<compile_context>
chip_gen: v6e
topology: v6e:2x2x1
jax: 0.10.0
libtpu: 0.0.40
codegen_flags: <defaults>
</compile_context>

<pallas_src>
import functools
import math

import jax
import jax.numpy as jnp
from jax.experimental import pallas as pl
from jax.experimental.pallas import tpu as pltpu


# Explicit scoped-VMEM limit: comfortably above the defaults (16/32 MiB on
# v5e/v6e/v7x) while leaving headroom below v7x's 64 MiB physical VMEM.
_VMEM_LIMIT = 48 * 1024 * 1024

_WEIGHT_KEYS = ("wq1", "wk1", "wv1", "wo1",
                "wq2", "wk2", "wv2", "wo2",
                "w1", "w2")


# ----------------------------------------------------------------------------
# Fused (pre-LN) multi-head attention sublayer:  out = x + MHA(LN(x), kv, mask)
# ----------------------------------------------------------------------------
def _attn_sublayer_kernel(*refs, num_heads, has_kv, ln_kv, eps):
    if has_kv:
        (x_ref, kv_ref, bias_ref, g_ref, b_ref,
         wq_ref, bq_ref, wk_ref, bk_ref, wv_ref, bv_ref,
         wo_ref, bo_ref, o_ref, head_scr) = refs
    else:
        (x_ref, bias_ref, g_ref, b_ref,
         wq_ref, bq_ref, wk_ref, bk_ref, wv_ref, bv_ref,
         wo_ref, bo_ref, o_ref, head_scr) = refs
        kv_ref = None

    x = x_ref[...].astype(jnp.float32)                    # (tq, D) residual input
    g = g_ref[...].astype(jnp.float32)
    b = b_ref[...].astype(jnp.float32)

    def layer_norm(t):
        mean = jnp.mean(t, axis=-1, keepdims=True)
        var = jnp.mean((t - mean) ** 2, axis=-1, keepdims=True)
        return (t - mean) * jax.lax.rsqrt(var + eps) * g + b

    # Pre-LayerNorm on the query stream (SkipConnection LNs before the sublayer).
    y = layer_norm(x)

    if kv_ref is None:
        kv = y                                            # self-attn, full-seq tile
    else:
        kv = kv_ref[...].astype(jnp.float32)              # (Skv, D)
        if ln_kv:
            kv = layer_norm(kv)                           # self-attn, query-tiled
        # else: cross-attn uses the raw encoder output as K/V (per the module)

    wdt = wq_ref.dtype                                    # bf16 in prod, f32 in test
    q = jnp.dot(y.astype(wdt), wq_ref[...],
                preferred_element_type=jnp.float32) + bq_ref[...]
    k = jnp.dot(kv.astype(wdt), wk_ref[...],
                preferred_element_type=jnp.float32) + bk_ref[...]
    v = jnp.dot(kv.astype(wdt), wv_ref[...],
                preferred_element_type=jnp.float32) + bv_ref[...]

    _, d = q.shape
    dk = d // num_heads
    scale = 1.0 / math.sqrt(dk)
    bias = bias_ref[...]                                  # additive mask bias (tq, Skv)

    for h in range(num_heads):                            # static, unrolled
        lo = h * dk
        s = jax.lax.dot_general(q[:, lo:lo + dk], k[:, lo:lo + dk],
                                (((1,), (1,)), ((), ())),
                                preferred_element_type=jnp.float32) * scale + bias
        m = jnp.max(s, axis=-1, keepdims=True)
        p = jnp.exp(s - m)
        p = p / jnp.sum(p, axis=-1, keepdims=True)
        # Park each head's output at its lane offset; apply Wo once afterwards.
        head_scr[:, lo:lo + dk] = jnp.dot(p, v[:, lo:lo + dk],
                                          preferred_element_type=jnp.float32)

    # One full-D-contraction output projection (concat(heads) @ Wo).
    attn = jnp.dot(head_scr[...].astype(wdt), wo_ref[...],
                   preferred_element_type=jnp.float32) + bo_ref[...]

    o_ref[...] = (x + attn).astype(o_ref.dtype)           # residual (dropout = id)


def attention_sublayer(x, kv, mask, gamma, beta,
                       wq, bq, wk, bk, wv, bv, wo, bo,
                       *, num_heads, self_attn, tq=None,
                       vmem_limit_bytes=_VMEM_LIMIT):
    B, Sq, D = x.shape
    assert D % num_heads == 0
    if tq is None:
        tq = Sq if Sq <= 256 else 128                     # query tile
    assert Sq % tq == 0, "sequence length must be divisible by the query tile"
    n_q = Sq // tq

    fused_self = self_attn and n_q == 1                   # K/V from the query tile itself
    has_kv = not fused_self
    ln_kv = self_attn and has_kv                          # query-tiled self-attn
    kv_src = x if self_attn else kv
    Skv = kv_src.shape[1]

    # Additive mask bias: 0 where attended, -1e9 where masked.
    bias = jnp.where(mask != 0, 0.0, -1e9).astype(jnp.float32)

    const2 = lambda bi, qi: (0, 0)
    in_specs = [pl.BlockSpec((None, tq, D), lambda bi, qi: (bi, qi, 0))]   # x
    args = [x]
    if has_kv:
        # qi-constant index -> block stays resident across query tiles.
        in_specs.append(pl.BlockSpec((None, Skv, D), lambda bi, qi: (bi, 0, 0)))
        args.append(kv_src)
    in_specs += [
        pl.BlockSpec((tq, Skv), lambda bi, qi: (qi, 0)),  # additive mask bias
        pl.BlockSpec((1, D), const2),                     # LN gamma
        pl.BlockSpec((1, D), const2),                     # LN beta
        pl.BlockSpec((D, D), const2),                     # Wq
        pl.BlockSpec((1, D), const2),                     # bq
        pl.BlockSpec((D, D), const2),                     # Wk
        pl.BlockSpec((1, D), const2),                     # bk
        pl.BlockSpec((D, D), const2),                     # Wv
        pl.BlockSpec((1, D), const2),                     # bv
        pl.BlockSpec((D, D), const2),                     # Wo
        pl.BlockSpec((1, D), const2),                     # bo
    ]
    args += [bias, gamma, beta, wq, bq, wk, bk, wv, bv, wo, bo]

    kernel = functools.partial(_attn_sublayer_kernel, num_heads=num_heads,
                               has_kv=has_kv, ln_kv=ln_kv, eps=1e-5)
    return pl.pallas_call(
        kernel,
        out_shape=jax.ShapeDtypeStruct((B, Sq, D), x.dtype),
        grid=(B, n_q),
        in_specs=in_specs,
        out_specs=pl.BlockSpec((None, tq, D), lambda bi, qi: (bi, qi, 0)),
        scratch_shapes=[pltpu.VMEM((tq, D), jnp.float32)],   # head-output staging
        compiler_params=pltpu.CompilerParams(
            dimension_semantics=("parallel", "parallel"),
            vmem_limit_bytes=vmem_limit_bytes),
    )(*args)


# ----------------------------------------------------------------------------
# Fused (pre-LN) feed-forward sublayer with d_ff-chunked reduction:
#   out = x + relu(LN(x) @ W1 + b1) @ W2 + b2
# ----------------------------------------------------------------------------
def _ffn_sublayer_kernel(x_ref, g_ref, b_ref, w1_ref, b1_ref, w2_ref, b2_ref,
                         o_ref, y_scr, acc_scr, *, eps):
    k = pl.program_id(1)

    @pl.when(k == 0)
    def _():
        x = x_ref[...].astype(jnp.float32)
        mean = jnp.mean(x, axis=-1, keepdims=True)
        var = jnp.mean((x - mean) ** 2, axis=-1, keepdims=True)
        y_scr[...] = ((x - mean) * jax.lax.rsqrt(var + eps)
                      * g_ref[...].astype(jnp.float32)
                      + b_ref[...].astype(jnp.float32))
        acc_scr[...] = jnp.zeros_like(acc_scr)

    wdt = w1_ref.dtype
    h = jnp.dot(y_scr[...].astype(wdt), w1_ref[...],
                preferred_element_type=jnp.float32) + b1_ref[...]
    h = jnp.maximum(h, 0.0)                               # ReLU (elementwise per chunk)
    acc_scr[...] += jnp.dot(h.astype(wdt), w2_ref[...],
                            preferred_element_type=jnp.float32)

    @pl.when(k == pl.num_programs(1) - 1)
    def _():
        o_ref[...] = (x_ref[...].astype(jnp.float32) + acc_scr[...]
                      + b2_ref[...]).astype(o_ref.dtype)  # residual (dropout = id)


def ffn_sublayer(x, gamma, beta, w1, b1, w2, b2, *, tm=None, tf=None,
                 vmem_limit_bytes=_VMEM_LIMIT):
    B, S, D = x.shape
    d_ff = w1.shape[1]
    N = B * S
    xf = x.reshape(N, D)
    if tm is None:
        tm = N if N <= 1024 else 512                      # big row tiles amortize overhead
    if tf is None:
        tf = d_ff if d_ff <= 2048 else 1024               # bound W1/W2 + hidden residency
    assert N % tm == 0, "token count must be divisible by the row tile"
    assert d_ff % tf == 0, "d_ff must be divisible by the d_ff tile"

    const = lambda i, k: (0, 0)
    out = pl.pallas_call(
        functools.partial(_ffn_sublayer_kernel, eps=1e-5),
        out_shape=jax.ShapeDtypeStruct((N, D), x.dtype),
        grid=(N // tm, d_ff // tf),
        in_specs=[
            pl.BlockSpec((tm, D), lambda i, k: (i, 0)),   # x rows (resident over k)
            pl.BlockSpec((1, D), const),                  # LN gamma
            pl.BlockSpec((1, D), const),                  # LN beta
            pl.BlockSpec((D, tf), lambda i, k: (0, k)),   # W1 chunk
            pl.BlockSpec((1, tf), lambda i, k: (0, k)),   # b1 chunk
            pl.BlockSpec((tf, D), lambda i, k: (k, 0)),   # W2 chunk
            pl.BlockSpec((1, D), const),                  # b2
        ],
        out_specs=pl.BlockSpec((tm, D), lambda i, k: (i, 0)),
        scratch_shapes=[pltpu.VMEM((tm, D), jnp.float32),   # LN(x) staging
                        pltpu.VMEM((tm, D), jnp.float32)],  # output accumulator
        compiler_params=pltpu.CompilerParams(
            dimension_semantics=("parallel", "arbitrary"),
            vmem_limit_bytes=vmem_limit_bytes),
    )(xf, gamma, beta, w1, b1, w2, b2)
    return out.reshape(B, S, D)


# ----------------------------------------------------------------------------
# DecoderBlock forward (Pallas)
# ----------------------------------------------------------------------------
def decoder_block(x, enc_output, src_mask, tgt_mask, p, *, num_heads,
                  weight_dtype=None):
    if weight_dtype is not None:
        # Ship the big matrices (Wq/Wk/Wv/Wo, W1/W2) in a narrower dtype
        # (bf16 in prod); biases / LN params stay f32.
        p = {k: (v.astype(weight_dtype) if k in _WEIGHT_KEYS else v)
             for k, v in p.items()}
    # SkipConnection[0]: self-attention with tgt_mask (no redundant kv DMA)
    x = attention_sublayer(x, None, tgt_mask, p["ln1_g"], p["ln1_b"],
                           p["wq1"], p["bq1"], p["wk1"], p["bk1"],
                           p["wv1"], p["bv1"], p["wo1"], p["bo1"],
                           num_heads=num_heads, self_attn=True)
    # SkipConnection[1]: cross-attention (K/V from raw encoder output) with src_mask
    x = attention_sublayer(x, enc_output, src_mask, p["ln2_g"], p["ln2_b"],
                           p["wq2"], p["bq2"], p["wk2"], p["bk2"],
                           p["wv2"], p["bv2"], p["wo2"], p["bo2"],
                           num_heads=num_heads, self_attn=False)
    # SkipConnection[2]: feed-forward
    x = ffn_sublayer(x, p["ln3_g"], p["ln3_b"],
                     p["w1"], p["b1f"], p["w2"], p["b2f"])
    return x


# ----------------------------------------------------------------------------
# Pure-JAX reference (mirrors the PyTorch module semantics, dropout = eval mode)
# ----------------------------------------------------------------------------
def _layer_norm_ref(x, g, b, eps=1e-5):
    mean = x.mean(-1, keepdims=True)
    var = ((x - mean) ** 2).mean(-1, keepdims=True)
    return (x - mean) / jnp.sqrt(var + eps) * g + b


def _mha_ref(q_in, kv_in, mask, wq, bq, wk, bk, wv, bv, wo, bo, num_heads):
    B, Sq, D = q_in.shape
    Skv = kv_in.shape[1]
    dk = D // num_heads
    q = (q_in @ wq + bq).reshape(B, Sq, num_heads, dk).transpose(0, 2, 1, 3)
    k = (kv_in @ wk + bk).reshape(B, Skv, num_heads, dk).transpose(0, 2, 1, 3)
    v = (kv_in @ wv + bv).reshape(B, Skv, num_heads, dk).transpose(0, 2, 1, 3)
    s = jnp.einsum("bhqd,bhkd->bhqk", q, k) / math.sqrt(dk)
    s = jnp.where(mask[None, None] != 0, s, -1e9)
    p = jax.nn.softmax(s, axis=-1)
    o = jnp.einsum("bhqk,bhkd->bhqd", p, v).transpose(0, 2, 1, 3).reshape(B, Sq, D)
    return o @ wo + bo


def decoder_block_ref(x, enc, src_mask, tgt_mask, p, *, num_heads):
    y1 = _layer_norm_ref(x, p["ln1_g"], p["ln1_b"])
    x = x + _mha_ref(y1, y1, tgt_mask, p["wq1"], p["bq1"], p["wk1"], p["bk1"],
                     p["wv1"], p["bv1"], p["wo1"], p["bo1"], num_heads)
    y2 = _layer_norm_ref(x, p["ln2_g"], p["ln2_b"])
    x = x + _mha_ref(y2, enc, src_mask, p["wq2"], p["bq2"], p["wk2"], p["bk2"],
                     p["wv2"], p["bv2"], p["wo2"], p["bo2"], num_heads)
    y3 = _layer_norm_ref(x, p["ln3_g"], p["ln3_b"])
    ff = jnp.maximum(y3 @ p["w1"] + p["b1f"], 0.0) @ p["w2"] + p["b2f"]
    return x + ff


# ----------------------------------------------------------------------------
if __name__ == "__main__":
    # Use full-precision matmuls so the XLA reference and the Pallas kernel
    # agree tightly (TPU's default matmul precision is bf16-ish).
    jax.config.update("jax_default_matmul_precision", "highest")

    # Small deterministic config: batch=2, seq=8, d_model=32, heads=4, d_ff=64
    B, S, D, H, D_FF = 2, 8, 32, 4, 64

    key = jax.random.PRNGKey(0)
    keys = jax.random.split(key, 32)
    ki = iter(range(32))

    def w(shape, scale=0.1):
        return (scale * jax.random.normal(keys[next(ki)], shape)).astype(jnp.float32)

    params = {
        # LayerNorms (gamma near 1, beta near 0)
        "ln1_g": (1.0 + w((1, D))), "ln1_b": w((1, D)),
        "ln2_g": (1.0 + w((1, D))), "ln2_b": w((1, D)),
        "ln3_g": (1.0 + w((1, D))), "ln3_b": w((1, D)),
        # self-attention
        "wq1": w((D, D)), "bq1": w((1, D)), "wk1": w((D, D)), "bk1": w((1, D)),
        "wv1": w((D, D)), "bv1": w((1, D)), "wo1": w((D, D)), "bo1": w((1, D)),
        # cross-attention
        "wq2": w((D, D)), "bq2": w((1, D)), "wk2": w((D, D)), "bk2": w((1, D)),
        "wv2": w((D, D)), "bv2": w((1, D)), "wo2": w((D, D)), "bo2": w((1, D)),
        # feed-forward
        "w1": w((D, D_FF)), "b1f": w((1, D_FF)),
        "w2": w((D_FF, D)), "b2f": w((1, D)),
    }

    x = jax.random.normal(keys[next(ki)], (B, S, D), dtype=jnp.float32)
    enc = jax.random.normal(keys[next(ki)], (B, S, D), dtype=jnp.float32)
    tgt_mask = jnp.tril(jnp.ones((S, S), jnp.float32))   # causal decoder mask
    src_mask = jnp.ones((S, S), jnp.float32)             # no source padding

    # --- f32 weights: tight check against the pure-JAX reference ------------
    out = decoder_block(x, enc, src_mask, tgt_mask, params, num_heads=H)
    out = jax.block_until_ready(out)
    ref = decoder_block_ref(x, enc, src_mask, tgt_mask, params, num_heads=H)
    assert out.shape == (B, S, D)
    assert jnp.allclose(out, ref, atol=1e-3, rtol=1e-3), \
        f"f32 max abs diff {jnp.max(jnp.abs(out - ref))}"

    # --- bf16 weights (production setting): compare against a reference that
    #     uses the same bf16-quantized weight matrices --------------------------
    out_bf16 = decoder_block(x, enc, src_mask, tgt_mask, params, num_heads=H,
                             weight_dtype=jnp.bfloat16)
    out_bf16 = jax.block_until_ready(out_bf16)
    params_deq = {k: (v.astype(jnp.bfloat16).astype(jnp.float32)
                      if k in _WEIGHT_KEYS else v) for k, v in params.items()}
    ref_bf16 = decoder_block_ref(x, enc, src_mask, tgt_mask, params_deq,
                                 num_heads=H)
    assert jnp.allclose(out_bf16, ref_bf16, atol=5e-2, rtol=5e-2), \
        f"bf16 max abs diff {jnp.max(jnp.abs(out_bf16 - ref_bf16))}"

    print("KERNEL_OK")
</pallas_src>

<mosaic_0001>
module attributes {stable_mosaic.version = 11 : i64} {
  func.func @_attn_sublayer_kernel(%arg0: i32, %arg1: i32, %arg2: memref<1x8x32xf32, #tpu.memory_space<vmem>>, %arg3: memref<8x8xf32, #tpu.memory_space<vmem>>, %arg4: memref<1x32xf32, #tpu.memory_space<vmem>>, %arg5: memref<1x32xf32, #tpu.memory_space<vmem>>, %arg6: memref<32x32xf32, #tpu.memory_space<vmem>>, %arg7: memref<1x32xf32, #tpu.memory_space<vmem>>, %arg8: memref<32x32xf32, #tpu.memory_space<vmem>>, %arg9: memref<1x32xf32, #tpu.memory_space<vmem>>, %arg10: memref<32x32xf32, #tpu.memory_space<vmem>>, %arg11: memref<1x32xf32, #tpu.memory_space<vmem>>, %arg12: memref<32x32xf32, #tpu.memory_space<vmem>>, %arg13: memref<1x32xf32, #tpu.memory_space<vmem>>, %arg14: memref<1x8x32xf32, #tpu.memory_space<vmem>>, %arg15: memref<8x32xf32, #tpu.memory_space<vmem>>) attributes {dimension_semantics = [#tpu.dimension_semantics<parallel>, #tpu.dimension_semantics<parallel>], iteration_bounds = array<i64: 2, 1>, scalar_prefetch = 0 : i64, scratch_operands = 1 : i64, tpu.core_type = #tpu.core_type<tc>, window_params = [{transform_indices = @transform_0, window_bounds = array<i64: 1, 8, 32>}, {transform_indices = @transform_1, window_bounds = array<i64: 8, 8>}, {pipeline_mode = #tpu.pipeline_mode<synchronous>, transform_indices = @transform_2, window_bounds = array<i64: 1, 32>}, {pipeline_mode = #tpu.pipeline_mode<synchronous>, transform_indices = @transform_3, window_bounds = array<i64: 1, 32>}, {pipeline_mode = #tpu.pipeline_mode<synchronous>, transform_indices = @transform_4, window_bounds = array<i64: 32, 32>}, {pipeline_mode = #tpu.pipeline_mode<synchronous>, transform_indices = @transform_5, window_bounds = array<i64: 1, 32>}, {pipeline_mode = #tpu.pipeline_mode<synchronous>, transform_indices = @transform_6, window_bounds = array<i64: 32, 32>}, {pipeline_mode = #tpu.pipeline_mode<synchronous>, transform_indices = @transform_7, window_bounds = array<i64: 1, 32>}, {pipeline_mode = #tpu.pipeline_mode<synchronous>, transform_indices = @transform_8, window_bounds = array<i64: 32, 32>}, {pipeline_mode = #tpu.pipeline_mode<synchronous>, transform_indices = @transform_9, window_bounds = array<i64: 1, 32>}, {pipeline_mode = #tpu.pipeline_mode<synchronous>, transform_indices = @transform_10, window_bounds = array<i64: 32, 32>}, {pipeline_mode = #tpu.pipeline_mode<synchronous>, transform_indices = @transform_11, window_bounds = array<i64: 1, 32>}, {transform_indices = @transform_12, window_bounds = array<i64: 1, 8, 32>}]} {
    %c0 = arith.constant 0 : index
    %c0_0 = arith.constant 0 : index
    %c0_1 = arith.constant 0 : index
    %0 = vector.load %arg2[%c0, %c0_0, %c0_1] : memref<1x8x32xf32, #tpu.memory_space<vmem>>, vector<1x8x32xf32>
    %1 = vector.shape_cast %0 : vector<1x8x32xf32> to vector<8x32xf32>
    %c0_2 = arith.constant 0 : index
    %c0_3 = arith.constant 0 : index
    %2 = vector.load %arg4[%c0_2, %c0_3] : memref<1x32xf32, #tpu.memory_space<vmem>>, vector<1x32xf32>
    %c0_4 = arith.constant 0 : index
    %c0_5 = arith.constant 0 : index
    %3 = vector.load %arg5[%c0_4, %c0_5] : memref<1x32xf32, #tpu.memory_space<vmem>>, vector<1x32xf32>
    %cst = arith.constant dense<0.000000e+00> : vector<8xf32>
    %4 = vector.multi_reduction <add>, %1, %cst [1] : vector<8x32xf32> to vector<8xf32>
    %5 = vector.shape_cast %4 : vector<8xf32> to vector<8x1xf32>
    %cst_6 = arith.constant 3.200000e+01 : f32
    %6 = vector.broadcast %cst_6 : f32 to vector<8x1xf32>
    %7 = arith.divf %5, %6 : vector<8x1xf32>
    %8 = vector.broadcast %7 : vector<8x1xf32> to vector<8x32xf32>
    %9 = arith.subf %1, %8 : vector<8x32xf32>
    %10 = arith.mulf %9, %9 : vector<8x32xf32>
    %cst_7 = arith.constant dense<0.000000e+00> : vector<8xf32>
    %11 = vector.multi_reduction <add>, %10, %cst_7 [1] : vector<8x32xf32> to vector<8xf32>
    %12 = vector.shape_cast %11 : vector<8xf32> to vector<8x1xf32>
    %cst_8 = arith.constant 3.200000e+01 : f32
    %13 = vector.broadcast %cst_8 : f32 to vector<8x1xf32>
    %14 = arith.divf %12, %13 : vector<8x1xf32>
    %15 = vector.broadcast %7 : vector<8x1xf32> to vector<8x32xf32>
    %16 = arith.subf %1, %15 : vector<8x32xf32>
    %cst_9 = arith.constant 9.99999974E-6 : f32
    %17 = vector.broadcast %cst_9 : f32 to vector<8x1xf32>
    %18 = arith.addf %14, %17 : vector<8x1xf32>
    %19 = math.rsqrt %18 : vector<8x1xf32>
    %20 = vector.broadcast %19 : vector<8x1xf32> to vector<8x32xf32>
    %21 = arith.mulf %16, %20 : vector<8x32xf32>
    %22 = vector.broadcast %2 : vector<1x32xf32> to vector<8x32xf32>
    %23 = arith.mulf %21, %22 : vector<8x32xf32>
    %24 = vector.broadcast %3 : vector<1x32xf32> to vector<8x32xf32>
    %25 = arith.addf %23, %24 : vector<8x32xf32>
    %c0_10 = arith.constant 0 : index
    %c0_11 = arith.constant 0 : index
    %26 = vector.load %arg6[%c0_10, %c0_11] : memref<32x32xf32, #tpu.memory_space<vmem>>, vector<32x32xf32>
    %cst_12 = arith.constant dense<0.000000e+00> : vector<8x32xf32>
    %27 = tpu.matmul %25, %26, %cst_12 {dimension_numbers = #tpu.dot_dimension_numbers<[1], [0], [0], [1], [0, 0, 1, 1], [], []>, precision = #tpu.contract_precision<fp32>} : vector<8x32xf32>, vector<32x32xf32>, vector<8x32xf32> -> vector<8x32xf32>
    %c0_13 = arith.constant 0 : index
    %c0_14 = arith.constant 0 : index
    %28 = vector.load %arg7[%c0_13, %c0_14] : memref<1x32xf32, #tpu.memory_space<vmem>>, vector<1x32xf32>
    %29 = vector.broadcast %28 : vector<1x32xf32> to vector<8x32xf32>
    %30 = arith.addf %27, %29 : vector<8x32xf32>
    %c0_15 = arith.constant 0 : index
    %c0_16 = arith.constant 0 : index
    %31 = vector.load %arg8[%c0_15, %c0_16] : memref<32x32xf32, #tpu.memory_space<vmem>>, vector<32x32xf32>
    %cst_17 = arith.constant dense<0.000000e+00> : vector<8x32xf32>
    %32 = tpu.matmul %25, %31, %cst_17 {dimension_numbers = #tpu.dot_dimension_numbers<[1], [0], [0], [1], [0, 0, 1, 1], [], []>, precision = #tpu.contract_precision<fp32>} : vector<8x32xf32>, vector<32x32xf32>, vector<8x32xf32> -> vector<8x32xf32>
    %c0_18 = arith.constant 0 : index
    %c0_19 = arith.constant 0 : index
    %33 = vector.load %arg9[%c0_18, %c0_19] : memref<1x32xf32, #tpu.memory_space<vmem>>, vector<1x32xf32>
    %34 = vector.broadcast %33 : vector<1x32xf32> to vector<8x32xf32>
    %35 = arith.addf %32, %34 : vector<8x32xf32>
    %c0_20 = arith.constant 0 : index
    %c0_21 = arith.constant 0 : index
    %36 = vector.load %arg10[%c0_20, %c0_21] : memref<32x32xf32, #tpu.memory_space<vmem>>, vector<32x32xf32>
    %cst_22 = arith.constant dense<0.000000e+00> : vector<8x32xf32>
    %37 = tpu.matmul %25, %36, %cst_22 {dimension_numbers = #tpu.dot_dimension_numbers<[1], [0], [0], [1], [0, 0, 1, 1], [], []>, precision = #tpu.contract_precision<fp32>} : vector<8x32xf32>, vector<32x32xf32>, vector<8x32xf32> -> vector<8x32xf32>
    %c0_23 = arith.constant 0 : index
    %c0_24 = arith.constant 0 : index
    %38 = vector.load %arg11[%c0_23, %c0_24] : memref<1x32xf32, #tpu.memory_space<vmem>>, vector<1x32xf32>
    %39 = vector.broadcast %38 : vector<1x32xf32> to vector<8x32xf32>
    %40 = arith.addf %37, %39 : vector<8x32xf32>
    %c0_25 = arith.constant 0 : index
    %c0_26 = arith.constant 0 : index
    %41 = vector.load %arg3[%c0_25, %c0_26] : memref<8x8xf32, #tpu.memory_space<vmem>>, vector<8x8xf32>
    %42 = vector.extract_strided_slice %30 {offsets = [0, 0], sizes = [8, 8], strides = [1, 1]} : vector<8x32xf32> to vector<8x8xf32>
    %43 = vector.extract_strided_slice %35 {offsets = [0, 0], sizes = [8, 8], strides = [1, 1]} : vector<8x32xf32> to vector<8x8xf32>
    %cst_27 = arith.constant dense<0.000000e+00> : vector<8x8xf32>
    %44 = tpu.matmul %42, %43, %cst_27 {dimension_numbers = #tpu.dot_dimension_numbers<[1], [1], [0], [0], [0, 0, 1, 0], [], []>, precision = #tpu.contract_precision<fp32>} : vector<8x8xf32>, vector<8x8xf32>, vector<8x8xf32> -> vector<8x8xf32>
    %cst_28 = arith.constant 0.353553385 : f32
    %45 = vector.broadcast %cst_28 : f32 to vector<8x8xf32>
    %46 = arith.mulf %44, %45 : vector<8x8xf32>
    %47 = arith.addf %46, %41 : vector<8x8xf32>
    %cst_29 = arith.constant dense<0xFF800000> : vector<8xf32>
    %48 = vector.multi_reduction <maximumf>, %47, %cst_29 [1] : vector<8x8xf32> to vector<8xf32>
    %49 = vector.shape_cast %48 : vector<8xf32> to vector<8x1xf32>
    %50 = vector.broadcast %49 : vector<8x1xf32> to vector<8x8xf32>
    %51 = arith.subf %47, %50 : vector<8x8xf32>
    %52 = math.exp %51 : vector<8x8xf32>
    %cst_30 = arith.constant dense<0.000000e+00> : vector<8xf32>
    %53 = vector.multi_reduction <add>, %52, %cst_30 [1] : vector<8x8xf32> to vector<8xf32>
    %54 = vector.shape_cast %53 : vector<8xf32> to vector<8x1xf32>
    %55 = vector.broadcast %54 : vector<8x1xf32> to vector<8x8xf32>
    %56 = arith.divf %52, %55 : vector<8x8xf32>
    %57 = vector.extract_strided_slice %40 {offsets = [0, 0], sizes = [8, 8], strides = [1, 1]} : vector<8x32xf32> to vector<8x8xf32>
    %cst_31 = arith.constant dense<0.000000e+00> : vector<8x8xf32>
    %58 = tpu.matmul %56, %57, %cst_31 {dimension_numbers = #tpu.dot_dimension_numbers<[1], [0], [0], [1], [0, 0, 1, 1], [], []>, precision = #tpu.contract_precision<fp32>} : vector<8x8xf32>, vector<8x8xf32>, vector<8x8xf32> -> vector<8x8xf32>
    %c0_32 = arith.constant 0 : index
    %c0_33 = arith.constant 0 : index
    %59 = vector.load %arg15[%c0_32, %c0_33] : memref<8x32xf32, #tpu.memory_space<vmem>>, vector<8x8xf32>
    tpu.vector_store %arg15[%c0_32, %c0_33], %58 {strides = array<i32>} : memref<8x32xf32, #tpu.memory_space<vmem>>, vector<8x8xf32>,
    %60 = vector.extract_strided_slice %30 {offsets = [0, 8], sizes = [8, 8], strides = [1, 1]} : vector<8x32xf32> to vector<8x8xf32>
    %61 = vector.extract_strided_slice %35 {offsets = [0, 8], sizes = [8, 8], strides = [1, 1]} : vector<8x32xf32> to vector<8x8xf32>
    %cst_34 = arith.constant dense<0.000000e+00> : vector<8x8xf32>
    %62 = tpu.matmul %60, %61, %cst_34 {dimension_numbers = #tpu.dot_dimension_numbers<[1], [1], [0], [0], [0, 0, 1, 0], [], []>, precision = #tpu.contract_precision<fp32>} : vector<8x8xf32>, vector<8x8xf32>, vector<8x8xf32> -> vector<8x8xf32>
    %cst_35 = arith.constant 0.353553385 : f32
    %63 = vector.broadcast %cst_35 : f32 to vector<8x8xf32>
    %64 = arith.mulf %62, %63 : vector<8x8xf32>
    %65 = arith.addf %64, %41 : vector<8x8xf32>
    %cst_36 = arith.constant dense<0xFF800000> : vector<8xf32>
    %66 = vector.multi_reduction <maximumf>, %65, %cst_36 [1] : vector<8x8xf32> to vector<8xf32>
    %67 = vector.shape_cast %66 : vector<8xf32> to vector<8x1xf32>
    %68 = vector.broadcast %67 : vector<8x1xf32> to vector<8x8xf32>
    %69 = arith.subf %65, %68 : vector<8x8xf32>
    %70 = math.exp %69 : vector<8x8xf32>
    %cst_37 = arith.constant dense<0.000000e+00> : vector<8xf32>
    %71 = vector.multi_reduction <add>, %70, %cst_37 [1] : vector<8x8xf32> to vector<8xf32>
    %72 = vector.shape_cast %71 : vector<8xf32> to vector<8x1xf32>
    %73 = vector.broadcast %72 : vector<8x1xf32> to vector<8x8xf32>
    %74 = arith.divf %70, %73 : vector<8x8xf32>
    %75 = vector.extract_strided_slice %40 {offsets = [0, 8], sizes = [8, 8], strides = [1, 1]} : vector<8x32xf32> to vector<8x8xf32>
    %cst_38 = arith.constant dense<0.000000e+00> : vector<8x8xf32>
    %76 = tpu.matmul %74, %75, %cst_38 {dimension_numbers = #tpu.dot_dimension_numbers<[1], [0], [0], [1], [0, 0, 1, 1], [], []>, precision = #tpu.contract_precision<fp32>} : vector<8x8xf32>, vector<8x8xf32>, vector<8x8xf32> -> vector<8x8xf32>
    %c0_39 = arith.constant 0 : index
    %c8 = arith.constant 8 : index
    %77 = vector.load %arg15[%c0_39, %c8] : memref<8x32xf32, #tpu.memory_space<vmem>>, vector<8x8xf32>
    tpu.vector_store %arg15[%c0_39, %c8], %76 {strides = array<i32>} : memref<8x32xf32, #tpu.memory_space<vmem>>, vector<8x8xf32>,
    %78 = vector.extract_strided_slice %30 {offsets = [0, 16], sizes = [8, 8], strides = [1, 1]} : vector<8x32xf32> to vector<8x8xf32>
    %79 = vector.extract_strided_slice %35 {offsets = [0, 16], sizes = [8, 8], strides = [1, 1]} : vector<8x32xf32> to vector<8x8xf32>
    %cst_40 = arith.constant dense<0.000000e+00> : vector<8x8xf32>
    %80 = tpu.matmul %78, %79, %cst_40 {dimension_numbers = #tpu.dot_dimension_numbers<[1], [1], [0], [0], [0, 0, 1, 0], [], []>, precision = #tpu.contract_precision<fp32>} : vector<8x8xf32>, vector<8x8xf32>, vector<8x8xf32> -> vector<8x8xf32>
    %cst_41 = arith.constant 0.353553385 : f32
    %81 = vector.broadcast %cst_41 : f32 to vector<8x8xf32>
    %82 = arith.mulf %80, %81 : vector<8x8xf32>
    %83 = arith.addf %82, %41 : vector<8x8xf32>
    %cst_42 = arith.constant dense<0xFF800000> : vector<8xf32>
    %84 = vector.multi_reduction <maximumf>, %83, %cst_42 [1] : vector<8x8xf32> to vector<8xf32>
    %85 = vector.shape_cast %84 : vector<8xf32> to vector<8x1xf32>
    %86 = vector.broadcast %85 : vector<8x1xf32> to vector<8x8xf32>
    %87 = arith.subf %83, %86 : vector<8x8xf32>
    %88 = math.exp %87 : vector<8x8xf32>
    %cst_43 = arith.constant dense<0.000000e+00> : vector<8xf32>
    %89 = vector.multi_reduction <add>, %88, %cst_43 [1] : vector<8x8xf32> to vector<8xf32>
    %90 = vector.shape_cast %89 : vector<8xf32> to vector<8x1xf32>
    %91 = vector.broadcast %90 : vector<8x1xf32> to vector<8x8xf32>
    %92 = arith.divf %88, %91 : vector<8x8xf32>
    %93 = vector.extract_strided_slice %40 {offsets = [0, 16], sizes = [8, 8], strides = [1, 1]} : vector<8x32xf32> to vector<8x8xf32>
    %cst_44 = arith.constant dense<0.000000e+00> : vector<8x8xf32>
    %94 = tpu.matmul %92, %93, %cst_44 {dimension_numbers = #tpu.dot_dimension_numbers<[1], [0], [0], [1], [0, 0, 1, 1], [], []>, precision = #tpu.contract_precision<fp32>} : vector<8x8xf32>, vector<8x8xf32>, vector<8x8xf32> -> vector<8x8xf32>
    %c0_45 = arith.constant 0 : index
    %c16 = arith.constant 16 : index
    %95 = vector.load %arg15[%c0_45, %c16] : memref<8x32xf32, #tpu.memory_space<vmem>>, vector<8x8xf32>
    tpu.vector_store %arg15[%c0_45, %c16], %94 {strides = array<i32>} : memref<8x32xf32, #tpu.memory_space<vmem>>, vector<8x8xf32>,
    %96 = vector.extract_strided_slice %30 {offsets = [0, 24], sizes = [8, 8], strides = [1, 1]} : vector<8x32xf32> to vector<8x8xf32>
    %97 = vector.extract_strided_slice %35 {offsets = [0, 24], sizes = [8, 8], strides = [1, 1]} : vector<8x32xf32> to vector<8x8xf32>
    %cst_46 = arith.constant dense<0.000000e+00> : vector<8x8xf32>
    %98 = tpu.matmul %96, %97, %cst_46 {dimension_numbers = #tpu.dot_dimension_numbers<[1], [1], [0], [0], [0, 0, 1, 0], [], []>, precision = #tpu.contract_precision<fp32>} : vector<8x8xf32>, vector<8x8xf32>, vector<8x8xf32> -> vector<8x8xf32>
    %cst_47 = arith.constant 0.353553385 : f32
    %99 = vector.broadcast %cst_47 : f32 to vector<8x8xf32>
    %100 = arith.mulf %98, %99 : vector<8x8xf32>
    %101 = arith.addf %100, %41 : vector<8x8xf32>
    %cst_48 = arith.constant dense<0xFF800000> : vector<8xf32>
    %102 = vector.multi_reduction <maximumf>, %101, %cst_48 [1] : vector<8x8xf32> to vector<8xf32>
    %103 = vector.shape_cast %102 : vector<8xf32> to vector<8x1xf32>
    %104 = vector.broadcast %103 : vector<8x1xf32> to vector<8x8xf32>
    %105 = arith.subf %101, %104 : vector<8x8xf32>
    %106 = math.exp %105 : vector<8x8xf32>
    %cst_49 = arith.constant dense<0.000000e+00> : vector<8xf32>
    %107 = vector.multi_reduction <add>, %106, %cst_49 [1] : vector<8x8xf32> to vector<8xf32>
    %108 = vector.shape_cast %107 : vector<8xf32> to vector<8x1xf32>
    %109 = vector.broadcast %108 : vector<8x1xf32> to vector<8x8xf32>
    %110 = arith.divf %106, %109 : vector<8x8xf32>
    %111 = vector.extract_strided_slice %40 {offsets = [0, 24], sizes = [8, 8], strides = [1, 1]} : vector<8x32xf32> to vector<8x8xf32>
    %cst_50 = arith.constant dense<0.000000e+00> : vector<8x8xf32>
    %112 = tpu.matmul %110, %111, %cst_50 {dimension_numbers = #tpu.dot_dimension_numbers<[1], [0], [0], [1], [0, 0, 1, 1], [], []>, precision = #tpu.contract_precision<fp32>} : vector<8x8xf32>, vector<8x8xf32>, vector<8x8xf32> -> vector<8x8xf32>
    %c0_51 = arith.constant 0 : index
    %c24 = arith.constant 24 : index
    %113 = vector.load %arg15[%c0_51, %c24] : memref<8x32xf32, #tpu.memory_space<vmem>>, vector<8x8xf32>
    tpu.vector_store %arg15[%c0_51, %c24], %112 {strides = array<i32>} : memref<8x32xf32, #tpu.memory_space<vmem>>, vector<8x8xf32>,
    %c0_52 = arith.constant 0 : index
    %c0_53 = arith.constant 0 : index
    %114 = vector.load %arg15[%c0_52, %c0_53] : memref<8x32xf32, #tpu.memory_space<vmem>>, vector<8x32xf32>
    %c0_54 = arith.constant 0 : index
    %c0_55 = arith.constant 0 : index
    %115 = vector.load %arg12[%c0_54, %c0_55] : memref<32x32xf32, #tpu.memory_space<vmem>>, vector<32x32xf32>
    %cst_56 = arith.constant dense<0.000000e+00> : vector<8x32xf32>
    %116 = tpu.matmul %114, %115, %cst_56 {dimension_numbers = #tpu.dot_dimension_numbers<[1], [0], [0], [1], [0, 0, 1, 1], [], []>, precision = #tpu.contract_precision<fp32>} : vector<8x32xf32>, vector<32x32xf32>, vector<8x32xf32> -> vector<8x32xf32>
    %c0_57 = arith.constant 0 : index
    %c0_58 = arith.constant 0 : index
    %117 = vector.load %arg13[%c0_57, %c0_58] : memref<1x32xf32, #tpu.memory_space<vmem>>, vector<1x32xf32>
    %118 = vector.broadcast %117 : vector<1x32xf32> to vector<8x32xf32>
    %119 = arith.addf %116, %118 : vector<8x32xf32>
    %120 = arith.addf %1, %119 : vector<8x32xf32>
    %c0_59 = arith.constant 0 : index
    %c0_60 = arith.constant 0 : index
    %c0_61 = arith.constant 0 : index
    %121 = vector.load %arg14[%c0_59, %c0_60, %c0_61] : memref<1x8x32xf32, #tpu.memory_space<vmem>>, vector<1x8x32xf32>
    %122 = vector.shape_cast %121 : vector<1x8x32xf32> to vector<8x32xf32>
    %123 = vector.shape_cast %120 : vector<8x32xf32> to vector<1x8x32xf32>
    tpu.vector_store %arg14[%c0_59, %c0_60, %c0_61], %123 {strides = array<i32>} : memref<1x8x32xf32, #tpu.memory_space<vmem>>, vector<1x8x32xf32>,
    return
  }
  func.func @transform_0(%arg0: i32, %arg1: i32) -> (i32, i32, i32) {
    %c0_i32 = arith.constant 0 : i32
    %c0_i32_0 = arith.constant 0 : i32
    return %arg0, %arg1, %c0_i32 : i32, i32, i32
  }
  func.func @transform_1(%arg0: i32, %arg1: i32) -> (i32, i32) {
    %c0_i32 = arith.constant 0 : i32
    %c0_i32_0 = arith.constant 0 : i32
    return %arg1, %c0_i32 : i32, i32
  }
  func.func @transform_2(%arg0: i32, %arg1: i32) -> (i32, i32) {
    %c0_i32 = arith.constant 0 : i32
    %c0_i32_0 = arith.constant 0 : i32
    %c0_i32_1 = arith.constant 0 : i32
    return %c0_i32, %c0_i32_0 : i32, i32
  }
  func.func @transform_3(%arg0: i32, %arg1: i32) -> (i32, i32) {
    %c0_i32 = arith.constant 0 : i32
    %c0_i32_0 = arith.constant 0 : i32
    %c0_i32_1 = arith.constant 0 : i32
    return %c0_i32, %c0_i32_0 : i32, i32
  }
  func.func @transform_4(%arg0: i32, %arg1: i32) -> (i32, i32) {
    %c0_i32 = arith.constant 0 : i32
    %c0_i32_0 = arith.constant 0 : i32
    %c0_i32_1 = arith.constant 0 : i32
    return %c0_i32, %c0_i32_0 : i32, i32
  }
  func.func @transform_5(%arg0: i32, %arg1: i32) -> (i32, i32) {
    %c0_i32 = arith.constant 0 : i32
    %c0_i32_0 = arith.constant 0 : i32
    %c0_i32_1 = arith.constant 0 : i32
    return %c0_i32, %c0_i32_0 : i32, i32
  }
  func.func @transform_6(%arg0: i32, %arg1: i32) -> (i32, i32) {
    %c0_i32 = arith.constant 0 : i32
    %c0_i32_0 = arith.constant 0 : i32
    %c0_i32_1 = arith.constant 0 : i32
    return %c0_i32, %c0_i32_0 : i32, i32
  }
  func.func @transform_7(%arg0: i32, %arg1: i32) -> (i32, i32) {
    %c0_i32 = arith.constant 0 : i32
    %c0_i32_0 = arith.constant 0 : i32
    %c0_i32_1 = arith.constant 0 : i32
    return %c0_i32, %c0_i32_0 : i32, i32
  }
  func.func @transform_8(%arg0: i32, %arg1: i32) -> (i32, i32) {
    %c0_i32 = arith.constant 0 : i32
    %c0_i32_0 = arith.constant 0 : i32
    %c0_i32_1 = arith.constant 0 : i32
    return %c0_i32, %c0_i32_0 : i32, i32
  }
  func.func @transform_9(%arg0: i32, %arg1: i32) -> (i32, i32) {
    %c0_i32 = arith.constant 0 : i32
    %c0_i32_0 = arith.constant 0 : i32
    %c0_i32_1 = arith.constant 0 : i32
    return %c0_i32, %c0_i32_0 : i32, i32
  }
  func.func @transform_10(%arg0: i32, %arg1: i32) -> (i32, i32) {
    %c0_i32 = arith.constant 0 : i32
    %c0_i32_0 = arith.constant 0 : i32
    %c0_i32_1 = arith.constant 0 : i32
    return %c0_i32, %c0_i32_0 : i32, i32
  }
  func.func @transform_11(%arg0: i32, %arg1: i32) -> (i32, i32) {
    %c0_i32 = arith.constant 0 : i32
    %c0_i32_0 = arith.constant 0 : i32
    %c0_i32_1 = arith.constant 0 : i32
    return %c0_i32, %c0_i32_0 : i32, i32
  }
  func.func @transform_12(%arg0: i32, %arg1: i32) -> (i32, i32, i32) {
    %c0_i32 = arith.constant 0 : i32
    %c0_i32_0 = arith.constant 0 : i32
    return %arg0, %arg1, %c0_i32 : i32, i32, i32
  }
}

</mosaic_0001>

<llo_original>
// kernel: tpu_custom_call.1
$region0: #{tpu_custom_call.1}
  #allocation0 [shape = 'u32[]', space=smem, size = 0x4, offset = 0x4, fixed_abs, tag = 'smem constant byte address 0x4 - core index']
  #allocation1 [shape = 'u32[144,128]{1,0:T(1,128)}', space=vmem, size = 0x12000, scoped, tag = 'internal scratch']
  #allocation2 [shape = 'f32[8,32]{1,0:T(8,128)}', space=vmem, size = 0x1000, scoped, tag = 'scratch operand']
  %s0 = inlined_call_operand.hbm [shape: f32[2,8,32], index: 0, kind: input, shape index: {}]
  %s1 = inlined_call_operand.hbm [shape: f32[8,8], index: 1, kind: input, shape index: {}]
  %s2 = inlined_call_operand.vmem [shape: f32[1,32], index: 2, kind: input, shape index: {}]
  %s3 = inlined_call_operand.vmem [shape: f32[1,32], index: 3, kind: input, shape index: {}]
  %s4 = inlined_call_operand.hbm [shape: f32[32,32], index: 4, kind: input, shape index: {}]
  %s5 = inlined_call_operand.vmem [shape: f32[1,32], index: 5, kind: input, shape index: {}]
  %s6 = inlined_call_operand.hbm [shape: f32[32,32], index: 6, kind: input, shape index: {}]
  %s7 = inlined_call_operand.vmem [shape: f32[1,32], index: 7, kind: input, shape index: {}]
  %s8 = inlined_call_operand.hbm [shape: f32[32,32], index: 8, kind: input, shape index: {}]
  %s9 = inlined_call_operand.vmem [shape: f32[1,32], index: 9, kind: input, shape index: {}]
  %s10 = inlined_call_operand.hbm [shape: f32[32,32], index: 10, kind: input, shape index: {}]
  %s11 = inlined_call_operand.vmem [shape: f32[1,32], index: 11, kind: input, shape index: {}]
  %s12 = inlined_call_operand.hbm [shape: f32[2,8,32], index: 12, kind: output, shape index: {}]
  %s13 = sld [smem:[#allocation0]]
  $region105: #{tpu_custom_call.1} parent=0
    _
  %s15 = ssub.s32 1, %s13
  %s16 = scalar_select 0, %s15, %s13
  $region1: #{tpu_custom_call.1} parent=0
    #allocation3 [shape = 'u8[8192]{0}', space=vmem, size = 0x2000, scoped, tag = 'input window, operand 0']
    #allocation4 [shape = 's32[2]{0}', space=sflag, size = 0x8, scoped, tag = 'scoped memory for tpu_custom_call.1']
    #allocation5 [shape = 's32[2]{0}', space=sflag, size = 0x8, scoped, tag = 'scoped memory for tpu_custom_call.1']
    #allocation6 [shape = 'u8[4096]{0}', space=vmem, size = 0x1000, scoped, tag = 'input window, operand 1, single buffered']
    #allocation7 [shape = 's32[1]{0}', space=sflag, size = 0x4, scoped, tag = 'scoped memory for tpu_custom_call.1']
    #allocation8 [shape = 'u8[16384]{0}', space=vmem, size = 0x4000, scoped, tag = 'input window, operand 4, single buffered']
    #allocation9 [shape = 'u8[16384]{0}', space=vmem, size = 0x4000, scoped, tag = 'input window, operand 6, single buffered']
    #allocation10 [shape = 's32[1]{0}', space=sflag, size = 0x4, scoped, tag = 'scoped memory for tpu_custom_call.1']
    #allocation11 [shape = 'u8[16384]{0}', space=vmem, size = 0x4000, scoped, tag = 'input window, operand 8, single buffered']
    #allocation12 [shape = 'u8[16384]{0}', space=vmem, size = 0x4000, scoped, tag = 'input window, operand 10, single buffered']
    #allocation13 [shape = 's32[1]{0}', space=sflag, size = 0x4, scoped, tag = 'scoped memory for tpu_custom_call.1']
    #allocation14 [shape = 'u8[8192]{0}', space=vmem, size = 0x2000, scoped, tag = 'output window, operand 0']
    %17 = vsyncpa [#allocation4], 0
    %s18 = scalar_lea.sflag [#allocation4], 1
    %19 = vsyncpa %s18, 0
    %20 = vsyncpa [#allocation7], 0
    %21 = vsyncpa [#allocation10], 0
    %22 = vsyncpa [#allocation13], 0
    %23 = vsyncpa [#allocation5], 0
    %s24 = scalar_lea.sflag [#allocation5], 1
    %25 = vsyncpa %s24, 0
    loop: start=0, step=1, limit=4
    $region2: #{tpu_custom_call.1} parent=1 // loop_pre_header
      _
    $region3: #{tpu_custom_call.1} parent=1 // loop_header
      %s27 = sphi 0, %s31
      %p28 = scmp.ge.s32.totalorder %s27, 4
      %s34 = sphi 0, %s46
      %s35 = sphi 0, %s42
      %s36 = sphi 0, %s34
      %s37 = sphi 0, %s35
      %s38 = sphi 0, %s36
      %s39 = sphi 0, %s37
      %s51 = sphi 0, %s53
      %s54 = sphi 0, %s51
      %s55 = sphi 0, %s54
      %s71 = sphi 0, %s55
      %s77 = sphi 0, %s79
      %s80 = sphi 0, %s77
      %s81 = sphi 0, %s80
      %s97 = sphi 0, %s81
      %s101 = sphi 0, %s101
      %s103 = sphi 0, %s101
      %s104 = sphi 0, %s103
      %s118 = sphi 0, %s104
      %s122 = sphi 0, %s122
      %s124 = sphi 0, %s122
      %s125 = sphi 0, %s124
      %s139 = sphi 0, %s125
      %s143 = sphi 0, %s143
      %s145 = sphi 0, %s143
      %s146 = sphi 0, %s145
      %s160 = sphi 0, %s146
      %s164 = sphi 0, %s164
      %s166 = sphi 0, %s164
      %s167 = sphi 0, %s166
      %s181 = sphi 0, %s167
      %s185 = sphi 0, %s185
      %s187 = sphi 0, %s185
      %s188 = sphi 0, %s187
      %s202 = sphi 0, %s188
      %s206 = sphi 0, %s206
      %s208 = sphi 0, %s206
      %s209 = sphi 0, %s208
      %s223 = sphi 0, %s209
      %s227 = sphi 0, %s227
      %s229 = sphi 0, %s227
      %s230 = sphi 0, %s229
      %s244 = sphi 0, %s230
      %s248 = sphi 0, %s248
      %s250 = sphi 0, %s248
      %s251 = sphi 0, %s250
      %s265 = sphi 0, %s251
      %s269 = sphi 0, %s269
      %s271 = sphi 0, %s269
      %s272 = sphi 0, %s271
      %s286 = sphi 0, %s272
      %s290 = sphi 0, %s290
      %s292 = sphi 0, %s290
      %s293 = sphi 0, %s292
      %s307 = sphi 0, %s293
      %s315 = sphi 0, %s317
      %s318 = sphi 0, %s315
      %s319 = sphi 0, %s318
      %s335 = sphi 0, %s319
    $region4: #{tpu_custom_call.1} parent=1 // loop_header_branch
      %30 = sbr.rel (%p28) target = $region8
    $region5: #{tpu_custom_call.1} parent=1 // loop_body
      %s32 = ssub.s32 %s27, 1
      %s33 = ssub.s32 %s27, 2
      %s40 = sadd.s32 1, %s35
      %p41 = scmp.ge.s32.totalorder %s40, 1
      %s42 = scalar_select %p41, 0, %s40
      %s43 = sadd.s32 1, %s34
      %s44 = scalar_select %p41, %s43, %s34
      %p45 = scmp.ge.s32.totalorder %s44, 2
      %s46 = scalar_select %p45, 0, %s44
      %s47 = ssub.s32 %s34, %s46
      %s48 = ssub.s32 %s35, %s42
      %s49 = sor.u32 %s47, %s48
      %p50 = scmp.eq.s32.totalorder %s49, 0
      %s52 = sadd.s32 %s51, 1
      %s53 = scalar_select %p50, %s51, %s52
      %p56 = pneg %p50
      %p57 = scmp.eq.s32.totalorder %s27, 1
      %p58 = por %p56, %p57
      %p59 = scmp.ne.s32.totalorder %s51, %s54
      %p60 = scmp.eq.s32.totalorder %s27, 0
      %p61 = por %p59, %p60
      %p62 = scmp.ne.s32.totalorder %s51, %s54
      %p63 = scmp.eq.s32.totalorder %s32, 1
      %p64 = por %p62, %p63
      %p65 = scmp.ne.s32.totalorder %s54, %s55
      %p66 = scmp.eq.s32.totalorder %s32, 0
      %p67 = por %p65, %p66
      %p68 = scmp.ne.s32.totalorder %s54, %s55
      %p69 = scmp.eq.s32.totalorder %s33, 1
      %p70 = por %p68, %p69
      %p72 = scmp.ne.s32.totalorder %s55, %s71
      %p73 = scmp.eq.s32.totalorder %s33, 0
      %p74 = por %p72, %p73
      %s75 = ssub.s32 %s35, %s42
      %p76 = scmp.eq.s32.totalorder %s75, 0
      %s78 = sadd.s32 %s77, 1
      %s79 = scalar_select %p76, %s77, %s78
      %p82 = pneg %p76
      %p83 = scmp.eq.s32.totalorder %s27, 1
      %p84 = por %p82, %p83
      %p85 = scmp.ne.s32.totalorder %s77, %s80
      %p86 = scmp.eq.s32.totalorder %s27, 0
      %p87 = por %p85, %p86
      %p88 = scmp.ne.s32.totalorder %s77, %s80
      %p89 = scmp.eq.s32.totalorder %s32, 1
      %p90 = por %p88, %p89
      %p91 = scmp.ne.s32.totalorder %s80, %s81
      %p92 = scmp.eq.s32.totalorder %s32, 0
      %p93 = por %p91, %p92
      %p94 = scmp.ne.s32.totalorder %s80, %s81
      %p95 = scmp.eq.s32.totalorder %s33, 1
      %p96 = por %p94, %p95
      %p98 = scmp.ne.s32.totalorder %s81, %s97
      %p99 = scmp.eq.s32.totalorder %s33, 0
      %p100 = por %p98, %p99
      %s102 = sadd.s32 %s101, 1
      %p105 = scmp.eq.s32.totalorder %s27, 1
      %p106 = scmp.ne.s32.totalorder %s101, %s103
      %p107 = scmp.eq.s32.totalorder %s27, 0
      %p108 = por %p106, %p107
      %p109 = scmp.ne.s32.totalorder %s101, %s103
      %p110 = scmp.eq.s32.totalorder %s32, 1
      %p111 = por %p109, %p110
      %p112 = scmp.ne.s32.totalorder %s103, %s104
      %p113 = scmp.eq.s32.totalorder %s32, 0
      %p114 = por %p112, %p113
      %p115 = scmp.ne.s32.totalorder %s103, %s104
      %p116 = scmp.eq.s32.totalorder %s33, 1
      %p117 = por %p115, %p116
      %p119 = scmp.ne.s32.totalorder %s104, %s118
      %p120 = scmp.eq.s32.totalorder %s33, 0
      %p121 = por %p119, %p120
      %s123 = sadd.s32 %s122, 1
      %p126 = scmp.eq.s32.totalorder %s27, 1
      %p127 = scmp.ne.s32.totalorder %s122, %s124
      %p128 = scmp.eq.s32.totalorder %s27, 0
      %p129 = por %p127, %p128
      %p130 = scmp.ne.s32.totalorder %s122, %s124
      %p131 = scmp.eq.s32.totalorder %s32, 1
      %p132 = por %p130, %p131
      %p133 = scmp.ne.s32.totalorder %s124, %s125
      %p134 = scmp.eq.s32.totalorder %s32, 0
      %p135 = por %p133, %p134
      %p136 = scmp.ne.s32.totalorder %s124, %s125
      %p137 = scmp.eq.s32.totalorder %s33, 1
      %p138 = por %p136, %p137
      %p140 = scmp.ne.s32.totalorder %s125, %s139
      %p141 = scmp.eq.s32.totalorder %s33, 0
      %p142 = por %p140, %p141
      %s144 = sadd.s32 %s143, 1
      %p147 = scmp.eq.s32.totalorder %s27, 1
      %p148 = scmp.ne.s32.totalorder %s143, %s145
      %p149 = scmp.eq.s32.totalorder %s27, 0
      %p150 = por %p148, %p149
      %p151 = scmp.ne.s32.totalorder %s143, %s145
      %p152 = scmp.eq.s32.totalorder %s32, 1
      %p153 = por %p151, %p152
      %p154 = scmp.ne.s32.totalorder %s145, %s146
      %p155 = scmp.eq.s32.totalorder %s32, 0
      %p156 = por %p154, %p155
      %p157 = scmp.ne.s32.totalorder %s145, %s146
      %p158 = scmp.eq.s32.totalorder %s33, 1
      %p159 = por %p157, %p158
      %p161 = scmp.ne.s32.totalorder %s146, %s160
      %p162 = scmp.eq.s32.totalorder %s33, 0
      %p163 = por %p161, %p162
      %s165 = sadd.s32 %s164, 1
      %p168 = scmp.eq.s32.totalorder %s27, 1
      %p169 = scmp.ne.s32.totalorder %s164, %s166
      %p170 = scmp.eq.s32.totalorder %s27, 0
      %p171 = por %p169, %p170
      %p172 = scmp.ne.s32.totalorder %s164, %s166
      %p173 = scmp.eq.s32.totalorder %s32, 1
      %p174 = por %p172, %p173
      %p175 = scmp.ne.s32.totalorder %s166, %s167
      %p176 = scmp.eq.s32.totalorder %s32, 0
      %p177 = por %p175, %p176
      %p178 = scmp.ne.s32.totalorder %s166, %s167
      %p179 = scmp.eq.s32.totalorder %s33, 1
      %p180 = por %p178, %p179
      %p182 = scmp.ne.s32.totalorder %s167, %s181
      %p183 = scmp.eq.s32.totalorder %s33, 0
      %p184 = por %p182, %p183
      %s186 = sadd.s32 %s185, 1
      %p189 = scmp.eq.s32.totalorder %s27, 1
      %p190 = scmp.ne.s32.totalorder %s185, %s187
      %p191 = scmp.eq.s32.totalorder %s27, 0
      %p192 = por %p190, %p191
      %p193 = scmp.ne.s32.totalorder %s185, %s187
      %p194 = scmp.eq.s32.totalorder %s32, 1
      %p195 = por %p193, %p194
      %p196 = scmp.ne.s32.totalorder %s187, %s188
      %p197 = scmp.eq.s32.totalorder %s32, 0
      %p198 = por %p196, %p197
      %p199 = scmp.ne.s32.totalorder %s187, %s188
      %p200 = scmp.eq.s32.totalorder %s33, 1
      %p201 = por %p199, %p200
      %p203 = scmp.ne.s32.totalorder %s188, %s202
      %p204 = scmp.eq.s32.totalorder %s33, 0
      %p205 = por %p203, %p204
      %s207 = sadd.s32 %s206, 1
      %p210 = scmp.eq.s32.totalorder %s27, 1
      %p211 = scmp.ne.s32.totalorder %s206, %s208
      %p212 = scmp.eq.s32.totalorder %s27, 0
      %p213 = por %p211, %p212
      %p214 = scmp.ne.s32.totalorder %s206, %s208
      %p215 = scmp.eq.s32.totalorder %s32, 1
      %p216 = por %p214, %p215
      %p217 = scmp.ne.s32.totalorder %s208, %s209
      %p218 = scmp.eq.s32.totalorder %s32, 0
      %p219 = por %p217, %p218
      %p220 = scmp.ne.s32.totalorder %s208, %s209
      %p221 = scmp.eq.s32.totalorder %s33, 1
      %p222 = por %p220, %p221
      %p224 = scmp.ne.s32.totalorder %s209, %s223
      %p225 = scmp.eq.s32.totalorder %s33, 0
      %p226 = por %p224, %p225
      %s228 = sadd.s32 %s227, 1
      %p231 = scmp.eq.s32.totalorder %s27, 1
      %p232 = scmp.ne.s32.totalorder %s227, %s229
      %p233 = scmp.eq.s32.totalorder %s27, 0
      %p234 = por %p232, %p233
      %p235 = scmp.ne.s32.totalorder %s227, %s229
      %p236 = scmp.eq.s32.totalorder %s32, 1
      %p237 = por %p235, %p236
      %p238 = scmp.ne.s32.totalorder %s229, %s230
      %p239 = scmp.eq.s32.totalorder %s32, 0
      %p240 = por %p238, %p239
      %p241 = scmp.ne.s32.totalorder %s229, %s230
      %p242 = scmp.eq.s32.totalorder %s33, 1
      %p243 = por %p241, %p242
      %p245 = scmp.ne.s32.totalorder %s230, %s244
      %p246 = scmp.eq.s32.totalorder %s33, 0
      %p247 = por %p245, %p246
      %s249 = sadd.s32 %s248, 1
      %p252 = scmp.eq.s32.totalorder %s27, 1
      %p253 = scmp.ne.s32.totalorder %s248, %s250
      %p254 = scmp.eq.s32.totalorder %s27, 0
      %p255 = por %p253, %p254
      %p256 = scmp.ne.s32.totalorder %s248, %s250
      %p257 = scmp.eq.s32.totalorder %s32, 1
      %p258 = por %p256, %p257
      %p259 = scmp.ne.s32.totalorder %s250, %s251
      %p260 = scmp.eq.s32.totalorder %s32, 0
      %p261 = por %p259, %p260
      %p262 = scmp.ne.s32.totalorder %s250, %s251
      %p263 = scmp.eq.s32.totalorder %s33, 1
      %p264 = por %p262, %p263
      %p266 = scmp.ne.s32.totalorder %s251, %s265
      %p267 = scmp.eq.s32.totalorder %s33, 0
      %p268 = por %p266, %p267
      %s270 = sadd.s32 %s269, 1
      %p273 = scmp.eq.s32.totalorder %s27, 1
      %p274 = scmp.ne.s32.totalorder %s269, %s271
      %p275 = scmp.eq.s32.totalorder %s27, 0
      %p276 = por %p274, %p275
      %p277 = scmp.ne.s32.totalorder %s269, %s271
      %p278 = scmp.eq.s32.totalorder %s32, 1
      %p279 = por %p277, %p278
      %p280 = scmp.ne.s32.totalorder %s271, %s272
      %p281 = scmp.eq.s32.totalorder %s32, 0
      %p282 = por %p280, %p281
      %p283 = scmp.ne.s32.totalorder %s271, %s272
      %p284 = scmp.eq.s32.totalorder %s33, 1
      %p285 = por %p283, %p284
      %p287 = scmp.ne.s32.totalorder %s272, %s286
      %p288 = scmp.eq.s32.totalorder %s33, 0
      %p289 = por %p287, %p288
      %s291 = sadd.s32 %s290, 1
      %p294 = scmp.eq.s32.totalorder %s27, 1
      %p295 = scmp.ne.s32.totalorder %s290, %s292
      %p296 = scmp.eq.s32.totalorder %s27, 0
      %p297 = por %p295, %p296
      %p298 = scmp.ne.s32.totalorder %s290, %s292
      %p299 = scmp.eq.s32.totalorder %s32, 1
      %p300 = por %p298, %p299
      %p301 = scmp.ne.s32.totalorder %s292, %s293
      %p302 = scmp.eq.s32.totalorder %s32, 0
      %p303 = por %p301, %p302
      %p304 = scmp.ne.s32.totalorder %s292, %s293
      %p305 = scmp.eq.s32.totalorder %s33, 1
      %p306 = por %p304, %p305
      %p308 = scmp.ne.s32.totalorder %s293, %s307
      %p309 = scmp.eq.s32.totalorder %s33, 0
      %p310 = por %p308, %p309
      %s311 = ssub.s32 %s34, %s46
      %s312 = ssub.s32 %s35, %s42
      %s313 = sor.u32 %s311, %s312
      %p314 = scmp.eq.s32.totalorder %s313, 0
      %s316 = sadd.s32 %s315, 1
      %s317 = scalar_select %p314, %s315, %s316
      %p320 = pneg %p314
      %p321 = scmp.eq.s32.totalorder %s27, 1
      %p322 = por %p320, %p321
      %p323 = scmp.ne.s32.totalorder %s315, %s318
      %p324 = scmp.eq.s32.totalorder %s27, 0
      %p325 = por %p323, %p324
      %p326 = scmp.ne.s32.totalorder %s315, %s318
      %p327 = scmp.eq.s32.totalorder %s32, 1
      %p328 = por %p326, %p327
      %p329 = scmp.ne.s32.totalorder %s318, %s319
      %p330 = scmp.eq.s32.totalorder %s32, 0
      %p331 = por %p329, %p330
      %p332 = scmp.ne.s32.totalorder %s318, %s319
      %p333 = scmp.eq.s32.totalorder %s33, 1
      %p334 = por %p332, %p333
      %p336 = scmp.ne.s32.totalorder %s319, %s335
      %p337 = scmp.eq.s32.totalorder %s33, 0
      %p338 = por %p336, %p337
      %p339 = scmp.le.s32.totalorder 1, %s27
      %p340 = scmp.lt.s32.totalorder %s27, 3
      %p341 = pnand %p339, %p340
      %p342 = pneg %p341
      // Predicated region
      $region9: #{tpu_custom_call.1} parent=5 // pred_check
        _
      $region10: #{tpu_custom_call.1} parent=5 // pred_check_branch
        %344 = sbr.rel (%p341) target = $region12
      $region11: #{tpu_custom_call.1} parent=5 // pred_region
        %s345 = ssub.s32 %s27, 1
        // Predicated region
        $region13: #{tpu_custom_call.1} parent=11 // pred_check
          %p346 = pneg %p93
        $region14: #{tpu_custom_call.1} parent=11 // pred_check_branch
          %348 = sbr.rel (%p346) target = $region16
        $region15: #{tpu_custom_call.1} parent=11 // pred_region
          %s350 = ssub.s32 128, 128
          %351 = vsyncadd [#allocation7], %s350
          %s352 = smul.addr %s37, 128
          %s353 = scalar_lea.hbm %s1, %s352
          %s355 = sshll.u32 [#allocation6], 4
          %s356 = int_to_ptr.vmem [resolvable:$true] %s355
          %358 = dma.hbm_to_vmem [thread:$0]  %s353, 128, %s356, [#allocation7]
        $region16: #{tpu_custom_call.1} parent=11 // pred_fallthru
          _
        // Predicated region
        $region17: #{tpu_custom_call.1} parent=11 // pred_check
          %p359 = pneg %p114
        $region18: #{tpu_custom_call.1} parent=11 // pred_check_branch
          %361 = sbr.rel (%p359) target = $region20
        $region19: #{tpu_custom_call.1} parent=11 // pred_region
          _
        $region20: #{tpu_custom_call.1} parent=11 // pred_fallthru
          _
        // Predicated region
        $region21: #{tpu_custom_call.1} parent=11 // pred_check
          %p362 = pneg %p135
        $region22: #{tpu_custom_call.1} parent=11 // pred_check_branch
          %364 = sbr.rel (%p362) target = $region24
        $region23: #{tpu_custom_call.1} parent=11 // pred_region
          _
        $region24: #{tpu_custom_call.1} parent=11 // pred_fallthru
          _
        // Predicated region
        $region25: #{tpu_custom_call.1} parent=11 // pred_check
          %p365 = pneg %p156
        $region26: #{tpu_custom_call.1} parent=11 // pred_check_branch
          %367 = sbr.rel (%p365) target = $region28
        $region27: #{tpu_custom_call.1} parent=11 // pred_region
          %s369 = ssub.s32 512, 512
          %370 = vsyncadd [#allocation7], %s369
          %s371 = sshll.u32 [#allocation8], 4
          %s372 = int_to_ptr.vmem [resolvable:$true] %s371
          %377 = dma.hbm_to_vmem [thread:$0]  %s4, 512, %s372, [#allocation7], 128, 128, 8
        $region28: #{tpu_custom_call.1} parent=11 // pred_fallthru
          _
        // Predicated region
        $region29: #{tpu_custom_call.1} parent=11 // pred_check
          %p378 = pneg %p177
        $region30: #{tpu_custom_call.1} parent=11 // pred_check_branch
          %380 = sbr.rel (%p378) target = $region32
        $region31: #{tpu_custom_call.1} parent=11 // pred_region
          _
        $region32: #{tpu_custom_call.1} parent=11 // pred_fallthru
          _
        // Predicated region
        $region33: #{tpu_custom_call.1} parent=11 // pred_check
          %p381 = pneg %p198
        $region34: #{tpu_custom_call.1} parent=11 // pred_check_branch
          %383 = sbr.rel (%p381) target = $region36
        $region35: #{tpu_custom_call.1} parent=11 // pred_region
          %s385 = ssub.s32 512, 512
          %386 = vsyncadd [#allocation10], %s385
          %s387 = sshll.u32 [#allocation9], 4
          %s388 = int_to_ptr.vmem [resolvable:$true] %s387
          %393 = dma.hbm_to_vmem [thread:$0]  %s6, 512, %s388, [#allocation10], 128, 128, 8
        $region36: #{tpu_custom_call.1} parent=11 // pred_fallthru
          _
        // Predicated region
        $region37: #{tpu_custom_call.1} parent=11 // pred_check
          %p394 = pneg %p219
        $region38: #{tpu_custom_call.1} parent=11 // pred_check_branch
          %396 = sbr.rel (%p394) target = $region40
        $region39: #{tpu_custom_call.1} parent=11 // pred_region
          _
        $region40: #{tpu_custom_call.1} parent=11 // pred_fallthru
          _
        // Predicated region
        $region41: #{tpu_custom_call.1} parent=11 // pred_check
          %p397 = pneg %p240
        $region42: #{tpu_custom_call.1} parent=11 // pred_check_branch
          %399 = sbr.rel (%p397) target = $region44
        $region43: #{tpu_custom_call.1} parent=11 // pred_region
          %s401 = ssub.s32 512, 512
          %402 = vsyncadd [#allocation10], %s401
          %s403 = sshll.u32 [#allocation11], 4
          %s404 = int_to_ptr.vmem [resolvable:$true] %s403
          %409 = dma.hbm_to_vmem [thread:$0]  %s8, 512, %s404, [#allocation10], 128, 128, 8
        $region44: #{tpu_custom_call.1} parent=11 // pred_fallthru
          _
        // Predicated region
        $region45: #{tpu_custom_call.1} parent=11 // pred_check
          %p410 = pneg %p261
        $region46: #{tpu_custom_call.1} parent=11 // pred_check_branch
          %412 = sbr.rel (%p410) target = $region48
        $region47: #{tpu_custom_call.1} parent=11 // pred_region
          _
        $region48: #{tpu_custom_call.1} parent=11 // pred_fallthru
          _
        // Predicated region
        $region49: #{tpu_custom_call.1} parent=11 // pred_check
          %p413 = pneg %p282
        $region50: #{tpu_custom_call.1} parent=11 // pred_check_branch
          %415 = sbr.rel (%p413) target = $region52
        $region51: #{tpu_custom_call.1} parent=11 // pred_region
          %s417 = ssub.s32 512, 512
          %418 = vsyncadd [#allocation13], %s417
          %s419 = sshll.u32 [#allocation12], 4
          %s420 = int_to_ptr.vmem [resolvable:$true] %s419
          %425 = dma.hbm_to_vmem [thread:$0]  %s10, 512, %s420, [#allocation13], 128, 128, 8
        $region52: #{tpu_custom_call.1} parent=11 // pred_fallthru
          _
        // Predicated region
        $region53: #{tpu_custom_call.1} parent=11 // pred_check
          %p426 = pneg %p303
        $region54: #{tpu_custom_call.1} parent=11 // pred_check_branch
          %428 = sbr.rel (%p426) target = $region56
        $region55: #{tpu_custom_call.1} parent=11 // pred_region
          _
        $region56: #{tpu_custom_call.1} parent=11 // pred_fallthru
          _
      $region12: #{tpu_custom_call.1} parent=5 // pred_fallthru
        _
      %p429 = scmp.lt.s32.totalorder %s27, 2
      // Predicated region
      $region57: #{tpu_custom_call.1} parent=5 // pred_check
        %p430 = pneg %p429
      $region58: #{tpu_custom_call.1} parent=5 // pred_check_branch
        %432 = sbr.rel (%p430) target = $region60
      $region59: #{tpu_custom_call.1} parent=5 // pred_region
        // Predicated region
        $region61: #{tpu_custom_call.1} parent=59 // pred_check
          %p433 = pneg %p61
        $region62: #{tpu_custom_call.1} parent=59 // pred_check_branch
          %435 = sbr.rel (%p433) target = $region64
        $region63: #{tpu_custom_call.1} parent=59 // pred_region
          %s436 = sand.u32 %s51, 1
          %s437 = scalar_lea.sflag [#allocation4], %s436
          %s438 = sand.u32 %s51, 1
          %s439 = smul.addr %s438, 8
          %s440 = scalar_lea.vmem [#allocation3], %s439
          %s442 = ssub.s32 128, 128
          %443 = vsyncadd %s437, %s442
          %s444 = sadd.s32 %s35, %s34
          %s445 = smul.addr %s444, 128
          %s446 = scalar_lea.hbm %s0, %s445
          %s448 = sshll.u32 %s440, 4
          %s449 = int_to_ptr.vmem [resolvable:$true] %s448
          %451 = dma.hbm_to_vmem [thread:$0]  %s446, 128, %s449, %s437
        $region64: #{tpu_custom_call.1} parent=59 // pred_fallthru
          _
      $region60: #{tpu_custom_call.1} parent=5 // pred_fallthru
        _
      %p452 = scmp.le.s32.totalorder 1, %s27
      %p453 = scmp.lt.s32.totalorder %s27, 3
      %p454 = pnand %p452, %p453
      %p455 = pneg %p454
      // Predicated region
      $region65: #{tpu_custom_call.1} parent=5 // pred_check
        _
      $region66: #{tpu_custom_call.1} parent=5 // pred_check_branch
        %457 = sbr.rel (%p454) target = $region68
      $region67: #{tpu_custom_call.1} parent=5 // pred_region
        %s458 = ssub.s32 %s27, 1
        %s459 = sand.u32 %s54, 1
        %s460 = scalar_lea.sflag [#allocation4], %s459
        %s461 = sand.u32 %s54, 1
        %s462 = smul.addr %s461, 8
        %s463 = scalar_lea.vmem [#allocation3], %s462
        // Predicated region
        $region69: #{tpu_custom_call.1} parent=67 // pred_check
          %p464 = pneg %p67
        $region70: #{tpu_custom_call.1} parent=67 // pred_check_branch
          %466 = sbr.rel (%p464) target = $region72
        $region71: #{tpu_custom_call.1} parent=67 // pred_region
          %467 = dma.done %s460, 128
        $region72: #{tpu_custom_call.1} parent=67 // pred_fallthru
          _
        // Predicated region
        $region73: #{tpu_custom_call.1} parent=67 // pred_check
          %p468 = pneg %p93
        $region74: #{tpu_custom_call.1} parent=67 // pred_check_branch
          %470 = sbr.rel (%p468) target = $region76
        $region75: #{tpu_custom_call.1} parent=67 // pred_region
          %471 = dma.done [#allocation7], 128
        $region76: #{tpu_custom_call.1} parent=67 // pred_fallthru
          _
        // Predicated region
        $region77: #{tpu_custom_call.1} parent=67 // pred_check
          %p472 = pneg %p156
        $region78: #{tpu_custom_call.1} parent=67 // pred_check_branch
          %474 = sbr.rel (%p472) target = $region80
        $region79: #{tpu_custom_call.1} parent=67 // pred_region
          %475 = dma.done [#allocation7], 512
        $region80: #{tpu_custom_call.1} parent=67 // pred_fallthru
          _
        // Predicated region
        $region81: #{tpu_custom_call.1} parent=67 // pred_check
          %p476 = pneg %p198
        $region82: #{tpu_custom_call.1} parent=67 // pred_check_branch
          %478 = sbr.rel (%p476) target = $region84
        $region83: #{tpu_custom_call.1} parent=67 // pred_region
          %479 = dma.done [#allocation10], 512
        $region84: #{tpu_custom_call.1} parent=67 // pred_fallthru
          _
        // Predicated region
        $region85: #{tpu_custom_call.1} parent=67 // pred_check
          %p480 = pneg %p240
        $region86: #{tpu_custom_call.1} parent=67 // pred_check_branch
          %482 = sbr.rel (%p480) target = $region88
        $region87: #{tpu_custom_call.1} parent=67 // pred_region
          %483 = dma.done [#allocation10], 512
        $region88: #{tpu_custom_call.1} parent=67 // pred_fallthru
          _
        // Predicated region
        $region89: #{tpu_custom_call.1} parent=67 // pred_check
          %p484 = pneg %p282
        $region90: #{tpu_custom_call.1} parent=67 // pred_check_branch
          %486 = sbr.rel (%p484) target = $region92
        $region91: #{tpu_custom_call.1} parent=67 // pred_region
          %487 = dma.done [#allocation13], 512
        $region92: #{tpu_custom_call.1} parent=67 // pred_fallthru
          _
        %s488 = sand.u32 %s54, 1
        %s489 = scalar_lea.sflag [#allocation4], %s488
        %s490 = sand.u32 %s54, 1
        %s491 = smul.addr %s490, 8
        %s492 = scalar_lea.vmem [#allocation3], %s491
        %p493 = pneg %p67
        %p494 = pneg %p64
        %p495 = pneg %p93
        %p496 = pneg %p90
        %p497 = pneg %p114
        %p498 = pneg %p111
        %p499 = pneg %p135
        %p500 = pneg %p132
        %p501 = pneg %p156
        %p502 = pneg %p153
        %p503 = pneg %p177
        %p504 = pneg %p174
        %p505 = pneg %p198
        %p506 = pneg %p195
        %p507 = pneg %p219
        %p508 = pneg %p216
        %p509 = pneg %p240
        %p510 = pneg %p237
        %p511 = pneg %p261
        %p512 = pneg %p258
        %p513 = pneg %p282
        %p514 = pneg %p279
        %p515 = pneg %p303
        %p516 = pneg %p300
        %p517 = pneg %p331
        %p518 = pneg %p328
        %s519 = sand.u32 %s318, 1
        %s520 = scalar_lea.sflag [#allocation5], %s519
        %s521 = sand.u32 %s318, 1
        %s522 = smul.addr %s521, 8
        %s523 = scalar_lea.vmem [#allocation14], %s522
        %v524 = vld [vmem:[%s463] sm:$0xff]
        %v525 = vld [vmem:[%s2] sm:$0x1]
        %v526 = vld [vmem:[%s3] sm:$0x1]
        %vm527 = vcmask 261120
        %v528 = vsel %vm527, %v524, 0.0
        %529 = vadd.xlane.f32.xlu0 %v528
        %v530 = vpop.xlane.xlu0 %529
        %v531 = vrcp.pop 32.0
        %v532 = vmul.f32 %v530, %v531
        %v533 = vsub.f32 %v524, %v532
        %v534 = vmul.f32 %v533, %v533
        %v535 = vsel %vm527, %v534, 0.0
        %536 = vadd.xlane.f32.xlu0 %v535
        %v537 = vpop.xlane.xlu0 %536
        %v538 = vmul.f32 %v537, %v531
        %v539 = vadd.f32 %v538, 1e-05
        %v540 = vrsqrt.pop %v539
        %v541 = vmul.f32 %v533, %v540
        %v543 = vlaneseq
        %v544 = vshrl.u32 %v543, 7
        %v545 = vsub.s32 0, %v544
        %v546 = vrot.slane %v525, %v545
        %v548 = vmul.f32 %v541, %v546
        %v550 = vlaneseq
        %v551 = vshrl.u32 %v550, 7
        %v552 = vsub.s32 0, %v551
        %v553 = vrot.slane %v526, %v552
        %v555 = vadd.f32 %v548, %v553
        %v556 = vld [vmem:[#allocation8] sm:$0xff]
        %v557 = vld [vmem:[#allocation8 + $0x8] sm:$0xff]
        %v558 = vld [vmem:[#allocation8 + $0x10] sm:$0xff]
        %v559 = vld [vmem:[#allocation8 + $0x18] sm:$0xff]
        %v560 = vld [vmem:[%s5] sm:$0x1]
        %v562 = vlaneseq
        %v563 = vshrl.u32 %v562, 7
        %v564 = vsub.s32 0, %v563
        %v565 = vrot.slane %v560, %v564
        %v568 = vsel %vm527, %v555, 0
        %570 = vmatprep.subr.mxu0 0.0
        %571 = vmatpush1.msra.mxu0 0.0
        %572 = vmatprep.subr.mxu0 0.0
        %573 = vmatpush1.msra.mxu0 0.0
        %574 = vmatprep.subr.mxu0 0.0
        %575 = vmatpush1.msra.mxu0 0.0
        %576 = vmatprep.subr.mxu0 0.0
        %577 = vmatpush1.msra.mxu0 0.0
        %578 = vmatprep.subr.mxu0 0.0
        %579 = vmatpush1.msra.mxu0 0.0
        %580 = vmatprep.subr.mxu0 0.0
        %581 = vmatpush1.msra.mxu0 0.0
        %582 = vmatprep.subr.mxu0 0.0
        %583 = vmatpush1.msra.mxu0 0.0
        %584 = vmatprep.subr.mxu0 0.0
        %585 = vmatpush1.msra.mxu0 0.0
        %586 = vmatprep.subr.mxu0 0.0
        %587 = vmatpush1.msra.mxu0 0.0
        %588 = vmatprep.subr.mxu0 0.0
        %589 = vmatpush1.msra.mxu0 0.0
        %590 = vmatprep.subr.mxu0 0.0
        %591 = vmatpush1.msra.mxu0 0.0
        %592 = vmatprep.subr.mxu0 0.0
        %593 = vmatpush1.msra.mxu0 0.0
        %594 = vmatprep.subr.mxu0 0.0
        %v595 = vand.u32 %v559, 4294901760
        %596 = vmatpush1.msra.mxu0 %v595
        %597 = vmatprep.subr.mxu0 0.0
        %v598 = vand.u32 %v558, 4294901760
        %599 = vmatpush1.msra.mxu0 %v598
        %600 = vmatprep.subr.mxu0 0.0
        %v601 = vand.u32 %v557, 4294901760
        %602 = vmatpush1.msra.mxu0 %v601
        %603 = vmatprep.subr.mxu0 0.0
        %v604 = vand.u32 %v556, 4294901760
        %605 = vmatpush1.msra.mxu0 %v604
        %606 = vmatprep.subr.mxu0 0.0
        %607 = vmatpush2.msra.mxu0 0.0
        %608 = vmatprep.subr.mxu0 0.0
        %609 = vmatpush2.msra.mxu0 0.0
        %610 = vmatprep.subr.mxu0 0.0
        %611 = vmatpush2.msra.mxu0 0.0
        %612 = vmatprep.subr.mxu0 0.0
        %613 = vmatpush2.msra.mxu0 0.0
        %614 = vmatprep.subr.mxu0 0.0
        %615 = vmatpush2.msra.mxu0 0.0
        %616 = vmatprep.subr.mxu0 0.0
        %617 = vmatpush2.msra.mxu0 0.0
        %618 = vmatprep.subr.mxu0 0.0
        %619 = vmatpush2.msra.mxu0 0.0
        %620 = vmatprep.subr.mxu0 0.0
        %621 = vmatpush2.msra.mxu0 0.0
        %622 = vmatprep.subr.mxu0 0.0
        %623 = vmatpush2.msra.mxu0 0.0
        %624 = vmatprep.subr.mxu0 0.0
        %625 = vmatpush2.msra.mxu0 0.0
        %626 = vmatprep.subr.mxu0 0.0
        %627 = vmatpush2.msra.mxu0 0.0
        %628 = vmatprep.subr.mxu0 0.0
        %629 = vmatpush2.msra.mxu0 0.0
        %630 = vmatprep.subr.mxu0 0.0
        %631 = vmatpush2.msra.mxu0 0.0
        %632 = vmatprep.subr.mxu0 0.0
        %633 = vmatpush2.msra.mxu0 0.0
        %634 = vmatprep.subr.mxu0 0.0
        %635 = vmatpush2.msra.mxu0 0.0
        %636 = vmatprep.subr.mxu0 0.0
        %637 = vmatpush2.msra.mxu0 0.0
        %638 = vmatprep.mubr.f32.mxu0 0.0
        %v639 = vand.u32 %v568, 4294901760
        %v640 = vsub.f32 %v568, %v639
        %v641 = vand.u32 %v640, 4294901760
        %v642 = vsub.f32 %v640, %v641
        %v643 = vand.u32 %v642, 4294901760
        %644 = vmatmul.mubr.f32.gmra.mxu0 %v643
        %v645 = vpop.f32.mrf.mxu0
        %v646 = vadd.f32 %v565, %v645
        %v647 = vpop.f32.mrf.mxu0
        %648 = vdwg.mxu0
        %649 = vmatprep.subr.mxu0 0.0
        %650 = vmatpush1.msra.mxu0 0.0
        %651 = vmatprep.subr.mxu0 0.0
        %652 = vmatpush1.msra.mxu0 0.0
        %653 = vmatprep.subr.mxu0 0.0
        %654 = vmatpush1.msra.mxu0 0.0
        %655 = vmatprep.subr.mxu0 0.0
        %656 = vmatpush1.msra.mxu0 0.0
        %657 = vmatprep.subr.mxu0 0.0
        %658 = vmatpush1.msra.mxu0 0.0
        %659 = vmatprep.subr.mxu0 0.0
        %660 = vmatpush1.msra.mxu0 0.0
        %661 = vmatprep.subr.mxu0 0.0
        %662 = vmatpush1.msra.mxu0 0.0
        %663 = vmatprep.subr.mxu0 0.0
        %664 = vmatpush1.msra.mxu0 0.0
        %665 = vmatprep.subr.mxu0 0.0
        %666 = vmatpush1.msra.mxu0 0.0
        %667 = vmatprep.subr.mxu0 0.0
        %668 = vmatpush1.msra.mxu0 0.0
        %669 = vmatprep.subr.mxu0 0.0
        %670 = vmatpush1.msra.mxu0 0.0
        %671 = vmatprep.subr.mxu0 0.0
        %672 = vmatpush1.msra.mxu0 0.0
        %673 = vmatprep.subr.mxu0 0.0
        %v674 = vand.u32 %v559, 4294901760
        %v675 = vsub.f32 %v559, %v674
        %v676 = vand.u32 %v675, 4294901760
        %v677 = vsub.f32 %v675, %v676
        %v678 = vand.u32 %v677, 4294901760
        %679 = vmatpush1.msra.mxu0 %v678
        %680 = vmatprep.subr.mxu0 0.0
        %v681 = vand.u32 %v558, 4294901760
        %v682 = vsub.f32 %v558, %v681
        %v683 = vand.u32 %v682, 4294901760
        %v684 = vsub.f32 %v682, %v683
        %v685 = vand.u32 %v684, 4294901760
        %686 = vmatpush1.msra.mxu0 %v685
        %687 = vmatprep.subr.mxu0 0.0
        %v688 = vand.u32 %v557, 4294901760
        %v689 = vsub.f32 %v557, %v688
        %v690 = vand.u32 %v689, 4294901760
        %v691 = vsub.f32 %v689, %v690
        %v692 = vand.u32 %v691, 4294901760
        %693 = vmatpush1.msra.mxu0 %v692
        %694 = vmatprep.subr.mxu0 0.0
        %v695 = vand.u32 %v556, 4294901760
        %v696 = vsub.f32 %v556, %v695
        %v697 = vand.u32 %v696, 4294901760
        %v698 = vsub.f32 %v696, %v697
        %v699 = vand.u32 %v698, 4294901760
        %700 = vmatpush1.msra.mxu0 %v699
        %701 = vmatprep.subr.mxu0 0.0
        %702 = vmatpush2.msra.mxu0 0.0
        %703 = vmatprep.subr.mxu0 0.0
        %704 = vmatpush2.msra.mxu0 0.0
        %705 = vmatprep.subr.mxu0 0.0
        %706 = vmatpush2.msra.mxu0 0.0
        %707 = vmatprep.subr.mxu0 0.0
        %708 = vmatpush2.msra.mxu0 0.0
        %709 = vmatprep.subr.mxu0 0.0
        %710 = vmatpush2.msra.mxu0 0.0
        %711 = vmatprep.subr.mxu0 0.0
        %712 = vmatpush2.msra.mxu0 0.0
        %713 = vmatprep.subr.mxu0 0.0
        %714 = vmatpush2.msra.mxu0 0.0
        %715 = vmatprep.subr.mxu0 0.0
        %716 = vmatpush2.msra.mxu0 0.0
        %717 = vmatprep.subr.mxu0 0.0
        %718 = vmatpush2.msra.mxu0 0.0
        %719 = vmatprep.subr.mxu0 0.0
        %720 = vmatpush2.msra.mxu0 0.0
        %721 = vmatprep.subr.mxu0 0.0
        %722 = vmatpush2.msra.mxu0 0.0
        %723 = vmatprep.subr.mxu0 0.0
        %724 = vmatpush2.msra.mxu0 0.0
        %725 = vmatprep.subr.mxu0 0.0
        %726 = vmatpush2.msra.mxu0 0.0
        %727 = vmatprep.subr.mxu0 0.0
        %728 = vmatpush2.msra.mxu0 0.0
        %729 = vmatprep.subr.mxu0 0.0
        %730 = vmatpush2.msra.mxu0 0.0
        %731 = vmatprep.subr.mxu0 0.0
        %732 = vmatpush2.msra.mxu0 0.0
        %733 = vmatprep.mubr.f32.mxu0 0.0
        %v734 = vand.u32 %v568, 4294901760
        %735 = vmatmul.mubr.f32.gmra.mxu0 %v734
        %v736 = vpop.f32.mrf.mxu0
        %v737 = vadd.f32 %v646, %v736
        %v738 = vpop.f32.mrf.mxu0
        %739 = vdwg.mxu0
        %740 = vmatprep.subr.mxu0 0.0
        %741 = vmatpush1.msra.mxu0 0.0
        %742 = vmatprep.subr.mxu0 0.0
        %743 = vmatpush1.msra.mxu0 0.0
        %744 = vmatprep.subr.mxu0 0.0
        %745 = vmatpush1.msra.mxu0 0.0
        %746 = vmatprep.subr.mxu0 0.0
        %747 = vmatpush1.msra.mxu0 0.0
        %748 = vmatprep.subr.mxu0 0.0
        %749 = vmatpush1.msra.mxu0 0.0
        %750 = vmatprep.subr.mxu0 0.0
        %751 = vmatpush1.msra.mxu0 0.0
        %752 = vmatprep.subr.mxu0 0.0
        %753 = vmatpush1.msra.mxu0 0.0
        %754 = vmatprep.subr.mxu0 0.0
        %755 = vmatpush1.msra.mxu0 0.0
        %756 = vmatprep.subr.mxu0 0.0
        %757 = vmatpush1.msra.mxu0 0.0
        %758 = vmatprep.subr.mxu0 0.0
        %759 = vmatpush1.msra.mxu0 0.0
        %760 = vmatprep.subr.mxu0 0.0
        %761 = vmatpush1.msra.mxu0 0.0
        %762 = vmatprep.subr.mxu0 0.0
        %763 = vmatpush1.msra.mxu0 0.0
        %764 = vmatprep.subr.mxu0 0.0
        %v765 = vand.u32 %v559, 4294901760
        %v766 = vsub.f32 %v559, %v765
        %767 = vmatpush1.msra.mxu0 %v766
        %768 = vmatprep.subr.mxu0 0.0
        %v769 = vand.u32 %v558, 4294901760
        %v770 = vsub.f32 %v558, %v769
        %771 = vmatpush1.msra.mxu0 %v770
        %772 = vmatprep.subr.mxu0 0.0
        %v773 = vand.u32 %v557, 4294901760
        %v774 = vsub.f32 %v557, %v773
        %775 = vmatpush1.msra.mxu0 %v774
        %776 = vmatprep.subr.mxu0 0.0
        %v777 = vand.u32 %v556, 4294901760
        %v778 = vsub.f32 %v556, %v777
        %779 = vmatpush1.msra.mxu0 %v778
        %780 = vmatprep.subr.mxu0 0.0
        %781 = vmatpush2.msra.mxu0 0.0
        %782 = vmatprep.subr.mxu0 0.0
        %783 = vmatpush2.msra.mxu0 0.0
        %784 = vmatprep.subr.mxu0 0.0
        %785 = vmatpush2.msra.mxu0 0.0
        %786 = vmatprep.subr.mxu0 0.0
        %787 = vmatpush2.msra.mxu0 0.0
        %788 = vmatprep.subr.mxu0 0.0
        %789 = vmatpush2.msra.mxu0 0.0
        %790 = vmatprep.subr.mxu0 0.0
        %791 = vmatpush2.msra.mxu0 0.0
        %792 = vmatprep.subr.mxu0 0.0
        %793 = vmatpush2.msra.mxu0 0.0
        %794 = vmatprep.subr.mxu0 0.0
        %795 = vmatpush2.msra.mxu0 0.0
        %796 = vmatprep.subr.mxu0 0.0
        %797 = vmatpush2.msra.mxu0 0.0
        %798 = vmatprep.subr.mxu0 0.0
        %799 = vmatpush2.msra.mxu0 0.0
        %800 = vmatprep.subr.mxu0 0.0
        %801 = vmatpush2.msra.mxu0 0.0
        %802 = vmatprep.subr.mxu0 0.0
        %803 = vmatpush2.msra.mxu0 0.0
        %804 = vmatprep.subr.mxu0 0.0
        %805 = vmatpush2.msra.mxu0 0.0
        %806 = vmatprep.subr.mxu0 0.0
        %807 = vmatpush2.msra.mxu0 0.0
        %808 = vmatprep.subr.mxu0 0.0
        %809 = vmatpush2.msra.mxu0 0.0
        %810 = vmatprep.subr.mxu0 0.0
        %811 = vmatpush2.msra.mxu0 0.0
        %812 = vmatprep.mubr.f32.mxu0 0.0
        %v813 = vand.u32 %v568, 4294901760
        %v814 = vsub.f32 %v568, %v813
        %815 = vmatmul.mubr.f32.gmra.mxu0 %v814
        %v816 = vpop.f32.mrf.mxu0
        %v817 = vadd.f32 %v737, %v816
        %v818 = vpop.f32.mrf.mxu0
        %819 = vdwg.mxu0
        %820 = vmatprep.subr.mxu0 0.0
        %821 = vmatpush1.msra.mxu0 0.0
        %822 = vmatprep.subr.mxu0 0.0
        %823 = vmatpush1.msra.mxu0 0.0
        %824 = vmatprep.subr.mxu0 0.0
        %825 = vmatpush1.msra.mxu0 0.0
        %826 = vmatprep.subr.mxu0 0.0
        %827 = vmatpush1.msra.mxu0 0.0
        %828 = vmatprep.subr.mxu0 0.0
        %829 = vmatpush1.msra.mxu0 0.0
        %830 = vmatprep.subr.mxu0 0.0
        %831 = vmatpush1.msra.mxu0 0.0
        %832 = vmatprep.subr.mxu0 0.0
        %833 = vmatpush1.msra.mxu0 0.0
        %834 = vmatprep.subr.mxu0 0.0
        %835 = vmatpush1.msra.mxu0 0.0
        %836 = vmatprep.subr.mxu0 0.0
        %837 = vmatpush1.msra.mxu0 0.0
        %838 = vmatprep.subr.mxu0 0.0
        %839 = vmatpush1.msra.mxu0 0.0
        %840 = vmatprep.subr.mxu0 0.0
        %841 = vmatpush1.msra.mxu0 0.0
        %842 = vmatprep.subr.mxu0 0.0
        %843 = vmatpush1.msra.mxu0 0.0
        %844 = vmatprep.subr.mxu0 0.0
        %v845 = vand.u32 %v559, 4294901760
        %846 = vmatpush1.msra.mxu0 %v845
        %847 = vmatprep.subr.mxu0 0.0
        %v848 = vand.u32 %v558, 4294901760
        %849 = vmatpush1.msra.mxu0 %v848
        %850 = vmatprep.subr.mxu0 0.0
        %v851 = vand.u32 %v557, 4294901760
        %852 = vmatpush1.msra.mxu0 %v851
        %853 = vmatprep.subr.mxu0 0.0
        %v854 = vand.u32 %v556, 4294901760
        %855 = vmatpush1.msra.mxu0 %v854
        %856 = vmatprep.subr.mxu0 0.0
        %857 = vmatpush2.msra.mxu0 0.0
        %858 = vmatprep.subr.mxu0 0.0
        %859 = vmatpush2.msra.mxu0 0.0
        %860 = vmatprep.subr.mxu0 0.0
        %861 = vmatpush2.msra.mxu0 0.0
        %862 = vmatprep.subr.mxu0 0.0
        %863 = vmatpush2.msra.mxu0 0.0
        %864 = vmatprep.subr.mxu0 0.0
        %865 = vmatpush2.msra.mxu0 0.0
        %866 = vmatprep.subr.mxu0 0.0
        %867 = vmatpush2.msra.mxu0 0.0
        %868 = vmatprep.subr.mxu0 0.0
        %869 = vmatpush2.msra.mxu0 0.0
        %870 = vmatprep.subr.mxu0 0.0
        %871 = vmatpush2.msra.mxu0 0.0
        %872 = vmatprep.subr.mxu0 0.0
        %873 = vmatpush2.msra.mxu0 0.0
        %874 = vmatprep.subr.mxu0 0.0
        %875 = vmatpush2.msra.mxu0 0.0
        %876 = vmatprep.subr.mxu0 0.0
        %877 = vmatpush2.msra.mxu0 0.0
        %878 = vmatprep.subr.mxu0 0.0
        %879 = vmatpush2.msra.mxu0 0.0
        %880 = vmatprep.subr.mxu0 0.0
        %881 = vmatpush2.msra.mxu0 0.0
        %882 = vmatprep.subr.mxu0 0.0
        %883 = vmatpush2.msra.mxu0 0.0
        %884 = vmatprep.subr.mxu0 0.0
        %885 = vmatpush2.msra.mxu0 0.0
        %886 = vmatprep.subr.mxu0 0.0
        %887 = vmatpush2.msra.mxu0 0.0
        %888 = vmatprep.mubr.f32.mxu0 0.0
        %v889 = vand.u32 %v568, 4294901760
        %v890 = vsub.f32 %v568, %v889
        %v891 = vand.u32 %v890, 4294901760
        %892 = vmatmul.mubr.f32.gmra.mxu0 %v891
        %v893 = vpop.f32.mrf.mxu0
        %v894 = vadd.f32 %v817, %v893
        %v895 = vpop.f32.mrf.mxu0
        %896 = vdwg.mxu0
        %897 = vmatprep.subr.mxu0 0.0
        %898 = vmatpush1.msra.mxu0 0.0
        %899 = vmatprep.subr.mxu0 0.0
        %900 = vmatpush1.msra.mxu0 0.0
        %901 = vmatprep.subr.mxu0 0.0
        %902 = vmatpush1.msra.mxu0 0.0
        %903 = vmatprep.subr.mxu0 0.0
        %904 = vmatpush1.msra.mxu0 0.0
        %905 = vmatprep.subr.mxu0 0.0
        %906 = vmatpush1.msra.mxu0 0.0
        %907 = vmatprep.subr.mxu0 0.0
        %908 = vmatpush1.msra.mxu0 0.0
        %909 = vmatprep.subr.mxu0 0.0
        %910 = vmatpush1.msra.mxu0 0.0
        %911 = vmatprep.subr.mxu0 0.0
        %912 = vmatpush1.msra.mxu0 0.0
        %913 = vmatprep.subr.mxu0 0.0
        %914 = vmatpush1.msra.mxu0 0.0
        %915 = vmatprep.subr.mxu0 0.0
        %916 = vmatpush1.msra.mxu0 0.0
        %917 = vmatprep.subr.mxu0 0.0
        %918 = vmatpush1.msra.mxu0 0.0
        %919 = vmatprep.subr.mxu0 0.0
        %920 = vmatpush1.msra.mxu0 0.0
        %921 = vmatprep.subr.mxu0 0.0
        %v922 = vand.u32 %v559, 4294901760
        %v923 = vsub.f32 %v559, %v922
        %v924 = vand.u32 %v923, 4294901760
        %925 = vmatpush1.msra.mxu0 %v924
        %926 = vmatprep.subr.mxu0 0.0
        %v927 = vand.u32 %v558, 4294901760
        %v928 = vsub.f32 %v558, %v927
        %v929 = vand.u32 %v928, 4294901760
        %930 = vmatpush1.msra.mxu0 %v929
        %931 = vmatprep.subr.mxu0 0.0
        %v932 = vand.u32 %v557, 4294901760
        %v933 = vsub.f32 %v557, %v932
        %v934 = vand.u32 %v933, 4294901760
        %935 = vmatpush1.msra.mxu0 %v934
        %936 = vmatprep.subr.mxu0 0.0
        %v937 = vand.u32 %v556, 4294901760
        %v938 = vsub.f32 %v556, %v937
        %v939 = vand.u32 %v938, 4294901760
        %940 = vmatpush1.msra.mxu0 %v939
        %941 = vmatprep.subr.mxu0 0.0
        %942 = vmatpush2.msra.mxu0 0.0
        %943 = vmatprep.subr.mxu0 0.0
        %944 = vmatpush2.msra.mxu0 0.0
        %945 = vmatprep.subr.mxu0 0.0
        %946 = vmatpush2.msra.mxu0 0.0
        %947 = vmatprep.subr.mxu0 0.0
        %948 = vmatpush2.msra.mxu0 0.0
        %949 = vmatprep.subr.mxu0 0.0
        %950 = vmatpush2.msra.mxu0 0.0
        %951 = vmatprep.subr.mxu0 0.0
        %952 = vmatpush2.msra.mxu0 0.0
        %953 = vmatprep.subr.mxu0 0.0
        %954 = vmatpush2.msra.mxu0 0.0
        %955 = vmatprep.subr.mxu0 0.0
        %956 = vmatpush2.msra.mxu0 0.0
        %957 = vmatprep.subr.mxu0 0.0
        %958 = vmatpush2.msra.mxu0 0.0
        %959 = vmatprep.subr.mxu0 0.0
        %960 = vmatpush2.msra.mxu0 0.0
        %961 = vmatprep.subr.mxu0 0.0
        %962 = vmatpush2.msra.mxu0 0.0
        %963 = vmatprep.subr.mxu0 0.0
        %964 = vmatpush2.msra.mxu0 0.0
        %965 = vmatprep.subr.mxu0 0.0
        %966 = vmatpush2.msra.mxu0 0.0
        %967 = vmatprep.subr.mxu0 0.0
        %968 = vmatpush2.msra.mxu0 0.0
        %969 = vmatprep.subr.mxu0 0.0
        %970 = vmatpush2.msra.mxu0 0.0
        %971 = vmatprep.subr.mxu0 0.0
        %972 = vmatpush2.msra.mxu0 0.0
        %973 = vmatprep.mubr.f32.mxu0 0.0
        %v974 = vand.u32 %v568, 4294901760
        %975 = vmatmul.mubr.f32.gmra.mxu0 %v974
        %v976 = vpop.f32.mrf.mxu0
        %v977 = vadd.f32 %v894, %v976
        %v978 = vpop.f32.mrf.mxu0
        %979 = vdwg.mxu0
        %980 = vmatprep.subr.mxu0 0.0
        %981 = vmatpush1.msra.mxu0 0.0
        %982 = vmatprep.subr.mxu0 0.0
        %983 = vmatpush1.msra.mxu0 0.0
        %984 = vmatprep.subr.mxu0 0.0
        %985 = vmatpush1.msra.mxu0 0.0
        %986 = vmatprep.subr.mxu0 0.0
        %987 = vmatpush1.msra.mxu0 0.0
        %988 = vmatprep.subr.mxu0 0.0
        %989 = vmatpush1.msra.mxu0 0.0
        %990 = vmatprep.subr.mxu0 0.0
        %991 = vmatpush1.msra.mxu0 0.0
        %992 = vmatprep.subr.mxu0 0.0
        %993 = vmatpush1.msra.mxu0 0.0
        %994 = vmatprep.subr.mxu0 0.0
        %995 = vmatpush1.msra.mxu0 0.0
        %996 = vmatprep.subr.mxu0 0.0
        %997 = vmatpush1.msra.mxu0 0.0
        %998 = vmatprep.subr.mxu0 0.0
        %999 = vmatpush1.msra.mxu0 0.0
        %1000 = vmatprep.subr.mxu0 0.0
        %1001 = vmatpush1.msra.mxu0 0.0
        %1002 = vmatprep.subr.mxu0 0.0
        %1003 = vmatpush1.msra.mxu0 0.0
        %1004 = vmatprep.subr.mxu0 0.0
        %v1005 = vand.u32 %v559, 4294901760
        %1006 = vmatpush1.msra.mxu0 %v1005
        %1007 = vmatprep.subr.mxu0 0.0
        %v1008 = vand.u32 %v558, 4294901760
        %1009 = vmatpush1.msra.mxu0 %v1008
        %1010 = vmatprep.subr.mxu0 0.0
        %v1011 = vand.u32 %v557, 4294901760
        %1012 = vmatpush1.msra.mxu0 %v1011
        %1013 = vmatprep.subr.mxu0 0.0
        %v1014 = vand.u32 %v556, 4294901760
        %1015 = vmatpush1.msra.mxu0 %v1014
        %1016 = vmatprep.subr.mxu0 0.0
        %1017 = vmatpush2.msra.mxu0 0.0
        %1018 = vmatprep.subr.mxu0 0.0
        %1019 = vmatpush2.msra.mxu0 0.0
        %1020 = vmatprep.subr.mxu0 0.0
        %1021 = vmatpush2.msra.mxu0 0.0
        %1022 = vmatprep.subr.mxu0 0.0
        %1023 = vmatpush2.msra.mxu0 0.0
        %1024 = vmatprep.subr.mxu0 0.0
        %1025 = vmatpush2.msra.mxu0 0.0
        %1026 = vmatprep.subr.mxu0 0.0
        %1027 = vmatpush2.msra.mxu0 0.0
        %1028 = vmatprep.subr.mxu0 0.0
        %1029 = vmatpush2.msra.mxu0 0.0
        %1030 = vmatprep.subr.mxu0 0.0
        %1031 = vmatpush2.msra.mxu0 0.0
        %1032 = vmatprep.subr.mxu0 0.0
        %1033 = vmatpush2.msra.mxu0 0.0
        %1034 = vmatprep.subr.mxu0 0.0
        %1035 = vmatpush2.msra.mxu0 0.0
        %1036 = vmatprep.subr.mxu0 0.0
        %1037 = vmatpush2.msra.mxu0 0.0
        %1038 = vmatprep.subr.mxu0 0.0
        %1039 = vmatpush2.msra.mxu0 0.0
        %1040 = vmatprep.subr.mxu0 0.0
        %1041 = vmatpush2.msra.mxu0 0.0
        %1042 = vmatprep.subr.mxu0 0.0
        %1043 = vmatpush2.msra.mxu0 0.0
        %1044 = vmatprep.subr.mxu0 0.0
        %1045 = vmatpush2.msra.mxu0 0.0
        %1046 = vmatprep.subr.mxu0 0.0
        %1047 = vmatpush2.msra.mxu0 0.0
        %1048 = vmatprep.mubr.f32.mxu0 0.0
        %v1049 = vand.u32 %v568, 4294901760
        %1050 = vmatmul.mubr.f32.gmra.mxu0 %v1049
        %v1051 = vpop.f32.mrf.mxu0
        %v1052 = vadd.f32 %v977, %v1051
        %v1053 = vpop.f32.mrf.mxu0
        %1054 = vdwg.mxu0
        %v1055 = vld [vmem:[#allocation9] sm:$0xff]
        %v1056 = vld [vmem:[#allocation9 + $0x8] sm:$0xff]
        %v1057 = vld [vmem:[#allocation9 + $0x10] sm:$0xff]
        %v1058 = vld [vmem:[#allocation9 + $0x18] sm:$0xff]
        %v1059 = vld [vmem:[%s7] sm:$0x1]
        %v1061 = vlaneseq
        %v1062 = vshrl.u32 %v1061, 7
        %v1063 = vsub.s32 0, %v1062
        %v1064 = vrot.slane %v1059, %v1063
        %1066 = vmatprep.subr.mxu0 0.0
        %1067 = vmatpush1.msra.mxu0 0.0
        %1068 = vmatprep.subr.mxu0 0.0
        %1069 = vmatpush1.msra.mxu0 0.0
        %1070 = vmatprep.subr.mxu0 0.0
        %1071 = vmatpush1.msra.mxu0 0.0
        %1072 = vmatprep.subr.mxu0 0.0
        %1073 = vmatpush1.msra.mxu0 0.0
        %1074 = vmatprep.subr.mxu0 0.0
        %1075 = vmatpush1.msra.mxu0 0.0
        %1076 = vmatprep.subr.mxu0 0.0
        %1077 = vmatpush1.msra.mxu0 0.0
        %1078 = vmatprep.subr.mxu0 0.0
        %1079 = vmatpush1.msra.mxu0 0.0
        %1080 = vmatprep.subr.mxu0 0.0
        %1081 = vmatpush1.msra.mxu0 0.0
        %1082 = vmatprep.subr.mxu0 0.0
        %1083 = vmatpush1.msra.mxu0 0.0
        %1084 = vmatprep.subr.mxu0 0.0
        %1085 = vmatpush1.msra.mxu0 0.0
        %1086 = vmatprep.subr.mxu0 0.0
        %1087 = vmatpush1.msra.mxu0 0.0
        %1088 = vmatprep.subr.mxu0 0.0
        %1089 = vmatpush1.msra.mxu0 0.0
        %1090 = vmatprep.subr.mxu0 0.0
        %v1091 = vand.u32 %v1058, 4294901760
        %1092 = vmatpush1.msra.mxu0 %v1091
        %1093 = vmatprep.subr.mxu0 0.0
        %v1094 = vand.u32 %v1057, 4294901760
        %1095 = vmatpush1.msra.mxu0 %v1094
        %1096 = vmatprep.subr.mxu0 0.0
        %v1097 = vand.u32 %v1056, 4294901760
        %1098 = vmatpush1.msra.mxu0 %v1097
        %1099 = vmatprep.subr.mxu0 0.0
        %v1100 = vand.u32 %v1055, 4294901760
        %1101 = vmatpush1.msra.mxu0 %v1100
        %1102 = vmatprep.subr.mxu0 0.0
        %1103 = vmatpush2.msra.mxu0 0.0
        %1104 = vmatprep.subr.mxu0 0.0
        %1105 = vmatpush2.msra.mxu0 0.0
        %1106 = vmatprep.subr.mxu0 0.0
        %1107 = vmatpush2.msra.mxu0 0.0
        %1108 = vmatprep.subr.mxu0 0.0
        %1109 = vmatpush2.msra.mxu0 0.0
        %1110 = vmatprep.subr.mxu0 0.0
        %1111 = vmatpush2.msra.mxu0 0.0
        %1112 = vmatprep.subr.mxu0 0.0
        %1113 = vmatpush2.msra.mxu0 0.0
        %1114 = vmatprep.subr.mxu0 0.0
        %1115 = vmatpush2.msra.mxu0 0.0
        %1116 = vmatprep.subr.mxu0 0.0
        %1117 = vmatpush2.msra.mxu0 0.0
        %1118 = vmatprep.subr.mxu0 0.0
        %1119 = vmatpush2.msra.mxu0 0.0
        %1120 = vmatprep.subr.mxu0 0.0
        %1121 = vmatpush2.msra.mxu0 0.0
        %1122 = vmatprep.subr.mxu0 0.0
        %1123 = vmatpush2.msra.mxu0 0.0
        %1124 = vmatprep.subr.mxu0 0.0
        %1125 = vmatpush2.msra.mxu0 0.0
        %1126 = vmatprep.subr.mxu0 0.0
        %1127 = vmatpush2.msra.mxu0 0.0
        %1128 = vmatprep.subr.mxu0 0.0
        %1129 = vmatpush2.msra.mxu0 0.0
        %1130 = vmatprep.subr.mxu0 0.0
        %1131 = vmatpush2.msra.mxu0 0.0
        %1132 = vmatprep.subr.mxu0 0.0
        %1133 = vmatpush2.msra.mxu0 0.0
        %1134 = vmatprep.mubr.f32.mxu0 0.0
        %v1135 = vand.u32 %v568, 4294901760
        %v1136 = vsub.f32 %v568, %v1135
        %v1137 = vand.u32 %v1136, 4294901760
        %v1138 = vsub.f32 %v1136, %v1137
        %v1139 = vand.u32 %v1138, 4294901760
        %1140 = vmatmul.mubr.f32.gmra.mxu0 %v1139
        %v1141 = vpop.f32.mrf.mxu0
        %v1142 = vadd.f32 %v1064, %v1141
        %v1143 = vpop.f32.mrf.mxu0
        %1144 = vdwg.mxu0
        %1145 = vmatprep.subr.mxu0 0.0
        %1146 = vmatpush1.msra.mxu0 0.0
        %1147 = vmatprep.subr.mxu0 0.0
        %1148 = vmatpush1.msra.mxu0 0.0
        %1149 = vmatprep.subr.mxu0 0.0
        %1150 = vmatpush1.msra.mxu0 0.0
        %1151 = vmatprep.subr.mxu0 0.0
        %1152 = vmatpush1.msra.mxu0 0.0
        %1153 = vmatprep.subr.mxu0 0.0
        %1154 = vmatpush1.msra.mxu0 0.0
        %1155 = vmatprep.subr.mxu0 0.0
        %1156 = vmatpush1.msra.mxu0 0.0
        %1157 = vmatprep.subr.mxu0 0.0
        %1158 = vmatpush1.msra.mxu0 0.0
        %1159 = vmatprep.subr.mxu0 0.0
        %1160 = vmatpush1.msra.mxu0 0.0
        %1161 = vmatprep.subr.mxu0 0.0
        %1162 = vmatpush1.msra.mxu0 0.0
        %1163 = vmatprep.subr.mxu0 0.0
        %1164 = vmatpush1.msra.mxu0 0.0
        %1165 = vmatprep.subr.mxu0 0.0
        %1166 = vmatpush1.msra.mxu0 0.0
        %1167 = vmatprep.subr.mxu0 0.0
        %1168 = vmatpush1.msra.mxu0 0.0
        %1169 = vmatprep.subr.mxu0 0.0
        %v1170 = vand.u32 %v1058, 4294901760
        %v1171 = vsub.f32 %v1058, %v1170
        %v1172 = vand.u32 %v1171, 4294901760
        %v1173 = vsub.f32 %v1171, %v1172
        %v1174 = vand.u32 %v1173, 4294901760
        %1175 = vmatpush1.msra.mxu0 %v1174
        %1176 = vmatprep.subr.mxu0 0.0
        %v1177 = vand.u32 %v1057, 4294901760
        %v1178 = vsub.f32 %v1057, %v1177
        %v1179 = vand.u32 %v1178, 4294901760
        %v1180 = vsub.f32 %v1178, %v1179
        %v1181 = vand.u32 %v1180, 4294901760
        %1182 = vmatpush1.msra.mxu0 %v1181
        %1183 = vmatprep.subr.mxu0 0.0
        %v1184 = vand.u32 %v1056, 4294901760
        %v1185 = vsub.f32 %v1056, %v1184
        %v1186 = vand.u32 %v1185, 4294901760
        %v1187 = vsub.f32 %v1185, %v1186
        %v1188 = vand.u32 %v1187, 4294901760
        %1189 = vmatpush1.msra.mxu0 %v1188
        %1190 = vmatprep.subr.mxu0 0.0
        %v1191 = vand.u32 %v1055, 4294901760
        %v1192 = vsub.f32 %v1055, %v1191
        %v1193 = vand.u32 %v1192, 4294901760
        %v1194 = vsub.f32 %v1192, %v1193
        %v1195 = vand.u32 %v1194, 4294901760
        %1196 = vmatpush1.msra.mxu0 %v1195
        %1197 = vmatprep.subr.mxu0 0.0
        %1198 = vmatpush2.msra.mxu0 0.0
        %1199 = vmatprep.subr.mxu0 0.0
        %1200 = vmatpush2.msra.mxu0 0.0
        %1201 = vmatprep.subr.mxu0 0.0
        %1202 = vmatpush2.msra.mxu0 0.0
        %1203 = vmatprep.subr.mxu0 0.0
        %1204 = vmatpush2.msra.mxu0 0.0
        %1205 = vmatprep.subr.mxu0 0.0
        %1206 = vmatpush2.msra.mxu0 0.0
        %1207 = vmatprep.subr.mxu0 0.0
        %1208 = vmatpush2.msra.mxu0 0.0
        %1209 = vmatprep.subr.mxu0 0.0
        %1210 = vmatpush2.msra.mxu0 0.0
        %1211 = vmatprep.subr.mxu0 0.0
        %1212 = vmatpush2.msra.mxu0 0.0
        %1213 = vmatprep.subr.mxu0 0.0
        %1214 = vmatpush2.msra.mxu0 0.0
        %1215 = vmatprep.subr.mxu0 0.0
        %1216 = vmatpush2.msra.mxu0 0.0
        %1217 = vmatprep.subr.mxu0 0.0
        %1218 = vmatpush2.msra.mxu0 0.0
        %1219 = vmatprep.subr.mxu0 0.0
        %1220 = vmatpush2.msra.mxu0 0.0
        %1221 = vmatprep.subr.mxu0 0.0
        %1222 = vmatpush2.msra.mxu0 0.0
        %1223 = vmatprep.subr.mxu0 0.0
        %1224 = vmatpush2.msra.mxu0 0.0
        %1225 = vmatprep.subr.mxu0 0.0
        %1226 = vmatpush2.msra.mxu0 0.0
        %1227 = vmatprep.subr.mxu0 0.0
        %1228 = vmatpush2.msra.mxu0 0.0
        %1229 = vmatprep.mubr.f32.mxu0 0.0
        %v1230 = vand.u32 %v568, 4294901760
        %1231 = vmatmul.mubr.f32.gmra.mxu0 %v1230
        %v1232 = vpop.f32.mrf.mxu0
        %v1233 = vadd.f32 %v1142, %v1232
        %v1234 = vpop.f32.mrf.mxu0
        %1235 = vdwg.mxu0
        %1236 = vmatprep.subr.mxu0 0.0
        %1237 = vmatpush1.msra.mxu0 0.0
        %1238 = vmatprep.subr.mxu0 0.0
        %1239 = vmatpush1.msra.mxu0 0.0
        %1240 = vmatprep.subr.mxu0 0.0
        %1241 = vmatpush1.msra.mxu0 0.0
        %1242 = vmatprep.subr.mxu0 0.0
        %1243 = vmatpush1.msra.mxu0 0.0
        %1244 = vmatprep.subr.mxu0 0.0
        %1245 = vmatpush1.msra.mxu0 0.0
        %1246 = vmatprep.subr.mxu0 0.0
        %1247 = vmatpush1.msra.mxu0 0.0
        %1248 = vmatprep.subr.mxu0 0.0
        %1249 = vmatpush1.msra.mxu0 0.0
        %1250 = vmatprep.subr.mxu0 0.0
        %1251 = vmatpush1.msra.mxu0 0.0
        %1252 = vmatprep.subr.mxu0 0.0
        %1253 = vmatpush1.msra.mxu0 0.0
        %1254 = vmatprep.subr.mxu0 0.0
        %1255 = vmatpush1.msra.mxu0 0.0
        %1256 = vmatprep.subr.mxu0 0.0
        %1257 = vmatpush1.msra.mxu0 0.0
        %1258 = vmatprep.subr.mxu0 0.0
        %1259 = vmatpush1.msra.mxu0 0.0
        %1260 = vmatprep.subr.mxu0 0.0
        %v1261 = vand.u32 %v1058, 4294901760
        %v1262 = vsub.f32 %v1058, %v1261
        %1263 = vmatpush1.msra.mxu0 %v1262
        %1264 = vmatprep.subr.mxu0 0.0
        %v1265 = vand.u32 %v1057, 4294901760
        %v1266 = vsub.f32 %v1057, %v1265
        %1267 = vmatpush1.msra.mxu0 %v1266
        %1268 = vmatprep.subr.mxu0 0.0
        %v1269 = vand.u32 %v1056, 4294901760
        %v1270 = vsub.f32 %v1056, %v1269
        %1271 = vmatpush1.msra.mxu0 %v1270
        %1272 = vmatprep.subr.mxu0 0.0
        %v1273 = vand.u32 %v1055, 4294901760
        %v1274 = vsub.f32 %v1055, %v1273
        %1275 = vmatpush1.msra.mxu0 %v1274
        %1276 = vmatprep.subr.mxu0 0.0
        %1277 = vmatpush2.msra.mxu0 0.0
        %1278 = vmatprep.subr.mxu0 0.0
        %1279 = vmatpush2.msra.mxu0 0.0
        %1280 = vmatprep.subr.mxu0 0.0
        %1281 = vmatpush2.msra.mxu0 0.0
        %1282 = vmatprep.subr.mxu0 0.0
        %1283 = vmatpush2.msra.mxu0 0.0
        %1284 = vmatprep.subr.mxu0 0.0
        %1285 = vmatpush2.msra.mxu0 0.0
        %1286 = vmatprep.subr.mxu0 0.0
        %1287 = vmatpush2.msra.mxu0 0.0
        %1288 = vmatprep.subr.mxu0 0.0
        %1289 = vmatpush2.msra.mxu0 0.0
        %1290 = vmatprep.subr.mxu0 0.0
        %1291 = vmatpush2.msra.mxu0 0.0
        %1292 = vmatprep.subr.mxu0 0.0
        %1293 = vmatpush2.msra.mxu0 0.0
        %1294 = vmatprep.subr.mxu0 0.0
        %1295 = vmatpush2.msra.mxu0 0.0
        %1296 = vmatprep.subr.mxu0 0.0
        %1297 = vmatpush2.msra.mxu0 0.0
        %1298 = vmatprep.subr.mxu0 0.0
        %1299 = vmatpush2.msra.mxu0 0.0
        %1300 = vmatprep.subr.mxu0 0.0
        %1301 = vmatpush2.msra.mxu0 0.0
        %1302 = vmatprep.subr.mxu0 0.0
        %1303 = vmatpush2.msra.mxu0 0.0
        %1304 = vmatprep.subr.mxu0 0.0
        %1305 = vmatpush2.msra.mxu0 0.0
        %1306 = vmatprep.subr.mxu0 0.0
        %1307 = vmatpush2.msra.mxu0 0.0
        %1308 = vmatprep.mubr.f32.mxu0 0.0
        %v1309 = vand.u32 %v568, 4294901760
        %v1310 = vsub.f32 %v568, %v1309
        %1311 = vmatmul.mubr.f32.gmra.mxu0 %v1310
        %v1312 = vpop.f32.mrf.mxu0
        %v1313 = vadd.f32 %v1233, %v1312
        %v1314 = vpop.f32.mrf.mxu0
        %1315 = vdwg.mxu0
        %1316 = vmatprep.subr.mxu0 0.0
        %1317 = vmatpush1.msra.mxu0 0.0
        %1318 = vmatprep.subr.mxu0 0.0
        %1319 = vmatpush1.msra.mxu0 0.0
        %1320 = vmatprep.subr.mxu0 0.0
        %1321 = vmatpush1.msra.mxu0 0.0
        %1322 = vmatprep.subr.mxu0 0.0
        %1323 = vmatpush1.msra.mxu0 0.0
        %1324 = vmatprep.subr.mxu0 0.0
        %1325 = vmatpush1.msra.mxu0 0.0
        %1326 = vmatprep.subr.mxu0 0.0
        %1327 = vmatpush1.msra.mxu0 0.0
        %1328 = vmatprep.subr.mxu0 0.0
        %1329 = vmatpush1.msra.mxu0 0.0
        %1330 = vmatprep.subr.mxu0 0.0
        %1331 = vmatpush1.msra.mxu0 0.0
        %1332 = vmatprep.subr.mxu0 0.0
        %1333 = vmatpush1.msra.mxu0 0.0
        %1334 = vmatprep.subr.mxu0 0.0
        %1335 = vmatpush1.msra.mxu0 0.0
        %1336 = vmatprep.subr.mxu0 0.0
        %1337 = vmatpush1.msra.mxu0 0.0
        %1338 = vmatprep.subr.mxu0 0.0
        %1339 = vmatpush1.msra.mxu0 0.0
        %1340 = vmatprep.subr.mxu0 0.0
        %v1341 = vand.u32 %v1058, 4294901760
        %1342 = vmatpush1.msra.mxu0 %v1341
        %1343 = vmatprep.subr.mxu0 0.0
        %v1344 = vand.u32 %v1057, 4294901760
        %1345 = vmatpush1.msra.mxu0 %v1344
        %1346 = vmatprep.subr.mxu0 0.0
        %v1347 = vand.u32 %v1056, 4294901760
        %1348 = vmatpush1.msra.mxu0 %v1347
        %1349 = vmatprep.subr.mxu0 0.0
        %v1350 = vand.u32 %v1055, 4294901760
        %1351 = vmatpush1.msra.mxu0 %v1350
        %1352 = vmatprep.subr.mxu0 0.0
        %1353 = vmatpush2.msra.mxu0 0.0
        %1354 = vmatprep.subr.mxu0 0.0
        %1355 = vmatpush2.msra.mxu0 0.0
        %1356 = vmatprep.subr.mxu0 0.0
        %1357 = vmatpush2.msra.mxu0 0.0
        %1358 = vmatprep.subr.mxu0 0.0
        %1359 = vmatpush2.msra.mxu0 0.0
        %1360 = vmatprep.subr.mxu0 0.0
        %1361 = vmatpush2.msra.mxu0 0.0
        %1362 = vmatprep.subr.mxu0 0.0
        %1363 = vmatpush2.msra.mxu0 0.0
        %1364 = vmatprep.subr.mxu0 0.0
        %1365 = vmatpush2.msra.mxu0 0.0
        %1366 = vmatprep.subr.mxu0 0.0
        %1367 = vmatpush2.msra.mxu0 0.0
        %1368 = vmatprep.subr.mxu0 0.0
        %1369 = vmatpush2.msra.mxu0 0.0
        %1370 = vmatprep.subr.mxu0 0.0
        %1371 = vmatpush2.msra.mxu0 0.0
        %1372 = vmatprep.subr.mxu0 0.0
        %1373 = vmatpush2.msra.mxu0 0.0
        %1374 = vmatprep.subr.mxu0 0.0
        %1375 = vmatpush2.msra.mxu0 0.0
        %1376 = vmatprep.subr.mxu0 0.0
        %1377 = vmatpush2.msra.mxu0 0.0
        %1378 = vmatprep.subr.mxu0 0.0
        %1379 = vmatpush2.msra.mxu0 0.0
        %1380 = vmatprep.subr.mxu0 0.0
        %1381 = vmatpush2.msra.mxu0 0.0
        %1382 = vmatprep.subr.mxu0 0.0
        %1383 = vmatpush2.msra.mxu0 0.0
        %1384 = vmatprep.mubr.f32.mxu0 0.0
        %v1385 = vand.u32 %v568, 4294901760
        %v1386 = vsub.f32 %v568, %v1385
        %v1387 = vand.u32 %v1386, 4294901760
        %1388 = vmatmul.mubr.f32.gmra.mxu0 %v1387
        %v1389 = vpop.f32.mrf.mxu0
        %v1390 = vadd.f32 %v1313, %v1389
        %v1391 = vpop.f32.mrf.mxu0
        %1392 = vdwg.mxu0
        %1393 = vmatprep.subr.mxu0 0.0
        %1394 = vmatpush1.msra.mxu0 0.0
        %1395 = vmatprep.subr.mxu0 0.0
        %1396 = vmatpush1.msra.mxu0 0.0
        %1397 = vmatprep.subr.mxu0 0.0
        %1398 = vmatpush1.msra.mxu0 0.0
        %1399 = vmatprep.subr.mxu0 0.0
        %1400 = vmatpush1.msra.mxu0 0.0
        %1401 = vmatprep.subr.mxu0 0.0
        %1402 = vmatpush1.msra.mxu0 0.0
        %1403 = vmatprep.subr.mxu0 0.0
        %1404 = vmatpush1.msra.mxu0 0.0
        %1405 = vmatprep.subr.mxu0 0.0
        %1406 = vmatpush1.msra.mxu0 0.0
        %1407 = vmatprep.subr.mxu0 0.0
        %1408 = vmatpush1.msra.mxu0 0.0
        %1409 = vmatprep.subr.mxu0 0.0
        %1410 = vmatpush1.msra.mxu0 0.0
        %1411 = vmatprep.subr.mxu0 0.0
        %1412 = vmatpush1.msra.mxu0 0.0
        %1413 = vmatprep.subr.mxu0 0.0
        %1414 = vmatpush1.msra.mxu0 0.0
        %1415 = vmatprep.subr.mxu0 0.0
        %1416 = vmatpush1.msra.mxu0 0.0
        %1417 = vmatprep.subr.mxu0 0.0
        %v1418 = vand.u32 %v1058, 4294901760
        %v1419 = vsub.f32 %v1058, %v1418
        %v1420 = vand.u32 %v1419, 4294901760
        %1421 = vmatpush1.msra.mxu0 %v1420
        %1422 = vmatprep.subr.mxu0 0.0
        %v1423 = vand.u32 %v1057, 4294901760
        %v1424 = vsub.f32 %v1057, %v1423
        %v1425 = vand.u32 %v1424, 4294901760
        %1426 = vmatpush1.msra.mxu0 %v1425
        %1427 = vmatprep.subr.mxu0 0.0
        %v1428 = vand.u32 %v1056, 4294901760
        %v1429 = vsub.f32 %v1056, %v1428
        %v1430 = vand.u32 %v1429, 4294901760
        %1431 = vmatpush1.msra.mxu0 %v1430
        %1432 = vmatprep.subr.mxu0 0.0
        %v1433 = vand.u32 %v1055, 4294901760
        %v1434 = vsub.f32 %v1055, %v1433
        %v1435 = vand.u32 %v1434, 4294901760
        %1436 = vmatpush1.msra.mxu0 %v1435
        %1437 = vmatprep.subr.mxu0 0.0
        %1438 = vmatpush2.msra.mxu0 0.0
        %1439 = vmatprep.subr.mxu0 0.0
        %1440 = vmatpush2.msra.mxu0 0.0
        %1441 = vmatprep.subr.mxu0 0.0
        %1442 = vmatpush2.msra.mxu0 0.0
        %1443 = vmatprep.subr.mxu0 0.0
        %1444 = vmatpush2.msra.mxu0 0.0
        %1445 = vmatprep.subr.mxu0 0.0
        %1446 = vmatpush2.msra.mxu0 0.0
        %1447 = vmatprep.subr.mxu0 0.0
        %1448 = vmatpush2.msra.mxu0 0.0
        %1449 = vmatprep.subr.mxu0 0.0
        %1450 = vmatpush2.msra.mxu0 0.0
        %1451 = vmatprep.subr.mxu0 0.0
        %1452 = vmatpush2.msra.mxu0 0.0
        %1453 = vmatprep.subr.mxu0 0.0
        %1454 = vmatpush2.msra.mxu0 0.0
        %1455 = vmatprep.subr.mxu0 0.0
        %1456 = vmatpush2.msra.mxu0 0.0
        %1457 = vmatprep.subr.mxu0 0.0
        %1458 = vmatpush2.msra.mxu0 0.0
        %1459 = vmatprep.subr.mxu0 0.0
        %1460 = vmatpush2.msra.mxu0 0.0
        %1461 = vmatprep.subr.mxu0 0.0
        %1462 = vmatpush2.msra.mxu0 0.0
        %1463 = vmatprep.subr.mxu0 0.0
        %1464 = vmatpush2.msra.mxu0 0.0
        %1465 = vmatprep.subr.mxu0 0.0
        %1466 = vmatpush2.msra.mxu0 0.0
        %1467 = vmatprep.subr.mxu0 0.0
        %1468 = vmatpush2.msra.mxu0 0.0
        %1469 = vmatprep.mubr.f32.mxu0 0.0
        %v1470 = vand.u32 %v568, 4294901760
        %1471 = vmatmul.mubr.f32.gmra.mxu0 %v1470
        %v1472 = vpop.f32.mrf.mxu0
        %v1473 = vadd.f32 %v1390, %v1472
        %v1474 = vpop.f32.mrf.mxu0
        %1475 = vdwg.mxu0
        %1476 = vmatprep.subr.mxu0 0.0
        %1477 = vmatpush1.msra.mxu0 0.0
        %1478 = vmatprep.subr.mxu0 0.0
        %1479 = vmatpush1.msra.mxu0 0.0
        %1480 = vmatprep.subr.mxu0 0.0
        %1481 = vmatpush1.msra.mxu0 0.0
        %1482 = vmatprep.subr.mxu0 0.0
        %1483 = vmatpush1.msra.mxu0 0.0
        %1484 = vmatprep.subr.mxu0 0.0
        %1485 = vmatpush1.msra.mxu0 0.0
        %1486 = vmatprep.subr.mxu0 0.0
        %1487 = vmatpush1.msra.mxu0 0.0
        %1488 = vmatprep.subr.mxu0 0.0
        %1489 = vmatpush1.msra.mxu0 0.0
        %1490 = vmatprep.subr.mxu0 0.0
        %1491 = vmatpush1.msra.mxu0 0.0
        %1492 = vmatprep.subr.mxu0 0.0
        %1493 = vmatpush1.msra.mxu0 0.0
        %1494 = vmatprep.subr.mxu0 0.0
        %1495 = vmatpush1.msra.mxu0 0.0
        %1496 = vmatprep.subr.mxu0 0.0
        %1497 = vmatpush1.msra.mxu0 0.0
        %1498 = vmatprep.subr.mxu0 0.0
        %1499 = vmatpush1.msra.mxu0 0.0
        %1500 = vmatprep.subr.mxu0 0.0
        %v1501 = vand.u32 %v1058, 4294901760
        %1502 = vmatpush1.msra.mxu0 %v1501
        %1503 = vmatprep.subr.mxu0 0.0
        %v1504 = vand.u32 %v1057, 4294901760
        %1505 = vmatpush1.msra.mxu0 %v1504
        %1506 = vmatprep.subr.mxu0 0.0
        %v1507 = vand.u32 %v1056, 4294901760
        %1508 = vmatpush1.msra.mxu0 %v1507
        %1509 = vmatprep.subr.mxu0 0.0
        %v1510 = vand.u32 %v1055, 4294901760
        %1511 = vmatpush1.msra.mxu0 %v1510
        %1512 = vmatprep.subr.mxu0 0.0
        %1513 = vmatpush2.msra.mxu0 0.0
        %1514 = vmatprep.subr.mxu0 0.0
        %1515 = vmatpush2.msra.mxu0 0.0
        %1516 = vmatprep.subr.mxu0 0.0
        %1517 = vmatpush2.msra.mxu0 0.0
        %1518 = vmatprep.subr.mxu0 0.0
        %1519 = vmatpush2.msra.mxu0 0.0
        %1520 = vmatprep.subr.mxu0 0.0
        %1521 = vmatpush2.msra.mxu0 0.0
        %1522 = vmatprep.subr.mxu0 0.0
        %1523 = vmatpush2.msra.mxu0 0.0
        %1524 = vmatprep.subr.mxu0 0.0
        %1525 = vmatpush2.msra.mxu0 0.0
        %1526 = vmatprep.subr.mxu0 0.0
        %1527 = vmatpush2.msra.mxu0 0.0
        %1528 = vmatprep.subr.mxu0 0.0
        %1529 = vmatpush2.msra.mxu0 0.0
        %1530 = vmatprep.subr.mxu0 0.0
        %1531 = vmatpush2.msra.mxu0 0.0
        %1532 = vmatprep.subr.mxu0 0.0
        %1533 = vmatpush2.msra.mxu0 0.0
        %1534 = vmatprep.subr.mxu0 0.0
        %1535 = vmatpush2.msra.mxu0 0.0
        %1536 = vmatprep.subr.mxu0 0.0
        %1537 = vmatpush2.msra.mxu0 0.0
        %1538 = vmatprep.subr.mxu0 0.0
        %1539 = vmatpush2.msra.mxu0 0.0
        %1540 = vmatprep.subr.mxu0 0.0
        %1541 = vmatpush2.msra.mxu0 0.0
        %1542 = vmatprep.subr.mxu0 0.0
        %1543 = vmatpush2.msra.mxu0 0.0
        %1544 = vmatprep.mubr.f32.mxu0 0.0
        %v1545 = vand.u32 %v568, 4294901760
        %1546 = vmatmul.mubr.f32.gmra.mxu0 %v1545
        %v1547 = vpop.f32.mrf.mxu0
        %v1548 = vadd.f32 %v1473, %v1547
        %v1549 = vpop.f32.mrf.mxu0
        %1550 = vdwg.mxu0
        %v1551 = vld [vmem:[#allocation11] sm:$0xff]
        %v1552 = vld [vmem:[#allocation11 + $0x8] sm:$0xff]
        %v1553 = vld [vmem:[#allocation11 + $0x10] sm:$0xff]
        %v1554 = vld [vmem:[#allocation11 + $0x18] sm:$0xff]
        %v1555 = vld [vmem:[%s9] sm:$0x1]
        %v1557 = vlaneseq
        %v1558 = vshrl.u32 %v1557, 7
        %v1559 = vsub.s32 0, %v1558
        %v1560 = vrot.slane %v1555, %v1559
        %1562 = vmatprep.subr.mxu0 0.0
        %1563 = vmatpush1.msra.mxu0 0.0
        %1564 = vmatprep.subr.mxu0 0.0
        %1565 = vmatpush1.msra.mxu0 0.0
        %1566 = vmatprep.subr.mxu0 0.0
        %1567 = vmatpush1.msra.mxu0 0.0
        %1568 = vmatprep.subr.mxu0 0.0
        %1569 = vmatpush1.msra.mxu0 0.0
        %1570 = vmatprep.subr.mxu0 0.0
        %1571 = vmatpush1.msra.mxu0 0.0
        %1572 = vmatprep.subr.mxu0 0.0
        %1573 = vmatpush1.msra.mxu0 0.0
        %1574 = vmatprep.subr.mxu0 0.0
        %1575 = vmatpush1.msra.mxu0 0.0
        %1576 = vmatprep.subr.mxu0 0.0
        %1577 = vmatpush1.msra.mxu0 0.0
        %1578 = vmatprep.subr.mxu0 0.0
        %1579 = vmatpush1.msra.mxu0 0.0
        %1580 = vmatprep.subr.mxu0 0.0
        %1581 = vmatpush1.msra.mxu0 0.0
        %1582 = vmatprep.subr.mxu0 0.0
        %1583 = vmatpush1.msra.mxu0 0.0
        %1584 = vmatprep.subr.mxu0 0.0
        %1585 = vmatpush1.msra.mxu0 0.0
        %1586 = vmatprep.subr.mxu0 0.0
        %v1587 = vand.u32 %v1554, 4294901760
        %1588 = vmatpush1.msra.mxu0 %v1587
        %1589 = vmatprep.subr.mxu0 0.0
        %v1590 = vand.u32 %v1553, 4294901760
        %1591 = vmatpush1.msra.mxu0 %v1590
        %1592 = vmatprep.subr.mxu0 0.0
        %v1593 = vand.u32 %v1552, 4294901760
        %1594 = vmatpush1.msra.mxu0 %v1593
        %1595 = vmatprep.subr.mxu0 0.0
        %v1596 = vand.u32 %v1551, 4294901760
        %1597 = vmatpush1.msra.mxu0 %v1596
        %1598 = vmatprep.subr.mxu0 0.0
        %1599 = vmatpush2.msra.mxu0 0.0
        %1600 = vmatprep.subr.mxu0 0.0
        %1601 = vmatpush2.msra.mxu0 0.0
        %1602 = vmatprep.subr.mxu0 0.0
        %1603 = vmatpush2.msra.mxu0 0.0
        %1604 = vmatprep.subr.mxu0 0.0
        %1605 = vmatpush2.msra.mxu0 0.0
        %1606 = vmatprep.subr.mxu0 0.0
        %1607 = vmatpush2.msra.mxu0 0.0
        %1608 = vmatprep.subr.mxu0 0.0
        %1609 = vmatpush2.msra.mxu0 0.0
        %1610 = vmatprep.subr.mxu0 0.0
        %1611 = vmatpush2.msra.mxu0 0.0
        %1612 = vmatprep.subr.mxu0 0.0
        %1613 = vmatpush2.msra.mxu0 0.0
        %1614 = vmatprep.subr.mxu0 0.0
        %1615 = vmatpush2.msra.mxu0 0.0
        %1616 = vmatprep.subr.mxu0 0.0
        %1617 = vmatpush2.msra.mxu0 0.0
        %1618 = vmatprep.subr.mxu0 0.0
        %1619 = vmatpush2.msra.mxu0 0.0
        %1620 = vmatprep.subr.mxu0 0.0
        %1621 = vmatpush2.msra.mxu0 0.0
        %1622 = vmatprep.subr.mxu0 0.0
        %1623 = vmatpush2.msra.mxu0 0.0
        %1624 = vmatprep.subr.mxu0 0.0
        %1625 = vmatpush2.msra.mxu0 0.0
        %1626 = vmatprep.subr.mxu0 0.0
        %1627 = vmatpush2.msra.mxu0 0.0
        %1628 = vmatprep.subr.mxu0 0.0
        %1629 = vmatpush2.msra.mxu0 0.0
        %1630 = vmatprep.mubr.f32.mxu0 0.0
        %v1631 = vand.u32 %v568, 4294901760
        %v1632 = vsub.f32 %v568, %v1631
        %v1633 = vand.u32 %v1632, 4294901760
        %v1634 = vsub.f32 %v1632, %v1633
        %v1635 = vand.u32 %v1634, 4294901760
        %1636 = vmatmul.mubr.f32.gmra.mxu0 %v1635
        %v1637 = vpop.f32.mrf.mxu0
        %v1638 = vadd.f32 %v1560, %v1637
        %v1639 = vpop.f32.mrf.mxu0
        %1640 = vdwg.mxu0
        %1641 = vmatprep.subr.mxu0 0.0
        %1642 = vmatpush1.msra.mxu0 0.0
        %1643 = vmatprep.subr.mxu0 0.0
        %1644 = vmatpush1.msra.mxu0 0.0
        %1645 = vmatprep.subr.mxu0 0.0
        %1646 = vmatpush1.msra.mxu0 0.0
        %1647 = vmatprep.subr.mxu0 0.0
        %1648 = vmatpush1.msra.mxu0 0.0
        %1649 = vmatprep.subr.mxu0 0.0
        %1650 = vmatpush1.msra.mxu0 0.0
        %1651 = vmatprep.subr.mxu0 0.0
        %1652 = vmatpush1.msra.mxu0 0.0
        %1653 = vmatprep.subr.mxu0 0.0
        %1654 = vmatpush1.msra.mxu0 0.0
        %1655 = vmatprep.subr.mxu0 0.0
        %1656 = vmatpush1.msra.mxu0 0.0
        %1657 = vmatprep.subr.mxu0 0.0
        %1658 = vmatpush1.msra.mxu0 0.0
        %1659 = vmatprep.subr.mxu0 0.0
        %1660 = vmatpush1.msra.mxu0 0.0
        %1661 = vmatprep.subr.mxu0 0.0
        %1662 = vmatpush1.msra.mxu0 0.0
        %1663 = vmatprep.subr.mxu0 0.0
        %1664 = vmatpush1.msra.mxu0 0.0
        %1665 = vmatprep.subr.mxu0 0.0
        %v1666 = vand.u32 %v1554, 4294901760
        %v1667 = vsub.f32 %v1554, %v1666
        %v1668 = vand.u32 %v1667, 4294901760
        %v1669 = vsub.f32 %v1667, %v1668
        %v1670 = vand.u32 %v1669, 4294901760
        %1671 = vmatpush1.msra.mxu0 %v1670
        %1672 = vmatprep.subr.mxu0 0.0
        %v1673 = vand.u32 %v1553, 4294901760
        %v1674 = vsub.f32 %v1553, %v1673
        %v1675 = vand.u32 %v1674, 4294901760
        %v1676 = vsub.f32 %v1674, %v1675
        %v1677 = vand.u32 %v1676, 4294901760
        %1678 = vmatpush1.msra.mxu0 %v1677
        %1679 = vmatprep.subr.mxu0 0.0
        %v1680 = vand.u32 %v1552, 4294901760
        %v1681 = vsub.f32 %v1552, %v1680
        %v1682 = vand.u32 %v1681, 4294901760
        %v1683 = vsub.f32 %v1681, %v1682
        %v1684 = vand.u32 %v1683, 4294901760
        %1685 = vmatpush1.msra.mxu0 %v1684
        %1686 = vmatprep.subr.mxu0 0.0
        %v1687 = vand.u32 %v1551, 4294901760
        %v1688 = vsub.f32 %v1551, %v1687
        %v1689 = vand.u32 %v1688, 4294901760
        %v1690 = vsub.f32 %v1688, %v1689
        %v1691 = vand.u32 %v1690, 4294901760
        %1692 = vmatpush1.msra.mxu0 %v1691
        %1693 = vmatprep.subr.mxu0 0.0
        %1694 = vmatpush2.msra.mxu0 0.0
        %1695 = vmatprep.subr.mxu0 0.0
        %1696 = vmatpush2.msra.mxu0 0.0
        %1697 = vmatprep.subr.mxu0 0.0
        %1698 = vmatpush2.msra.mxu0 0.0
        %1699 = vmatprep.subr.mxu0 0.0
        %1700 = vmatpush2.msra.mxu0 0.0
        %1701 = vmatprep.subr.mxu0 0.0
        %1702 = vmatpush2.msra.mxu0 0.0
        %1703 = vmatprep.subr.mxu0 0.0
        %1704 = vmatpush2.msra.mxu0 0.0
        %1705 = vmatprep.subr.mxu0 0.0
        %1706 = vmatpush2.msra.mxu0 0.0
        %1707 = vmatprep.subr.mxu0 0.0
        %1708 = vmatpush2.msra.mxu0 0.0
        %1709 = vmatprep.subr.mxu0 0.0
        %1710 = vmatpush2.msra.mxu0 0.0
        %1711 = vmatprep.subr.mxu0 0.0
        %1712 = vmatpush2.msra.mxu0 0.0
        %1713 = vmatprep.subr.mxu0 0.0
        %1714 = vmatpush2.msra.mxu0 0.0
        %1715 = vmatprep.subr.mxu0 0.0
        %1716 = vmatpush2.msra.mxu0 0.0
        %1717 = vmatprep.subr.mxu0 0.0
        %1718 = vmatpush2.msra.mxu0 0.0
        %1719 = vmatprep.subr.mxu0 0.0
        %1720 = vmatpush2.msra.mxu0 0.0
        %1721 = vmatprep.subr.mxu0 0.0
        %1722 = vmatpush2.msra.mxu0 0.0
        %1723 = vmatprep.subr.mxu0 0.0
        %1724 = vmatpush2.msra.mxu0 0.0
        %1725 = vmatprep.mubr.f32.mxu0 0.0
        %v1726 = vand.u32 %v568, 4294901760
        %1727 = vmatmul.mubr.f32.gmra.mxu0 %v1726
        %v1728 = vpop.f32.mrf.mxu0
        %v1729 = vadd.f32 %v1638, %v1728
        %v1730 = vpop.f32.mrf.mxu0
        %1731 = vdwg.mxu0
        %1732 = vmatprep.subr.mxu0 0.0
        %1733 = vmatpush1.msra.mxu0 0.0
        %1734 = vmatprep.subr.mxu0 0.0
        %1735 = vmatpush1.msra.mxu0 0.0
        %1736 = vmatprep.subr.mxu0 0.0
        %1737 = vmatpush1.msra.mxu0 0.0
        %1738 = vmatprep.subr.mxu0 0.0
        %1739 = vmatpush1.msra.mxu0 0.0
        %1740 = vmatprep.subr.mxu0 0.0
        %1741 = vmatpush1.msra.mxu0 0.0
        %1742 = vmatprep.subr.mxu0 0.0
        %1743 = vmatpush1.msra.mxu0 0.0
        %1744 = vmatprep.subr.mxu0 0.0
        %1745 = vmatpush1.msra.mxu0 0.0
        %1746 = vmatprep.subr.mxu0 0.0
        %1747 = vmatpush1.msra.mxu0 0.0
        %1748 = vmatprep.subr.mxu0 0.0
        %1749 = vmatpush1.msra.mxu0 0.0
        %1750 = vmatprep.subr.mxu0 0.0
        %1751 = vmatpush1.msra.mxu0 0.0
        %1752 = vmatprep.subr.mxu0 0.0
        %1753 = vmatpush1.msra.mxu0 0.0
        %1754 = vmatprep.subr.mxu0 0.0
        %1755 = vmatpush1.msra.mxu0 0.0
        %1756 = vmatprep.subr.mxu0 0.0
        %v1757 = vand.u32 %v1554, 4294901760
        %v1758 = vsub.f32 %v1554, %v1757
        %1759 = vmatpush1.msra.mxu0 %v1758
        %1760 = vmatprep.subr.mxu0 0.0
        %v1761 = vand.u32 %v1553, 4294901760
        %v1762 = vsub.f32 %v1553, %v1761
        %1763 = vmatpush1.msra.mxu0 %v1762
        %1764 = vmatprep.subr.mxu0 0.0
        %v1765 = vand.u32 %v1552, 4294901760
        %v1766 = vsub.f32 %v1552, %v1765
        %1767 = vmatpush1.msra.mxu0 %v1766
        %1768 = vmatprep.subr.mxu0 0.0
        %v1769 = vand.u32 %v1551, 4294901760
        %v1770 = vsub.f32 %v1551, %v1769
        %1771 = vmatpush1.msra.mxu0 %v1770
        %1772 = vmatprep.subr.mxu0 0.0
        %1773 = vmatpush2.msra.mxu0 0.0
        %1774 = vmatprep.subr.mxu0 0.0
        %1775 = vmatpush2.msra.mxu0 0.0
        %1776 = vmatprep.subr.mxu0 0.0
        %1777 = vmatpush2.msra.mxu0 0.0
        %1778 = vmatprep.subr.mxu0 0.0
        %1779 = vmatpush2.msra.mxu0 0.0
        %1780 = vmatprep.subr.mxu0 0.0
        %1781 = vmatpush2.msra.mxu0 0.0
        %1782 = vmatprep.subr.mxu0 0.0
        %1783 = vmatpush2.msra.mxu0 0.0
        %1784 = vmatprep.subr.mxu0 0.0
        %1785 = vmatpush2.msra.mxu0 0.0
        %1786 = vmatprep.subr.mxu0 0.0
        %1787 = vmatpush2.msra.mxu0 0.0
        %1788 = vmatprep.subr.mxu0 0.0
        %1789 = vmatpush2.msra.mxu0 0.0
        %1790 = vmatprep.subr.mxu0 0.0
        %1791 = vmatpush2.msra.mxu0 0.0
        %1792 = vmatprep.subr.mxu0 0.0
        %1793 = vmatpush2.msra.mxu0 0.0
        %1794 = vmatprep.subr.mxu0 0.0
        %1795 = vmatpush2.msra.mxu0 0.0
        %1796 = vmatprep.subr.mxu0 0.0
        %1797 = vmatpush2.msra.mxu0 0.0
        %1798 = vmatprep.subr.mxu0 0.0
        %1799 = vmatpush2.msra.mxu0 0.0
        %1800 = vmatprep.subr.mxu0 0.0
        %1801 = vmatpush2.msra.mxu0 0.0
        %1802 = vmatprep.subr.mxu0 0.0
        %1803 = vmatpush2.msra.mxu0 0.0
        %1804 = vmatprep.mubr.f32.mxu0 0.0
        %v1805 = vand.u32 %v568, 4294901760
        %v1806 = vsub.f32 %v568, %v1805
        %1807 = vmatmul.mubr.f32.gmra.mxu0 %v1806
        %v1808 = vpop.f32.mrf.mxu0
        %v1809 = vadd.f32 %v1729, %v1808
        %v1810 = vpop.f32.mrf.mxu0
        %1811 = vdwg.mxu0
        %1812 = vmatprep.subr.mxu0 0.0
        %1813 = vmatpush1.msra.mxu0 0.0
        %1814 = vmatprep.subr.mxu0 0.0
        %1815 = vmatpush1.msra.mxu0 0.0
        %1816 = vmatprep.subr.mxu0 0.0
        %1817 = vmatpush1.msra.mxu0 0.0
        %1818 = vmatprep.subr.mxu0 0.0
        %1819 = vmatpush1.msra.mxu0 0.0
        %1820 = vmatprep.subr.mxu0 0.0
        %1821 = vmatpush1.msra.mxu0 0.0
        %1822 = vmatprep.subr.mxu0 0.0
        %1823 = vmatpush1.msra.mxu0 0.0
        %1824 = vmatprep.subr.mxu0 0.0
        %1825 = vmatpush1.msra.mxu0 0.0
        %1826 = vmatprep.subr.mxu0 0.0
        %1827 = vmatpush1.msra.mxu0 0.0
        %1828 = vmatprep.subr.mxu0 0.0
        %1829 = vmatpush1.msra.mxu0 0.0
        %1830 = vmatprep.subr.mxu0 0.0
        %1831 = vmatpush1.msra.mxu0 0.0
        %1832 = vmatprep.subr.mxu0 0.0
        %1833 = vmatpush1.msra.mxu0 0.0
        %1834 = vmatprep.subr.mxu0 0.0
        %1835 = vmatpush1.msra.mxu0 0.0
        %1836 = vmatprep.subr.mxu0 0.0
        %v1837 = vand.u32 %v1554, 4294901760
        %1838 = vmatpush1.msra.mxu0 %v1837
        %1839 = vmatprep.subr.mxu0 0.0
        %v1840 = vand.u32 %v1553, 4294901760
        %1841 = vmatpush1.msra.mxu0 %v1840
        %1842 = vmatprep.subr.mxu0 0.0
        %v1843 = vand.u32 %v1552, 4294901760
        %1844 = vmatpush1.msra.mxu0 %v1843
        %1845 = vmatprep.subr.mxu0 0.0
        %v1846 = vand.u32 %v1551, 4294901760
        %1847 = vmatpush1.msra.mxu0 %v1846
        %1848 = vmatprep.subr.mxu0 0.0
        %1849 = vmatpush2.msra.mxu0 0.0
        %1850 = vmatprep.subr.mxu0 0.0
        %1851 = vmatpush2.msra.mxu0 0.0
        %1852 = vmatprep.subr.mxu0 0.0
        %1853 = vmatpush2.msra.mxu0 0.0
        %1854 = vmatprep.subr.mxu0 0.0
        %1855 = vmatpush2.msra.mxu0 0.0
        %1856 = vmatprep.subr.mxu0 0.0
        %1857 = vmatpush2.msra.mxu0 0.0
        %1858 = vmatprep.subr.mxu0 0.0
        %1859 = vmatpush2.msra.mxu0 0.0
        %1860 = vmatprep.subr.mxu0 0.0
        %1861 = vmatpush2.msra.mxu0 0.0
        %1862 = vmatprep.subr.mxu0 0.0
        %1863 = vmatpush2.msra.mxu0 0.0
        %1864 = vmatprep.subr.mxu0 0.0
        %1865 = vmatpush2.msra.mxu0 0.0
        %1866 = vmatprep.subr.mxu0 0.0
        %1867 = vmatpush2.msra.mxu0 0.0
        %1868 = vmatprep.subr.mxu0 0.0
        %1869 = vmatpush2.msra.mxu0 0.0
        %1870 = vmatprep.subr.mxu0 0.0
        %1871 = vmatpush2.msra.mxu0 0.0
        %1872 = vmatprep.subr.mxu0 0.0
        %1873 = vmatpush2.msra.mxu0 0.0
        %1874 = vmatprep.subr.mxu0 0.0
        %1875 = vmatpush2.msra.mxu0 0.0
        %1876 = vmatprep.subr.mxu0 0.0
        %1877 = vmatpush2.msra.mxu0 0.0
        %1878 = vmatprep.subr.mxu0 0.0
        %1879 = vmatpush2.msra.mxu0 0.0
        %1880 = vmatprep.mubr.f32.mxu0 0.0
        %v1881 = vand.u32 %v568, 4294901760
        %v1882 = vsub.f32 %v568, %v1881
        %v1883 = vand.u32 %v1882, 4294901760
        %1884 = vmatmul.mubr.f32.gmra.mxu0 %v1883
        %v1885 = vpop.f32.mrf.mxu0
        %v1886 = vadd.f32 %v1809, %v1885
        %v1887 = vpop.f32.mrf.mxu0
        %1888 = vdwg.mxu0
        %1889 = vmatprep.subr.mxu0 0.0
        %1890 = vmatpush1.msra.mxu0 0.0
        %1891 = vmatprep.subr.mxu0 0.0
        %1892 = vmatpush1.msra.mxu0 0.0
        %1893 = vmatprep.subr.mxu0 0.0
        %1894 = vmatpush1.msra.mxu0 0.0
        %1895 = vmatprep.subr.mxu0 0.0
        %1896 = vmatpush1.msra.mxu0 0.0
        %1897 = vmatprep.subr.mxu0 0.0
        %1898 = vmatpush1.msra.mxu0 0.0
        %1899 = vmatprep.subr.mxu0 0.0
        %1900 = vmatpush1.msra.mxu0 0.0
        %1901 = vmatprep.subr.mxu0 0.0
        %1902 = vmatpush1.msra.mxu0 0.0
        %1903 = vmatprep.subr.mxu0 0.0
        %1904 = vmatpush1.msra.mxu0 0.0
        %1905 = vmatprep.subr.mxu0 0.0
        %1906 = vmatpush1.msra.mxu0 0.0
        %1907 = vmatprep.subr.mxu0 0.0
        %1908 = vmatpush1.msra.mxu0 0.0
        %1909 = vmatprep.subr.mxu0 0.0
        %1910 = vmatpush1.msra.mxu0 0.0
        %1911 = vmatprep.subr.mxu0 0.0
        %1912 = vmatpush1.msra.mxu0 0.0
        %1913 = vmatprep.subr.mxu0 0.0
        %v1914 = vand.u32 %v1554, 4294901760
        %v1915 = vsub.f32 %v1554, %v1914
        %v1916 = vand.u32 %v1915, 4294901760
        %1917 = vmatpush1.msra.mxu0 %v1916
        %1918 = vmatprep.subr.mxu0 0.0
        %v1919 = vand.u32 %v1553, 4294901760
        %v1920 = vsub.f32 %v1553, %v1919
        %v1921 = vand.u32 %v1920, 4294901760
        %1922 = vmatpush1.msra.mxu0 %v1921
        %1923 = vmatprep.subr.mxu0 0.0
        %v1924 = vand.u32 %v1552, 4294901760
        %v1925 = vsub.f32 %v1552, %v1924
        %v1926 = vand.u32 %v1925, 4294901760
        %1927 = vmatpush1.msra.mxu0 %v1926
        %1928 = vmatprep.subr.mxu0 0.0
        %v1929 = vand.u32 %v1551, 4294901760
        %v1930 = vsub.f32 %v1551, %v1929
        %v1931 = vand.u32 %v1930, 4294901760
        %1932 = vmatpush1.msra.mxu0 %v1931
        %1933 = vmatprep.subr.mxu0 0.0
        %1934 = vmatpush2.msra.mxu0 0.0
        %1935 = vmatprep.subr.mxu0 0.0
        %1936 = vmatpush2.msra.mxu0 0.0
        %1937 = vmatprep.subr.mxu0 0.0
        %1938 = vmatpush2.msra.mxu0 0.0
        %1939 = vmatprep.subr.mxu0 0.0
        %1940 = vmatpush2.msra.mxu0 0.0
        %1941 = vmatprep.subr.mxu0 0.0
        %1942 = vmatpush2.msra.mxu0 0.0
        %1943 = vmatprep.subr.mxu0 0.0
        %1944 = vmatpush2.msra.mxu0 0.0
        %1945 = vmatprep.subr.mxu0 0.0
        %1946 = vmatpush2.msra.mxu0 0.0
        %1947 = vmatprep.subr.mxu0 0.0
        %1948 = vmatpush2.msra.mxu0 0.0
        %1949 = vmatprep.subr.mxu0 0.0
        %1950 = vmatpush2.msra.mxu0 0.0
        %1951 = vmatprep.subr.mxu0 0.0
        %1952 = vmatpush2.msra.mxu0 0.0
        %1953 = vmatprep.subr.mxu0 0.0
        %1954 = vmatpush2.msra.mxu0 0.0
        %1955 = vmatprep.subr.mxu0 0.0
        %1956 = vmatpush2.msra.mxu0 0.0
        %1957 = vmatprep.subr.mxu0 0.0
        %1958 = vmatpush2.msra.mxu0 0.0
        %1959 = vmatprep.subr.mxu0 0.0
        %1960 = vmatpush2.msra.mxu0 0.0
        %1961 = vmatprep.subr.mxu0 0.0
        %1962 = vmatpush2.msra.mxu0 0.0
        %1963 = vmatprep.subr.mxu0 0.0
        %1964 = vmatpush2.msra.mxu0 0.0
        %1965 = vmatprep.mubr.f32.mxu0 0.0
        %v1966 = vand.u32 %v568, 4294901760
        %1967 = vmatmul.mubr.f32.gmra.mxu0 %v1966
        %v1968 = vpop.f32.mrf.mxu0
        %v1969 = vadd.f32 %v1886, %v1968
        %v1970 = vpop.f32.mrf.mxu0
        %1971 = vdwg.mxu0
        %1972 = vmatprep.subr.mxu0 0.0
        %1973 = vmatpush1.msra.mxu0 0.0
        %1974 = vmatprep.subr.mxu0 0.0
        %1975 = vmatpush1.msra.mxu0 0.0
        %1976 = vmatprep.subr.mxu0 0.0
        %1977 = vmatpush1.msra.mxu0 0.0
        %1978 = vmatprep.subr.mxu0 0.0
        %1979 = vmatpush1.msra.mxu0 0.0
        %1980 = vmatprep.subr.mxu0 0.0
        %1981 = vmatpush1.msra.mxu0 0.0
        %1982 = vmatprep.subr.mxu0 0.0
        %1983 = vmatpush1.msra.mxu0 0.0
        %1984 = vmatprep.subr.mxu0 0.0
        %1985 = vmatpush1.msra.mxu0 0.0
        %1986 = vmatprep.subr.mxu0 0.0
        %1987 = vmatpush1.msra.mxu0 0.0
        %1988 = vmatprep.subr.mxu0 0.0
        %1989 = vmatpush1.msra.mxu0 0.0
        %1990 = vmatprep.subr.mxu0 0.0
        %1991 = vmatpush1.msra.mxu0 0.0
        %1992 = vmatprep.subr.mxu0 0.0
        %1993 = vmatpush1.msra.mxu0 0.0
        %1994 = vmatprep.subr.mxu0 0.0
        %1995 = vmatpush1.msra.mxu0 0.0
        %1996 = vmatprep.subr.mxu0 0.0
        %v1997 = vand.u32 %v1554, 4294901760
        %1998 = vmatpush1.msra.mxu0 %v1997
        %1999 = vmatprep.subr.mxu0 0.0
        %v2000 = vand.u32 %v1553, 4294901760
        %2001 = vmatpush1.msra.mxu0 %v2000
        %2002 = vmatprep.subr.mxu0 0.0
        %v2003 = vand.u32 %v1552, 4294901760
        %2004 = vmatpush1.msra.mxu0 %v2003
        %2005 = vmatprep.subr.mxu0 0.0
        %v2006 = vand.u32 %v1551, 4294901760
        %2007 = vmatpush1.msra.mxu0 %v2006
        %2008 = vmatprep.subr.mxu0 0.0
        %2009 = vmatpush2.msra.mxu0 0.0
        %2010 = vmatprep.subr.mxu0 0.0
        %2011 = vmatpush2.msra.mxu0 0.0
        %2012 = vmatprep.subr.mxu0 0.0
        %2013 = vmatpush2.msra.mxu0 0.0
        %2014 = vmatprep.subr.mxu0 0.0
        %2015 = vmatpush2.msra.mxu0 0.0
        %2016 = vmatprep.subr.mxu0 0.0
        %2017 = vmatpush2.msra.mxu0 0.0
        %2018 = vmatprep.subr.mxu0 0.0
        %2019 = vmatpush2.msra.mxu0 0.0
        %2020 = vmatprep.subr.mxu0 0.0
        %2021 = vmatpush2.msra.mxu0 0.0
        %2022 = vmatprep.subr.mxu0 0.0
        %2023 = vmatpush2.msra.mxu0 0.0
        %2024 = vmatprep.subr.mxu0 0.0
        %2025 = vmatpush2.msra.mxu0 0.0
        %2026 = vmatprep.subr.mxu0 0.0
        %2027 = vmatpush2.msra.mxu0 0.0
        %2028 = vmatprep.subr.mxu0 0.0
        %2029 = vmatpush2.msra.mxu0 0.0
        %2030 = vmatprep.subr.mxu0 0.0
        %2031 = vmatpush2.msra.mxu0 0.0
        %2032 = vmatprep.subr.mxu0 0.0
        %2033 = vmatpush2.msra.mxu0 0.0
        %2034 = vmatprep.subr.mxu0 0.0
        %2035 = vmatpush2.msra.mxu0 0.0
        %2036 = vmatprep.subr.mxu0 0.0
        %2037 = vmatpush2.msra.mxu0 0.0
        %2038 = vmatprep.subr.mxu0 0.0
        %2039 = vmatpush2.msra.mxu0 0.0
        %2040 = vmatprep.mubr.f32.mxu0 0.0
        %v2041 = vand.u32 %v568, 4294901760
        %2042 = vmatmul.mubr.f32.gmra.mxu0 %v2041
        %v2043 = vpop.f32.mrf.mxu0
        %v2044 = vadd.f32 %v1969, %v2043
        %v2045 = vpop.f32.mrf.mxu0
        %2046 = vdwg.mxu0
        %v2047 = vld [vmem:[#allocation6] sm:$0xff]
        %vm2048 = vcmask 64512
        %v2050 = vsel %vm2048, %v1052, 0
        %v2053 = vsel %vm2048, %v1548, 0
        %2055 = vmatprep.subr.mxu0 0.0
        %2056 = vmatpush1.xpose.msra.mxu0 0.0
        %2057 = vmatprep.subr.mxu0 0.0
        %2058 = vmatpush1.xpose.msra.mxu0 0.0
        %2059 = vmatprep.subr.mxu0 0.0
        %2060 = vmatpush1.xpose.msra.mxu0 0.0
        %2061 = vmatprep.subr.mxu0 0.0
        %2062 = vmatpush1.xpose.msra.mxu0 0.0
        %2063 = vmatprep.subr.mxu0 0.0
        %2064 = vmatpush1.xpose.msra.mxu0 0.0
        %2065 = vmatprep.subr.mxu0 0.0
        %2066 = vmatpush1.xpose.msra.mxu0 0.0
        %2067 = vmatprep.subr.mxu0 0.0
        %2068 = vmatpush1.xpose.msra.mxu0 0.0
        %2069 = vmatprep.subr.mxu0 0.0
        %2070 = vmatpush1.xpose.msra.mxu0 0.0
        %2071 = vmatprep.subr.mxu0 0.0
        %2072 = vmatpush1.xpose.msra.mxu0 0.0
        %2073 = vmatprep.subr.mxu0 0.0
        %2074 = vmatpush1.xpose.msra.mxu0 0.0
        %2075 = vmatprep.subr.mxu0 0.0
        %2076 = vmatpush1.xpose.msra.mxu0 0.0
        %2077 = vmatprep.subr.mxu0 0.0
        %2078 = vmatpush1.xpose.msra.mxu0 0.0
        %2079 = vmatprep.subr.mxu0 0.0
        %2080 = vmatpush1.xpose.msra.mxu0 0.0
        %2081 = vmatprep.subr.mxu0 0.0
        %2082 = vmatpush1.xpose.msra.mxu0 0.0
        %2083 = vmatprep.subr.mxu0 0.0
        %2084 = vmatpush1.xpose.msra.mxu0 0.0
        %2085 = vmatprep.subr.mxu0 0.0
        %v2086 = vand.u32 %v2053, 4294901760
        %2087 = vmatpush1.xpose.msra.mxu0 %v2086
        %2088 = vmatprep.subr.mxu0 0.0
        %2089 = vmatpush2.xpose.msra.mxu0 0.0
        %2090 = vmatprep.subr.mxu0 0.0
        %2091 = vmatpush2.xpose.msra.mxu0 0.0
        %2092 = vmatprep.subr.mxu0 0.0
        %2093 = vmatpush2.xpose.msra.mxu0 0.0
        %2094 = vmatprep.subr.mxu0 0.0
        %2095 = vmatpush2.xpose.msra.mxu0 0.0
        %2096 = vmatprep.subr.mxu0 0.0
        %2097 = vmatpush2.xpose.msra.mxu0 0.0
        %2098 = vmatprep.subr.mxu0 0.0
        %2099 = vmatpush2.xpose.msra.mxu0 0.0
        %2100 = vmatprep.subr.mxu0 0.0
        %2101 = vmatpush2.xpose.msra.mxu0 0.0
        %2102 = vmatprep.subr.mxu0 0.0
        %2103 = vmatpush2.xpose.msra.mxu0 0.0
        %2104 = vmatprep.subr.mxu0 0.0
        %2105 = vmatpush2.xpose.msra.mxu0 0.0
        %2106 = vmatprep.subr.mxu0 0.0
        %2107 = vmatpush2.xpose.msra.mxu0 0.0
        %2108 = vmatprep.subr.mxu0 0.0
        %2109 = vmatpush2.xpose.msra.mxu0 0.0
        %2110 = vmatprep.subr.mxu0 0.0
        %2111 = vmatpush2.xpose.msra.mxu0 0.0
        %2112 = vmatprep.subr.mxu0 0.0
        %2113 = vmatpush2.xpose.msra.mxu0 0.0
        %2114 = vmatprep.subr.mxu0 0.0
        %2115 = vmatpush2.xpose.msra.mxu0 0.0
        %2116 = vmatprep.subr.mxu0 0.0
        %2117 = vmatpush2.xpose.msra.mxu0 0.0
        %2118 = vmatprep.subr.mxu0 0.0
        %2119 = vmatpush2.xpose.msra.mxu0 0.0
        %2120 = vmatprep.mubr.f32.mxu0 0.0
        %v2121 = vand.u32 %v2050, 4294901760
        %v2122 = vsub.f32 %v2050, %v2121
        %v2123 = vand.u32 %v2122, 4294901760
        %v2124 = vsub.f32 %v2122, %v2123
        %v2125 = vand.u32 %v2124, 4294901760
        %2126 = vmatmul.mubr.f32.gmra.mxu0 %v2125
        %v2127 = vpop.f32.mrf.mxu0
        %v2128 = vadd.f32 0.0, %v2127
        %v2129 = vpop.f32.mrf.mxu0
        %2130 = vdwg.mxu0
        %2131 = vmatprep.subr.mxu0 0.0
        %2132 = vmatpush1.xpose.msra.mxu0 0.0
        %2133 = vmatprep.subr.mxu0 0.0
        %2134 = vmatpush1.xpose.msra.mxu0 0.0
        %2135 = vmatprep.subr.mxu0 0.0
        %2136 = vmatpush1.xpose.msra.mxu0 0.0
        %2137 = vmatprep.subr.mxu0 0.0
        %2138 = vmatpush1.xpose.msra.mxu0 0.0
        %2139 = vmatprep.subr.mxu0 0.0
        %2140 = vmatpush1.xpose.msra.mxu0 0.0
        %2141 = vmatprep.subr.mxu0 0.0
        %2142 = vmatpush1.xpose.msra.mxu0 0.0
        %2143 = vmatprep.subr.mxu0 0.0
        %2144 = vmatpush1.xpose.msra.mxu0 0.0
        %2145 = vmatprep.subr.mxu0 0.0
        %2146 = vmatpush1.xpose.msra.mxu0 0.0
        %2147 = vmatprep.subr.mxu0 0.0
        %2148 = vmatpush1.xpose.msra.mxu0 0.0
        %2149 = vmatprep.subr.mxu0 0.0
        %2150 = vmatpush1.xpose.msra.mxu0 0.0
        %2151 = vmatprep.subr.mxu0 0.0
        %2152 = vmatpush1.xpose.msra.mxu0 0.0
        %2153 = vmatprep.subr.mxu0 0.0
        %2154 = vmatpush1.xpose.msra.mxu0 0.0
        %2155 = vmatprep.subr.mxu0 0.0
        %2156 = vmatpush1.xpose.msra.mxu0 0.0
        %2157 = vmatprep.subr.mxu0 0.0
        %2158 = vmatpush1.xpose.msra.mxu0 0.0
        %2159 = vmatprep.subr.mxu0 0.0
        %2160 = vmatpush1.xpose.msra.mxu0 0.0
        %2161 = vmatprep.subr.mxu0 0.0
        %v2162 = vand.u32 %v2053, 4294901760
        %v2163 = vsub.f32 %v2053, %v2162
        %v2164 = vand.u32 %v2163, 4294901760
        %v2165 = vsub.f32 %v2163, %v2164
        %v2166 = vand.u32 %v2165, 4294901760
        %2167 = vmatpush1.xpose.msra.mxu0 %v2166
        %2168 = vmatprep.subr.mxu0 0.0
        %2169 = vmatpush2.xpose.msra.mxu0 0.0
        %2170 = vmatprep.subr.mxu0 0.0
        %2171 = vmatpush2.xpose.msra.mxu0 0.0
        %2172 = vmatprep.subr.mxu0 0.0
        %2173 = vmatpush2.xpose.msra.mxu0 0.0
        %2174 = vmatprep.subr.mxu0 0.0
        %2175 = vmatpush2.xpose.msra.mxu0 0.0
        %2176 = vmatprep.subr.mxu0 0.0
        %2177 = vmatpush2.xpose.msra.mxu0 0.0
        %2178 = vmatprep.subr.mxu0 0.0
        %2179 = vmatpush2.xpose.msra.mxu0 0.0
        %2180 = vmatprep.subr.mxu0 0.0
        %2181 = vmatpush2.xpose.msra.mxu0 0.0
        %2182 = vmatprep.subr.mxu0 0.0
        %2183 = vmatpush2.xpose.msra.mxu0 0.0
        %2184 = vmatprep.subr.mxu0 0.0
        %2185 = vmatpush2.xpose.msra.mxu0 0.0
        %2186 = vmatprep.subr.mxu0 0.0
        %2187 = vmatpush2.xpose.msra.mxu0 0.0
        %2188 = vmatprep.subr.mxu0 0.0
        %2189 = vmatpush2.xpose.msra.mxu0 0.0
        %2190 = vmatprep.subr.mxu0 0.0
        %2191 = vmatpush2.xpose.msra.mxu0 0.0
        %2192 = vmatprep.subr.mxu0 0.0
        %2193 = vmatpush2.xpose.msra.mxu0 0.0
        %2194 = vmatprep.subr.mxu0 0.0
        %2195 = vmatpush2.xpose.msra.mxu0 0.0
        %2196 = vmatprep.subr.mxu0 0.0
        %2197 = vmatpush2.xpose.msra.mxu0 0.0
        %2198 = vmatprep.subr.mxu0 0.0
        %2199 = vmatpush2.xpose.msra.mxu0 0.0
        %2200 = vmatprep.mubr.f32.mxu0 0.0
        %v2201 = vand.u32 %v2050, 4294901760
        %2202 = vmatmul.mubr.f32.gmra.mxu0 %v2201
        %v2203 = vpop.f32.mrf.mxu0
        %v2204 = vadd.f32 %v2128, %v2203
        %v2205 = vpop.f32.mrf.mxu0
        %2206 = vdwg.mxu0
        %2207 = vmatprep.subr.mxu0 0.0
        %2208 = vmatpush1.xpose.msra.mxu0 0.0
        %2209 = vmatprep.subr.mxu0 0.0
        %2210 = vmatpush1.xpose.msra.mxu0 0.0
        %2211 = vmatprep.subr.mxu0 0.0
        %2212 = vmatpush1.xpose.msra.mxu0 0.0
        %2213 = vmatprep.subr.mxu0 0.0
        %2214 = vmatpush1.xpose.msra.mxu0 0.0
        %2215 = vmatprep.subr.mxu0 0.0
        %2216 = vmatpush1.xpose.msra.mxu0 0.0
        %2217 = vmatprep.subr.mxu0 0.0
        %2218 = vmatpush1.xpose.msra.mxu0 0.0
        %2219 = vmatprep.subr.mxu0 0.0
        %2220 = vmatpush1.xpose.msra.mxu0 0.0
        %2221 = vmatprep.subr.mxu0 0.0
        %2222 = vmatpush1.xpose.msra.mxu0 0.0
        %2223 = vmatprep.subr.mxu0 0.0
        %2224 = vmatpush1.xpose.msra.mxu0 0.0
        %2225 = vmatprep.subr.mxu0 0.0
        %2226 = vmatpush1.xpose.msra.mxu0 0.0
        %2227 = vmatprep.subr.mxu0 0.0
        %2228 = vmatpush1.xpose.msra.mxu0 0.0
        %2229 = vmatprep.subr.mxu0 0.0
        %2230 = vmatpush1.xpose.msra.mxu0 0.0
        %2231 = vmatprep.subr.mxu0 0.0
        %2232 = vmatpush1.xpose.msra.mxu0 0.0
        %2233 = vmatprep.subr.mxu0 0.0
        %2234 = vmatpush1.xpose.msra.mxu0 0.0
        %2235 = vmatprep.subr.mxu0 0.0
        %2236 = vmatpush1.xpose.msra.mxu0 0.0
        %2237 = vmatprep.subr.mxu0 0.0
        %v2238 = vand.u32 %v2053, 4294901760
        %v2239 = vsub.f32 %v2053, %v2238
        %2240 = vmatpush1.xpose.msra.mxu0 %v2239
        %2241 = vmatprep.subr.mxu0 0.0
        %2242 = vmatpush2.xpose.msra.mxu0 0.0
        %2243 = vmatprep.subr.mxu0 0.0
        %2244 = vmatpush2.xpose.msra.mxu0 0.0
        %2245 = vmatprep.subr.mxu0 0.0
        %2246 = vmatpush2.xpose.msra.mxu0 0.0
        %2247 = vmatprep.subr.mxu0 0.0
        %2248 = vmatpush2.xpose.msra.mxu0 0.0
        %2249 = vmatprep.subr.mxu0 0.0
        %2250 = vmatpush2.xpose.msra.mxu0 0.0
        %2251 = vmatprep.subr.mxu0 0.0
        %2252 = vmatpush2.xpose.msra.mxu0 0.0
        %2253 = vmatprep.subr.mxu0 0.0
        %2254 = vmatpush2.xpose.msra.mxu0 0.0
        %2255 = vmatprep.subr.mxu0 0.0
        %2256 = vmatpush2.xpose.msra.mxu0 0.0
        %2257 = vmatprep.subr.mxu0 0.0
        %2258 = vmatpush2.xpose.msra.mxu0 0.0
        %2259 = vmatprep.subr.mxu0 0.0
        %2260 = vmatpush2.xpose.msra.mxu0 0.0
        %2261 = vmatprep.subr.mxu0 0.0
        %2262 = vmatpush2.xpose.msra.mxu0 0.0
        %2263 = vmatprep.subr.mxu0 0.0
        %2264 = vmatpush2.xpose.msra.mxu0 0.0
        %2265 = vmatprep.subr.mxu0 0.0
        %2266 = vmatpush2.xpose.msra.mxu0 0.0
        %2267 = vmatprep.subr.mxu0 0.0
        %2268 = vmatpush2.xpose.msra.mxu0 0.0
        %2269 = vmatprep.subr.mxu0 0.0
        %2270 = vmatpush2.xpose.msra.mxu0 0.0
        %2271 = vmatprep.subr.mxu0 0.0
        %2272 = vmatpush2.xpose.msra.mxu0 0.0
        %2273 = vmatprep.mubr.f32.mxu0 0.0
        %v2274 = vand.u32 %v2050, 4294901760
        %v2275 = vsub.f32 %v2050, %v2274
        %2276 = vmatmul.mubr.f32.gmra.mxu0 %v2275
        %v2277 = vpop.f32.mrf.mxu0
        %v2278 = vadd.f32 %v2204, %v2277
        %v2279 = vpop.f32.mrf.mxu0
        %2280 = vdwg.mxu0
        %2281 = vmatprep.subr.mxu0 0.0
        %2282 = vmatpush1.xpose.msra.mxu0 0.0
        %2283 = vmatprep.subr.mxu0 0.0
        %2284 = vmatpush1.xpose.msra.mxu0 0.0
        %2285 = vmatprep.subr.mxu0 0.0
        %2286 = vmatpush1.xpose.msra.mxu0 0.0
        %2287 = vmatprep.subr.mxu0 0.0
        %2288 = vmatpush1.xpose.msra.mxu0 0.0
        %2289 = vmatprep.subr.mxu0 0.0
        %2290 = vmatpush1.xpose.msra.mxu0 0.0
        %2291 = vmatprep.subr.mxu0 0.0
        %2292 = vmatpush1.xpose.msra.mxu0 0.0
        %2293 = vmatprep.subr.mxu0 0.0
        %2294 = vmatpush1.xpose.msra.mxu0 0.0
        %2295 = vmatprep.subr.mxu0 0.0
        %2296 = vmatpush1.xpose.msra.mxu0 0.0
        %2297 = vmatprep.subr.mxu0 0.0
        %2298 = vmatpush1.xpose.msra.mxu0 0.0
        %2299 = vmatprep.subr.mxu0 0.0
        %2300 = vmatpush1.xpose.msra.mxu0 0.0
        %2301 = vmatprep.subr.mxu0 0.0
        %2302 = vmatpush1.xpose.msra.mxu0 0.0
        %2303 = vmatprep.subr.mxu0 0.0
        %2304 = vmatpush1.xpose.msra.mxu0 0.0
        %2305 = vmatprep.subr.mxu0 0.0
        %2306 = vmatpush1.xpose.msra.mxu0 0.0
        %2307 = vmatprep.subr.mxu0 0.0
        %2308 = vmatpush1.xpose.msra.mxu0 0.0
        %2309 = vmatprep.subr.mxu0 0.0
        %2310 = vmatpush1.xpose.msra.mxu0 0.0
        %2311 = vmatprep.subr.mxu0 0.0
        %v2312 = vand.u32 %v2053, 4294901760
        %2313 = vmatpush1.xpose.msra.mxu0 %v2312
        %2314 = vmatprep.subr.mxu0 0.0
        %2315 = vmatpush2.xpose.msra.mxu0 0.0
        %2316 = vmatprep.subr.mxu0 0.0
        %2317 = vmatpush2.xpose.msra.mxu0 0.0
        %2318 = vmatprep.subr.mxu0 0.0
        %2319 = vmatpush2.xpose.msra.mxu0 0.0
        %2320 = vmatprep.subr.mxu0 0.0
        %2321 = vmatpush2.xpose.msra.mxu0 0.0
        %2322 = vmatprep.subr.mxu0 0.0
        %2323 = vmatpush2.xpose.msra.mxu0 0.0
        %2324 = vmatprep.subr.mxu0 0.0
        %2325 = vmatpush2.xpose.msra.mxu0 0.0
        %2326 = vmatprep.subr.mxu0 0.0
        %2327 = vmatpush2.xpose.msra.mxu0 0.0
        %2328 = vmatprep.subr.mxu0 0.0
        %2329 = vmatpush2.xpose.msra.mxu0 0.0
        %2330 = vmatprep.subr.mxu0 0.0
        %2331 = vmatpush2.xpose.msra.mxu0 0.0
        %2332 = vmatprep.subr.mxu0 0.0
        %2333 = vmatpush2.xpose.msra.mxu0 0.0
        %2334 = vmatprep.subr.mxu0 0.0
        %2335 = vmatpush2.xpose.msra.mxu0 0.0
        %2336 = vmatprep.subr.mxu0 0.0
        %2337 = vmatpush2.xpose.msra.mxu0 0.0
        %2338 = vmatprep.subr.mxu0 0.0
        %2339 = vmatpush2.xpose.msra.mxu0 0.0
        %2340 = vmatprep.subr.mxu0 0.0
        %2341 = vmatpush2.xpose.msra.mxu0 0.0
        %2342 = vmatprep.subr.mxu0 0.0
        %2343 = vmatpush2.xpose.msra.mxu0 0.0
        %2344 = vmatprep.subr.mxu0 0.0
        %2345 = vmatpush2.xpose.msra.mxu0 0.0
        %2346 = vmatprep.mubr.f32.mxu0 0.0
        %v2347 = vand.u32 %v2050, 4294901760
        %v2348 = vsub.f32 %v2050, %v2347
        %v2349 = vand.u32 %v2348, 4294901760
        %2350 = vmatmul.mubr.f32.gmra.mxu0 %v2349
        %v2351 = vpop.f32.mrf.mxu0
        %v2352 = vadd.f32 %v2278, %v2351
        %v2353 = vpop.f32.mrf.mxu0
        %2354 = vdwg.mxu0
        %2355 = vmatprep.subr.mxu0 0.0
        %2356 = vmatpush1.xpose.msra.mxu0 0.0
        %2357 = vmatprep.subr.mxu0 0.0
        %2358 = vmatpush1.xpose.msra.mxu0 0.0
        %2359 = vmatprep.subr.mxu0 0.0
        %2360 = vmatpush1.xpose.msra.mxu0 0.0
        %2361 = vmatprep.subr.mxu0 0.0
        %2362 = vmatpush1.xpose.msra.mxu0 0.0
        %2363 = vmatprep.subr.mxu0 0.0
        %2364 = vmatpush1.xpose.msra.mxu0 0.0
        %2365 = vmatprep.subr.mxu0 0.0
        %2366 = vmatpush1.xpose.msra.mxu0 0.0
        %2367 = vmatprep.subr.mxu0 0.0
        %2368 = vmatpush1.xpose.msra.mxu0 0.0
        %2369 = vmatprep.subr.mxu0 0.0
        %2370 = vmatpush1.xpose.msra.mxu0 0.0
        %2371 = vmatprep.subr.mxu0 0.0
        %2372 = vmatpush1.xpose.msra.mxu0 0.0
        %2373 = vmatprep.subr.mxu0 0.0
        %2374 = vmatpush1.xpose.msra.mxu0 0.0
        %2375 = vmatprep.subr.mxu0 0.0
        %2376 = vmatpush1.xpose.msra.mxu0 0.0
        %2377 = vmatprep.subr.mxu0 0.0
        %2378 = vmatpush1.xpose.msra.mxu0 0.0
        %2379 = vmatprep.subr.mxu0 0.0
        %2380 = vmatpush1.xpose.msra.mxu0 0.0
        %2381 = vmatprep.subr.mxu0 0.0
        %2382 = vmatpush1.xpose.msra.mxu0 0.0
        %2383 = vmatprep.subr.mxu0 0.0
        %2384 = vmatpush1.xpose.msra.mxu0 0.0
        %2385 = vmatprep.subr.mxu0 0.0
        %v2386 = vand.u32 %v2053, 4294901760
        %v2387 = vsub.f32 %v2053, %v2386
        %v2388 = vand.u32 %v2387, 4294901760
        %2389 = vmatpush1.xpose.msra.mxu0 %v2388
        %2390 = vmatprep.subr.mxu0 0.0
        %2391 = vmatpush2.xpose.msra.mxu0 0.0
        %2392 = vmatprep.subr.mxu0 0.0
        %2393 = vmatpush2.xpose.msra.mxu0 0.0
        %2394 = vmatprep.subr.mxu0 0.0
        %2395 = vmatpush2.xpose.msra.mxu0 0.0
        %2396 = vmatprep.subr.mxu0 0.0
        %2397 = vmatpush2.xpose.msra.mxu0 0.0
        %2398 = vmatprep.subr.mxu0 0.0
        %2399 = vmatpush2.xpose.msra.mxu0 0.0
        %2400 = vmatprep.subr.mxu0 0.0
        %2401 = vmatpush2.xpose.msra.mxu0 0.0
        %2402 = vmatprep.subr.mxu0 0.0
        %2403 = vmatpush2.xpose.msra.mxu0 0.0
        %2404 = vmatprep.subr.mxu0 0.0
        %2405 = vmatpush2.xpose.msra.mxu0 0.0
        %2406 = vmatprep.subr.mxu0 0.0
        %2407 = vmatpush2.xpose.msra.mxu0 0.0
        %2408 = vmatprep.subr.mxu0 0.0
        %2409 = vmatpush2.xpose.msra.mxu0 0.0
        %2410 = vmatprep.subr.mxu0 0.0
        %2411 = vmatpush2.xpose.msra.mxu0 0.0
        %2412 = vmatprep.subr.mxu0 0.0
        %2413 = vmatpush2.xpose.msra.mxu0 0.0
        %2414 = vmatprep.subr.mxu0 0.0
        %2415 = vmatpush2.xpose.msra.mxu0 0.0
        %2416 = vmatprep.subr.mxu0 0.0
        %2417 = vmatpush2.xpose.msra.mxu0 0.0
        %2418 = vmatprep.subr.mxu0 0.0
        %2419 = vmatpush2.xpose.msra.mxu0 0.0
        %2420 = vmatprep.subr.mxu0 0.0
        %2421 = vmatpush2.xpose.msra.mxu0 0.0
        %2422 = vmatprep.mubr.f32.mxu0 0.0
        %v2423 = vand.u32 %v2050, 4294901760
        %2424 = vmatmul.mubr.f32.gmra.mxu0 %v2423
        %v2425 = vpop.f32.mrf.mxu0
        %v2426 = vadd.f32 %v2352, %v2425
        %v2427 = vpop.f32.mrf.mxu0
        %2428 = vdwg.mxu0
        %2429 = vmatprep.subr.mxu0 0.0
        %2430 = vmatpush1.xpose.msra.mxu0 0.0
        %2431 = vmatprep.subr.mxu0 0.0
        %2432 = vmatpush1.xpose.msra.mxu0 0.0
        %2433 = vmatprep.subr.mxu0 0.0
        %2434 = vmatpush1.xpose.msra.mxu0 0.0
        %2435 = vmatprep.subr.mxu0 0.0
        %2436 = vmatpush1.xpose.msra.mxu0 0.0
        %2437 = vmatprep.subr.mxu0 0.0
        %2438 = vmatpush1.xpose.msra.mxu0 0.0
        %2439 = vmatprep.subr.mxu0 0.0
        %2440 = vmatpush1.xpose.msra.mxu0 0.0
        %2441 = vmatprep.subr.mxu0 0.0
        %2442 = vmatpush1.xpose.msra.mxu0 0.0
        %2443 = vmatprep.subr.mxu0 0.0
        %2444 = vmatpush1.xpose.msra.mxu0 0.0
        %2445 = vmatprep.subr.mxu0 0.0
        %2446 = vmatpush1.xpose.msra.mxu0 0.0
        %2447 = vmatprep.subr.mxu0 0.0
        %2448 = vmatpush1.xpose.msra.mxu0 0.0
        %2449 = vmatprep.subr.mxu0 0.0
        %2450 = vmatpush1.xpose.msra.mxu0 0.0
        %2451 = vmatprep.subr.mxu0 0.0
        %2452 = vmatpush1.xpose.msra.mxu0 0.0
        %2453 = vmatprep.subr.mxu0 0.0
        %2454 = vmatpush1.xpose.msra.mxu0 0.0
        %2455 = vmatprep.subr.mxu0 0.0
        %2456 = vmatpush1.xpose.msra.mxu0 0.0
        %2457 = vmatprep.subr.mxu0 0.0
        %2458 = vmatpush1.xpose.msra.mxu0 0.0
        %2459 = vmatprep.subr.mxu0 0.0
        %v2460 = vand.u32 %v2053, 4294901760
        %2461 = vmatpush1.xpose.msra.mxu0 %v2460
        %2462 = vmatprep.subr.mxu0 0.0
        %2463 = vmatpush2.xpose.msra.mxu0 0.0
        %2464 = vmatprep.subr.mxu0 0.0
        %2465 = vmatpush2.xpose.msra.mxu0 0.0
        %2466 = vmatprep.subr.mxu0 0.0
        %2467 = vmatpush2.xpose.msra.mxu0 0.0
        %2468 = vmatprep.subr.mxu0 0.0
        %2469 = vmatpush2.xpose.msra.mxu0 0.0
        %2470 = vmatprep.subr.mxu0 0.0
        %2471 = vmatpush2.xpose.msra.mxu0 0.0
        %2472 = vmatprep.subr.mxu0 0.0
        %2473 = vmatpush2.xpose.msra.mxu0 0.0
        %2474 = vmatprep.subr.mxu0 0.0
        %2475 = vmatpush2.xpose.msra.mxu0 0.0
        %2476 = vmatprep.subr.mxu0 0.0
        %2477 = vmatpush2.xpose.msra.mxu0 0.0
        %2478 = vmatprep.subr.mxu0 0.0
        %2479 = vmatpush2.xpose.msra.mxu0 0.0
        %2480 = vmatprep.subr.mxu0 0.0
        %2481 = vmatpush2.xpose.msra.mxu0 0.0
        %2482 = vmatprep.subr.mxu0 0.0
        %2483 = vmatpush2.xpose.msra.mxu0 0.0
        %2484 = vmatprep.subr.mxu0 0.0
        %2485 = vmatpush2.xpose.msra.mxu0 0.0
        %2486 = vmatprep.subr.mxu0 0.0
        %2487 = vmatpush2.xpose.msra.mxu0 0.0
        %2488 = vmatprep.subr.mxu0 0.0
        %2489 = vmatpush2.xpose.msra.mxu0 0.0
        %2490 = vmatprep.subr.mxu0 0.0
        %2491 = vmatpush2.xpose.msra.mxu0 0.0
        %2492 = vmatprep.subr.mxu0 0.0
        %2493 = vmatpush2.xpose.msra.mxu0 0.0
        %2494 = vmatprep.mubr.f32.mxu0 0.0
        %v2495 = vand.u32 %v2050, 4294901760
        %2496 = vmatmul.mubr.f32.gmra.mxu0 %v2495
        %v2497 = vpop.f32.mrf.mxu0
        %v2498 = vadd.f32 %v2426, %v2497
        %v2499 = vpop.f32.mrf.mxu0
        %2500 = vdwg.mxu0
        %v2501 = vmul.f32 %v2498, 0.35355338
        %v2502 = vadd.f32 %v2501, %v2047
        %v2503 = vsel %vm2048, %v2502, -inf
        %2504 = vmax.xlane.f32.xlu0 %v2503
        %v2505 = vpop.xlane.xlu0 %2504
        %v2506 = vsub.f32 %v2502, %v2505
        %v2507 = vmul.f32 %v2506, 1.442695
        %v2508 = vpow.pop %v2507
        %v2509 = vsel %vm2048, %v2508, 0.0
        %2510 = vadd.xlane.f32.xlu0 %v2509
        %v2511 = vpop.xlane.xlu0 %2510
        %v2512 = vrcp.pop %v2511
        %v2513 = vmul.f32 %v2508, %v2512
        %v2515 = vsel %vm2048, %v2513, 0
        %2517 = vmatprep.subr.mxu0 0.0
        %2518 = vmatpush1.msra.mxu0 0.0
        %2519 = vmatprep.subr.mxu0 0.0
        %2520 = vmatpush1.msra.mxu0 0.0
        %2521 = vmatprep.subr.mxu0 0.0
        %2522 = vmatpush1.msra.mxu0 0.0
        %2523 = vmatprep.subr.mxu0 0.0
        %2524 = vmatpush1.msra.mxu0 0.0
        %2525 = vmatprep.subr.mxu0 0.0
        %2526 = vmatpush1.msra.mxu0 0.0
        %2527 = vmatprep.subr.mxu0 0.0
        %2528 = vmatpush1.msra.mxu0 0.0
        %2529 = vmatprep.subr.mxu0 0.0
        %2530 = vmatpush1.msra.mxu0 0.0
        %2531 = vmatprep.subr.mxu0 0.0
        %2532 = vmatpush1.msra.mxu0 0.0
        %2533 = vmatprep.subr.mxu0 0.0
        %2534 = vmatpush1.msra.mxu0 0.0
        %2535 = vmatprep.subr.mxu0 0.0
        %2536 = vmatpush1.msra.mxu0 0.0
        %2537 = vmatprep.subr.mxu0 0.0
        %2538 = vmatpush1.msra.mxu0 0.0
        %2539 = vmatprep.subr.mxu0 0.0
        %2540 = vmatpush1.msra.mxu0 0.0
        %2541 = vmatprep.subr.mxu0 0.0
        %2542 = vmatpush1.msra.mxu0 0.0
        %2543 = vmatprep.subr.mxu0 0.0
        %2544 = vmatpush1.msra.mxu0 0.0
        %2545 = vmatprep.subr.mxu0 0.0
        %2546 = vmatpush1.msra.mxu0 0.0
        %2547 = vmatprep.subr.mxu0 0.0
        %v2548 = vand.u32 %v2044, 4294901760
        %2549 = vmatpush1.msra.mxu0 %v2548
        %2550 = vmatprep.subr.mxu0 0.0
        %2551 = vmatpush2.msra.mxu0 0.0
        %2552 = vmatprep.subr.mxu0 0.0
        %2553 = vmatpush2.msra.mxu0 0.0
        %2554 = vmatprep.subr.mxu0 0.0
        %2555 = vmatpush2.msra.mxu0 0.0
        %2556 = vmatprep.subr.mxu0 0.0
        %2557 = vmatpush2.msra.mxu0 0.0
        %2558 = vmatprep.subr.mxu0 0.0
        %2559 = vmatpush2.msra.mxu0 0.0
        %2560 = vmatprep.subr.mxu0 0.0
        %2561 = vmatpush2.msra.mxu0 0.0
        %2562 = vmatprep.subr.mxu0 0.0
        %2563 = vmatpush2.msra.mxu0 0.0
        %2564 = vmatprep.subr.mxu0 0.0
        %2565 = vmatpush2.msra.mxu0 0.0
        %2566 = vmatprep.subr.mxu0 0.0
        %2567 = vmatpush2.msra.mxu0 0.0
        %2568 = vmatprep.subr.mxu0 0.0
        %2569 = vmatpush2.msra.mxu0 0.0
        %2570 = vmatprep.subr.mxu0 0.0
        %2571 = vmatpush2.msra.mxu0 0.0
        %2572 = vmatprep.subr.mxu0 0.0
        %2573 = vmatpush2.msra.mxu0 0.0
        %2574 = vmatprep.subr.mxu0 0.0
        %2575 = vmatpush2.msra.mxu0 0.0
        %2576 = vmatprep.subr.mxu0 0.0
        %2577 = vmatpush2.msra.mxu0 0.0
        %2578 = vmatprep.subr.mxu0 0.0
        %2579 = vmatpush2.msra.mxu0 0.0
        %2580 = vmatprep.subr.mxu0 0.0
        %2581 = vmatpush2.msra.mxu0 0.0
        %2582 = vmatprep.mubr.f32.mxu0 0.0
        %v2583 = vand.u32 %v2515, 4294901760
        %v2584 = vsub.f32 %v2515, %v2583
        %v2585 = vand.u32 %v2584, 4294901760
        %v2586 = vsub.f32 %v2584, %v2585
        %v2587 = vand.u32 %v2586, 4294901760
        %2588 = vmatmul.mubr.f32.gmra.mxu0 %v2587
        %v2589 = vpop.f32.mrf.mxu0
        %v2590 = vadd.f32 0.0, %v2589
        %v2591 = vpop.f32.mrf.mxu0
        %2592 = vdwg.mxu0
        %2593 = vmatprep.subr.mxu0 0.0
        %2594 = vmatpush1.msra.mxu0 0.0
        %2595 = vmatprep.subr.mxu0 0.0
        %2596 = vmatpush1.msra.mxu0 0.0
        %2597 = vmatprep.subr.mxu0 0.0
        %2598 = vmatpush1.msra.mxu0 0.0
        %2599 = vmatprep.subr.mxu0 0.0
        %2600 = vmatpush1.msra.mxu0 0.0
        %2601 = vmatprep.subr.mxu0 0.0
        %2602 = vmatpush1.msra.mxu0 0.0
        %2603 = vmatprep.subr.mxu0 0.0
        %2604 = vmatpush1.msra.mxu0 0.0
        %2605 = vmatprep.subr.mxu0 0.0
        %2606 = vmatpush1.msra.mxu0 0.0
        %2607 = vmatprep.subr.mxu0 0.0
        %2608 = vmatpush1.msra.mxu0 0.0
        %2609 = vmatprep.subr.mxu0 0.0
        %2610 = vmatpush1.msra.mxu0 0.0
        %2611 = vmatprep.subr.mxu0 0.0
        %2612 = vmatpush1.msra.mxu0 0.0
        %2613 = vmatprep.subr.mxu0 0.0
        %2614 = vmatpush1.msra.mxu0 0.0
        %2615 = vmatprep.subr.mxu0 0.0
        %2616 = vmatpush1.msra.mxu0 0.0
        %2617 = vmatprep.subr.mxu0 0.0
        %2618 = vmatpush1.msra.mxu0 0.0
        %2619 = vmatprep.subr.mxu0 0.0
        %2620 = vmatpush1.msra.mxu0 0.0
        %2621 = vmatprep.subr.mxu0 0.0
        %2622 = vmatpush1.msra.mxu0 0.0
        %2623 = vmatprep.subr.mxu0 0.0
        %v2624 = vand.u32 %v2044, 4294901760
        %v2625 = vsub.f32 %v2044, %v2624
        %v2626 = vand.u32 %v2625, 4294901760
        %v2627 = vsub.f32 %v2625, %v2626
        %v2628 = vand.u32 %v2627, 4294901760
        %2629 = vmatpush1.msra.mxu0 %v2628
        %2630 = vmatprep.subr.mxu0 0.0
        %2631 = vmatpush2.msra.mxu0 0.0
        %2632 = vmatprep.subr.mxu0 0.0
        %2633 = vmatpush2.msra.mxu0 0.0
        %2634 = vmatprep.subr.mxu0 0.0
        %2635 = vmatpush2.msra.mxu0 0.0
        %2636 = vmatprep.subr.mxu0 0.0
        %2637 = vmatpush2.msra.mxu0 0.0
        %2638 = vmatprep.subr.mxu0 0.0
        %2639 = vmatpush2.msra.mxu0 0.0
        %2640 = vmatprep.subr.mxu0 0.0
        %2641 = vmatpush2.msra.mxu0 0.0
        %2642 = vmatprep.subr.mxu0 0.0
        %2643 = vmatpush2.msra.mxu0 0.0
        %2644 = vmatprep.subr.mxu0 0.0
        %2645 = vmatpush2.msra.mxu0 0.0
        %2646 = vmatprep.subr.mxu0 0.0
        %2647 = vmatpush2.msra.mxu0 0.0
        %2648 = vmatprep.subr.mxu0 0.0
        %2649 = vmatpush2.msra.mxu0 0.0
        %2650 = vmatprep.subr.mxu0 0.0
        %2651 = vmatpush2.msra.mxu0 0.0
        %2652 = vmatprep.subr.mxu0 0.0
        %2653 = vmatpush2.msra.mxu0 0.0
        %2654 = vmatprep.subr.mxu0 0.0
        %2655 = vmatpush2.msra.mxu0 0.0
        %2656 = vmatprep.subr.mxu0 0.0
        %2657 = vmatpush2.msra.mxu0 0.0
        %2658 = vmatprep.subr.mxu0 0.0
        %2659 = vmatpush2.msra.mxu0 0.0
        %2660 = vmatprep.subr.mxu0 0.0
        %2661 = vmatpush2.msra.mxu0 0.0
        %2662 = vmatprep.mubr.f32.mxu0 0.0
        %v2663 = vand.u32 %v2515, 4294901760
        %2664 = vmatmul.mubr.f32.gmra.mxu0 %v2663
        %v2665 = vpop.f32.mrf.mxu0
        %v2666 = vadd.f32 %v2590, %v2665
        %v2667 = vpop.f32.mrf.mxu0
        %2668 = vdwg.mxu0
        %2669 = vmatprep.subr.mxu0 0.0
        %2670 = vmatpush1.msra.mxu0 0.0
        %2671 = vmatprep.subr.mxu0 0.0
        %2672 = vmatpush1.msra.mxu0 0.0
        %2673 = vmatprep.subr.mxu0 0.0
        %2674 = vmatpush1.msra.mxu0 0.0
        %2675 = vmatprep.subr.mxu0 0.0
        %2676 = vmatpush1.msra.mxu0 0.0
        %2677 = vmatprep.subr.mxu0 0.0
        %2678 = vmatpush1.msra.mxu0 0.0
        %2679 = vmatprep.subr.mxu0 0.0
        %2680 = vmatpush1.msra.mxu0 0.0
        %2681 = vmatprep.subr.mxu0 0.0
        %2682 = vmatpush1.msra.mxu0 0.0
        %2683 = vmatprep.subr.mxu0 0.0
        %2684 = vmatpush1.msra.mxu0 0.0
        %2685 = vmatprep.subr.mxu0 0.0
        %2686 = vmatpush1.msra.mxu0 0.0
        %2687 = vmatprep.subr.mxu0 0.0
        %2688 = vmatpush1.msra.mxu0 0.0
        %2689 = vmatprep.subr.mxu0 0.0
        %2690 = vmatpush1.msra.mxu0 0.0
        %2691 = vmatprep.subr.mxu0 0.0
        %2692 = vmatpush1.msra.mxu0 0.0
        %2693 = vmatprep.subr.mxu0 0.0
        %2694 = vmatpush1.msra.mxu0 0.0
        %2695 = vmatprep.subr.mxu0 0.0
        %2696 = vmatpush1.msra.mxu0 0.0
        %2697 = vmatprep.subr.mxu0 0.0
        %2698 = vmatpush1.msra.mxu0 0.0
        %2699 = vmatprep.subr.mxu0 0.0
        %v2700 = vand.u32 %v2044, 4294901760
        %v2701 = vsub.f32 %v2044, %v2700
        %2702 = vmatpush1.msra.mxu0 %v2701
        %2703 = vmatprep.subr.mxu0 0.0
        %2704 = vmatpush2.msra.mxu0 0.0
        %2705 = vmatprep.subr.mxu0 0.0
        %2706 = vmatpush2.msra.mxu0 0.0
        %2707 = vmatprep.subr.mxu0 0.0
        %2708 = vmatpush2.msra.mxu0 0.0
        %2709 = vmatprep.subr.mxu0 0.0
        %2710 = vmatpush2.msra.mxu0 0.0
        %2711 = vmatprep.subr.mxu0 0.0
        %2712 = vmatpush2.msra.mxu0 0.0
        %2713 = vmatprep.subr.mxu0 0.0
        %2714 = vmatpush2.msra.mxu0 0.0
        %2715 = vmatprep.subr.mxu0 0.0
        %2716 = vmatpush2.msra.mxu0 0.0
        %2717 = vmatprep.subr.mxu0 0.0
        %2718 = vmatpush2.msra.mxu0 0.0
        %2719 = vmatprep.subr.mxu0 0.0
        %2720 = vmatpush2.msra.mxu0 0.0
        %2721 = vmatprep.subr.mxu0 0.0
        %2722 = vmatpush2.msra.mxu0 0.0
        %2723 = vmatprep.subr.mxu0 0.0
        %2724 = vmatpush2.msra.mxu0 0.0
        %2725 = vmatprep.subr.mxu0 0.0
        %2726 = vmatpush2.msra.mxu0 0.0
        %2727 = vmatprep.subr.mxu0 0.0
        %2728 = vmatpush2.msra.mxu0 0.0
        %2729 = vmatprep.subr.mxu0 0.0
        %2730 = vmatpush2.msra.mxu0 0.0
        %2731 = vmatprep.subr.mxu0 0.0
        %2732 = vmatpush2.msra.mxu0 0.0
        %2733 = vmatprep.subr.mxu0 0.0
        %2734 = vmatpush2.msra.mxu0 0.0
        %2735 = vmatprep.mubr.f32.mxu0 0.0
        %v2736 = vand.u32 %v2515, 4294901760
        %v2737 = vsub.f32 %v2515, %v2736
        %2738 = vmatmul.mubr.f32.gmra.mxu0 %v2737
        %v2739 = vpop.f32.mrf.mxu0
        %v2740 = vadd.f32 %v2666, %v2739
        %v2741 = vpop.f32.mrf.mxu0
        %2742 = vdwg.mxu0
        %2743 = vmatprep.subr.mxu0 0.0
        %2744 = vmatpush1.msra.mxu0 0.0
        %2745 = vmatprep.subr.mxu0 0.0
        %2746 = vmatpush1.msra.mxu0 0.0
        %2747 = vmatprep.subr.mxu0 0.0
        %2748 = vmatpush1.msra.mxu0 0.0
        %2749 = vmatprep.subr.mxu0 0.0
        %2750 = vmatpush1.msra.mxu0 0.0
        %2751 = vmatprep.subr.mxu0 0.0
        %2752 = vmatpush1.msra.mxu0 0.0
        %2753 = vmatprep.subr.mxu0 0.0
        %2754 = vmatpush1.msra.mxu0 0.0
        %2755 = vmatprep.subr.mxu0 0.0
        %2756 = vmatpush1.msra.mxu0 0.0
        %2757 = vmatprep.subr.mxu0 0.0
        %2758 = vmatpush1.msra.mxu0 0.0
        %2759 = vmatprep.subr.mxu0 0.0
        %2760 = vmatpush1.msra.mxu0 0.0
        %2761 = vmatprep.subr.mxu0 0.0
        %2762 = vmatpush1.msra.mxu0 0.0
        %2763 = vmatprep.subr.mxu0 0.0
        %2764 = vmatpush1.msra.mxu0 0.0
        %2765 = vmatprep.subr.mxu0 0.0
        %2766 = vmatpush1.msra.mxu0 0.0
        %2767 = vmatprep.subr.mxu0 0.0
        %2768 = vmatpush1.msra.mxu0 0.0
        %2769 = vmatprep.subr.mxu0 0.0
        %2770 = vmatpush1.msra.mxu0 0.0
        %2771 = vmatprep.subr.mxu0 0.0
        %2772 = vmatpush1.msra.mxu0 0.0
        %2773 = vmatprep.subr.mxu0 0.0
        %v2774 = vand.u32 %v2044, 4294901760
        %2775 = vmatpush1.msra.mxu0 %v2774
        %2776 = vmatprep.subr.mxu0 0.0
        %2777 = vmatpush2.msra.mxu0 0.0
        %2778 = vmatprep.subr.mxu0 0.0
        %2779 = vmatpush2.msra.mxu0 0.0
        %2780 = vmatprep.subr.mxu0 0.0
        %2781 = vmatpush2.msra.mxu0 0.0
        %2782 = vmatprep.subr.mxu0 0.0
        %2783 = vmatpush2.msra.mxu0 0.0
        %2784 = vmatprep.subr.mxu0 0.0
        %2785 = vmatpush2.msra.mxu0 0.0
        %2786 = vmatprep.subr.mxu0 0.0
        %2787 = vmatpush2.msra.mxu0 0.0
        %2788 = vmatprep.subr.mxu0 0.0
        %2789 = vmatpush2.msra.mxu0 0.0
        %2790 = vmatprep.subr.mxu0 0.0
        %2791 = vmatpush2.msra.mxu0 0.0
        %2792 = vmatprep.subr.mxu0 0.0
        %2793 = vmatpush2.msra.mxu0 0.0
        %2794 = vmatprep.subr.mxu0 0.0
        %2795 = vmatpush2.msra.mxu0 0.0
        %2796 = vmatprep.subr.mxu0 0.0
        %2797 = vmatpush2.msra.mxu0 0.0
        %2798 = vmatprep.subr.mxu0 0.0
        %2799 = vmatpush2.msra.mxu0 0.0
        %2800 = vmatprep.subr.mxu0 0.0
        %2801 = vmatpush2.msra.mxu0 0.0
        %2802 = vmatprep.subr.mxu0 0.0
        %2803 = vmatpush2.msra.mxu0 0.0
        %2804 = vmatprep.subr.mxu0 0.0
        %2805 = vmatpush2.msra.mxu0 0.0
        %2806 = vmatprep.subr.mxu0 0.0
        %2807 = vmatpush2.msra.mxu0 0.0
        %2808 = vmatprep.mubr.f32.mxu0 0.0
        %v2809 = vand.u32 %v2515, 4294901760
        %v2810 = vsub.f32 %v2515, %v2809
        %v2811 = vand.u32 %v2810, 4294901760
        %2812 = vmatmul.mubr.f32.gmra.mxu0 %v2811
        %v2813 = vpop.f32.mrf.mxu0
        %v2814 = vadd.f32 %v2740, %v2813
        %v2815 = vpop.f32.mrf.mxu0
        %2816 = vdwg.mxu0
        %2817 = vmatprep.subr.mxu0 0.0
        %2818 = vmatpush1.msra.mxu0 0.0
        %2819 = vmatprep.subr.mxu0 0.0
        %2820 = vmatpush1.msra.mxu0 0.0
        %2821 = vmatprep.subr.mxu0 0.0
        %2822 = vmatpush1.msra.mxu0 0.0
        %2823 = vmatprep.subr.mxu0 0.0
        %2824 = vmatpush1.msra.mxu0 0.0
        %2825 = vmatprep.subr.mxu0 0.0
        %2826 = vmatpush1.msra.mxu0 0.0
        %2827 = vmatprep.subr.mxu0 0.0
        %2828 = vmatpush1.msra.mxu0 0.0
        %2829 = vmatprep.subr.mxu0 0.0
        %2830 = vmatpush1.msra.mxu0 0.0
        %2831 = vmatprep.subr.mxu0 0.0
        %2832 = vmatpush1.msra.mxu0 0.0
        %2833 = vmatprep.subr.mxu0 0.0
        %2834 = vmatpush1.msra.mxu0 0.0
        %2835 = vmatprep.subr.mxu0 0.0
        %2836 = vmatpush1.msra.mxu0 0.0
        %2837 = vmatprep.subr.mxu0 0.0
        %2838 = vmatpush1.msra.mxu0 0.0
        %2839 = vmatprep.subr.mxu0 0.0
        %2840 = vmatpush1.msra.mxu0 0.0
        %2841 = vmatprep.subr.mxu0 0.0
        %2842 = vmatpush1.msra.mxu0 0.0
        %2843 = vmatprep.subr.mxu0 0.0
        %2844 = vmatpush1.msra.mxu0 0.0
        %2845 = vmatprep.subr.mxu0 0.0
        %2846 = vmatpush1.msra.mxu0 0.0
        %2847 = vmatprep.subr.mxu0 0.0
        %v2848 = vand.u32 %v2044, 4294901760
        %v2849 = vsub.f32 %v2044, %v2848
        %v2850 = vand.u32 %v2849, 4294901760
        %2851 = vmatpush1.msra.mxu0 %v2850
        %2852 = vmatprep.subr.mxu0 0.0
        %2853 = vmatpush2.msra.mxu0 0.0
        %2854 = vmatprep.subr.mxu0 0.0
        %2855 = vmatpush2.msra.mxu0 0.0
        %2856 = vmatprep.subr.mxu0 0.0
        %2857 = vmatpush2.msra.mxu0 0.0
        %2858 = vmatprep.subr.mxu0 0.0
        %2859 = vmatpush2.msra.mxu0 0.0
        %2860 = vmatprep.subr.mxu0 0.0
        %2861 = vmatpush2.msra.mxu0 0.0
        %2862 = vmatprep.subr.mxu0 0.0
        %2863 = vmatpush2.msra.mxu0 0.0
        %2864 = vmatprep.subr.mxu0 0.0
        %2865 = vmatpush2.msra.mxu0 0.0
        %2866 = vmatprep.subr.mxu0 0.0
        %2867 = vmatpush2.msra.mxu0 0.0
        %2868 = vmatprep.subr.mxu0 0.0
        %2869 = vmatpush2.msra.mxu0 0.0
        %2870 = vmatprep.subr.mxu0 0.0
        %2871 = vmatpush2.msra.mxu0 0.0
        %2872 = vmatprep.subr.mxu0 0.0
        %2873 = vmatpush2.msra.mxu0 0.0
        %2874 = vmatprep.subr.mxu0 0.0
        %2875 = vmatpush2.msra.mxu0 0.0
        %2876 = vmatprep.subr.mxu0 0.0
        %2877 = vmatpush2.msra.mxu0 0.0
        %2878 = vmatprep.subr.mxu0 0.0
        %2879 = vmatpush2.msra.mxu0 0.0
        %2880 = vmatprep.subr.mxu0 0.0
        %2881 = vmatpush2.msra.mxu0 0.0
        %2882 = vmatprep.subr.mxu0 0.0
        %2883 = vmatpush2.msra.mxu0 0.0
        %2884 = vmatprep.mubr.f32.mxu0 0.0
        %v2885 = vand.u32 %v2515, 4294901760
        %2886 = vmatmul.mubr.f32.gmra.mxu0 %v2885
        %v2887 = vpop.f32.mrf.mxu0
        %v2888 = vadd.f32 %v2814, %v2887
        %v2889 = vpop.f32.mrf.mxu0
        %2890 = vdwg.mxu0
        %2891 = vmatprep.subr.mxu0 0.0
        %2892 = vmatpush1.msra.mxu0 0.0
        %2893 = vmatprep.subr.mxu0 0.0
        %2894 = vmatpush1.msra.mxu0 0.0
        %2895 = vmatprep.subr.mxu0 0.0
        %2896 = vmatpush1.msra.mxu0 0.0
        %2897 = vmatprep.subr.mxu0 0.0
        %2898 = vmatpush1.msra.mxu0 0.0
        %2899 = vmatprep.subr.mxu0 0.0
        %2900 = vmatpush1.msra.mxu0 0.0
        %2901 = vmatprep.subr.mxu0 0.0
        %2902 = vmatpush1.msra.mxu0 0.0
        %2903 = vmatprep.subr.mxu0 0.0
        %2904 = vmatpush1.msra.mxu0 0.0
        %2905 = vmatprep.subr.mxu0 0.0
        %2906 = vmatpush1.msra.mxu0 0.0
        %2907 = vmatprep.subr.mxu0 0.0
        %2908 = vmatpush1.msra.mxu0 0.0
        %2909 = vmatprep.subr.mxu0 0.0
        %2910 = vmatpush1.msra.mxu0 0.0
        %2911 = vmatprep.subr.mxu0 0.0
        %2912 = vmatpush1.msra.mxu0 0.0
        %2913 = vmatprep.subr.mxu0 0.0
        %2914 = vmatpush1.msra.mxu0 0.0
        %2915 = vmatprep.subr.mxu0 0.0
        %2916 = vmatpush1.msra.mxu0 0.0
        %2917 = vmatprep.subr.mxu0 0.0
        %2918 = vmatpush1.msra.mxu0 0.0
        %2919 = vmatprep.subr.mxu0 0.0
        %2920 = vmatpush1.msra.mxu0 0.0
        %2921 = vmatprep.subr.mxu0 0.0
        %v2922 = vand.u32 %v2044, 4294901760
        %2923 = vmatpush1.msra.mxu0 %v2922
        %2924 = vmatprep.subr.mxu0 0.0
        %2925 = vmatpush2.msra.mxu0 0.0
        %2926 = vmatprep.subr.mxu0 0.0
        %2927 = vmatpush2.msra.mxu0 0.0
        %2928 = vmatprep.subr.mxu0 0.0
        %2929 = vmatpush2.msra.mxu0 0.0
        %2930 = vmatprep.subr.mxu0 0.0
        %2931 = vmatpush2.msra.mxu0 0.0
        %2932 = vmatprep.subr.mxu0 0.0
        %2933 = vmatpush2.msra.mxu0 0.0
        %2934 = vmatprep.subr.mxu0 0.0
        %2935 = vmatpush2.msra.mxu0 0.0
        %2936 = vmatprep.subr.mxu0 0.0
        %2937 = vmatpush2.msra.mxu0 0.0
        %2938 = vmatprep.subr.mxu0 0.0
        %2939 = vmatpush2.msra.mxu0 0.0
        %2940 = vmatprep.subr.mxu0 0.0
        %2941 = vmatpush2.msra.mxu0 0.0
        %2942 = vmatprep.subr.mxu0 0.0
        %2943 = vmatpush2.msra.mxu0 0.0
        %2944 = vmatprep.subr.mxu0 0.0
        %2945 = vmatpush2.msra.mxu0 0.0
        %2946 = vmatprep.subr.mxu0 0.0
        %2947 = vmatpush2.msra.mxu0 0.0
        %2948 = vmatprep.subr.mxu0 0.0
        %2949 = vmatpush2.msra.mxu0 0.0
        %2950 = vmatprep.subr.mxu0 0.0
        %2951 = vmatpush2.msra.mxu0 0.0
        %2952 = vmatprep.subr.mxu0 0.0
        %2953 = vmatpush2.msra.mxu0 0.0
        %2954 = vmatprep.subr.mxu0 0.0
        %2955 = vmatpush2.msra.mxu0 0.0
        %2956 = vmatprep.mubr.f32.mxu0 0.0
        %v2957 = vand.u32 %v2515, 4294901760
        %2958 = vmatmul.mubr.f32.gmra.mxu0 %v2957
        %v2959 = vpop.f32.mrf.mxu0
        %v2960 = vadd.f32 %v2888, %v2959
        %v2961 = vpop.f32.mrf.mxu0
        %2962 = vdwg.mxu0
        %2963 = vst.msk [vmem:[#allocation2] sm:$0xff] %vm2048, %v2960
        %2964 = vrot.lane.b32.xlu0 %v1052, 120
        %v2965 = vpop.permute.xlu0 %2964
        %2966 = vrot.lane.b32.xlu0 %v1548, 120
        %v2967 = vpop.permute.xlu0 %2966
        %v2968 = vsel %vm2048, %v2965, 0
        %v2970 = vsel %vm2048, %v2967, 0
        %2972 = vmatprep.subr.mxu0 0.0
        %2973 = vmatpush1.xpose.msra.mxu0 0.0
        %2974 = vmatprep.subr.mxu0 0.0
        %2975 = vmatpush1.xpose.msra.mxu0 0.0
        %2976 = vmatprep.subr.mxu0 0.0
        %2977 = vmatpush1.xpose.msra.mxu0 0.0
        %2978 = vmatprep.subr.mxu0 0.0
        %2979 = vmatpush1.xpose.msra.mxu0 0.0
        %2980 = vmatprep.subr.mxu0 0.0
        %2981 = vmatpush1.xpose.msra.mxu0 0.0
        %2982 = vmatprep.subr.mxu0 0.0
        %2983 = vmatpush1.xpose.msra.mxu0 0.0
        %2984 = vmatprep.subr.mxu0 0.0
        %2985 = vmatpush1.xpose.msra.mxu0 0.0
        %2986 = vmatprep.subr.mxu0 0.0
        %2987 = vmatpush1.xpose.msra.mxu0 0.0
        %2988 = vmatprep.subr.mxu0 0.0
        %2989 = vmatpush1.xpose.msra.mxu0 0.0
        %2990 = vmatprep.subr.mxu0 0.0
        %2991 = vmatpush1.xpose.msra.mxu0 0.0
        %2992 = vmatprep.subr.mxu0 0.0
        %2993 = vmatpush1.xpose.msra.mxu0 0.0
        %2994 = vmatprep.subr.mxu0 0.0
        %2995 = vmatpush1.xpose.msra.mxu0 0.0
        %2996 = vmatprep.subr.mxu0 0.0
        %2997 = vmatpush1.xpose.msra.mxu0 0.0
        %2998 = vmatprep.subr.mxu0 0.0
        %2999 = vmatpush1.xpose.msra.mxu0 0.0
        %3000 = vmatprep.subr.mxu0 0.0
        %3001 = vmatpush1.xpose.msra.mxu0 0.0
        %3002 = vmatprep.subr.mxu0 0.0
        %v3003 = vand.u32 %v2970, 4294901760
        %3004 = vmatpush1.xpose.msra.mxu0 %v3003
        %3005 = vmatprep.subr.mxu0 0.0
        %3006 = vmatpush2.xpose.msra.mxu0 0.0
        %3007 = vmatprep.subr.mxu0 0.0
        %3008 = vmatpush2.xpose.msra.mxu0 0.0
        %3009 = vmatprep.subr.mxu0 0.0
        %3010 = vmatpush2.xpose.msra.mxu0 0.0
        %3011 = vmatprep.subr.mxu0 0.0
        %3012 = vmatpush2.xpose.msra.mxu0 0.0
        %3013 = vmatprep.subr.mxu0 0.0
        %3014 = vmatpush2.xpose.msra.mxu0 0.0
        %3015 = vmatprep.subr.mxu0 0.0
        %3016 = vmatpush2.xpose.msra.mxu0 0.0
        %3017 = vmatprep.subr.mxu0 0.0
        %3018 = vmatpush2.xpose.msra.mxu0 0.0
        %3019 = vmatprep.subr.mxu0 0.0
        %3020 = vmatpush2.xpose.msra.mxu0 0.0
        %3021 = vmatprep.subr.mxu0 0.0
        %3022 = vmatpush2.xpose.msra.mxu0 0.0
        %3023 = vmatprep.subr.mxu0 0.0
        %3024 = vmatpush2.xpose.msra.mxu0 0.0
        %3025 = vmatprep.subr.mxu0 0.0
        %3026 = vmatpush2.xpose.msra.mxu0 0.0
        %3027 = vmatprep.subr.mxu0 0.0
        %3028 = vmatpush2.xpose.msra.mxu0 0.0
        %3029 = vmatprep.subr.mxu0 0.0
        %3030 = vmatpush2.xpose.msra.mxu0 0.0
        %3031 = vmatprep.subr.mxu0 0.0
        %3032 = vmatpush2.xpose.msra.mxu0 0.0
        %3033 = vmatprep.subr.mxu0 0.0
        %3034 = vmatpush2.xpose.msra.mxu0 0.0
        %3035 = vmatprep.subr.mxu0 0.0
        %3036 = vmatpush2.xpose.msra.mxu0 0.0
        %3037 = vmatprep.mubr.f32.mxu0 0.0
        %v3038 = vand.u32 %v2968, 4294901760
        %v3039 = vsub.f32 %v2968, %v3038
        %v3040 = vand.u32 %v3039, 4294901760
        %v3041 = vsub.f32 %v3039, %v3040
        %v3042 = vand.u32 %v3041, 4294901760
        %3043 = vmatmul.mubr.f32.gmra.mxu0 %v3042
        %v3044 = vpop.f32.mrf.mxu0
        %v3045 = vadd.f32 0.0, %v3044
        %v3046 = vpop.f32.mrf.mxu0
        %3047 = vdwg.mxu0
        %3048 = vmatprep.subr.mxu0 0.0
        %3049 = vmatpush1.xpose.msra.mxu0 0.0
        %3050 = vmatprep.subr.mxu0 0.0
        %3051 = vmatpush1.xpose.msra.mxu0 0.0
        %3052 = vmatprep.subr.mxu0 0.0
        %3053 = vmatpush1.xpose.msra.mxu0 0.0
        %3054 = vmatprep.subr.mxu0 0.0
        %3055 = vmatpush1.xpose.msra.mxu0 0.0
        %3056 = vmatprep.subr.mxu0 0.0
        %3057 = vmatpush1.xpose.msra.mxu0 0.0
        %3058 = vmatprep.subr.mxu0 0.0
        %3059 = vmatpush1.xpose.msra.mxu0 0.0
        %3060 = vmatprep.subr.mxu0 0.0
        %3061 = vmatpush1.xpose.msra.mxu0 0.0
        %3062 = vmatprep.subr.mxu0 0.0
        %3063 = vmatpush1.xpose.msra.mxu0 0.0
        %3064 = vmatprep.subr.mxu0 0.0
        %3065 = vmatpush1.xpose.msra.mxu0 0.0
        %3066 = vmatprep.subr.mxu0 0.0
        %3067 = vmatpush1.xpose.msra.mxu0 0.0
        %3068 = vmatprep.subr.mxu0 0.0
        %3069 = vmatpush1.xpose.msra.mxu0 0.0
        %3070 = vmatprep.subr.mxu0 0.0
        %3071 = vmatpush1.xpose.msra.mxu0 0.0
        %3072 = vmatprep.subr.mxu0 0.0
        %3073 = vmatpush1.xpose.msra.mxu0 0.0
        %3074 = vmatprep.subr.mxu0 0.0
        %3075 = vmatpush1.xpose.msra.mxu0 0.0
        %3076 = vmatprep.subr.mxu0 0.0
        %3077 = vmatpush1.xpose.msra.mxu0 0.0
        %3078 = vmatprep.subr.mxu0 0.0
        %v3079 = vand.u32 %v2970, 4294901760
        %v3080 = vsub.f32 %v2970, %v3079
        %v3081 = vand.u32 %v3080, 4294901760
        %v3082 = vsub.f32 %v3080, %v3081
        %v3083 = vand.u32 %v3082, 4294901760
        %3084 = vmatpush1.xpose.msra.mxu0 %v3083
        %3085 = vmatprep.subr.mxu0 0.0
        %3086 = vmatpush2.xpose.msra.mxu0 0.0
        %3087 = vmatprep.subr.mxu0 0.0
        %3088 = vmatpush2.xpose.msra.mxu0 0.0
        %3089 = vmatprep.subr.mxu0 0.0
        %3090 = vmatpush2.xpose.msra.mxu0 0.0
        %3091 = vmatprep.subr.mxu0 0.0
        %3092 = vmatpush2.xpose.msra.mxu0 0.0
        %3093 = vmatprep.subr.mxu0 0.0
        %3094 = vmatpush2.xpose.msra.mxu0 0.0
        %3095 = vmatprep.subr.mxu0 0.0
        %3096 = vmatpush2.xpose.msra.mxu0 0.0
        %3097 = vmatprep.subr.mxu0 0.0
        %3098 = vmatpush2.xpose.msra.mxu0 0.0
        %3099 = vmatprep.subr.mxu0 0.0
        %3100 = vmatpush2.xpose.msra.mxu0 0.0
        %3101 = vmatprep.subr.mxu0 0.0
        %3102 = vmatpush2.xpose.msra.mxu0 0.0
        %3103 = vmatprep.subr.mxu0 0.0
        %3104 = vmatpush2.xpose.msra.mxu0 0.0
        %3105 = vmatprep.subr.mxu0 0.0
        %3106 = vmatpush2.xpose.msra.mxu0 0.0
        %3107 = vmatprep.subr.mxu0 0.0
        %3108 = vmatpush2.xpose.msra.mxu0 0.0
        %3109 = vmatprep.subr.mxu0 0.0
        %3110 = vmatpush2.xpose.msra.mxu0 0.0
        %3111 = vmatprep.subr.mxu0 0.0
        %3112 = vmatpush2.xpose.msra.mxu0 0.0
        %3113 = vmatprep.subr.mxu0 0.0
        %3114 = vmatpush2.xpose.msra.mxu0 0.0
        %3115 = vmatprep.subr.mxu0 0.0
        %3116 = vmatpush2.xpose.msra.mxu0 0.0
        %3117 = vmatprep.mubr.f32.mxu0 0.0
        %v3118 = vand.u32 %v2968, 4294901760
        %3119 = vmatmul.mubr.f32.gmra.mxu0 %v3118
        %v3120 = vpop.f32.mrf.mxu0
        %v3121 = vadd.f32 %v3045, %v3120
        %v3122 = vpop.f32.mrf.mxu0
        %3123 = vdwg.mxu0
        %3124 = vmatprep.subr.mxu0 0.0
        %3125 = vmatpush1.xpose.msra.mxu0 0.0
        %3126 = vmatprep.subr.mxu0 0.0
        %3127 = vmatpush1.xpose.msra.mxu0 0.0
        %3128 = vmatprep.subr.mxu0 0.0
        %3129 = vmatpush1.xpose.msra.mxu0 0.0
        %3130 = vmatprep.subr.mxu0 0.0
        %3131 = vmatpush1.xpose.msra.mxu0 0.0
        %3132 = vmatprep.subr.mxu0 0.0
        %3133 = vmatpush1.xpose.msra.mxu0 0.0
        %3134 = vmatprep.subr.mxu0 0.0
        %3135 = vmatpush1.xpose.msra.mxu0 0.0
        %3136 = vmatprep.subr.mxu0 0.0
        %3137 = vmatpush1.xpose.msra.mxu0 0.0
        %3138 = vmatprep.subr.mxu0 0.0
        %3139 = vmatpush1.xpose.msra.mxu0 0.0
        %3140 = vmatprep.subr.mxu0 0.0
        %3141 = vmatpush1.xpose.msra.mxu0 0.0
        %3142 = vmatprep.subr.mxu0 0.0
        %3143 = vmatpush1.xpose.msra.mxu0 0.0
        %3144 = vmatprep.subr.mxu0 0.0
        %3145 = vmatpush1.xpose.msra.mxu0 0.0
        %3146 = vmatprep.subr.mxu0 0.0
        %3147 = vmatpush1.xpose.msra.mxu0 0.0
        %3148 = vmatprep.subr.mxu0 0.0
        %3149 = vmatpush1.xpose.msra.mxu0 0.0
        %3150 = vmatprep.subr.mxu0 0.0
        %3151 = vmatpush1.xpose.msra.mxu0 0.0
        %3152 = vmatprep.subr.mxu0 0.0
        %3153 = vmatpush1.xpose.msra.mxu0 0.0
        %3154 = vmatprep.subr.mxu0 0.0
        %v3155 = vand.u32 %v2970, 4294901760
        %v3156 = vsub.f32 %v2970, %v3155
        %3157 = vmatpush1.xpose.msra.mxu0 %v3156
        %3158 = vmatprep.subr.mxu0 0.0
        %3159 = vmatpush2.xpose.msra.mxu0 0.0
        %3160 = vmatprep.subr.mxu0 0.0
        %3161 = vmatpush2.xpose.msra.mxu0 0.0
        %3162 = vmatprep.subr.mxu0 0.0
        %3163 = vmatpush2.xpose.msra.mxu0 0.0
        %3164 = vmatprep.subr.mxu0 0.0
        %3165 = vmatpush2.xpose.msra.mxu0 0.0
        %3166 = vmatprep.subr.mxu0 0.0
        %3167 = vmatpush2.xpose.msra.mxu0 0.0
        %3168 = vmatprep.subr.mxu0 0.0
        %3169 = vmatpush2.xpose.msra.mxu0 0.0
        %3170 = vmatprep.subr.mxu0 0.0
        %3171 = vmatpush2.xpose.msra.mxu0 0.0
        %3172 = vmatprep.subr.mxu0 0.0
        %3173 = vmatpush2.xpose.msra.mxu0 0.0
        %3174 = vmatprep.subr.mxu0 0.0
        %3175 = vmatpush2.xpose.msra.mxu0 0.0
        %3176 = vmatprep.subr.mxu0 0.0
        %3177 = vmatpush2.xpose.msra.mxu0 0.0
        %3178 = vmatprep.subr.mxu0 0.0
        %3179 = vmatpush2.xpose.msra.mxu0 0.0
        %3180 = vmatprep.subr.mxu0 0.0
        %3181 = vmatpush2.xpose.msra.mxu0 0.0
        %3182 = vmatprep.subr.mxu0 0.0
        %3183 = vmatpush2.xpose.msra.mxu0 0.0
        %3184 = vmatprep.subr.mxu0 0.0
        %3185 = vmatpush2.xpose.msra.mxu0 0.0
        %3186 = vmatprep.subr.mxu0 0.0
        %3187 = vmatpush2.xpose.msra.mxu0 0.0
        %3188 = vmatprep.subr.mxu0 0.0
        %3189 = vmatpush2.xpose.msra.mxu0 0.0
        %3190 = vmatprep.mubr.f32.mxu0 0.0
        %v3191 = vand.u32 %v2968, 4294901760
        %v3192 = vsub.f32 %v2968, %v3191
        %3193 = vmatmul.mubr.f32.gmra.mxu0 %v3192
        %v3194 = vpop.f32.mrf.mxu0
        %v3195 = vadd.f32 %v3121, %v3194
        %v3196 = vpop.f32.mrf.mxu0
        %3197 = vdwg.mxu0
        %3198 = vmatprep.subr.mxu0 0.0
        %3199 = vmatpush1.xpose.msra.mxu0 0.0
        %3200 = vmatprep.subr.mxu0 0.0
        %3201 = vmatpush1.xpose.msra.mxu0 0.0
        %3202 = vmatprep.subr.mxu0 0.0
        %3203 = vmatpush1.xpose.msra.mxu0 0.0
        %3204 = vmatprep.subr.mxu0 0.0
        %3205 = vmatpush1.xpose.msra.mxu0 0.0
        %3206 = vmatprep.subr.mxu0 0.0
        %3207 = vmatpush1.xpose.msra.mxu0 0.0
        %3208 = vmatprep.subr.mxu0 0.0
        %3209 = vmatpush1.xpose.msra.mxu0 0.0
        %3210 = vmatprep.subr.mxu0 0.0
        %3211 = vmatpush1.xpose.msra.mxu0 0.0
        %3212 = vmatprep.subr.mxu0 0.0
        %3213 = vmatpush1.xpose.msra.mxu0 0.0
        %3214 = vmatprep.subr.mxu0 0.0
        %3215 = vmatpush1.xpose.msra.mxu0 0.0
        %3216 = vmatprep.subr.mxu0 0.0
        %3217 = vmatpush1.xpose.msra.mxu0 0.0
        %3218 = vmatprep.subr.mxu0 0.0
        %3219 = vmatpush1.xpose.msra.mxu0 0.0
        %3220 = vmatprep.subr.mxu0 0.0
        %3221 = vmatpush1.xpose.msra.mxu0 0.0
        %3222 = vmatprep.subr.mxu0 0.0
        %3223 = vmatpush1.xpose.msra.mxu0 0.0
        %3224 = vmatprep.subr.mxu0 0.0
        %3225 = vmatpush1.xpose.msra.mxu0 0.0
        %3226 = vmatprep.subr.mxu0 0.0
        %3227 = vmatpush1.xpose.msra.mxu0 0.0
        %3228 = vmatprep.subr.mxu0 0.0
        %v3229 = vand.u32 %v2970, 4294901760
        %3230 = vmatpush1.xpose.msra.mxu0 %v3229
        %3231 = vmatprep.subr.mxu0 0.0
        %3232 = vmatpush2.xpose.msra.mxu0 0.0
        %3233 = vmatprep.subr.mxu0 0.0
        %3234 = vmatpush2.xpose.msra.mxu0 0.0
        %3235 = vmatprep.subr.mxu0 0.0
        %3236 = vmatpush2.xpose.msra.mxu0 0.0
        %3237 = vmatprep.subr.mxu0 0.0
        %3238 = vmatpush2.xpose.msra.mxu0 0.0
        %3239 = vmatprep.subr.mxu0 0.0
        %3240 = vmatpush2.xpose.msra.mxu0 0.0
        %3241 = vmatprep.subr.mxu0 0.0
        %3242 = vmatpush2.xpose.msra.mxu0 0.0
        %3243 = vmatprep.subr.mxu0 0.0
        %3244 = vmatpush2.xpose.msra.mxu0 0.0
        %3245 = vmatprep.subr.mxu0 0.0
        %3246 = vmatpush2.xpose.msra.mxu0 0.0
        %3247 = vmatprep.subr.mxu0 0.0
        %3248 = vmatpush2.xpose.msra.mxu0 0.0
        %3249 = vmatprep.subr.mxu0 0.0
        %3250 = vmatpush2.xpose.msra.mxu0 0.0
        %3251 = vmatprep.subr.mxu0 0.0
        %3252 = vmatpush2.xpose.msra.mxu0 0.0
        %3253 = vmatprep.subr.mxu0 0.0
        %3254 = vmatpush2.xpose.msra.mxu0 0.0
        %3255 = vmatprep.subr.mxu0 0.0
        %3256 = vmatpush2.xpose.msra.mxu0 0.0
        %3257 = vmatprep.subr.mxu0 0.0
        %3258 = vmatpush2.xpose.msra.mxu0 0.0
        %3259 = vmatprep.subr.mxu0 0.0
        %3260 = vmatpush2.xpose.msra.mxu0 0.0
        %3261 = vmatprep.subr.mxu0 0.0
        %3262 = vmatpush2.xpose.msra.mxu0 0.0
        %3263 = vmatprep.mubr.f32.mxu0 0.0
        %v3264 = vand.u32 %v2968, 4294901760
        %v3265 = vsub.f32 %v2968, %v3264
        %v3266 = vand.u32 %v3265, 4294901760
        %3267 = vmatmul.mubr.f32.gmra.mxu0 %v3266
        %v3268 = vpop.f32.mrf.mxu0
        %v3269 = vadd.f32 %v3195, %v3268
        %v3270 = vpop.f32.mrf.mxu0
        %3271 = vdwg.mxu0
        %3272 = vmatprep.subr.mxu0 0.0
        %3273 = vmatpush1.xpose.msra.mxu0 0.0
        %3274 = vmatprep.subr.mxu0 0.0
        %3275 = vmatpush1.xpose.msra.mxu0 0.0
        %3276 = vmatprep.subr.mxu0 0.0
        %3277 = vmatpush1.xpose.msra.mxu0 0.0
        %3278 = vmatprep.subr.mxu0 0.0
        %3279 = vmatpush1.xpose.msra.mxu0 0.0
        %3280 = vmatprep.subr.mxu0 0.0
        %3281 = vmatpush1.xpose.msra.mxu0 0.0
        %3282 = vmatprep.subr.mxu0 0.0
        %3283 = vmatpush1.xpose.msra.mxu0 0.0
        %3284 = vmatprep.subr.mxu0 0.0
        %3285 = vmatpush1.xpose.msra.mxu0 0.0
        %3286 = vmatprep.subr.mxu0 0.0
        %3287 = vmatpush1.xpose.msra.mxu0 0.0
        %3288 = vmatprep.subr.mxu0 0.0
        %3289 = vmatpush1.xpose.msra.mxu0 0.0
        %3290 = vmatprep.subr.mxu0 0.0
        %3291 = vmatpush1.xpose.msra.mxu0 0.0
        %3292 = vmatprep.subr.mxu0 0.0
        %3293 = vmatpush1.xpose.msra.mxu0 0.0
        %3294 = vmatprep.subr.mxu0 0.0
        %3295 = vmatpush1.xpose.msra.mxu0 0.0
        %3296 = vmatprep.subr.mxu0 0.0
        %3297 = vmatpush1.xpose.msra.mxu0 0.0
        %3298 = vmatprep.subr.mxu0 0.0
        %3299 = vmatpush1.xpose.msra.mxu0 0.0
        %3300 = vmatprep.subr.mxu0 0.0
        %3301 = vmatpush1.xpose.msra.mxu0 0.0
        %3302 = vmatprep.subr.mxu0 0.0
        %v3303 = vand.u32 %v2970, 4294901760
        %v3304 = vsub.f32 %v2970, %v3303
        %v3305 = vand.u32 %v3304, 4294901760
        %3306 = vmatpush1.xpose.msra.mxu0 %v3305
        %3307 = vmatprep.subr.mxu0 0.0
        %3308 = vmatpush2.xpose.msra.mxu0 0.0
        %3309 = vmatprep.subr.mxu0 0.0
        %3310 = vmatpush2.xpose.msra.mxu0 0.0
        %3311 = vmatprep.subr.mxu0 0.0
        %3312 = vmatpush2.xpose.msra.mxu0 0.0
        %3313 = vmatprep.subr.mxu0 0.0
        %3314 = vmatpush2.xpose.msra.mxu0 0.0
        %3315 = vmatprep.subr.mxu0 0.0
        %3316 = vmatpush2.xpose.msra.mxu0 0.0
        %3317 = vmatprep.subr.mxu0 0.0
        %3318 = vmatpush2.xpose.msra.mxu0 0.0
        %3319 = vmatprep.subr.mxu0 0.0
        %3320 = vmatpush2.xpose.msra.mxu0 0.0
        %3321 = vmatprep.subr.mxu0 0.0
        %3322 = vmatpush2.xpose.msra.mxu0 0.0
        %3323 = vmatprep.subr.mxu0 0.0
        %3324 = vmatpush2.xpose.msra.mxu0 0.0
        %3325 = vmatprep.subr.mxu0 0.0
        %3326 = vmatpush2.xpose.msra.mxu0 0.0
        %3327 = vmatprep.subr.mxu0 0.0
        %3328 = vmatpush2.xpose.msra.mxu0 0.0
        %3329 = vmatprep.subr.mxu0 0.0
        %3330 = vmatpush2.xpose.msra.mxu0 0.0
        %3331 = vmatprep.subr.mxu0 0.0
        %3332 = vmatpush2.xpose.msra.mxu0 0.0
        %3333 = vmatprep.subr.mxu0 0.0
        %3334 = vmatpush2.xpose.msra.mxu0 0.0
        %3335 = vmatprep.subr.mxu0 0.0
        %3336 = vmatpush2.xpose.msra.mxu0 0.0
        %3337 = vmatprep.subr.mxu0 0.0
        %3338 = vmatpush2.xpose.msra.mxu0 0.0
        %3339 = vmatprep.mubr.f32.mxu0 0.0
        %v3340 = vand.u32 %v2968, 4294901760
        %3341 = vmatmul.mubr.f32.gmra.mxu0 %v3340
        %v3342 = vpop.f32.mrf.mxu0
        %v3343 = vadd.f32 %v3269, %v3342
        %v3344 = vpop.f32.mrf.mxu0
        %3345 = vdwg.mxu0
        %3346 = vmatprep.subr.mxu0 0.0
        %3347 = vmatpush1.xpose.msra.mxu0 0.0
        %3348 = vmatprep.subr.mxu0 0.0
        %3349 = vmatpush1.xpose.msra.mxu0 0.0
        %3350 = vmatprep.subr.mxu0 0.0
        %3351 = vmatpush1.xpose.msra.mxu0 0.0
        %3352 = vmatprep.subr.mxu0 0.0
        %3353 = vmatpush1.xpose.msra.mxu0 0.0
        %3354 = vmatprep.subr.mxu0 0.0
        %3355 = vmatpush1.xpose.msra.mxu0 0.0
        %3356 = vmatprep.subr.mxu0 0.0
        %3357 = vmatpush1.xpose.msra.mxu0 0.0
        %3358 = vmatprep.subr.mxu0 0.0
        %3359 = vmatpush1.xpose.msra.mxu0 0.0
        %3360 = vmatprep.subr.mxu0 0.0
        %3361 = vmatpush1.xpose.msra.mxu0 0.0
        %3362 = vmatprep.subr.mxu0 0.0
        %3363 = vmatpush1.xpose.msra.mxu0 0.0
        %3364 = vmatprep.subr.mxu0 0.0
        %3365 = vmatpush1.xpose.msra.mxu0 0.0
        %3366 = vmatprep.subr.mxu0 0.0
        %3367 = vmatpush1.xpose.msra.mxu0 0.0
        %3368 = vmatprep.subr.mxu0 0.0
        %3369 = vmatpush1.xpose.msra.mxu0 0.0
        %3370 = vmatprep.subr.mxu0 0.0
        %3371 = vmatpush1.xpose.msra.mxu0 0.0
        %3372 = vmatprep.subr.mxu0 0.0
        %3373 = vmatpush1.xpose.msra.mxu0 0.0
        %3374 = vmatprep.subr.mxu0 0.0
        %3375 = vmatpush1.xpose.msra.mxu0 0.0
        %3376 = vmatprep.subr.mxu0 0.0
        %v3377 = vand.u32 %v2970, 4294901760
        %3378 = vmatpush1.xpose.msra.mxu0 %v3377
        %3379 = vmatprep.subr.mxu0 0.0
        %3380 = vmatpush2.xpose.msra.mxu0 0.0
        %3381 = vmatprep.subr.mxu0 0.0
        %3382 = vmatpush2.xpose.msra.mxu0 0.0
        %3383 = vmatprep.subr.mxu0 0.0
        %3384 = vmatpush2.xpose.msra.mxu0 0.0
        %3385 = vmatprep.subr.mxu0 0.0
        %3386 = vmatpush2.xpose.msra.mxu0 0.0
        %3387 = vmatprep.subr.mxu0 0.0
        %3388 = vmatpush2.xpose.msra.mxu0 0.0
        %3389 = vmatprep.subr.mxu0 0.0
        %3390 = vmatpush2.xpose.msra.mxu0 0.0
        %3391 = vmatprep.subr.mxu0 0.0
        %3392 = vmatpush2.xpose.msra.mxu0 0.0
        %3393 = vmatprep.subr.mxu0 0.0
        %3394 = vmatpush2.xpose.msra.mxu0 0.0
        %3395 = vmatprep.subr.mxu0 0.0
        %3396 = vmatpush2.xpose.msra.mxu0 0.0
        %3397 = vmatprep.subr.mxu0 0.0
        %3398 = vmatpush2.xpose.msra.mxu0 0.0
        %3399 = vmatprep.subr.mxu0 0.0
        %3400 = vmatpush2.xpose.msra.mxu0 0.0
        %3401 = vmatprep.subr.mxu0 0.0
        %3402 = vmatpush2.xpose.msra.mxu0 0.0
        %3403 = vmatprep.subr.mxu0 0.0
        %3404 = vmatpush2.xpose.msra.mxu0 0.0
        %3405 = vmatprep.subr.mxu0 0.0
        %3406 = vmatpush2.xpose.msra.mxu0 0.0
        %3407 = vmatprep.subr.mxu0 0.0
        %3408 = vmatpush2.xpose.msra.mxu0 0.0
        %3409 = vmatprep.subr.mxu0 0.0
        %3410 = vmatpush2.xpose.msra.mxu0 0.0
        %3411 = vmatprep.mubr.f32.mxu0 0.0
        %v3412 = vand.u32 %v2968, 4294901760
        %3413 = vmatmul.mubr.f32.gmra.mxu0 %v3412
        %v3414 = vpop.f32.mrf.mxu0
        %v3415 = vadd.f32 %v3343, %v3414
        %v3416 = vpop.f32.mrf.mxu0
        %3417 = vdwg.mxu0
        %v3418 = vmul.f32 %v3415, 0.35355338
        %v3419 = vadd.f32 %v3418, %v2047
        %v3420 = vsel %vm2048, %v3419, -inf
        %3421 = vmax.xlane.f32.xlu0 %v3420
        %v3422 = vpop.xlane.xlu0 %3421
        %v3423 = vsub.f32 %v3419, %v3422
        %v3424 = vmul.f32 %v3423, 1.442695
        %v3425 = vpow.pop %v3424
        %v3426 = vsel %vm2048, %v3425, 0.0
        %3427 = vadd.xlane.f32.xlu0 %v3426
        %v3428 = vpop.xlane.xlu0 %3427
        %v3429 = vrcp.pop %v3428
        %v3430 = vmul.f32 %v3425, %v3429
        %3432 = vrot.lane.b32.xlu0 %v2044, 120
        %v3433 = vpop.permute.xlu0 %3432
        %v3436 = vsel %vm2048, %v3430, 0
        %3438 = vmatprep.subr.mxu0 0.0
        %3439 = vmatpush1.msra.mxu0 0.0
        %3440 = vmatprep.subr.mxu0 0.0
        %3441 = vmatpush1.msra.mxu0 0.0
        %3442 = vmatprep.subr.mxu0 0.0
        %3443 = vmatpush1.msra.mxu0 0.0
        %3444 = vmatprep.subr.mxu0 0.0
        %3445 = vmatpush1.msra.mxu0 0.0
        %3446 = vmatprep.subr.mxu0 0.0
        %3447 = vmatpush1.msra.mxu0 0.0
        %3448 = vmatprep.subr.mxu0 0.0
        %3449 = vmatpush1.msra.mxu0 0.0
        %3450 = vmatprep.subr.mxu0 0.0
        %3451 = vmatpush1.msra.mxu0 0.0
        %3452 = vmatprep.subr.mxu0 0.0
        %3453 = vmatpush1.msra.mxu0 0.0
        %3454 = vmatprep.subr.mxu0 0.0
        %3455 = vmatpush1.msra.mxu0 0.0
        %3456 = vmatprep.subr.mxu0 0.0
        %3457 = vmatpush1.msra.mxu0 0.0
        %3458 = vmatprep.subr.mxu0 0.0
        %3459 = vmatpush1.msra.mxu0 0.0
        %3460 = vmatprep.subr.mxu0 0.0
        %3461 = vmatpush1.msra.mxu0 0.0
        %3462 = vmatprep.subr.mxu0 0.0
        %3463 = vmatpush1.msra.mxu0 0.0
        %3464 = vmatprep.subr.mxu0 0.0
        %3465 = vmatpush1.msra.mxu0 0.0
        %3466 = vmatprep.subr.mxu0 0.0
        %3467 = vmatpush1.msra.mxu0 0.0
        %3468 = vmatprep.subr.mxu0 0.0
        %v3469 = vand.u32 %v3433, 4294901760
        %3470 = vmatpush1.msra.mxu0 %v3469
        %3471 = vmatprep.subr.mxu0 0.0
        %3472 = vmatpush2.msra.mxu0 0.0
        %3473 = vmatprep.subr.mxu0 0.0
        %3474 = vmatpush2.msra.mxu0 0.0
        %3475 = vmatprep.subr.mxu0 0.0
        %3476 = vmatpush2.msra.mxu0 0.0
        %3477 = vmatprep.subr.mxu0 0.0
        %3478 = vmatpush2.msra.mxu0 0.0
        %3479 = vmatprep.subr.mxu0 0.0
        %3480 = vmatpush2.msra.mxu0 0.0
        %3481 = vmatprep.subr.mxu0 0.0
        %3482 = vmatpush2.msra.mxu0 0.0
        %3483 = vmatprep.subr.mxu0 0.0
        %3484 = vmatpush2.msra.mxu0 0.0
        %3485 = vmatprep.subr.mxu0 0.0
        %3486 = vmatpush2.msra.mxu0 0.0
        %3487 = vmatprep.subr.mxu0 0.0
        %3488 = vmatpush2.msra.mxu0 0.0
        %3489 = vmatprep.subr.mxu0 0.0
        %3490 = vmatpush2.msra.mxu0 0.0
        %3491 = vmatprep.subr.mxu0 0.0
        %3492 = vmatpush2.msra.mxu0 0.0
        %3493 = vmatprep.subr.mxu0 0.0
        %3494 = vmatpush2.msra.mxu0 0.0
        %3495 = vmatprep.subr.mxu0 0.0
        %3496 = vmatpush2.msra.mxu0 0.0
        %3497 = vmatprep.subr.mxu0 0.0
        %3498 = vmatpush2.msra.mxu0 0.0
        %3499 = vmatprep.subr.mxu0 0.0
        %3500 = vmatpush2.msra.mxu0 0.0
        %3501 = vmatprep.subr.mxu0 0.0
        %3502 = vmatpush2.msra.mxu0 0.0
        %3503 = vmatprep.mubr.f32.mxu0 0.0
        %v3504 = vand.u32 %v3436, 4294901760
        %v3505 = vsub.f32 %v3436, %v3504
        %v3506 = vand.u32 %v3505, 4294901760
        %v3507 = vsub.f32 %v3505, %v3506
        %v3508 = vand.u32 %v3507, 4294901760
        %3509 = vmatmul.mubr.f32.gmra.mxu0 %v3508
        %v3510 = vpop.f32.mrf.mxu0
        %v3511 = vadd.f32 0.0, %v3510
        %v3512 = vpop.f32.mrf.mxu0
        %3513 = vdwg.mxu0
        %3514 = vmatprep.subr.mxu0 0.0
        %3515 = vmatpush1.msra.mxu0 0.0
        %3516 = vmatprep.subr.mxu0 0.0
        %3517 = vmatpush1.msra.mxu0 0.0
        %3518 = vmatprep.subr.mxu0 0.0
        %3519 = vmatpush1.msra.mxu0 0.0
        %3520 = vmatprep.subr.mxu0 0.0
        %3521 = vmatpush1.msra.mxu0 0.0
        %3522 = vmatprep.subr.mxu0 0.0
        %3523 = vmatpush1.msra.mxu0 0.0
        %3524 = vmatprep.subr.mxu0 0.0
        %3525 = vmatpush1.msra.mxu0 0.0
        %3526 = vmatprep.subr.mxu0 0.0
        %3527 = vmatpush1.msra.mxu0 0.0
        %3528 = vmatprep.subr.mxu0 0.0
        %3529 = vmatpush1.msra.mxu0 0.0
        %3530 = vmatprep.subr.mxu0 0.0
        %3531 = vmatpush1.msra.mxu0 0.0
        %3532 = vmatprep.subr.mxu0 0.0
        %3533 = vmatpush1.msra.mxu0 0.0
        %3534 = vmatprep.subr.mxu0 0.0
        %3535 = vmatpush1.msra.mxu0 0.0
        %3536 = vmatprep.subr.mxu0 0.0
        %3537 = vmatpush1.msra.mxu0 0.0
        %3538 = vmatprep.subr.mxu0 0.0
        %3539 = vmatpush1.msra.mxu0 0.0
        %3540 = vmatprep.subr.mxu0 0.0
        %3541 = vmatpush1.msra.mxu0 0.0
        %3542 = vmatprep.subr.mxu0 0.0
        %3543 = vmatpush1.msra.mxu0 0.0
        %3544 = vmatprep.subr.mxu0 0.0
        %v3545 = vand.u32 %v3433, 4294901760
        %v3546 = vsub.f32 %v3433, %v3545
        %v3547 = vand.u32 %v3546, 4294901760
        %v3548 = vsub.f32 %v3546, %v3547
        %v3549 = vand.u32 %v3548, 4294901760
        %3550 = vmatpush1.msra.mxu0 %v3549
        %3551 = vmatprep.subr.mxu0 0.0
        %3552 = vmatpush2.msra.mxu0 0.0
        %3553 = vmatprep.subr.mxu0 0.0
        %3554 = vmatpush2.msra.mxu0 0.0
        %3555 = vmatprep.subr.mxu0 0.0
        %3556 = vmatpush2.msra.mxu0 0.0
        %3557 = vmatprep.subr.mxu0 0.0
        %3558 = vmatpush2.msra.mxu0 0.0
        %3559 = vmatprep.subr.mxu0 0.0
        %3560 = vmatpush2.msra.mxu0 0.0
        %3561 = vmatprep.subr.mxu0 0.0
        %3562 = vmatpush2.msra.mxu0 0.0
        %3563 = vmatprep.subr.mxu0 0.0
        %3564 = vmatpush2.msra.mxu0 0.0
        %3565 = vmatprep.subr.mxu0 0.0
        %3566 = vmatpush2.msra.mxu0 0.0
        %3567 = vmatprep.subr.mxu0 0.0
        %3568 = vmatpush2.msra.mxu0 0.0
        %3569 = vmatprep.subr.mxu0 0.0
        %3570 = vmatpush2.msra.mxu0 0.0
        %3571 = vmatprep.subr.mxu0 0.0
        %3572 = vmatpush2.msra.mxu0 0.0
        %3573 = vmatprep.subr.mxu0 0.0
        %3574 = vmatpush2.msra.mxu0 0.0
        %3575 = vmatprep.subr.mxu0 0.0
        %3576 = vmatpush2.msra.mxu0 0.0
        %3577 = vmatprep.subr.mxu0 0.0
        %3578 = vmatpush2.msra.mxu0 0.0
        %3579 = vmatprep.subr.mxu0 0.0
        %3580 = vmatpush2.msra.mxu0 0.0
        %3581 = vmatprep.subr.mxu0 0.0
        %3582 = vmatpush2.msra.mxu0 0.0
        %3583 = vmatprep.mubr.f32.mxu0 0.0
        %v3584 = vand.u32 %v3436, 4294901760
        %3585 = vmatmul.mubr.f32.gmra.mxu0 %v3584
        %v3586 = vpop.f32.mrf.mxu0
        %v3587 = vadd.f32 %v3511, %v3586
        %v3588 = vpop.f32.mrf.mxu0
        %3589 = vdwg.mxu0
        %3590 = vmatprep.subr.mxu0 0.0
        %3591 = vmatpush1.msra.mxu0 0.0
        %3592 = vmatprep.subr.mxu0 0.0
        %3593 = vmatpush1.msra.mxu0 0.0
        %3594 = vmatprep.subr.mxu0 0.0
        %3595 = vmatpush1.msra.mxu0 0.0
        %3596 = vmatprep.subr.mxu0 0.0
        %3597 = vmatpush1.msra.mxu0 0.0
        %3598 = vmatprep.subr.mxu0 0.0
        %3599 = vmatpush1.msra.mxu0 0.0
        %3600 = vmatprep.subr.mxu0 0.0
        %3601 = vmatpush1.msra.mxu0 0.0
        %3602 = vmatprep.subr.mxu0 0.0
        %3603 = vmatpush1.msra.mxu0 0.0
        %3604 = vmatprep.subr.mxu0 0.0
        %3605 = vmatpush1.msra.mxu0 0.0
        %3606 = vmatprep.subr.mxu0 0.0
        %3607 = vmatpush1.msra.mxu0 0.0
        %3608 = vmatprep.subr.mxu0 0.0
        %3609 = vmatpush1.msra.mxu0 0.0
        %3610 = vmatprep.subr.mxu0 0.0
        %3611 = vmatpush1.msra.mxu0 0.0
        %3612 = vmatprep.subr.mxu0 0.0
        %3613 = vmatpush1.msra.mxu0 0.0
        %3614 = vmatprep.subr.mxu0 0.0
        %3615 = vmatpush1.msra.mxu0 0.0
        %3616 = vmatprep.subr.mxu0 0.0
        %3617 = vmatpush1.msra.mxu0 0.0
        %3618 = vmatprep.subr.mxu0 0.0
        %3619 = vmatpush1.msra.mxu0 0.0
        %3620 = vmatprep.subr.mxu0 0.0
        %v3621 = vand.u32 %v3433, 4294901760
        %v3622 = vsub.f32 %v3433, %v3621
        %3623 = vmatpush1.msra.mxu0 %v3622
        %3624 = vmatprep.subr.mxu0 0.0
        %3625 = vmatpush2.msra.mxu0 0.0
        %3626 = vmatprep.subr.mxu0 0.0
        %3627 = vmatpush2.msra.mxu0 0.0
        %3628 = vmatprep.subr.mxu0 0.0
        %3629 = vmatpush2.msra.mxu0 0.0
        %3630 = vmatprep.subr.mxu0 0.0
        %3631 = vmatpush2.msra.mxu0 0.0
        %3632 = vmatprep.subr.mxu0 0.0
        %3633 = vmatpush2.msra.mxu0 0.0
        %3634 = vmatprep.subr.mxu0 0.0
        %3635 = vmatpush2.msra.mxu0 0.0
        %3636 = vmatprep.subr.mxu0 0.0
        %3637 = vmatpush2.msra.mxu0 0.0
        %3638 = vmatprep.subr.mxu0 0.0
        %3639 = vmatpush2.msra.mxu0 0.0
        %3640 = vmatprep.subr.mxu0 0.0
        %3641 = vmatpush2.msra.mxu0 0.0
        %3642 = vmatprep.subr.mxu0 0.0
        %3643 = vmatpush2.msra.mxu0 0.0
        %3644 = vmatprep.subr.mxu0 0.0
        %3645 = vmatpush2.msra.mxu0 0.0
        %3646 = vmatprep.subr.mxu0 0.0
        %3647 = vmatpush2.msra.mxu0 0.0
        %3648 = vmatprep.subr.mxu0 0.0
        %3649 = vmatpush2.msra.mxu0 0.0
        %3650 = vmatprep.subr.mxu0 0.0
        %3651 = vmatpush2.msra.mxu0 0.0
        %3652 = vmatprep.subr.mxu0 0.0
        %3653 = vmatpush2.msra.mxu0 0.0
        %3654 = vmatprep.subr.mxu0 0.0
        %3655 = vmatpush2.msra.mxu0 0.0
        %3656 = vmatprep.mubr.f32.mxu0 0.0
        %v3657 = vand.u32 %v3436, 4294901760
        %v3658 = vsub.f32 %v3436, %v3657
        %3659 = vmatmul.mubr.f32.gmra.mxu0 %v3658
        %v3660 = vpop.f32.mrf.mxu0
        %v3661 = vadd.f32 %v3587, %v3660
        %v3662 = vpop.f32.mrf.mxu0
        %3663 = vdwg.mxu0
        %3664 = vmatprep.subr.mxu0 0.0
        %3665 = vmatpush1.msra.mxu0 0.0
        %3666 = vmatprep.subr.mxu0 0.0
        %3667 = vmatpush1.msra.mxu0 0.0
        %3668 = vmatprep.subr.mxu0 0.0
        %3669 = vmatpush1.msra.mxu0 0.0
        %3670 = vmatprep.subr.mxu0 0.0
        %3671 = vmatpush1.msra.mxu0 0.0
        %3672 = vmatprep.subr.mxu0 0.0
        %3673 = vmatpush1.msra.mxu0 0.0
        %3674 = vmatprep.subr.mxu0 0.0
        %3675 = vmatpush1.msra.mxu0 0.0
        %3676 = vmatprep.subr.mxu0 0.0
        %3677 = vmatpush1.msra.mxu0 0.0
        %3678 = vmatprep.subr.mxu0 0.0
        %3679 = vmatpush1.msra.mxu0 0.0
        %3680 = vmatprep.subr.mxu0 0.0
        %3681 = vmatpush1.msra.mxu0 0.0
        %3682 = vmatprep.subr.mxu0 0.0
        %3683 = vmatpush1.msra.mxu0 0.0
        %3684 = vmatprep.subr.mxu0 0.0
        %3685 = vmatpush1.msra.mxu0 0.0
        %3686 = vmatprep.subr.mxu0 0.0
        %3687 = vmatpush1.msra.mxu0 0.0
        %3688 = vmatprep.subr.mxu0 0.0
        %3689 = vmatpush1.msra.mxu0 0.0
        %3690 = vmatprep.subr.mxu0 0.0
        %3691 = vmatpush1.msra.mxu0 0.0
        %3692 = vmatprep.subr.mxu0 0.0
        %3693 = vmatpush1.msra.mxu0 0.0
        %3694 = vmatprep.subr.mxu0 0.0
        %v3695 = vand.u32 %v3433, 4294901760
        %3696 = vmatpush1.msra.mxu0 %v3695
        %3697 = vmatprep.subr.mxu0 0.0
        %3698 = vmatpush2.msra.mxu0 0.0
        %3699 = vmatprep.subr.mxu0 0.0
        %3700 = vmatpush2.msra.mxu0 0.0
        %3701 = vmatprep.subr.mxu0 0.0
        %3702 = vmatpush2.msra.mxu0 0.0
        %3703 = vmatprep.subr.mxu0 0.0
        %3704 = vmatpush2.msra.mxu0 0.0
        %3705 = vmatprep.subr.mxu0 0.0
        %3706 = vmatpush2.msra.mxu0 0.0
        %3707 = vmatprep.subr.mxu0 0.0
        %3708 = vmatpush2.msra.mxu0 0.0
        %3709 = vmatprep.subr.mxu0 0.0
        %3710 = vmatpush2.msra.mxu0 0.0
        %3711 = vmatprep.subr.mxu0 0.0
        %3712 = vmatpush2.msra.mxu0 0.0
        %3713 = vmatprep.subr.mxu0 0.0
        %3714 = vmatpush2.msra.mxu0 0.0
        %3715 = vmatprep.subr.mxu0 0.0
        %3716 = vmatpush2.msra.mxu0 0.0
        %3717 = vmatprep.subr.mxu0 0.0
        %3718 = vmatpush2.msra.mxu0 0.0
        %3719 = vmatprep.subr.mxu0 0.0
        %3720 = vmatpush2.msra.mxu0 0.0
        %3721 = vmatprep.subr.mxu0 0.0
        %3722 = vmatpush2.msra.mxu0 0.0
        %3723 = vmatprep.subr.mxu0 0.0
        %3724 = vmatpush2.msra.mxu0 0.0
        %3725 = vmatprep.subr.mxu0 0.0
        %3726 = vmatpush2.msra.mxu0 0.0
        %3727 = vmatprep.subr.mxu0 0.0
        %3728 = vmatpush2.msra.mxu0 0.0
        %3729 = vmatprep.mubr.f32.mxu0 0.0
        %v3730 = vand.u32 %v3436, 4294901760
        %v3731 = vsub.f32 %v3436, %v3730
        %v3732 = vand.u32 %v3731, 4294901760
        %3733 = vmatmul.mubr.f32.gmra.mxu0 %v3732
        %v3734 = vpop.f32.mrf.mxu0
        %v3735 = vadd.f32 %v3661, %v3734
        %v3736 = vpop.f32.mrf.mxu0
        %3737 = vdwg.mxu0
        %3738 = vmatprep.subr.mxu0 0.0
        %3739 = vmatpush1.msra.mxu0 0.0
        %3740 = vmatprep.subr.mxu0 0.0
        %3741 = vmatpush1.msra.mxu0 0.0
        %3742 = vmatprep.subr.mxu0 0.0
        %3743 = vmatpush1.msra.mxu0 0.0
        %3744 = vmatprep.subr.mxu0 0.0
        %3745 = vmatpush1.msra.mxu0 0.0
        %3746 = vmatprep.subr.mxu0 0.0
        %3747 = vmatpush1.msra.mxu0 0.0
        %3748 = vmatprep.subr.mxu0 0.0
        %3749 = vmatpush1.msra.mxu0 0.0
        %3750 = vmatprep.subr.mxu0 0.0
        %3751 = vmatpush1.msra.mxu0 0.0
        %3752 = vmatprep.subr.mxu0 0.0
        %3753 = vmatpush1.msra.mxu0 0.0
        %3754 = vmatprep.subr.mxu0 0.0
        %3755 = vmatpush1.msra.mxu0 0.0
        %3756 = vmatprep.subr.mxu0 0.0
        %3757 = vmatpush1.msra.mxu0 0.0
        %3758 = vmatprep.subr.mxu0 0.0
        %3759 = vmatpush1.msra.mxu0 0.0
        %3760 = vmatprep.subr.mxu0 0.0
        %3761 = vmatpush1.msra.mxu0 0.0
        %3762 = vmatprep.subr.mxu0 0.0
        %3763 = vmatpush1.msra.mxu0 0.0
        %3764 = vmatprep.subr.mxu0 0.0
        %3765 = vmatpush1.msra.mxu0 0.0
        %3766 = vmatprep.subr.mxu0 0.0
        %3767 = vmatpush1.msra.mxu0 0.0
        %3768 = vmatprep.subr.mxu0 0.0
        %v3769 = vand.u32 %v3433, 4294901760
        %v3770 = vsub.f32 %v3433, %v3769
        %v3771 = vand.u32 %v3770, 4294901760
        %3772 = vmatpush1.msra.mxu0 %v3771
        %3773 = vmatprep.subr.mxu0 0.0
        %3774 = vmatpush2.msra.mxu0 0.0
        %3775 = vmatprep.subr.mxu0 0.0
        %3776 = vmatpush2.msra.mxu0 0.0
        %3777 = vmatprep.subr.mxu0 0.0
        %3778 = vmatpush2.msra.mxu0 0.0
        %3779 = vmatprep.subr.mxu0 0.0
        %3780 = vmatpush2.msra.mxu0 0.0
        %3781 = vmatprep.subr.mxu0 0.0
        %3782 = vmatpush2.msra.mxu0 0.0
        %3783 = vmatprep.subr.mxu0 0.0
        %3784 = vmatpush2.msra.mxu0 0.0
        %3785 = vmatprep.subr.mxu0 0.0
        %3786 = vmatpush2.msra.mxu0 0.0
        %3787 = vmatprep.subr.mxu0 0.0
        %3788 = vmatpush2.msra.mxu0 0.0
        %3789 = vmatprep.subr.mxu0 0.0
        %3790 = vmatpush2.msra.mxu0 0.0
        %3791 = vmatprep.subr.mxu0 0.0
        %3792 = vmatpush2.msra.mxu0 0.0
        %3793 = vmatprep.subr.mxu0 0.0
        %3794 = vmatpush2.msra.mxu0 0.0
        %3795 = vmatprep.subr.mxu0 0.0
        %3796 = vmatpush2.msra.mxu0 0.0
        %3797 = vmatprep.subr.mxu0 0.0
        %3798 = vmatpush2.msra.mxu0 0.0
        %3799 = vmatprep.subr.mxu0 0.0
        %3800 = vmatpush2.msra.mxu0 0.0
        %3801 = vmatprep.subr.mxu0 0.0
        %3802 = vmatpush2.msra.mxu0 0.0
        %3803 = vmatprep.subr.mxu0 0.0
        %3804 = vmatpush2.msra.mxu0 0.0
        %3805 = vmatprep.mubr.f32.mxu0 0.0
        %v3806 = vand.u32 %v3436, 4294901760
        %3807 = vmatmul.mubr.f32.gmra.mxu0 %v3806
        %v3808 = vpop.f32.mrf.mxu0
        %v3809 = vadd.f32 %v3735, %v3808
        %v3810 = vpop.f32.mrf.mxu0
        %3811 = vdwg.mxu0
        %3812 = vmatprep.subr.mxu0 0.0
        %3813 = vmatpush1.msra.mxu0 0.0
        %3814 = vmatprep.subr.mxu0 0.0
        %3815 = vmatpush1.msra.mxu0 0.0
        %3816 = vmatprep.subr.mxu0 0.0
        %3817 = vmatpush1.msra.mxu0 0.0
        %3818 = vmatprep.subr.mxu0 0.0
        %3819 = vmatpush1.msra.mxu0 0.0
        %3820 = vmatprep.subr.mxu0 0.0
        %3821 = vmatpush1.msra.mxu0 0.0
        %3822 = vmatprep.subr.mxu0 0.0
        %3823 = vmatpush1.msra.mxu0 0.0
        %3824 = vmatprep.subr.mxu0 0.0
        %3825 = vmatpush1.msra.mxu0 0.0
        %3826 = vmatprep.subr.mxu0 0.0
        %3827 = vmatpush1.msra.mxu0 0.0
        %3828 = vmatprep.subr.mxu0 0.0
        %3829 = vmatpush1.msra.mxu0 0.0
        %3830 = vmatprep.subr.mxu0 0.0
        %3831 = vmatpush1.msra.mxu0 0.0
        %3832 = vmatprep.subr.mxu0 0.0
        %3833 = vmatpush1.msra.mxu0 0.0
        %3834 = vmatprep.subr.mxu0 0.0
        %3835 = vmatpush1.msra.mxu0 0.0
        %3836 = vmatprep.subr.mxu0 0.0
        %3837 = vmatpush1.msra.mxu0 0.0
        %3838 = vmatprep.subr.mxu0 0.0
        %3839 = vmatpush1.msra.mxu0 0.0
        %3840 = vmatprep.subr.mxu0 0.0
        %3841 = vmatpush1.msra.mxu0 0.0
        %3842 = vmatprep.subr.mxu0 0.0
        %v3843 = vand.u32 %v3433, 4294901760
        %3844 = vmatpush1.msra.mxu0 %v3843
        %3845 = vmatprep.subr.mxu0 0.0
        %3846 = vmatpush2.msra.mxu0 0.0
        %3847 = vmatprep.subr.mxu0 0.0
        %3848 = vmatpush2.msra.mxu0 0.0
        %3849 = vmatprep.subr.mxu0 0.0
        %3850 = vmatpush2.msra.mxu0 0.0
        %3851 = vmatprep.subr.mxu0 0.0
        %3852 = vmatpush2.msra.mxu0 0.0
        %3853 = vmatprep.subr.mxu0 0.0
        %3854 = vmatpush2.msra.mxu0 0.0
        %3855 = vmatprep.subr.mxu0 0.0
        %3856 = vmatpush2.msra.mxu0 0.0
        %3857 = vmatprep.subr.mxu0 0.0
        %3858 = vmatpush2.msra.mxu0 0.0
        %3859 = vmatprep.subr.mxu0 0.0
        %3860 = vmatpush2.msra.mxu0 0.0
        %3861 = vmatprep.subr.mxu0 0.0
        %3862 = vmatpush2.msra.mxu0 0.0
        %3863 = vmatprep.subr.mxu0 0.0
        %3864 = vmatpush2.msra.mxu0 0.0
        %3865 = vmatprep.subr.mxu0 0.0
        %3866 = vmatpush2.msra.mxu0 0.0
        %3867 = vmatprep.subr.mxu0 0.0
        %3868 = vmatpush2.msra.mxu0 0.0
        %3869 = vmatprep.subr.mxu0 0.0
        %3870 = vmatpush2.msra.mxu0 0.0
        %3871 = vmatprep.subr.mxu0 0.0
        %3872 = vmatpush2.msra.mxu0 0.0
        %3873 = vmatprep.subr.mxu0 0.0
        %3874 = vmatpush2.msra.mxu0 0.0
        %3875 = vmatprep.subr.mxu0 0.0
        %3876 = vmatpush2.msra.mxu0 0.0
        %3877 = vmatprep.mubr.f32.mxu0 0.0
        %v3878 = vand.u32 %v3436, 4294901760
        %3879 = vmatmul.mubr.f32.gmra.mxu0 %v3878
        %v3880 = vpop.f32.mrf.mxu0
        %v3881 = vadd.f32 %v3809, %v3880
        %v3882 = vpop.f32.mrf.mxu0
        %3883 = vdwg.mxu0
        %3885 = vrot.lane.b32.xlu0 %v3881, 8
        %v3886 = vpop.permute.xlu0 %3885
        %vm3888 = vcmask 130112
        %3889 = vst.msk [vmem:[#allocation2] sm:$0xff] %vm3888, %v3886
        %3890 = vrot.lane.b32.xlu0 %v1052, 112
        %v3891 = vpop.permute.xlu0 %3890
        %3892 = vrot.lane.b32.xlu0 %v1548, 112
        %v3893 = vpop.permute.xlu0 %3892
        %v3894 = vsel %vm2048, %v3891, 0
        %v3896 = vsel %vm2048, %v3893, 0
        %3898 = vmatprep.subr.mxu0 0.0
        %3899 = vmatpush1.xpose.msra.mxu0 0.0
        %3900 = vmatprep.subr.mxu0 0.0
        %3901 = vmatpush1.xpose.msra.mxu0 0.0
        %3902 = vmatprep.subr.mxu0 0.0
        %3903 = vmatpush1.xpose.msra.mxu0 0.0
        %3904 = vmatprep.subr.mxu0 0.0
        %3905 = vmatpush1.xpose.msra.mxu0 0.0
        %3906 = vmatprep.subr.mxu0 0.0
        %3907 = vmatpush1.xpose.msra.mxu0 0.0
        %3908 = vmatprep.subr.mxu0 0.0
        %3909 = vmatpush1.xpose.msra.mxu0 0.0
        %3910 = vmatprep.subr.mxu0 0.0
        %3911 = vmatpush1.xpose.msra.mxu0 0.0
        %3912 = vmatprep.subr.mxu0 0.0
        %3913 = vmatpush1.xpose.msra.mxu0 0.0
        %3914 = vmatprep.subr.mxu0 0.0
        %3915 = vmatpush1.xpose.msra.mxu0 0.0
        %3916 = vmatprep.subr.mxu0 0.0
        %3917 = vmatpush1.xpose.msra.mxu0 0.0
        %3918 = vmatprep.subr.mxu0 0.0
        %3919 = vmatpush1.xpose.msra.mxu0 0.0
        %3920 = vmatprep.subr.mxu0 0.0
        %3921 = vmatpush1.xpose.msra.mxu0 0.0
        %3922 = vmatprep.subr.mxu0 0.0
        %3923 = vmatpush1.xpose.msra.mxu0 0.0
        %3924 = vmatprep.subr.mxu0 0.0
        %3925 = vmatpush1.xpose.msra.mxu0 0.0
        %3926 = vmatprep.subr.mxu0 0.0
        %3927 = vmatpush1.xpose.msra.mxu0 0.0
        %3928 = vmatprep.subr.mxu0 0.0
        %v3929 = vand.u32 %v3896, 4294901760
        %3930 = vmatpush1.xpose.msra.mxu0 %v3929
        %3931 = vmatprep.subr.mxu0 0.0
        %3932 = vmatpush2.xpose.msra.mxu0 0.0
        %3933 = vmatprep.subr.mxu0 0.0
        %3934 = vmatpush2.xpose.msra.mxu0 0.0
        %3935 = vmatprep.subr.mxu0 0.0
        %3936 = vmatpush2.xpose.msra.mxu0 0.0
        %3937 = vmatprep.subr.mxu0 0.0
        %3938 = vmatpush2.xpose.msra.mxu0 0.0
        %3939 = vmatprep.subr.mxu0 0.0
        %3940 = vmatpush2.xpose.msra.mxu0 0.0
        %3941 = vmatprep.subr.mxu0 0.0
        %3942 = vmatpush2.xpose.msra.mxu0 0.0
        %3943 = vmatprep.subr.mxu0 0.0
        %3944 = vmatpush2.xpose.msra.mxu0 0.0
        %3945 = vmatprep.subr.mxu0 0.0
        %3946 = vmatpush2.xpose.msra.mxu0 0.0
        %3947 = vmatprep.subr.mxu0 0.0
        %3948 = vmatpush2.xpose.msra.mxu0 0.0
        %3949 = vmatprep.subr.mxu0 0.0
        %3950 = vmatpush2.xpose.msra.mxu0 0.0
        %3951 = vmatprep.subr.mxu0 0.0
        %3952 = vmatpush2.xpose.msra.mxu0 0.0
        %3953 = vmatprep.subr.mxu0 0.0
        %3954 = vmatpush2.xpose.msra.mxu0 0.0
        %3955 = vmatprep.subr.mxu0 0.0
        %3956 = vmatpush2.xpose.msra.mxu0 0.0
        %3957 = vmatprep.subr.mxu0 0.0
        %3958 = vmatpush2.xpose.msra.mxu0 0.0
        %3959 = vmatprep.subr.mxu0 0.0
        %3960 = vmatpush2.xpose.msra.mxu0 0.0
        %3961 = vmatprep.subr.mxu0 0.0
        %3962 = vmatpush2.xpose.msra.mxu0 0.0
        %3963 = vmatprep.mubr.f32.mxu0 0.0
        %v3964 = vand.u32 %v3894, 4294901760
        %v3965 = vsub.f32 %v3894, %v3964
        %v3966 = vand.u32 %v3965, 4294901760
        %v3967 = vsub.f32 %v3965, %v3966
        %v3968 = vand.u32 %v3967, 4294901760
        %3969 = vmatmul.mubr.f32.gmra.mxu0 %v3968
        %v3970 = vpop.f32.mrf.mxu0
        %v3971 = vadd.f32 0.0, %v3970
        %v3972 = vpop.f32.mrf.mxu0
        %3973 = vdwg.mxu0
        %3974 = vmatprep.subr.mxu0 0.0
        %3975 = vmatpush1.xpose.msra.mxu0 0.0
        %3976 = vmatprep.subr.mxu0 0.0
        %3977 = vmatpush1.xpose.msra.mxu0 0.0
        %3978 = vmatprep.subr.mxu0 0.0
        %3979 = vmatpush1.xpose.msra.mxu0 0.0
        %3980 = vmatprep.subr.mxu0 0.0
        %3981 = vmatpush1.xpose.msra.mxu0 0.0
        %3982 = vmatprep.subr.mxu0 0.0
        %3983 = vmatpush1.xpose.msra.mxu0 0.0
        %3984 = vmatprep.subr.mxu0 0.0
        %3985 = vmatpush1.xpose.msra.mxu0 0.0
        %3986 = vmatprep.subr.mxu0 0.0
        %3987 = vmatpush1.xpose.msra.mxu0 0.0
        %3988 = vmatprep.subr.mxu0 0.0
        %3989 = vmatpush1.xpose.msra.mxu0 0.0
        %3990 = vmatprep.subr.mxu0 0.0
        %3991 = vmatpush1.xpose.msra.mxu0 0.0
        %3992 = vmatprep.subr.mxu0 0.0
        %3993 = vmatpush1.xpose.msra.mxu0 0.0
        %3994 = vmatprep.subr.mxu0 0.0
        %3995 = vmatpush1.xpose.msra.mxu0 0.0
        %3996 = vmatprep.subr.mxu0 0.0
        %3997 = vmatpush1.xpose.msra.mxu0 0.0
        %3998 = vmatprep.subr.mxu0 0.0
        %3999 = vmatpush1.xpose.msra.mxu0 0.0
        %4000 = vmatprep.subr.mxu0 0.0
        %4001 = vmatpush1.xpose.msra.mxu0 0.0
        %4002 = vmatprep.subr.mxu0 0.0
        %4003 = vmatpush1.xpose.msra.mxu0 0.0
        %4004 = vmatprep.subr.mxu0 0.0
        %v4005 = vand.u32 %v3896, 4294901760
        %v4006 = vsub.f32 %v3896, %v4005
        %v4007 = vand.u32 %v4006, 4294901760
        %v4008 = vsub.f32 %v4006, %v4007
        %v4009 = vand.u32 %v4008, 4294901760
        %4010 = vmatpush1.xpose.msra.mxu0 %v4009
        %4011 = vmatprep.subr.mxu0 0.0
        %4012 = vmatpush2.xpose.msra.mxu0 0.0
        %4013 = vmatprep.subr.mxu0 0.0
        %4014 = vmatpush2.xpose.msra.mxu0 0.0
        %4015 = vmatprep.subr.mxu0 0.0
        %4016 = vmatpush2.xpose.msra.mxu0 0.0
        %4017 = vmatprep.subr.mxu0 0.0
        %4018 = vmatpush2.xpose.msra.mxu0 0.0
        %4019 = vmatprep.subr.mxu0 0.0
        %4020 = vmatpush2.xpose.msra.mxu0 0.0
        %4021 = vmatprep.subr.mxu0 0.0
        %4022 = vmatpush2.xpose.msra.mxu0 0.0
        %4023 = vmatprep.subr.mxu0 0.0
        %4024 = vmatpush2.xpose.msra.mxu0 0.0
        %4025 = vmatprep.subr.mxu0 0.0
        %4026 = vmatpush2.xpose.msra.mxu0 0.0
        %4027 = vmatprep.subr.mxu0 0.0
        %4028 = vmatpush2.xpose.msra.mxu0 0.0
        %4029 = vmatprep.subr.mxu0 0.0
        %4030 = vmatpush2.xpose.msra.mxu0 0.0
        %4031 = vmatprep.subr.mxu0 0.0
        %4032 = vmatpush2.xpose.msra.mxu0 0.0
        %4033 = vmatprep.subr.mxu0 0.0
        %4034 = vmatpush2.xpose.msra.mxu0 0.0
        %4035 = vmatprep.subr.mxu0 0.0
        %4036 = vmatpush2.xpose.msra.mxu0 0.0
        %4037 = vmatprep.subr.mxu0 0.0
        %4038 = vmatpush2.xpose.msra.mxu0 0.0
        %4039 = vmatprep.subr.mxu0 0.0
        %4040 = vmatpush2.xpose.msra.mxu0 0.0
        %4041 = vmatprep.subr.mxu0 0.0
        %4042 = vmatpush2.xpose.msra.mxu0 0.0
        %4043 = vmatprep.mubr.f32.mxu0 0.0
        %v4044 = vand.u32 %v3894, 4294901760
        %4045 = vmatmul.mubr.f32.gmra.mxu0 %v4044
        %v4046 = vpop.f32.mrf.mxu0
        %v4047 = vadd.f32 %v3971, %v4046
        %v4048 = vpop.f32.mrf.mxu0
        %4049 = vdwg.mxu0
        %4050 = vmatprep.subr.mxu0 0.0
        %4051 = vmatpush1.xpose.msra.mxu0 0.0
        %4052 = vmatprep.subr.mxu0 0.0
        %4053 = vmatpush1.xpose.msra.mxu0 0.0
        %4054 = vmatprep.subr.mxu0 0.0
        %4055 = vmatpush1.xpose.msra.mxu0 0.0
        %4056 = vmatprep.subr.mxu0 0.0
        %4057 = vmatpush1.xpose.msra.mxu0 0.0
        %4058 = vmatprep.subr.mxu0 0.0
        %4059 = vmatpush1.xpose.msra.mxu0 0.0
        %4060 = vmatprep.subr.mxu0 0.0
        %4061 = vmatpush1.xpose.msra.mxu0 0.0
        %4062 = vmatprep.subr.mxu0 0.0
        %4063 = vmatpush1.xpose.msra.mxu0 0.0
        %4064 = vmatprep.subr.mxu0 0.0
        %4065 = vmatpush1.xpose.msra.mxu0 0.0
        %4066 = vmatprep.subr.mxu0 0.0
        %4067 = vmatpush1.xpose.msra.mxu0 0.0
        %4068 = vmatprep.subr.mxu0 0.0
        %4069 = vmatpush1.xpose.msra.mxu0 0.0
        %4070 = vmatprep.subr.mxu0 0.0
        %4071 = vmatpush1.xpose.msra.mxu0 0.0
        %4072 = vmatprep.subr.mxu0 0.0
        %4073 = vmatpush1.xpose.msra.mxu0 0.0
        %4074 = vmatprep.subr.mxu0 0.0
        %4075 = vmatpush1.xpose.msra.mxu0 0.0
        %4076 = vmatprep.subr.mxu0 0.0
        %4077 = vmatpush1.xpose.msra.mxu0 0.0
        %4078 = vmatprep.subr.mxu0 0.0
        %4079 = vmatpush1.xpose.msra.mxu0 0.0
        %4080 = vmatprep.subr.mxu0 0.0
        %v4081 = vand.u32 %v3896, 4294901760
        %v4082 = vsub.f32 %v3896, %v4081
        %4083 = vmatpush1.xpose.msra.mxu0 %v4082
        %4084 = vmatprep.subr.mxu0 0.0
        %4085 = vmatpush2.xpose.msra.mxu0 0.0
        %4086 = vmatprep.subr.mxu0 0.0
        %4087 = vmatpush2.xpose.msra.mxu0 0.0
        %4088 = vmatprep.subr.mxu0 0.0
        %4089 = vmatpush2.xpose.msra.mxu0 0.0
        %4090 = vmatprep.subr.mxu0 0.0
        %4091 = vmatpush2.xpose.msra.mxu0 0.0
        %4092 = vmatprep.subr.mxu0 0.0
        %4093 = vmatpush2.xpose.msra.mxu0 0.0
        %4094 = vmatprep.subr.mxu0 0.0
        %4095 = vmatpush2.xpose.msra.mxu0 0.0
        %4096 = vmatprep.subr.mxu0 0.0
        %4097 = vmatpush2.xpose.msra.mxu0 0.0
        %4098 = vmatprep.subr.mxu0 0.0
        %4099 = vmatpush2.xpose.msra.mxu0 0.0
        %4100 = vmatprep.subr.mxu0 0.0
        %4101 = vmatpush2.xpose.msra.mxu0 0.0
        %4102 = vmatprep.subr.mxu0 0.0
        %4103 = vmatpush2.xpose.msra.mxu0 0.0
        %4104 = vmatprep.subr.mxu0 0.0
        %4105 = vmatpush2.xpose.msra.mxu0 0.0
        %4106 = vmatprep.subr.mxu0 0.0
        %4107 = vmatpush2.xpose.msra.mxu0 0.0
        %4108 = vmatprep.subr.mxu0 0.0
        %4109 = vmatpush2.xpose.msra.mxu0 0.0
        %4110 = vmatprep.subr.mxu0 0.0
        %4111 = vmatpush2.xpose.msra.mxu0 0.0
        %4112 = vmatprep.subr.mxu0 0.0
        %4113 = vmatpush2.xpose.msra.mxu0 0.0
        %4114 = vmatprep.subr.mxu0 0.0
        %4115 = vmatpush2.xpose.msra.mxu0 0.0
        %4116 = vmatprep.mubr.f32.mxu0 0.0
        %v4117 = vand.u32 %v3894, 4294901760
        %v4118 = vsub.f32 %v3894, %v4117
        %4119 = vmatmul.mubr.f32.gmra.mxu0 %v4118
        %v4120 = vpop.f32.mrf.mxu0
        %v4121 = vadd.f32 %v4047, %v4120
        %v4122 = vpop.f32.mrf.mxu0
        %4123 = vdwg.mxu0
        %4124 = vmatprep.subr.mxu0 0.0
        %4125 = vmatpush1.xpose.msra.mxu0 0.0
        %4126 = vmatprep.subr.mxu0 0.0
        %4127 = vmatpush1.xpose.msra.mxu0 0.0
        %4128 = vmatprep.subr.mxu0 0.0
        %4129 = vmatpush1.xpose.msra.mxu0 0.0
        %4130 = vmatprep.subr.mxu0 0.0
        %4131 = vmatpush1.xpose.msra.mxu0 0.0
        %4132 = vmatprep.subr.mxu0 0.0
        %4133 = vmatpush1.xpose.msra.mxu0 0.0
        %4134 = vmatprep.subr.mxu0 0.0
        %4135 = vmatpush1.xpose.msra.mxu0 0.0
        %4136 = vmatprep.subr.mxu0 0.0
        %4137 = vmatpush1.xpose.msra.mxu0 0.0
        %4138 = vmatprep.subr.mxu0 0.0
        %4139 = vmatpush1.xpose.msra.mxu0 0.0
        %4140 = vmatprep.subr.mxu0 0.0
        %4141 = vmatpush1.xpose.msra.mxu0 0.0
        %4142 = vmatprep.subr.mxu0 0.0
        %4143 = vmatpush1.xpose.msra.mxu0 0.0
        %4144 = vmatprep.subr.mxu0 0.0
        %4145 = vmatpush1.xpose.msra.mxu0 0.0
        %4146 = vmatprep.subr.mxu0 0.0
        %4147 = vmatpush1.xpose.msra.mxu0 0.0
        %4148 = vmatprep.subr.mxu0 0.0
        %4149 = vmatpush1.xpose.msra.mxu0 0.0
        %4150 = vmatprep.subr.mxu0 0.0
        %4151 = vmatpush1.xpose.msra.mxu0 0.0
        %4152 = vmatprep.subr.mxu0 0.0
        %4153 = vmatpush1.xpose.msra.mxu0 0.0
        %4154 = vmatprep.subr.mxu0 0.0
        %v4155 = vand.u32 %v3896, 4294901760
        %4156 = vmatpush1.xpose.msra.mxu0 %v4155
        %4157 = vmatprep.subr.mxu0 0.0
        %4158 = vmatpush2.xpose.msra.mxu0 0.0
        %4159 = vmatprep.subr.mxu0 0.0
        %4160 = vmatpush2.xpose.msra.mxu0 0.0
        %4161 = vmatprep.subr.mxu0 0.0
        %4162 = vmatpush2.xpose.msra.mxu0 0.0
        %4163 = vmatprep.subr.mxu0 0.0
        %4164 = vmatpush2.xpose.msra.mxu0 0.0
        %4165 = vmatprep.subr.mxu0 0.0
        %4166 = vmatpush2.xpose.msra.mxu0 0.0
        %4167 = vmatprep.subr.mxu0 0.0
        %4168 = vmatpush2.xpose.msra.mxu0 0.0
        %4169 = vmatprep.subr.mxu0 0.0
        %4170 = vmatpush2.xpose.msra.mxu0 0.0
        %4171 = vmatprep.subr.mxu0 0.0
        %4172 = vmatpush2.xpose.msra.mxu0 0.0
        %4173 = vmatprep.subr.mxu0 0.0
        %4174 = vmatpush2.xpose.msra.mxu0 0.0
        %4175 = vmatprep.subr.mxu0 0.0
        %4176 = vmatpush2.xpose.msra.mxu0 0.0
        %4177 = vmatprep.subr.mxu0 0.0
        %4178 = vmatpush2.xpose.msra.mxu0 0.0
        %4179 = vmatprep.subr.mxu0 0.0
        %4180 = vmatpush2.xpose.msra.mxu0 0.0
        %4181 = vmatprep.subr.mxu0 0.0
        %4182 = vmatpush2.xpose.msra.mxu0 0.0
        %4183 = vmatprep.subr.mxu0 0.0
        %4184 = vmatpush2.xpose.msra.mxu0 0.0
        %4185 = vmatprep.subr.mxu0 0.0
        %4186 = vmatpush2.xpose.msra.mxu0 0.0
        %4187 = vmatprep.subr.mxu0 0.0
        %4188 = vmatpush2.xpose.msra.mxu0 0.0
        %4189 = vmatprep.mubr.f32.mxu0 0.0
        %v4190 = vand.u32 %v3894, 4294901760
        %v4191 = vsub.f32 %v3894, %v4190
        %v4192 = vand.u32 %v4191, 4294901760
        %4193 = vmatmul.mubr.f32.gmra.mxu0 %v4192
        %v4194 = vpop.f32.mrf.mxu0
        %v4195 = vadd.f32 %v4121, %v4194
        %v4196 = vpop.f32.mrf.mxu0
        %4197 = vdwg.mxu0
        %4198 = vmatprep.subr.mxu0 0.0
        %4199 = vmatpush1.xpose.msra.mxu0 0.0
        %4200 = vmatprep.subr.mxu0 0.0
        %4201 = vmatpush1.xpose.msra.mxu0 0.0
        %4202 = vmatprep.subr.mxu0 0.0
        %4203 = vmatpush1.xpose.msra.mxu0 0.0
        %4204 = vmatprep.subr.mxu0 0.0
        %4205 = vmatpush1.xpose.msra.mxu0 0.0
        %4206 = vmatprep.subr.mxu0 0.0
        %4207 = vmatpush1.xpose.msra.mxu0 0.0
        %4208 = vmatprep.subr.mxu0 0.0
        %4209 = vmatpush1.xpose.msra.mxu0 0.0
        %4210 = vmatprep.subr.mxu0 0.0
        %4211 = vmatpush1.xpose.msra.mxu0 0.0
        %4212 = vmatprep.subr.mxu0 0.0
        %4213 = vmatpush1.xpose.msra.mxu0 0.0
        %4214 = vmatprep.subr.mxu0 0.0
        %4215 = vmatpush1.xpose.msra.mxu0 0.0
        %4216 = vmatprep.subr.mxu0 0.0
        %4217 = vmatpush1.xpose.msra.mxu0 0.0
        %4218 = vmatprep.subr.mxu0 0.0
        %4219 = vmatpush1.xpose.msra.mxu0 0.0
        %4220 = vmatprep.subr.mxu0 0.0
        %4221 = vmatpush1.xpose.msra.mxu0 0.0
        %4222 = vmatprep.subr.mxu0 0.0
        %4223 = vmatpush1.xpose.msra.mxu0 0.0
        %4224 = vmatprep.subr.mxu0 0.0
        %4225 = vmatpush1.xpose.msra.mxu0 0.0
        %4226 = vmatprep.subr.mxu0 0.0
        %4227 = vmatpush1.xpose.msra.mxu0 0.0
        %4228 = vmatprep.subr.mxu0 0.0
        %v4229 = vand.u32 %v3896, 4294901760
        %v4230 = vsub.f32 %v3896, %v4229
        %v4231 = vand.u32 %v4230, 4294901760
        %4232 = vmatpush1.xpose.msra.mxu0 %v4231
        %4233 = vmatprep.subr.mxu0 0.0
        %4234 = vmatpush2.xpose.msra.mxu0 0.0
        %4235 = vmatprep.subr.mxu0 0.0
        %4236 = vmatpush2.xpose.msra.mxu0 0.0
        %4237 = vmatprep.subr.mxu0 0.0
        %4238 = vmatpush2.xpose.msra.mxu0 0.0
        %4239 = vmatprep.subr.mxu0 0.0
        %4240 = vmatpush2.xpose.msra.mxu0 0.0
        %4241 = vmatprep.subr.mxu0 0.0
        %4242 = vmatpush2.xpose.msra.mxu0 0.0
        %4243 = vmatprep.subr.mxu0 0.0
        %4244 = vmatpush2.xpose.msra.mxu0 0.0
        %4245 = vmatprep.subr.mxu0 0.0
        %4246 = vmatpush2.xpose.msra.mxu0 0.0
        %4247 = vmatprep.subr.mxu0 0.0
        %4248 = vmatpush2.xpose.msra.mxu0 0.0
        %4249 = vmatprep.subr.mxu0 0.0
        %4250 = vmatpush2.xpose.msra.mxu0 0.0
        %4251 = vmatprep.subr.mxu0 0.0
        %4252 = vmatpush2.xpose.msra.mxu0 0.0
        %4253 = vmatprep.subr.mxu0 0.0
        %4254 = vmatpush2.xpose.msra.mxu0 0.0
        %4255 = vmatprep.subr.mxu0 0.0
        %4256 = vmatpush2.xpose.msra.mxu0 0.0
        %4257 = vmatprep.subr.mxu0 0.0
        %4258 = vmatpush2.xpose.msra.mxu0 0.0
        %4259 = vmatprep.subr.mxu0 0.0
        %4260 = vmatpush2.xpose.msra.mxu0 0.0
        %4261 = vmatprep.subr.mxu0 0.0
        %4262 = vmatpush2.xpose.msra.mxu0 0.0
        %4263 = vmatprep.subr.mxu0 0.0
        %4264 = vmatpush2.xpose.msra.mxu0 0.0
        %4265 = vmatprep.mubr.f32.mxu0 0.0
        %v4266 = vand.u32 %v3894, 4294901760
        %4267 = vmatmul.mubr.f32.gmra.mxu0 %v4266
        %v4268 = vpop.f32.mrf.mxu0
        %v4269 = vadd.f32 %v4195, %v4268
        %v4270 = vpop.f32.mrf.mxu0
        %4271 = vdwg.mxu0
        %4272 = vmatprep.subr.mxu0 0.0
        %4273 = vmatpush1.xpose.msra.mxu0 0.0
        %4274 = vmatprep.subr.mxu0 0.0
        %4275 = vmatpush1.xpose.msra.mxu0 0.0
        %4276 = vmatprep.subr.mxu0 0.0
        %4277 = vmatpush1.xpose.msra.mxu0 0.0
        %4278 = vmatprep.subr.mxu0 0.0
        %4279 = vmatpush1.xpose.msra.mxu0 0.0
        %4280 = vmatprep.subr.mxu0 0.0
        %4281 = vmatpush1.xpose.msra.mxu0 0.0
        %4282 = vmatprep.subr.mxu0 0.0
        %4283 = vmatpush1.xpose.msra.mxu0 0.0
        %4284 = vmatprep.subr.mxu0 0.0
        %4285 = vmatpush1.xpose.msra.mxu0 0.0
        %4286 = vmatprep.subr.mxu0 0.0
        %4287 = vmatpush1.xpose.msra.mxu0 0.0
        %4288 = vmatprep.subr.mxu0 0.0
        %4289 = vmatpush1.xpose.msra.mxu0 0.0
        %4290 = vmatprep.subr.mxu0 0.0
        %4291 = vmatpush1.xpose.msra.mxu0 0.0
        %4292 = vmatprep.subr.mxu0 0.0
        %4293 = vmatpush1.xpose.msra.mxu0 0.0
        %4294 = vmatprep.subr.mxu0 0.0
        %4295 = vmatpush1.xpose.msra.mxu0 0.0
        %4296 = vmatprep.subr.mxu0 0.0
        %4297 = vmatpush1.xpose.msra.mxu0 0.0
        %4298 = vmatprep.subr.mxu0 0.0
        %4299 = vmatpush1.xpose.msra.mxu0 0.0
        %4300 = vmatprep.subr.mxu0 0.0
        %4301 = vmatpush1.xpose.msra.mxu0 0.0
        %4302 = vmatprep.subr.mxu0 0.0
        %v4303 = vand.u32 %v3896, 4294901760
        %4304 = vmatpush1.xpose.msra.mxu0 %v4303
        %4305 = vmatprep.subr.mxu0 0.0
        %4306 = vmatpush2.xpose.msra.mxu0 0.0
        %4307 = vmatprep.subr.mxu0 0.0
        %4308 = vmatpush2.xpose.msra.mxu0 0.0
        %4309 = vmatprep.subr.mxu0 0.0
        %4310 = vmatpush2.xpose.msra.mxu0 0.0
        %4311 = vmatprep.subr.mxu0 0.0
        %4312 = vmatpush2.xpose.msra.mxu0 0.0
        %4313 = vmatprep.subr.mxu0 0.0
        %4314 = vmatpush2.xpose.msra.mxu0 0.0
        %4315 = vmatprep.subr.mxu0 0.0
        %4316 = vmatpush2.xpose.msra.mxu0 0.0
        %4317 = vmatprep.subr.mxu0 0.0
        %4318 = vmatpush2.xpose.msra.mxu0 0.0
        %4319 = vmatprep.subr.mxu0 0.0
        %4320 = vmatpush2.xpose.msra.mxu0 0.0
        %4321 = vmatprep.subr.mxu0 0.0
        %4322 = vmatpush2.xpose.msra.mxu0 0.0
        %4323 = vmatprep.subr.mxu0 0.0
        %4324 = vmatpush2.xpose.msra.mxu0 0.0
        %4325 = vmatprep.subr.mxu0 0.0
        %4326 = vmatpush2.xpose.msra.mxu0 0.0
        %4327 = vmatprep.subr.mxu0 0.0
        %4328 = vmatpush2.xpose.msra.mxu0 0.0
        %4329 = vmatprep.subr.mxu0 0.0
        %4330 = vmatpush2.xpose.msra.mxu0 0.0
        %4331 = vmatprep.subr.mxu0 0.0
        %4332 = vmatpush2.xpose.msra.mxu0 0.0
        %4333 = vmatprep.subr.mxu0 0.0
        %4334 = vmatpush2.xpose.msra.mxu0 0.0
        %4335 = vmatprep.subr.mxu0 0.0
        %4336 = vmatpush2.xpose.msra.mxu0 0.0
        %4337 = vmatprep.mubr.f32.mxu0 0.0
        %v4338 = vand.u32 %v3894, 4294901760
        %4339 = vmatmul.mubr.f32.gmra.mxu0 %v4338
        %v4340 = vpop.f32.mrf.mxu0
        %v4341 = vadd.f32 %v4269, %v4340
        %v4342 = vpop.f32.mrf.mxu0
        %4343 = vdwg.mxu0
        %v4344 = vmul.f32 %v4341, 0.35355338
        %v4345 = vadd.f32 %v4344, %v2047
        %v4346 = vsel %vm2048, %v4345, -inf
        %4347 = vmax.xlane.f32.xlu0 %v4346
        %v4348 = vpop.xlane.xlu0 %4347
        %v4349 = vsub.f32 %v4345, %v4348
        %v4350 = vmul.f32 %v4349, 1.442695
        %v4351 = vpow.pop %v4350
        %v4352 = vsel %vm2048, %v4351, 0.0
        %4353 = vadd.xlane.f32.xlu0 %v4352
        %v4354 = vpop.xlane.xlu0 %4353
        %v4355 = vrcp.pop %v4354
        %v4356 = vmul.f32 %v4351, %v4355
        %4357 = vrot.lane.b32.xlu0 %v2044, 112
        %v4358 = vpop.permute.xlu0 %4357
        %v4361 = vsel %vm2048, %v4356, 0
        %4363 = vmatprep.subr.mxu0 0.0
        %4364 = vmatpush1.msra.mxu0 0.0
        %4365 = vmatprep.subr.mxu0 0.0
        %4366 = vmatpush1.msra.mxu0 0.0
        %4367 = vmatprep.subr.mxu0 0.0
        %4368 = vmatpush1.msra.mxu0 0.0
        %4369 = vmatprep.subr.mxu0 0.0
        %4370 = vmatpush1.msra.mxu0 0.0
        %4371 = vmatprep.subr.mxu0 0.0
        %4372 = vmatpush1.msra.mxu0 0.0
        %4373 = vmatprep.subr.mxu0 0.0
        %4374 = vmatpush1.msra.mxu0 0.0
        %4375 = vmatprep.subr.mxu0 0.0
        %4376 = vmatpush1.msra.mxu0 0.0
        %4377 = vmatprep.subr.mxu0 0.0
        %4378 = vmatpush1.msra.mxu0 0.0
        %4379 = vmatprep.subr.mxu0 0.0
        %4380 = vmatpush1.msra.mxu0 0.0
        %4381 = vmatprep.subr.mxu0 0.0
        %4382 = vmatpush1.msra.mxu0 0.0
        %4383 = vmatprep.subr.mxu0 0.0
        %4384 = vmatpush1.msra.mxu0 0.0
        %4385 = vmatprep.subr.mxu0 0.0
        %4386 = vmatpush1.msra.mxu0 0.0
        %4387 = vmatprep.subr.mxu0 0.0
        %4388 = vmatpush1.msra.mxu0 0.0
        %4389 = vmatprep.subr.mxu0 0.0
        %4390 = vmatpush1.msra.mxu0 0.0
        %4391 = vmatprep.subr.mxu0 0.0
        %4392 = vmatpush1.msra.mxu0 0.0
        %4393 = vmatprep.subr.mxu0 0.0
        %v4394 = vand.u32 %v4358, 4294901760
        %4395 = vmatpush1.msra.mxu0 %v4394
        %4396 = vmatprep.subr.mxu0 0.0
        %4397 = vmatpush2.msra.mxu0 0.0
        %4398 = vmatprep.subr.mxu0 0.0
        %4399 = vmatpush2.msra.mxu0 0.0
        %4400 = vmatprep.subr.mxu0 0.0
        %4401 = vmatpush2.msra.mxu0 0.0
        %4402 = vmatprep.subr.mxu0 0.0
        %4403 = vmatpush2.msra.mxu0 0.0
        %4404 = vmatprep.subr.mxu0 0.0
        %4405 = vmatpush2.msra.mxu0 0.0
        %4406 = vmatprep.subr.mxu0 0.0
        %4407 = vmatpush2.msra.mxu0 0.0
        %4408 = vmatprep.subr.mxu0 0.0
        %4409 = vmatpush2.msra.mxu0 0.0
        %4410 = vmatprep.subr.mxu0 0.0
        %4411 = vmatpush2.msra.mxu0 0.0
        %4412 = vmatprep.subr.mxu0 0.0
        %4413 = vmatpush2.msra.mxu0 0.0
        %4414 = vmatprep.subr.mxu0 0.0
        %4415 = vmatpush2.msra.mxu0 0.0
        %4416 = vmatprep.subr.mxu0 0.0
        %4417 = vmatpush2.msra.mxu0 0.0
        %4418 = vmatprep.subr.mxu0 0.0
        %4419 = vmatpush2.msra.mxu0 0.0
        %4420 = vmatprep.subr.mxu0 0.0
        %4421 = vmatpush2.msra.mxu0 0.0
        %4422 = vmatprep.subr.mxu0 0.0
        %4423 = vmatpush2.msra.mxu0 0.0
        %4424 = vmatprep.subr.mxu0 0.0
        %4425 = vmatpush2.msra.mxu0 0.0
        %4426 = vmatprep.subr.mxu0 0.0
        %4427 = vmatpush2.msra.mxu0 0.0
        %4428 = vmatprep.mubr.f32.mxu0 0.0
        %v4429 = vand.u32 %v4361, 4294901760
        %v4430 = vsub.f32 %v4361, %v4429
        %v4431 = vand.u32 %v4430, 4294901760
        %v4432 = vsub.f32 %v4430, %v4431
        %v4433 = vand.u32 %v4432, 4294901760
        %4434 = vmatmul.mubr.f32.gmra.mxu0 %v4433
        %v4435 = vpop.f32.mrf.mxu0
        %v4436 = vadd.f32 0.0, %v4435
        %v4437 = vpop.f32.mrf.mxu0
        %4438 = vdwg.mxu0
        %4439 = vmatprep.subr.mxu0 0.0
        %4440 = vmatpush1.msra.mxu0 0.0
        %4441 = vmatprep.subr.mxu0 0.0
        %4442 = vmatpush1.msra.mxu0 0.0
        %4443 = vmatprep.subr.mxu0 0.0
        %4444 = vmatpush1.msra.mxu0 0.0
        %4445 = vmatprep.subr.mxu0 0.0
        %4446 = vmatpush1.msra.mxu0 0.0
        %4447 = vmatprep.subr.mxu0 0.0
        %4448 = vmatpush1.msra.mxu0 0.0
        %4449 = vmatprep.subr.mxu0 0.0
        %4450 = vmatpush1.msra.mxu0 0.0
        %4451 = vmatprep.subr.mxu0 0.0
        %4452 = vmatpush1.msra.mxu0 0.0
        %4453 = vmatprep.subr.mxu0 0.0
        %4454 = vmatpush1.msra.mxu0 0.0
        %4455 = vmatprep.subr.mxu0 0.0
        %4456 = vmatpush1.msra.mxu0 0.0
        %4457 = vmatprep.subr.mxu0 0.0
        %4458 = vmatpush1.msra.mxu0 0.0
        %4459 = vmatprep.subr.mxu0 0.0
        %4460 = vmatpush1.msra.mxu0 0.0
        %4461 = vmatprep.subr.mxu0 0.0
        %4462 = vmatpush1.msra.mxu0 0.0
        %4463 = vmatprep.subr.mxu0 0.0
        %4464 = vmatpush1.msra.mxu0 0.0
        %4465 = vmatprep.subr.mxu0 0.0
        %4466 = vmatpush1.msra.mxu0 0.0
        %4467 = vmatprep.subr.mxu0 0.0
        %4468 = vmatpush1.msra.mxu0 0.0
        %4469 = vmatprep.subr.mxu0 0.0
        %v4470 = vand.u32 %v4358, 4294901760
        %v4471 = vsub.f32 %v4358, %v4470
        %v4472 = vand.u32 %v4471, 4294901760
        %v4473 = vsub.f32 %v4471, %v4472
        %v4474 = vand.u32 %v4473, 4294901760
        %4475 = vmatpush1.msra.mxu0 %v4474
        %4476 = vmatprep.subr.mxu0 0.0
        %4477 = vmatpush2.msra.mxu0 0.0
        %4478 = vmatprep.subr.mxu0 0.0
        %4479 = vmatpush2.msra.mxu0 0.0
        %4480 = vmatprep.subr.mxu0 0.0
        %4481 = vmatpush2.msra.mxu0 0.0
        %4482 = vmatprep.subr.mxu0 0.0
        %4483 = vmatpush2.msra.mxu0 0.0
        %4484 = vmatprep.subr.mxu0 0.0
        %4485 = vmatpush2.msra.mxu0 0.0
        %4486 = vmatprep.subr.mxu0 0.0
        %4487 = vmatpush2.msra.mxu0 0.0
        %4488 = vmatprep.subr.mxu0 0.0
        %4489 = vmatpush2.msra.mxu0 0.0
        %4490 = vmatprep.subr.mxu0 0.0
        %4491 = vmatpush2.msra.mxu0 0.0
        %4492 = vmatprep.subr.mxu0 0.0
        %4493 = vmatpush2.msra.mxu0 0.0
        %4494 = vmatprep.subr.mxu0 0.0
        %4495 = vmatpush2.msra.mxu0 0.0
        %4496 = vmatprep.subr.mxu0 0.0
        %4497 = vmatpush2.msra.mxu0 0.0
        %4498 = vmatprep.subr.mxu0 0.0
        %4499 = vmatpush2.msra.mxu0 0.0
        %4500 = vmatprep.subr.mxu0 0.0
        %4501 = vmatpush2.msra.mxu0 0.0
        %4502 = vmatprep.subr.mxu0 0.0
        %4503 = vmatpush2.msra.mxu0 0.0
        %4504 = vmatprep.subr.mxu0 0.0
        %4505 = vmatpush2.msra.mxu0 0.0
        %4506 = vmatprep.subr.mxu0 0.0
        %4507 = vmatpush2.msra.mxu0 0.0
        %4508 = vmatprep.mubr.f32.mxu0 0.0
        %v4509 = vand.u32 %v4361, 4294901760
        %4510 = vmatmul.mubr.f32.gmra.mxu0 %v4509
        %v4511 = vpop.f32.mrf.mxu0
        %v4512 = vadd.f32 %v4436, %v4511
        %v4513 = vpop.f32.mrf.mxu0
        %4514 = vdwg.mxu0
        %4515 = vmatprep.subr.mxu0 0.0
        %4516 = vmatpush1.msra.mxu0 0.0
        %4517 = vmatprep.subr.mxu0 0.0
        %4518 = vmatpush1.msra.mxu0 0.0
        %4519 = vmatprep.subr.mxu0 0.0
        %4520 = vmatpush1.msra.mxu0 0.0
        %4521 = vmatprep.subr.mxu0 0.0
        %4522 = vmatpush1.msra.mxu0 0.0
        %4523 = vmatprep.subr.mxu0 0.0
        %4524 = vmatpush1.msra.mxu0 0.0
        %4525 = vmatprep.subr.mxu0 0.0
        %4526 = vmatpush1.msra.mxu0 0.0
        %4527 = vmatprep.subr.mxu0 0.0
        %4528 = vmatpush1.msra.mxu0 0.0
        %4529 = vmatprep.subr.mxu0 0.0
        %4530 = vmatpush1.msra.mxu0 0.0
        %4531 = vmatprep.subr.mxu0 0.0
        %4532 = vmatpush1.msra.mxu0 0.0
        %4533 = vmatprep.subr.mxu0 0.0
        %4534 = vmatpush1.msra.mxu0 0.0
        %4535 = vmatprep.subr.mxu0 0.0
        %4536 = vmatpush1.msra.mxu0 0.0
        %4537 = vmatprep.subr.mxu0 0.0
        %4538 = vmatpush1.msra.mxu0 0.0
        %4539 = vmatprep.subr.mxu0 0.0
        %4540 = vmatpush1.msra.mxu0 0.0
        %4541 = vmatprep.subr.mxu0 0.0
        %4542 = vmatpush1.msra.mxu0 0.0
        %4543 = vmatprep.subr.mxu0 0.0
        %4544 = vmatpush1.msra.mxu0 0.0
        %4545 = vmatprep.subr.mxu0 0.0
        %v4546 = vand.u32 %v4358, 4294901760
        %v4547 = vsub.f32 %v4358, %v4546
        %4548 = vmatpush1.msra.mxu0 %v4547
        %4549 = vmatprep.subr.mxu0 0.0
        %4550 = vmatpush2.msra.mxu0 0.0
        %4551 = vmatprep.subr.mxu0 0.0
        %4552 = vmatpush2.msra.mxu0 0.0
        %4553 = vmatprep.subr.mxu0 0.0
        %4554 = vmatpush2.msra.mxu0 0.0
        %4555 = vmatprep.subr.mxu0 0.0
        %4556 = vmatpush2.msra.mxu0 0.0
        %4557 = vmatprep.subr.mxu0 0.0
        %4558 = vmatpush2.msra.mxu0 0.0
        %4559 = vmatprep.subr.mxu0 0.0
        %4560 = vmatpush2.msra.mxu0 0.0
        %4561 = vmatprep.subr.mxu0 0.0
        %4562 = vmatpush2.msra.mxu0 0.0
        %4563 = vmatprep.subr.mxu0 0.0
        %4564 = vmatpush2.msra.mxu0 0.0
        %4565 = vmatprep.subr.mxu0 0.0
        %4566 = vmatpush2.msra.mxu0 0.0
        %4567 = vmatprep.subr.mxu0 0.0
        %4568 = vmatpush2.msra.mxu0 0.0
        %4569 = vmatprep.subr.mxu0 0.0
        %4570 = vmatpush2.msra.mxu0 0.0
        %4571 = vmatprep.subr.mxu0 0.0
        %4572 = vmatpush2.msra.mxu0 0.0
        %4573 = vmatprep.subr.mxu0 0.0
        %4574 = vmatpush2.msra.mxu0 0.0
        %4575 = vmatprep.subr.mxu0 0.0
        %4576 = vmatpush2.msra.mxu0 0.0
        %4577 = vmatprep.subr.mxu0 0.0
        %4578 = vmatpush2.msra.mxu0 0.0
        %4579 = vmatprep.subr.mxu0 0.0
        %4580 = vmatpush2.msra.mxu0 0.0
        %4581 = vmatprep.mubr.f32.mxu0 0.0
        %v4582 = vand.u32 %v4361, 4294901760
        %v4583 = vsub.f32 %v4361, %v4582
        %4584 = vmatmul.mubr.f32.gmra.mxu0 %v4583
        %v4585 = vpop.f32.mrf.mxu0
        %v4586 = vadd.f32 %v4512, %v4585
        %v4587 = vpop.f32.mrf.mxu0
        %4588 = vdwg.mxu0
        %4589 = vmatprep.subr.mxu0 0.0
        %4590 = vmatpush1.msra.mxu0 0.0
        %4591 = vmatprep.subr.mxu0 0.0
        %4592 = vmatpush1.msra.mxu0 0.0
        %4593 = vmatprep.subr.mxu0 0.0
        %4594 = vmatpush1.msra.mxu0 0.0
        %4595 = vmatprep.subr.mxu0 0.0
        %4596 = vmatpush1.msra.mxu0 0.0
        %4597 = vmatprep.subr.mxu0 0.0
        %4598 = vmatpush1.msra.mxu0 0.0
        %4599 = vmatprep.subr.mxu0 0.0
        %4600 = vmatpush1.msra.mxu0 0.0
        %4601 = vmatprep.subr.mxu0 0.0
        %4602 = vmatpush1.msra.mxu0 0.0
        %4603 = vmatprep.subr.mxu0 0.0
        %4604 = vmatpush1.msra.mxu0 0.0
        %4605 = vmatprep.subr.mxu0 0.0
        %4606 = vmatpush1.msra.mxu0 0.0
        %4607 = vmatprep.subr.mxu0 0.0
        %4608 = vmatpush1.msra.mxu0 0.0
        %4609 = vmatprep.subr.mxu0 0.0
        %4610 = vmatpush1.msra.mxu0 0.0
        %4611 = vmatprep.subr.mxu0 0.0
        %4612 = vmatpush1.msra.mxu0 0.0
        %4613 = vmatprep.subr.mxu0 0.0
        %4614 = vmatpush1.msra.mxu0 0.0
        %4615 = vmatprep.subr.mxu0 0.0
        %4616 = vmatpush1.msra.mxu0 0.0
        %4617 = vmatprep.subr.mxu0 0.0
        %4618 = vmatpush1.msra.mxu0 0.0
        %4619 = vmatprep.subr.mxu0 0.0
        %v4620 = vand.u32 %v4358, 4294901760
        %4621 = vmatpush1.msra.mxu0 %v4620
        %4622 = vmatprep.subr.mxu0 0.0
        %4623 = vmatpush2.msra.mxu0 0.0
        %4624 = vmatprep.subr.mxu0 0.0
        %4625 = vmatpush2.msra.mxu0 0.0
        %4626 = vmatprep.subr.mxu0 0.0
        %4627 = vmatpush2.msra.mxu0 0.0
        %4628 = vmatprep.subr.mxu0 0.0
        %4629 = vmatpush2.msra.mxu0 0.0
        %4630 = vmatprep.subr.mxu0 0.0
        %4631 = vmatpush2.msra.mxu0 0.0
        %4632 = vmatprep.subr.mxu0 0.0
        %4633 = vmatpush2.msra.mxu0 0.0
        %4634 = vmatprep.subr.mxu0 0.0
        %4635 = vmatpush2.msra.mxu0 0.0
        %4636 = vmatprep.subr.mxu0 0.0
        %4637 = vmatpush2.msra.mxu0 0.0
        %4638 = vmatprep.subr.mxu0 0.0
        %4639 = vmatpush2.msra.mxu0 0.0
        %4640 = vmatprep.subr.mxu0 0.0
        %4641 = vmatpush2.msra.mxu0 0.0
        %4642 = vmatprep.subr.mxu0 0.0
        %4643 = vmatpush2.msra.mxu0 0.0
        %4644 = vmatprep.subr.mxu0 0.0
        %4645 = vmatpush2.msra.mxu0 0.0
        %4646 = vmatprep.subr.mxu0 0.0
        %4647 = vmatpush2.msra.mxu0 0.0
        %4648 = vmatprep.subr.mxu0 0.0
        %4649 = vmatpush2.msra.mxu0 0.0
        %4650 = vmatprep.subr.mxu0 0.0
        %4651 = vmatpush2.msra.mxu0 0.0
        %4652 = vmatprep.subr.mxu0 0.0
        %4653 = vmatpush2.msra.mxu0 0.0
        %4654 = vmatprep.mubr.f32.mxu0 0.0
        %v4655 = vand.u32 %v4361, 4294901760
        %v4656 = vsub.f32 %v4361, %v4655
        %v4657 = vand.u32 %v4656, 4294901760
        %4658 = vmatmul.mubr.f32.gmra.mxu0 %v4657
        %v4659 = vpop.f32.mrf.mxu0
        %v4660 = vadd.f32 %v4586, %v4659
        %v4661 = vpop.f32.mrf.mxu0
        %4662 = vdwg.mxu0
        %4663 = vmatprep.subr.mxu0 0.0
        %4664 = vmatpush1.msra.mxu0 0.0
        %4665 = vmatprep.subr.mxu0 0.0
        %4666 = vmatpush1.msra.mxu0 0.0
        %4667 = vmatprep.subr.mxu0 0.0
        %4668 = vmatpush1.msra.mxu0 0.0
        %4669 = vmatprep.subr.mxu0 0.0
        %4670 = vmatpush1.msra.mxu0 0.0
        %4671 = vmatprep.subr.mxu0 0.0
        %4672 = vmatpush1.msra.mxu0 0.0
        %4673 = vmatprep.subr.mxu0 0.0
        %4674 = vmatpush1.msra.mxu0 0.0
        %4675 = vmatprep.subr.mxu0 0.0
        %4676 = vmatpush1.msra.mxu0 0.0
        %4677 = vmatprep.subr.mxu0 0.0
        %4678 = vmatpush1.msra.mxu0 0.0
        %4679 = vmatprep.subr.mxu0 0.0
        %4680 = vmatpush1.msra.mxu0 0.0
        %4681 = vmatprep.subr.mxu0 0.0
        %4682 = vmatpush1.msra.mxu0 0.0
        %4683 = vmatprep.subr.mxu0 0.0
        %4684 = vmatpush1.msra.mxu0 0.0
        %4685 = vmatprep.subr.mxu0 0.0
        %4686 = vmatpush1.msra.mxu0 0.0
        %4687 = vmatprep.subr.mxu0 0.0
        %4688 = vmatpush1.msra.mxu0 0.0
        %4689 = vmatprep.subr.mxu0 0.0
        %4690 = vmatpush1.msra.mxu0 0.0
        %4691 = vmatprep.subr.mxu0 0.0
        %4692 = vmatpush1.msra.mxu0 0.0
        %4693 = vmatprep.subr.mxu0 0.0
        %v4694 = vand.u32 %v4358, 4294901760
        %v4695 = vsub.f32 %v4358, %v4694
        %v4696 = vand.u32 %v4695, 4294901760
        %4697 = vmatpush1.msra.mxu0 %v4696
        %4698 = vmatprep.subr.mxu0 0.0
        %4699 = vmatpush2.msra.mxu0 0.0
        %4700 = vmatprep.subr.mxu0 0.0
        %4701 = vmatpush2.msra.mxu0 0.0
        %4702 = vmatprep.subr.mxu0 0.0
        %4703 = vmatpush2.msra.mxu0 0.0
        %4704 = vmatprep.subr.mxu0 0.0
        %4705 = vmatpush2.msra.mxu0 0.0
        %4706 = vmatprep.subr.mxu0 0.0
        %4707 = vmatpush2.msra.mxu0 0.0
        %4708 = vmatprep.subr.mxu0 0.0
        %4709 = vmatpush2.msra.mxu0 0.0
        %4710 = vmatprep.subr.mxu0 0.0
        %4711 = vmatpush2.msra.mxu0 0.0
        %4712 = vmatprep.subr.mxu0 0.0
        %4713 = vmatpush2.msra.mxu0 0.0
        %4714 = vmatprep.subr.mxu0 0.0
        %4715 = vmatpush2.msra.mxu0 0.0
        %4716 = vmatprep.subr.mxu0 0.0
        %4717 = vmatpush2.msra.mxu0 0.0
        %4718 = vmatprep.subr.mxu0 0.0
        %4719 = vmatpush2.msra.mxu0 0.0
        %4720 = vmatprep.subr.mxu0 0.0
        %4721 = vmatpush2.msra.mxu0 0.0
        %4722 = vmatprep.subr.mxu0 0.0
        %4723 = vmatpush2.msra.mxu0 0.0
        %4724 = vmatprep.subr.mxu0 0.0
        %4725 = vmatpush2.msra.mxu0 0.0
        %4726 = vmatprep.subr.mxu0 0.0
        %4727 = vmatpush2.msra.mxu0 0.0
        %4728 = vmatprep.subr.mxu0 0.0
        %4729 = vmatpush2.msra.mxu0 0.0
        %4730 = vmatprep.mubr.f32.mxu0 0.0
        %v4731 = vand.u32 %v4361, 4294901760
        %4732 = vmatmul.mubr.f32.gmra.mxu0 %v4731
        %v4733 = vpop.f32.mrf.mxu0
        %v4734 = vadd.f32 %v4660, %v4733
        %v4735 = vpop.f32.mrf.mxu0
        %4736 = vdwg.mxu0
        %4737 = vmatprep.subr.mxu0 0.0
        %4738 = vmatpush1.msra.mxu0 0.0
        %4739 = vmatprep.subr.mxu0 0.0
        %4740 = vmatpush1.msra.mxu0 0.0
        %4741 = vmatprep.subr.mxu0 0.0
        %4742 = vmatpush1.msra.mxu0 0.0
        %4743 = vmatprep.subr.mxu0 0.0
        %4744 = vmatpush1.msra.mxu0 0.0
        %4745 = vmatprep.subr.mxu0 0.0
        %4746 = vmatpush1.msra.mxu0 0.0
        %4747 = vmatprep.subr.mxu0 0.0
        %4748 = vmatpush1.msra.mxu0 0.0
        %4749 = vmatprep.subr.mxu0 0.0
        %4750 = vmatpush1.msra.mxu0 0.0
        %4751 = vmatprep.subr.mxu0 0.0
        %4752 = vmatpush1.msra.mxu0 0.0
        %4753 = vmatprep.subr.mxu0 0.0
        %4754 = vmatpush1.msra.mxu0 0.0
        %4755 = vmatprep.subr.mxu0 0.0
        %4756 = vmatpush1.msra.mxu0 0.0
        %4757 = vmatprep.subr.mxu0 0.0
        %4758 = vmatpush1.msra.mxu0 0.0
        %4759 = vmatprep.subr.mxu0 0.0
        %4760 = vmatpush1.msra.mxu0 0.0
        %4761 = vmatprep.subr.mxu0 0.0
        %4762 = vmatpush1.msra.mxu0 0.0
        %4763 = vmatprep.subr.mxu0 0.0
        %4764 = vmatpush1.msra.mxu0 0.0
        %4765 = vmatprep.subr.mxu0 0.0
        %4766 = vmatpush1.msra.mxu0 0.0
        %4767 = vmatprep.subr.mxu0 0.0
        %v4768 = vand.u32 %v4358, 4294901760
        %4769 = vmatpush1.msra.mxu0 %v4768
        %4770 = vmatprep.subr.mxu0 0.0
        %4771 = vmatpush2.msra.mxu0 0.0
        %4772 = vmatprep.subr.mxu0 0.0
        %4773 = vmatpush2.msra.mxu0 0.0
        %4774 = vmatprep.subr.mxu0 0.0
        %4775 = vmatpush2.msra.mxu0 0.0
        %4776 = vmatprep.subr.mxu0 0.0
        %4777 = vmatpush2.msra.mxu0 0.0
        %4778 = vmatprep.subr.mxu0 0.0
        %4779 = vmatpush2.msra.mxu0 0.0
        %4780 = vmatprep.subr.mxu0 0.0
        %4781 = vmatpush2.msra.mxu0 0.0
        %4782 = vmatprep.subr.mxu0 0.0
        %4783 = vmatpush2.msra.mxu0 0.0
        %4784 = vmatprep.subr.mxu0 0.0
        %4785 = vmatpush2.msra.mxu0 0.0
        %4786 = vmatprep.subr.mxu0 0.0
        %4787 = vmatpush2.msra.mxu0 0.0
        %4788 = vmatprep.subr.mxu0 0.0
        %4789 = vmatpush2.msra.mxu0 0.0
        %4790 = vmatprep.subr.mxu0 0.0
        %4791 = vmatpush2.msra.mxu0 0.0
        %4792 = vmatprep.subr.mxu0 0.0
        %4793 = vmatpush2.msra.mxu0 0.0
        %4794 = vmatprep.subr.mxu0 0.0
        %4795 = vmatpush2.msra.mxu0 0.0
        %4796 = vmatprep.subr.mxu0 0.0
        %4797 = vmatpush2.msra.mxu0 0.0
        %4798 = vmatprep.subr.mxu0 0.0
        %4799 = vmatpush2.msra.mxu0 0.0
        %4800 = vmatprep.subr.mxu0 0.0
        %4801 = vmatpush2.msra.mxu0 0.0
        %4802 = vmatprep.mubr.f32.mxu0 0.0
        %v4803 = vand.u32 %v4361, 4294901760
        %4804 = vmatmul.mubr.f32.gmra.mxu0 %v4803
        %v4805 = vpop.f32.mrf.mxu0
        %v4806 = vadd.f32 %v4734, %v4805
        %v4807 = vpop.f32.mrf.mxu0
        %4808 = vdwg.mxu0
        %4810 = vrot.lane.b32.xlu0 %v4806, 16
        %v4811 = vpop.permute.xlu0 %4810
        %vm4813 = vcmask 195712
        %4814 = vst.msk [vmem:[#allocation2] sm:$0xff] %vm4813, %v4811
        %4815 = vrot.lane.b32.xlu0 %v1052, 104
        %v4816 = vpop.permute.xlu0 %4815
        %4817 = vrot.lane.b32.xlu0 %v1548, 104
        %v4818 = vpop.permute.xlu0 %4817
        %v4819 = vsel %vm2048, %v4816, 0
        %v4821 = vsel %vm2048, %v4818, 0
        %4823 = vmatprep.subr.mxu0 0.0
        %4824 = vmatpush1.xpose.msra.mxu0 0.0
        %4825 = vmatprep.subr.mxu0 0.0
        %4826 = vmatpush1.xpose.msra.mxu0 0.0
        %4827 = vmatprep.subr.mxu0 0.0
        %4828 = vmatpush1.xpose.msra.mxu0 0.0
        %4829 = vmatprep.subr.mxu0 0.0
        %4830 = vmatpush1.xpose.msra.mxu0 0.0
        %4831 = vmatprep.subr.mxu0 0.0
        %4832 = vmatpush1.xpose.msra.mxu0 0.0
        %4833 = vmatprep.subr.mxu0 0.0
        %4834 = vmatpush1.xpose.msra.mxu0 0.0
        %4835 = vmatprep.subr.mxu0 0.0
        %4836 = vmatpush1.xpose.msra.mxu0 0.0
        %4837 = vmatprep.subr.mxu0 0.0
        %4838 = vmatpush1.xpose.msra.mxu0 0.0
        %4839 = vmatprep.subr.mxu0 0.0
        %4840 = vmatpush1.xpose.msra.mxu0 0.0
        %4841 = vmatprep.subr.mxu0 0.0
        %4842 = vmatpush1.xpose.msra.mxu0 0.0
        %4843 = vmatprep.subr.mxu0 0.0
        %4844 = vmatpush1.xpose.msra.mxu0 0.0
        %4845 = vmatprep.subr.mxu0 0.0
        %4846 = vmatpush1.xpose.msra.mxu0 0.0
        %4847 = vmatprep.subr.mxu0 0.0
        %4848 = vmatpush1.xpose.msra.mxu0 0.0
        %4849 = vmatprep.subr.mxu0 0.0
        %4850 = vmatpush1.xpose.msra.mxu0 0.0
        %4851 = vmatprep.subr.mxu0 0.0
        %4852 = vmatpush1.xpose.msra.mxu0 0.0
        %4853 = vmatprep.subr.mxu0 0.0
        %v4854 = vand.u32 %v4821, 4294901760
        %4855 = vmatpush1.xpose.msra.mxu0 %v4854
        %4856 = vmatprep.subr.mxu0 0.0
        %4857 = vmatpush2.xpose.msra.mxu0 0.0
        %4858 = vmatprep.subr.mxu0 0.0
        %4859 = vmatpush2.xpose.msra.mxu0 0.0
        %4860 = vmatprep.subr.mxu0 0.0
        %4861 = vmatpush2.xpose.msra.mxu0 0.0
        %4862 = vmatprep.subr.mxu0 0.0
        %4863 = vmatpush2.xpose.msra.mxu0 0.0
        %4864 = vmatprep.subr.mxu0 0.0
        %4865 = vmatpush2.xpose.msra.mxu0 0.0
        %4866 = vmatprep.subr.mxu0 0.0
        %4867 = vmatpush2.xpose.msra.mxu0 0.0
        %4868 = vmatprep.subr.mxu0 0.0
        %4869 = vmatpush2.xpose.msra.mxu0 0.0
        %4870 = vmatprep.subr.mxu0 0.0
        %4871 = vmatpush2.xpose.msra.mxu0 0.0
        %4872 = vmatprep.subr.mxu0 0.0
        %4873 = vmatpush2.xpose.msra.mxu0 0.0
        %4874 = vmatprep.subr.mxu0 0.0
        %4875 = vmatpush2.xpose.msra.mxu0 0.0
        %4876 = vmatprep.subr.mxu0 0.0
        %4877 = vmatpush2.xpose.msra.mxu0 0.0
        %4878 = vmatprep.subr.mxu0 0.0
        %4879 = vmatpush2.xpose.msra.mxu0 0.0
        %4880 = vmatprep.subr.mxu0 0.0
        %4881 = vmatpush2.xpose.msra.mxu0 0.0
        %4882 = vmatprep.subr.mxu0 0.0
        %4883 = vmatpush2.xpose.msra.mxu0 0.0
        %4884 = vmatprep.subr.mxu0 0.0
        %4885 = vmatpush2.xpose.msra.mxu0 0.0
        %4886 = vmatprep.subr.mxu0 0.0
        %4887 = vmatpush2.xpose.msra.mxu0 0.0
        %4888 = vmatprep.mubr.f32.mxu0 0.0
        %v4889 = vand.u32 %v4819, 4294901760
        %v4890 = vsub.f32 %v4819, %v4889
        %v4891 = vand.u32 %v4890, 4294901760
        %v4892 = vsub.f32 %v4890, %v4891
        %v4893 = vand.u32 %v4892, 4294901760
        %4894 = vmatmul.mubr.f32.gmra.mxu0 %v4893
        %v4895 = vpop.f32.mrf.mxu0
        %v4896 = vadd.f32 0.0, %v4895
        %v4897 = vpop.f32.mrf.mxu0
        %4898 = vdwg.mxu0
        %4899 = vmatprep.subr.mxu0 0.0
        %4900 = vmatpush1.xpose.msra.mxu0 0.0
        %4901 = vmatprep.subr.mxu0 0.0
        %4902 = vmatpush1.xpose.msra.mxu0 0.0
        %4903 = vmatprep.subr.mxu0 0.0
        %4904 = vmatpush1.xpose.msra.mxu0 0.0
        %4905 = vmatprep.subr.mxu0 0.0
        %4906 = vmatpush1.xpose.msra.mxu0 0.0
        %4907 = vmatprep.subr.mxu0 0.0
        %4908 = vmatpush1.xpose.msra.mxu0 0.0
        %4909 = vmatprep.subr.mxu0 0.0
        %4910 = vmatpush1.xpose.msra.mxu0 0.0
        %4911 = vmatprep.subr.mxu0 0.0
        %4912 = vmatpush1.xpose.msra.mxu0 0.0
        %4913 = vmatprep.subr.mxu0 0.0
        %4914 = vmatpush1.xpose.msra.mxu0 0.0
        %4915 = vmatprep.subr.mxu0 0.0
        %4916 = vmatpush1.xpose.msra.mxu0 0.0
        %4917 = vmatprep.subr.mxu0 0.0
        %4918 = vmatpush1.xpose.msra.mxu0 0.0
        %4919 = vmatprep.subr.mxu0 0.0
        %4920 = vmatpush1.xpose.msra.mxu0 0.0
        %4921 = vmatprep.subr.mxu0 0.0
        %4922 = vmatpush1.xpose.msra.mxu0 0.0
        %4923 = vmatprep.subr.mxu0 0.0
        %4924 = vmatpush1.xpose.msra.mxu0 0.0
        %4925 = vmatprep.subr.mxu0 0.0
        %4926 = vmatpush1.xpose.msra.mxu0 0.0
        %4927 = vmatprep.subr.mxu0 0.0
        %4928 = vmatpush1.xpose.msra.mxu0 0.0
        %4929 = vmatprep.subr.mxu0 0.0
        %v4930 = vand.u32 %v4821, 4294901760
        %v4931 = vsub.f32 %v4821, %v4930
        %v4932 = vand.u32 %v4931, 4294901760
        %v4933 = vsub.f32 %v4931, %v4932
        %v4934 = vand.u32 %v4933, 4294901760
        %4935 = vmatpush1.xpose.msra.mxu0 %v4934
        %4936 = vmatprep.subr.mxu0 0.0
        %4937 = vmatpush2.xpose.msra.mxu0 0.0
        %4938 = vmatprep.subr.mxu0 0.0
        %4939 = vmatpush2.xpose.msra.mxu0 0.0
        %4940 = vmatprep.subr.mxu0 0.0
        %4941 = vmatpush2.xpose.msra.mxu0 0.0
        %4942 = vmatprep.subr.mxu0 0.0
        %4943 = vmatpush2.xpose.msra.mxu0 0.0
        %4944 = vmatprep.subr.mxu0 0.0
        %4945 = vmatpush2.xpose.msra.mxu0 0.0
        %4946 = vmatprep.subr.mxu0 0.0
        %4947 = vmatpush2.xpose.msra.mxu0 0.0
        %4948 = vmatprep.subr.mxu0 0.0
        %4949 = vmatpush2.xpose.msra.mxu0 0.0
        %4950 = vmatprep.subr.mxu0 0.0
        %4951 = vmatpush2.xpose.msra.mxu0 0.0
        %4952 = vmatprep.subr.mxu0 0.0
        %4953 = vmatpush2.xpose.msra.mxu0 0.0
        %4954 = vmatprep.subr.mxu0 0.0
        %4955 = vmatpush2.xpose.msra.mxu0 0.0
        %4956 = vmatprep.subr.mxu0 0.0
        %4957 = vmatpush2.xpose.msra.mxu0 0.0
        %4958 = vmatprep.subr.mxu0 0.0
        %4959 = vmatpush2.xpose.msra.mxu0 0.0
        %4960 = vmatprep.subr.mxu0 0.0
        %4961 = vmatpush2.xpose.msra.mxu0 0.0
        %4962 = vmatprep.subr.mxu0 0.0
        %4963 = vmatpush2.xpose.msra.mxu0 0.0
        %4964 = vmatprep.subr.mxu0 0.0
        %4965 = vmatpush2.xpose.msra.mxu0 0.0
        %4966 = vmatprep.subr.mxu0 0.0
        %4967 = vmatpush2.xpose.msra.mxu0 0.0
        %4968 = vmatprep.mubr.f32.mxu0 0.0
        %v4969 = vand.u32 %v4819, 4294901760
        %4970 = vmatmul.mubr.f32.gmra.mxu0 %v4969
        %v4971 = vpop.f32.mrf.mxu0
        %v4972 = vadd.f32 %v4896, %v4971
        %v4973 = vpop.f32.mrf.mxu0
        %4974 = vdwg.mxu0
        %4975 = vmatprep.subr.mxu0 0.0
        %4976 = vmatpush1.xpose.msra.mxu0 0.0
        %4977 = vmatprep.subr.mxu0 0.0
        %4978 = vmatpush1.xpose.msra.mxu0 0.0
        %4979 = vmatprep.subr.mxu0 0.0
        %4980 = vmatpush1.xpose.msra.mxu0 0.0
        %4981 = vmatprep.subr.mxu0 0.0
        %4982 = vmatpush1.xpose.msra.mxu0 0.0
        %4983 = vmatprep.subr.mxu0 0.0
        %4984 = vmatpush1.xpose.msra.mxu0 0.0
        %4985 = vmatprep.subr.mxu0 0.0
        %4986 = vmatpush1.xpose.msra.mxu0 0.0
        %4987 = vmatprep.subr.mxu0 0.0
        %4988 = vmatpush1.xpose.msra.mxu0 0.0
        %4989 = vmatprep.subr.mxu0 0.0
        %4990 = vmatpush1.xpose.msra.mxu0 0.0
        %4991 = vmatprep.subr.mxu0 0.0
        %4992 = vmatpush1.xpose.msra.mxu0 0.0
        %4993 = vmatprep.subr.mxu0 0.0
        %4994 = vmatpush1.xpose.msra.mxu0 0.0
        %4995 = vmatprep.subr.mxu0 0.0
        %4996 = vmatpush1.xpose.msra.mxu0 0.0
        %4997 = vmatprep.subr.mxu0 0.0
        %4998 = vmatpush1.xpose.msra.mxu0 0.0
        %4999 = vmatprep.subr.mxu0 0.0
        %5000 = vmatpush1.xpose.msra.mxu0 0.0
        %5001 = vmatprep.subr.mxu0 0.0
        %5002 = vmatpush1.xpose.msra.mxu0 0.0
        %5003 = vmatprep.subr.mxu0 0.0
        %5004 = vmatpush1.xpose.msra.mxu0 0.0
        %5005 = vmatprep.subr.mxu0 0.0
        %v5006 = vand.u32 %v4821, 4294901760
        %v5007 = vsub.f32 %v4821, %v5006
        %5008 = vmatpush1.xpose.msra.mxu0 %v5007
        %5009 = vmatprep.subr.mxu0 0.0
        %5010 = vmatpush2.xpose.msra.mxu0 0.0
        %5011 = vmatprep.subr.mxu0 0.0
        %5012 = vmatpush2.xpose.msra.mxu0 0.0
        %5013 = vmatprep.subr.mxu0 0.0
        %5014 = vmatpush2.xpose.msra.mxu0 0.0
        %5015 = vmatprep.subr.mxu0 0.0
        %5016 = vmatpush2.xpose.msra.mxu0 0.0
        %5017 = vmatprep.subr.mxu0 0.0
        %5018 = vmatpush2.xpose.msra.mxu0 0.0
        %5019 = vmatprep.subr.mxu0 0.0
        %5020 = vmatpush2.xpose.msra.mxu0 0.0
        %5021 = vmatprep.subr.mxu0 0.0
        %5022 = vmatpush2.xpose.msra.mxu0 0.0
        %5023 = vmatprep.subr.mxu0 0.0
        %5024 = vmatpush2.xpose.msra.mxu0 0.0
        %5025 = vmatprep.subr.mxu0 0.0
        %5026 = vmatpush2.xpose.msra.mxu0 0.0
        %5027 = vmatprep.subr.mxu0 0.0
        %5028 = vmatpush2.xpose.msra.mxu0 0.0
        %5029 = vmatprep.subr.mxu0 0.0
        %5030 = vmatpush2.xpose.msra.mxu0 0.0
        %5031 = vmatprep.subr.mxu0 0.0
        %5032 = vmatpush2.xpose.msra.mxu0 0.0
        %5033 = vmatprep.subr.mxu0 0.0
        %5034 = vmatpush2.xpose.msra.mxu0 0.0
        %5035 = vmatprep.subr.mxu0 0.0
        %5036 = vmatpush2.xpose.msra.mxu0 0.0
        %5037 = vmatprep.subr.mxu0 0.0
        %5038 = vmatpush2.xpose.msra.mxu0 0.0
        %5039 = vmatprep.subr.mxu0 0.0
        %5040 = vmatpush2.xpose.msra.mxu0 0.0
        %5041 = vmatprep.mubr.f32.mxu0 0.0
        %v5042 = vand.u32 %v4819, 4294901760
        %v5043 = vsub.f32 %v4819, %v5042
        %5044 = vmatmul.mubr.f32.gmra.mxu0 %v5043
        %v5045 = vpop.f32.mrf.mxu0
        %v5046 = vadd.f32 %v4972, %v5045
        %v5047 = vpop.f32.mrf.mxu0
        %5048 = vdwg.mxu0
        %5049 = vmatprep.subr.mxu0 0.0
        %5050 = vmatpush1.xpose.msra.mxu0 0.0
        %5051 = vmatprep.subr.mxu0 0.0
        %5052 = vmatpush1.xpose.msra.mxu0 0.0
        %5053 = vmatprep.subr.mxu0 0.0
        %5054 = vmatpush1.xpose.msra.mxu0 0.0
        %5055 = vmatprep.subr.mxu0 0.0
        %5056 = vmatpush1.xpose.msra.mxu0 0.0
        %5057 = vmatprep.subr.mxu0 0.0
        %5058 = vmatpush1.xpose.msra.mxu0 0.0
        %5059 = vmatprep.subr.mxu0 0.0
        %5060 = vmatpush1.xpose.msra.mxu0 0.0
        %5061 = vmatprep.subr.mxu0 0.0
        %5062 = vmatpush1.xpose.msra.mxu0 0.0
        %5063 = vmatprep.subr.mxu0 0.0
        %5064 = vmatpush1.xpose.msra.mxu0 0.0
        %5065 = vmatprep.subr.mxu0 0.0
        %5066 = vmatpush1.xpose.msra.mxu0 0.0
        %5067 = vmatprep.subr.mxu0 0.0
        %5068 = vmatpush1.xpose.msra.mxu0 0.0
        %5069 = vmatprep.subr.mxu0 0.0
        %5070 = vmatpush1.xpose.msra.mxu0 0.0
        %5071 = vmatprep.subr.mxu0 0.0
        %5072 = vmatpush1.xpose.msra.mxu0 0.0
        %5073 = vmatprep.subr.mxu0 0.0
        %5074 = vmatpush1.xpose.msra.mxu0 0.0
        %5075 = vmatprep.subr.mxu0 0.0
        %5076 = vmatpush1.xpose.msra.mxu0 0.0
        %5077 = vmatprep.subr.mxu0 0.0
        %5078 = vmatpush1.xpose.msra.mxu0 0.0
        %5079 = vmatprep.subr.mxu0 0.0
        %v5080 = vand.u32 %v4821, 4294901760
        %5081 = vmatpush1.xpose.msra.mxu0 %v5080
        %5082 = vmatprep.subr.mxu0 0.0
        %5083 = vmatpush2.xpose.msra.mxu0 0.0
        %5084 = vmatprep.subr.mxu0 0.0
        %5085 = vmatpush2.xpose.msra.mxu0 0.0
        %5086 = vmatprep.subr.mxu0 0.0
        %5087 = vmatpush2.xpose.msra.mxu0 0.0
        %5088 = vmatprep.subr.mxu0 0.0
        %5089 = vmatpush2.xpose.msra.mxu0 0.0
        %5090 = vmatprep.subr.mxu0 0.0
        %5091 = vmatpush2.xpose.msra.mxu0 0.0
        %5092 = vmatprep.subr.mxu0 0.0
        %5093 = vmatpush2.xpose.msra.mxu0 0.0
        %5094 = vmatprep.subr.mxu0 0.0
        %5095 = vmatpush2.xpose.msra.mxu0 0.0
        %5096 = vmatprep.subr.mxu0 0.0
        %5097 = vmatpush2.xpose.msra.mxu0 0.0
        %5098 = vmatprep.subr.mxu0 0.0
        %5099 = vmatpush2.xpose.msra.mxu0 0.0
        %5100 = vmatprep.subr.mxu0 0.0
        %5101 = vmatpush2.xpose.msra.mxu0 0.0
        %5102 = vmatprep.subr.mxu0 0.0
        %5103 = vmatpush2.xpose.msra.mxu0 0.0
        %5104 = vmatprep.subr.mxu0 0.0
        %5105 = vmatpush2.xpose.msra.mxu0 0.0
        %5106 = vmatprep.subr.mxu0 0.0
        %5107 = vmatpush2.xpose.msra.mxu0 0.0
        %5108 = vmatprep.subr.mxu0 0.0
        %5109 = vmatpush2.xpose.msra.mxu0 0.0
        %5110 = vmatprep.subr.mxu0 0.0
        %5111 = vmatpush2.xpose.msra.mxu0 0.0
        %5112 = vmatprep.subr.mxu0 0.0
        %5113 = vmatpush2.xpose.msra.mxu0 0.0
        %5114 = vmatprep.mubr.f32.mxu0 0.0
        %v5115 = vand.u32 %v4819, 4294901760
        %v5116 = vsub.f32 %v4819, %v5115
        %v5117 = vand.u32 %v5116, 4294901760
        %5118 = vmatmul.mubr.f32.gmra.mxu0 %v5117
        %v5119 = vpop.f32.mrf.mxu0
        %v5120 = vadd.f32 %v5046, %v5119
        %v5121 = vpop.f32.mrf.mxu0
        %5122 = vdwg.mxu0
        %5123 = vmatprep.subr.mxu0 0.0
        %5124 = vmatpush1.xpose.msra.mxu0 0.0
        %5125 = vmatprep.subr.mxu0 0.0
        %5126 = vmatpush1.xpose.msra.mxu0 0.0
        %5127 = vmatprep.subr.mxu0 0.0
        %5128 = vmatpush1.xpose.msra.mxu0 0.0
        %5129 = vmatprep.subr.mxu0 0.0
        %5130 = vmatpush1.xpose.msra.mxu0 0.0
        %5131 = vmatprep.subr.mxu0 0.0
        %5132 = vmatpush1.xpose.msra.mxu0 0.0
        %5133 = vmatprep.subr.mxu0 0.0
        %5134 = vmatpush1.xpose.msra.mxu0 0.0
        %5135 = vmatprep.subr.mxu0 0.0
        %5136 = vmatpush1.xpose.msra.mxu0 0.0
        %5137 = vmatprep.subr.mxu0 0.0
        %5138 = vmatpush1.xpose.msra.mxu0 0.0
        %5139 = vmatprep.subr.mxu0 0.0
        %5140 = vmatpush1.xpose.msra.mxu0 0.0
        %5141 = vmatprep.subr.mxu0 0.0
        %5142 = vmatpush1.xpose.msra.mxu0 0.0
        %5143 = vmatprep.subr.mxu0 0.0
        %5144 = vmatpush1.xpose.msra.mxu0 0.0
        %5145 = vmatprep.subr.mxu0 0.0
        %5146 = vmatpush1.xpose.msra.mxu0 0.0
        %5147 = vmatprep.subr.mxu0 0.0
        %5148 = vmatpush1.xpose.msra.mxu0 0.0
        %5149 = vmatprep.subr.mxu0 0.0
        %5150 = vmatpush1.xpose.msra.mxu0 0.0
        %5151 = vmatprep.subr.mxu0 0.0
        %5152 = vmatpush1.xpose.msra.mxu0 0.0
        %5153 = vmatprep.subr.mxu0 0.0
        %v5154 = vand.u32 %v4821, 4294901760
        %v5155 = vsub.f32 %v4821, %v5154
        %v5156 = vand.u32 %v5155, 4294901760
        %5157 = vmatpush1.xpose.msra.mxu0 %v5156
        %5158 = vmatprep.subr.mxu0 0.0
        %5159 = vmatpush2.xpose.msra.mxu0 0.0
        %5160 = vmatprep.subr.mxu0 0.0
        %5161 = vmatpush2.xpose.msra.mxu0 0.0
        %5162 = vmatprep.subr.mxu0 0.0
        %5163 = vmatpush2.xpose.msra.mxu0 0.0
        %5164 = vmatprep.subr.mxu0 0.0
        %5165 = vmatpush2.xpose.msra.mxu0 0.0
        %5166 = vmatprep.subr.mxu0 0.0
        %5167 = vmatpush2.xpose.msra.mxu0 0.0
        %5168 = vmatprep.subr.mxu0 0.0
        %5169 = vmatpush2.xpose.msra.mxu0 0.0
        %5170 = vmatprep.subr.mxu0 0.0
        %5171 = vmatpush2.xpose.msra.mxu0 0.0
        %5172 = vmatprep.subr.mxu0 0.0
        %5173 = vmatpush2.xpose.msra.mxu0 0.0
        %5174 = vmatprep.subr.mxu0 0.0
        %5175 = vmatpush2.xpose.msra.mxu0 0.0
        %5176 = vmatprep.subr.mxu0 0.0
        %5177 = vmatpush2.xpose.msra.mxu0 0.0
        %5178 = vmatprep.subr.mxu0 0.0
        %5179 = vmatpush2.xpose.msra.mxu0 0.0
        %5180 = vmatprep.subr.mxu0 0.0
        %5181 = vmatpush2.xpose.msra.mxu0 0.0
        %5182 = vmatprep.subr.mxu0 0.0
        %5183 = vmatpush2.xpose.msra.mxu0 0.0
        %5184 = vmatprep.subr.mxu0 0.0
        %5185 = vmatpush2.xpose.msra.mxu0 0.0
        %5186 = vmatprep.subr.mxu0 0.0
        %5187 = vmatpush2.xpose.msra.mxu0 0.0
        %5188 = vmatprep.subr.mxu0 0.0
        %5189 = vmatpush2.xpose.msra.mxu0 0.0
        %5190 = vmatprep.mubr.f32.mxu0 0.0
        %v5191 = vand.u32 %v4819, 4294901760
        %5192 = vmatmul.mubr.f32.gmra.mxu0 %v5191
        %v5193 = vpop.f32.mrf.mxu0
        %v5194 = vadd.f32 %v5120, %v5193
        %v5195 = vpop.f32.mrf.mxu0
        %5196 = vdwg.mxu0
        %5197 = vmatprep.subr.mxu0 0.0
        %5198 = vmatpush1.xpose.msra.mxu0 0.0
        %5199 = vmatprep.subr.mxu0 0.0
        %5200 = vmatpush1.xpose.msra.mxu0 0.0
        %5201 = vmatprep.subr.mxu0 0.0
        %5202 = vmatpush1.xpose.msra.mxu0 0.0
        %5203 = vmatprep.subr.mxu0 0.0
        %5204 = vmatpush1.xpose.msra.mxu0 0.0
        %5205 = vmatprep.subr.mxu0 0.0
        %5206 = vmatpush1.xpose.msra.mxu0 0.0
        %5207 = vmatprep.subr.mxu0 0.0
        %5208 = vmatpush1.xpose.msra.mxu0 0.0
        %5209 = vmatprep.subr.mxu0 0.0
        %5210 = vmatpush1.xpose.msra.mxu0 0.0
        %5211 = vmatprep.subr.mxu0 0.0
        %5212 = vmatpush1.xpose.msra.mxu0 0.0
        %5213 = vmatprep.subr.mxu0 0.0
        %5214 = vmatpush1.xpose.msra.mxu0 0.0
        %5215 = vmatprep.subr.mxu0 0.0
        %5216 = vmatpush1.xpose.msra.mxu0 0.0
        %5217 = vmatprep.subr.mxu0 0.0
        %5218 = vmatpush1.xpose.msra.mxu0 0.0
        %5219 = vmatprep.subr.mxu0 0.0
        %5220 = vmatpush1.xpose.msra.mxu0 0.0
        %5221 = vmatprep.subr.mxu0 0.0
        %5222 = vmatpush1.xpose.msra.mxu0 0.0
        %5223 = vmatprep.subr.mxu0 0.0
        %5224 = vmatpush1.xpose.msra.mxu0 0.0
        %5225 = vmatprep.subr.mxu0 0.0
        %5226 = vmatpush1.xpose.msra.mxu0 0.0
        %5227 = vmatprep.subr.mxu0 0.0
        %v5228 = vand.u32 %v4821, 4294901760
        %5229 = vmatpush1.xpose.msra.mxu0 %v5228
        %5230 = vmatprep.subr.mxu0 0.0
        %5231 = vmatpush2.xpose.msra.mxu0 0.0
        %5232 = vmatprep.subr.mxu0 0.0
        %5233 = vmatpush2.xpose.msra.mxu0 0.0
        %5234 = vmatprep.subr.mxu0 0.0
        %5235 = vmatpush2.xpose.msra.mxu0 0.0
        %5236 = vmatprep.subr.mxu0 0.0
        %5237 = vmatpush2.xpose.msra.mxu0 0.0
        %5238 = vmatprep.subr.mxu0 0.0
        %5239 = vmatpush2.xpose.msra.mxu0 0.0
        %5240 = vmatprep.subr.mxu0 0.0
        %5241 = vmatpush2.xpose.msra.mxu0 0.0
        %5242 = vmatprep.subr.mxu0 0.0
        %5243 = vmatpush2.xpose.msra.mxu0 0.0
        %5244 = vmatprep.subr.mxu0 0.0
        %5245 = vmatpush2.xpose.msra.mxu0 0.0
        %5246 = vmatprep.subr.mxu0 0.0
        %5247 = vmatpush2.xpose.msra.mxu0 0.0
        %5248 = vmatprep.subr.mxu0 0.0
        %5249 = vmatpush2.xpose.msra.mxu0 0.0
        %5250 = vmatprep.subr.mxu0 0.0
        %5251 = vmatpush2.xpose.msra.mxu0 0.0
        %5252 = vmatprep.subr.mxu0 0.0
        %5253 = vmatpush2.xpose.msra.mxu0 0.0
        %5254 = vmatprep.subr.mxu0 0.0
        %5255 = vmatpush2.xpose.msra.mxu0 0.0
        %5256 = vmatprep.subr.mxu0 0.0
        %5257 = vmatpush2.xpose.msra.mxu0 0.0
        %5258 = vmatprep.subr.mxu0 0.0
        %5259 = vmatpush2.xpose.msra.mxu0 0.0
        %5260 = vmatprep.subr.mxu0 0.0
        %5261 = vmatpush2.xpose.msra.mxu0 0.0
        %5262 = vmatprep.mubr.f32.mxu0 0.0
        %v5263 = vand.u32 %v4819, 4294901760
        %5264 = vmatmul.mubr.f32.gmra.mxu0 %v5263
        %v5265 = vpop.f32.mrf.mxu0
        %v5266 = vadd.f32 %v5194, %v5265
        %v5267 = vpop.f32.mrf.mxu0
        %5268 = vdwg.mxu0
        %v5269 = vmul.f32 %v5266, 0.35355338
        %v5270 = vadd.f32 %v5269, %v2047
        %v5271 = vsel %vm2048, %v5270, -inf
        %5272 = vmax.xlane.f32.xlu0 %v5271
        %v5273 = vpop.xlane.xlu0 %5272
        %v5274 = vsub.f32 %v5270, %v5273
        %v5275 = vmul.f32 %v5274, 1.442695
        %v5276 = vpow.pop %v5275
        %v5277 = vsel %vm2048, %v5276, 0.0
        %5278 = vadd.xlane.f32.xlu0 %v5277
        %v5279 = vpop.xlane.xlu0 %5278
        %v5280 = vrcp.pop %v5279
        %v5281 = vmul.f32 %v5276, %v5280
        %5282 = vrot.lane.b32.xlu0 %v2044, 104
        %v5283 = vpop.permute.xlu0 %5282
        %v5286 = vsel %vm2048, %v5281, 0
        %5288 = vmatprep.subr.mxu0 0.0
        %5289 = vmatpush1.msra.mxu0 0.0
        %5290 = vmatprep.subr.mxu0 0.0
        %5291 = vmatpush1.msra.mxu0 0.0
        %5292 = vmatprep.subr.mxu0 0.0
        %5293 = vmatpush1.msra.mxu0 0.0
        %5294 = vmatprep.subr.mxu0 0.0
        %5295 = vmatpush1.msra.mxu0 0.0
        %5296 = vmatprep.subr.mxu0 0.0
        %5297 = vmatpush1.msra.mxu0 0.0
        %5298 = vmatprep.subr.mxu0 0.0
        %5299 = vmatpush1.msra.mxu0 0.0
        %5300 = vmatprep.subr.mxu0 0.0
        %5301 = vmatpush1.msra.mxu0 0.0
        %5302 = vmatprep.subr.mxu0 0.0
        %5303 = vmatpush1.msra.mxu0 0.0
        %5304 = vmatprep.subr.mxu0 0.0
        %5305 = vmatpush1.msra.mxu0 0.0
        %5306 = vmatprep.subr.mxu0 0.0
        %5307 = vmatpush1.msra.mxu0 0.0
        %5308 = vmatprep.subr.mxu0 0.0
        %5309 = vmatpush1.msra.mxu0 0.0
        %5310 = vmatprep.subr.mxu0 0.0
        %5311 = vmatpush1.msra.mxu0 0.0
        %5312 = vmatprep.subr.mxu0 0.0
        %5313 = vmatpush1.msra.mxu0 0.0
        %5314 = vmatprep.subr.mxu0 0.0
        %5315 = vmatpush1.msra.mxu0 0.0
        %5316 = vmatprep.subr.mxu0 0.0
        %5317 = vmatpush1.msra.mxu0 0.0
        %5318 = vmatprep.subr.mxu0 0.0
        %v5319 = vand.u32 %v5283, 4294901760
        %5320 = vmatpush1.msra.mxu0 %v5319
        %5321 = vmatprep.subr.mxu0 0.0
        %5322 = vmatpush2.msra.mxu0 0.0
        %5323 = vmatprep.subr.mxu0 0.0
        %5324 = vmatpush2.msra.mxu0 0.0
        %5325 = vmatprep.subr.mxu0 0.0
        %5326 = vmatpush2.msra.mxu0 0.0
        %5327 = vmatprep.subr.mxu0 0.0
        %5328 = vmatpush2.msra.mxu0 0.0
        %5329 = vmatprep.subr.mxu0 0.0
        %5330 = vmatpush2.msra.mxu0 0.0
        %5331 = vmatprep.subr.mxu0 0.0
        %5332 = vmatpush2.msra.mxu0 0.0
        %5333 = vmatprep.subr.mxu0 0.0
        %5334 = vmatpush2.msra.mxu0 0.0
        %5335 = vmatprep.subr.mxu0 0.0
        %5336 = vmatpush2.msra.mxu0 0.0
        %5337 = vmatprep.subr.mxu0 0.0
        %5338 = vmatpush2.msra.mxu0 0.0
        %5339 = vmatprep.subr.mxu0 0.0
        %5340 = vmatpush2.msra.mxu0 0.0
        %5341 = vmatprep.subr.mxu0 0.0
        %5342 = vmatpush2.msra.mxu0 0.0
        %5343 = vmatprep.subr.mxu0 0.0
        %5344 = vmatpush2.msra.mxu0 0.0
        %5345 = vmatprep.subr.mxu0 0.0
        %5346 = vmatpush2.msra.mxu0 0.0
        %5347 = vmatprep.subr.mxu0 0.0
        %5348 = vmatpush2.msra.mxu0 0.0
        %5349 = vmatprep.subr.mxu0 0.0
        %5350 = vmatpush2.msra.mxu0 0.0
        %5351 = vmatprep.subr.mxu0 0.0
        %5352 = vmatpush2.msra.mxu0 0.0
        %5353 = vmatprep.mubr.f32.mxu0 0.0
        %v5354 = vand.u32 %v5286, 4294901760
        %v5355 = vsub.f32 %v5286, %v5354
        %v5356 = vand.u32 %v5355, 4294901760
        %v5357 = vsub.f32 %v5355, %v5356
        %v5358 = vand.u32 %v5357, 4294901760
        %5359 = vmatmul.mubr.f32.gmra.mxu0 %v5358
        %v5360 = vpop.f32.mrf.mxu0
        %v5361 = vadd.f32 0.0, %v5360
        %v5362 = vpop.f32.mrf.mxu0
        %5363 = vdwg.mxu0
        %5364 = vmatprep.subr.mxu0 0.0
        %5365 = vmatpush1.msra.mxu0 0.0
        %5366 = vmatprep.subr.mxu0 0.0
        %5367 = vmatpush1.msra.mxu0 0.0
        %5368 = vmatprep.subr.mxu0 0.0
        %5369 = vmatpush1.msra.mxu0 0.0
        %5370 = vmatprep.subr.mxu0 0.0
        %5371 = vmatpush1.msra.mxu0 0.0
        %5372 = vmatprep.subr.mxu0 0.0
        %5373 = vmatpush1.msra.mxu0 0.0
        %5374 = vmatprep.subr.mxu0 0.0
        %5375 = vmatpush1.msra.mxu0 0.0
        %5376 = vmatprep.subr.mxu0 0.0
        %5377 = vmatpush1.msra.mxu0 0.0
        %5378 = vmatprep.subr.mxu0 0.0
        %5379 = vmatpush1.msra.mxu0 0.0
        %5380 = vmatprep.subr.mxu0 0.0
        %5381 = vmatpush1.msra.mxu0 0.0
        %5382 = vmatprep.subr.mxu0 0.0
        %5383 = vmatpush1.msra.mxu0 0.0
        %5384 = vmatprep.subr.mxu0 0.0
        %5385 = vmatpush1.msra.mxu0 0.0
        %5386 = vmatprep.subr.mxu0 0.0
        %5387 = vmatpush1.msra.mxu0 0.0
        %5388 = vmatprep.subr.mxu0 0.0
        %5389 = vmatpush1.msra.mxu0 0.0
        %5390 = vmatprep.subr.mxu0 0.0
        %5391 = vmatpush1.msra.mxu0 0.0
        %5392 = vmatprep.subr.mxu0 0.0
        %5393 = vmatpush1.msra.mxu0 0.0
        %5394 = vmatprep.subr.mxu0 0.0
        %v5395 = vand.u32 %v5283, 4294901760
        %v5396 = vsub.f32 %v5283, %v5395
        %v5397 = vand.u32 %v5396, 4294901760
        %v5398 = vsub.f32 %v5396, %v5397
        %v5399 = vand.u32 %v5398, 4294901760
        %5400 = vmatpush1.msra.mxu0 %v5399
        %5401 = vmatprep.subr.mxu0 0.0
        %5402 = vmatpush2.msra.mxu0 0.0
        %5403 = vmatprep.subr.mxu0 0.0
        %5404 = vmatpush2.msra.mxu0 0.0
        %5405 = vmatprep.subr.mxu0 0.0
        %5406 = vmatpush2.msra.mxu0 0.0
        %5407 = vmatprep.subr.mxu0 0.0
        %5408 = vmatpush2.msra.mxu0 0.0
        %5409 = vmatprep.subr.mxu0 0.0
        %5410 = vmatpush2.msra.mxu0 0.0
        %5411 = vmatprep.subr.mxu0 0.0
        %5412 = vmatpush2.msra.mxu0 0.0
        %5413 = vmatprep.subr.mxu0 0.0
        %5414 = vmatpush2.msra.mxu0 0.0
        %5415 = vmatprep.subr.mxu0 0.0
        %5416 = vmatpush2.msra.mxu0 0.0
        %5417 = vmatprep.subr.mxu0 0.0
        %5418 = vmatpush2.msra.mxu0 0.0
        %5419 = vmatprep.subr.mxu0 0.0
        %5420 = vmatpush2.msra.mxu0 0.0
        %5421 = vmatprep.subr.mxu0 0.0
        %5422 = vmatpush2.msra.mxu0 0.0
        %5423 = vmatprep.subr.mxu0 0.0
        %5424 = vmatpush2.msra.mxu0 0.0
        %5425 = vmatprep.subr.mxu0 0.0
        %5426 = vmatpush2.msra.mxu0 0.0
        %5427 = vmatprep.subr.mxu0 0.0
        %5428 = vmatpush2.msra.mxu0 0.0
        %5429 = vmatprep.subr.mxu0 0.0
        %5430 = vmatpush2.msra.mxu0 0.0
        %5431 = vmatprep.subr.mxu0 0.0
        %5432 = vmatpush2.msra.mxu0 0.0
        %5433 = vmatprep.mubr.f32.mxu0 0.0
        %v5434 = vand.u32 %v5286, 4294901760
        %5435 = vmatmul.mubr.f32.gmra.mxu0 %v5434
        %v5436 = vpop.f32.mrf.mxu0
        %v5437 = vadd.f32 %v5361, %v5436
        %v5438 = vpop.f32.mrf.mxu0
        %5439 = vdwg.mxu0
        %5440 = vmatprep.subr.mxu0 0.0
        %5441 = vmatpush1.msra.mxu0 0.0
        %5442 = vmatprep.subr.mxu0 0.0
        %5443 = vmatpush1.msra.mxu0 0.0
        %5444 = vmatprep.subr.mxu0 0.0
        %5445 = vmatpush1.msra.mxu0 0.0
        %5446 = vmatprep.subr.mxu0 0.0
        %5447 = vmatpush1.msra.mxu0 0.0
        %5448 = vmatprep.subr.mxu0 0.0
        %5449 = vmatpush1.msra.mxu0 0.0
        %5450 = vmatprep.subr.mxu0 0.0
        %5451 = vmatpush1.msra.mxu0 0.0
        %5452 = vmatprep.subr.mxu0 0.0
        %5453 = vmatpush1.msra.mxu0 0.0
        %5454 = vmatprep.subr.mxu0 0.0
        %5455 = vmatpush1.msra.mxu0 0.0
        %5456 = vmatprep.subr.mxu0 0.0
        %5457 = vmatpush1.msra.mxu0 0.0
        %5458 = vmatprep.subr.mxu0 0.0
        %5459 = vmatpush1.msra.mxu0 0.0
        %5460 = vmatprep.subr.mxu0 0.0
        %5461 = vmatpush1.msra.mxu0 0.0
        %5462 = vmatprep.subr.mxu0 0.0
        %5463 = vmatpush1.msra.mxu0 0.0
        %5464 = vmatprep.subr.mxu0 0.0
        %5465 = vmatpush1.msra.mxu0 0.0
        %5466 = vmatprep.subr.mxu0 0.0
        %5467 = vmatpush1.msra.mxu0 0.0
        %5468 = vmatprep.subr.mxu0 0.0
        %5469 = vmatpush1.msra.mxu0 0.0
        %5470 = vmatprep.subr.mxu0 0.0
        %v5471 = vand.u32 %v5283, 4294901760
        %v5472 = vsub.f32 %v5283, %v5471
        %5473 = vmatpush1.msra.mxu0 %v5472
        %5474 = vmatprep.subr.mxu0 0.0
        %5475 = vmatpush2.msra.mxu0 0.0
        %5476 = vmatprep.subr.mxu0 0.0
        %5477 = vmatpush2.msra.mxu0 0.0
        %5478 = vmatprep.subr.mxu0 0.0
        %5479 = vmatpush2.msra.mxu0 0.0
        %5480 = vmatprep.subr.mxu0 0.0
        %5481 = vmatpush2.msra.mxu0 0.0
        %5482 = vmatprep.subr.mxu0 0.0
        %5483 = vmatpush2.msra.mxu0 0.0
        %5484 = vmatprep.subr.mxu0 0.0
        %5485 = vmatpush2.msra.mxu0 0.0
        %5486 = vmatprep.subr.mxu0 0.0
        %5487 = vmatpush2.msra.mxu0 0.0
        %5488 = vmatprep.subr.mxu0 0.0
        %5489 = vmatpush2.msra.mxu0 0.0
        %5490 = vmatprep.subr.mxu0 0.0
        %5491 = vmatpush2.msra.mxu0 0.0
        %5492 = vmatprep.subr.mxu0 0.0
        %5493 = vmatpush2.msra.mxu0 0.0
        %5494 = vmatprep.subr.mxu0 0.0
        %5495 = vmatpush2.msra.mxu0 0.0
        %5496 = vmatprep.subr.mxu0 0.0
        %5497 = vmatpush2.msra.mxu0 0.0
        %5498 = vmatprep.subr.mxu0 0.0
        %5499 = vmatpush2.msra.mxu0 0.0
        %5500 = vmatprep.subr.mxu0 0.0
        %5501 = vmatpush2.msra.mxu0 0.0
        %5502 = vmatprep.subr.mxu0 0.0
        %5503 = vmatpush2.msra.mxu0 0.0
        %5504 = vmatprep.subr.mxu0 0.0
        %5505 = vmatpush2.msra.mxu0 0.0
        %5506 = vmatprep.mubr.f32.mxu0 0.0
        %v5507 = vand.u32 %v5286, 4294901760
        %v5508 = vsub.f32 %v5286, %v5507
        %5509 = vmatmul.mubr.f32.gmra.mxu0 %v5508
        %v5510 = vpop.f32.mrf.mxu0
        %v5511 = vadd.f32 %v5437, %v5510
        %v5512 = vpop.f32.mrf.mxu0
        %5513 = vdwg.mxu0
        %5514 = vmatprep.subr.mxu0 0.0
        %5515 = vmatpush1.msra.mxu0 0.0
        %5516 = vmatprep.subr.mxu0 0.0
        %5517 = vmatpush1.msra.mxu0 0.0
        %5518 = vmatprep.subr.mxu0 0.0
        %5519 = vmatpush1.msra.mxu0 0.0
        %5520 = vmatprep.subr.mxu0 0.0
        %5521 = vmatpush1.msra.mxu0 0.0
        %5522 = vmatprep.subr.mxu0 0.0
        %5523 = vmatpush1.msra.mxu0 0.0
        %5524 = vmatprep.subr.mxu0 0.0
        %5525 = vmatpush1.msra.mxu0 0.0
        %5526 = vmatprep.subr.mxu0 0.0
        %5527 = vmatpush1.msra.mxu0 0.0
        %5528 = vmatprep.subr.mxu0 0.0
        %5529 = vmatpush1.msra.mxu0 0.0
        %5530 = vmatprep.subr.mxu0 0.0
        %5531 = vmatpush1.msra.mxu0 0.0
        %5532 = vmatprep.subr.mxu0 0.0
        %5533 = vmatpush1.msra.mxu0 0.0
        %5534 = vmatprep.subr.mxu0 0.0
        %5535 = vmatpush1.msra.mxu0 0.0
        %5536 = vmatprep.subr.mxu0 0.0
        %5537 = vmatpush1.msra.mxu0 0.0
        %5538 = vmatprep.subr.mxu0 0.0
        %5539 = vmatpush1.msra.mxu0 0.0
        %5540 = vmatprep.subr.mxu0 0.0
        %5541 = vmatpush1.msra.mxu0 0.0
        %5542 = vmatprep.subr.mxu0 0.0
        %5543 = vmatpush1.msra.mxu0 0.0
        %5544 = vmatprep.subr.mxu0 0.0
        %v5545 = vand.u32 %v5283, 4294901760
        %5546 = vmatpush1.msra.mxu0 %v5545
        %5547 = vmatprep.subr.mxu0 0.0
        %5548 = vmatpush2.msra.mxu0 0.0
        %5549 = vmatprep.subr.mxu0 0.0
        %5550 = vmatpush2.msra.mxu0 0.0
        %5551 = vmatprep.subr.mxu0 0.0
        %5552 = vmatpush2.msra.mxu0 0.0
        %5553 = vmatprep.subr.mxu0 0.0
        %5554 = vmatpush2.msra.mxu0 0.0
        %5555 = vmatprep.subr.mxu0 0.0
        %5556 = vmatpush2.msra.mxu0 0.0
        %5557 = vmatprep.subr.mxu0 0.0
        %5558 = vmatpush2.msra.mxu0 0.0
        %5559 = vmatprep.subr.mxu0 0.0
        %5560 = vmatpush2.msra.mxu0 0.0
        %5561 = vmatprep.subr.mxu0 0.0
        %5562 = vmatpush2.msra.mxu0 0.0
        %5563 = vmatprep.subr.mxu0 0.0
        %5564 = vmatpush2.msra.mxu0 0.0
        %5565 = vmatprep.subr.mxu0 0.0
        %5566 = vmatpush2.msra.mxu0 0.0
        %5567 = vmatprep.subr.mxu0 0.0
        %5568 = vmatpush2.msra.mxu0 0.0
        %5569 = vmatprep.subr.mxu0 0.0
        %5570 = vmatpush2.msra.mxu0 0.0
        %5571 = vmatprep.subr.mxu0 0.0
        %5572 = vmatpush2.msra.mxu0 0.0
        %5573 = vmatprep.subr.mxu0 0.0
        %5574 = vmatpush2.msra.mxu0 0.0
        %5575 = vmatprep.subr.mxu0 0.0
        %5576 = vmatpush2.msra.mxu0 0.0
        %5577 = vmatprep.subr.mxu0 0.0
        %5578 = vmatpush2.msra.mxu0 0.0
        %5579 = vmatprep.mubr.f32.mxu0 0.0
        %v5580 = vand.u32 %v5286, 4294901760
        %v5581 = vsub.f32 %v5286, %v5580
        %v5582 = vand.u32 %v5581, 4294901760
        %5583 = vmatmul.mubr.f32.gmra.mxu0 %v5582
        %v5584 = vpop.f32.mrf.mxu0
        %v5585 = vadd.f32 %v5511, %v5584
        %v5586 = vpop.f32.mrf.mxu0
        %5587 = vdwg.mxu0
        %5588 = vmatprep.subr.mxu0 0.0
        %5589 = vmatpush1.msra.mxu0 0.0
        %5590 = vmatprep.subr.mxu0 0.0
        %5591 = vmatpush1.msra.mxu0 0.0
        %5592 = vmatprep.subr.mxu0 0.0
        %5593 = vmatpush1.msra.mxu0 0.0
        %5594 = vmatprep.subr.mxu0 0.0
        %5595 = vmatpush1.msra.mxu0 0.0
        %5596 = vmatprep.subr.mxu0 0.0
        %5597 = vmatpush1.msra.mxu0 0.0
        %5598 = vmatprep.subr.mxu0 0.0
        %5599 = vmatpush1.msra.mxu0 0.0
        %5600 = vmatprep.subr.mxu0 0.0
        %5601 = vmatpush1.msra.mxu0 0.0
        %5602 = vmatprep.subr.mxu0 0.0
        %5603 = vmatpush1.msra.mxu0 0.0
        %5604 = vmatprep.subr.mxu0 0.0
        %5605 = vmatpush1.msra.mxu0 0.0
        %5606 = vmatprep.subr.mxu0 0.0
        %5607 = vmatpush1.msra.mxu0 0.0
        %5608 = vmatprep.subr.mxu0 0.0
        %5609 = vmatpush1.msra.mxu0 0.0
        %5610 = vmatprep.subr.mxu0 0.0
        %5611 = vmatpush1.msra.mxu0 0.0
        %5612 = vmatprep.subr.mxu0 0.0
        %5613 = vmatpush1.msra.mxu0 0.0
        %5614 = vmatprep.subr.mxu0 0.0
        %5615 = vmatpush1.msra.mxu0 0.0
        %5616 = vmatprep.subr.mxu0 0.0
        %5617 = vmatpush1.msra.mxu0 0.0
        %5618 = vmatprep.subr.mxu0 0.0
        %v5619 = vand.u32 %v5283, 4294901760
        %v5620 = vsub.f32 %v5283, %v5619
        %v5621 = vand.u32 %v5620, 4294901760
        %5622 = vmatpush1.msra.mxu0 %v5621
        %5623 = vmatprep.subr.mxu0 0.0
        %5624 = vmatpush2.msra.mxu0 0.0
        %5625 = vmatprep.subr.mxu0 0.0
        %5626 = vmatpush2.msra.mxu0 0.0
        %5627 = vmatprep.subr.mxu0 0.0
        %5628 = vmatpush2.msra.mxu0 0.0
        %5629 = vmatprep.subr.mxu0 0.0
        %5630 = vmatpush2.msra.mxu0 0.0
        %5631 = vmatprep.subr.mxu0 0.0
        %5632 = vmatpush2.msra.mxu0 0.0
        %5633 = vmatprep.subr.mxu0 0.0
        %5634 = vmatpush2.msra.mxu0 0.0
        %5635 = vmatprep.subr.mxu0 0.0
        %5636 = vmatpush2.msra.mxu0 0.0
        %5637 = vmatprep.subr.mxu0 0.0
        %5638 = vmatpush2.msra.mxu0 0.0
        %5639 = vmatprep.subr.mxu0 0.0
        %5640 = vmatpush2.msra.mxu0 0.0
        %5641 = vmatprep.subr.mxu0 0.0
        %5642 = vmatpush2.msra.mxu0 0.0
        %5643 = vmatprep.subr.mxu0 0.0
        %5644 = vmatpush2.msra.mxu0 0.0
        %5645 = vmatprep.subr.mxu0 0.0
        %5646 = vmatpush2.msra.mxu0 0.0
        %5647 = vmatprep.subr.mxu0 0.0
        %5648 = vmatpush2.msra.mxu0 0.0
        %5649 = vmatprep.subr.mxu0 0.0
        %5650 = vmatpush2.msra.mxu0 0.0
        %5651 = vmatprep.subr.mxu0 0.0
        %5652 = vmatpush2.msra.mxu0 0.0
        %5653 = vmatprep.subr.mxu0 0.0
        %5654 = vmatpush2.msra.mxu0 0.0
        %5655 = vmatprep.mubr.f32.mxu0 0.0
        %v5656 = vand.u32 %v5286, 4294901760
        %5657 = vmatmul.mubr.f32.gmra.mxu0 %v5656
        %v5658 = vpop.f32.mrf.mxu0
        %v5659 = vadd.f32 %v5585, %v5658
        %v5660 = vpop.f32.mrf.mxu0
        %5661 = vdwg.mxu0
        %5662 = vmatprep.subr.mxu0 0.0
        %5663 = vmatpush1.msra.mxu0 0.0
        %5664 = vmatprep.subr.mxu0 0.0
        %5665 = vmatpush1.msra.mxu0 0.0
        %5666 = vmatprep.subr.mxu0 0.0
        %5667 = vmatpush1.msra.mxu0 0.0
        %5668 = vmatprep.subr.mxu0 0.0
        %5669 = vmatpush1.msra.mxu0 0.0
        %5670 = vmatprep.subr.mxu0 0.0
        %5671 = vmatpush1.msra.mxu0 0.0
        %5672 = vmatprep.subr.mxu0 0.0
        %5673 = vmatpush1.msra.mxu0 0.0
        %5674 = vmatprep.subr.mxu0 0.0
        %5675 = vmatpush1.msra.mxu0 0.0
        %5676 = vmatprep.subr.mxu0 0.0
        %5677 = vmatpush1.msra.mxu0 0.0
        %5678 = vmatprep.subr.mxu0 0.0
        %5679 = vmatpush1.msra.mxu0 0.0
        %5680 = vmatprep.subr.mxu0 0.0
        %5681 = vmatpush1.msra.mxu0 0.0
        %5682 = vmatprep.subr.mxu0 0.0
        %5683 = vmatpush1.msra.mxu0 0.0
        %5684 = vmatprep.subr.mxu0 0.0
        %5685 = vmatpush1.msra.mxu0 0.0
        %5686 = vmatprep.subr.mxu0 0.0
        %5687 = vmatpush1.msra.mxu0 0.0
        %5688 = vmatprep.subr.mxu0 0.0
        %5689 = vmatpush1.msra.mxu0 0.0
        %5690 = vmatprep.subr.mxu0 0.0
        %5691 = vmatpush1.msra.mxu0 0.0
        %5692 = vmatprep.subr.mxu0 0.0
        %v5693 = vand.u32 %v5283, 4294901760
        %5694 = vmatpush1.msra.mxu0 %v5693
        %5695 = vmatprep.subr.mxu0 0.0
        %5696 = vmatpush2.msra.mxu0 0.0
        %5697 = vmatprep.subr.mxu0 0.0
        %5698 = vmatpush2.msra.mxu0 0.0
        %5699 = vmatprep.subr.mxu0 0.0
        %5700 = vmatpush2.msra.mxu0 0.0
        %5701 = vmatprep.subr.mxu0 0.0
        %5702 = vmatpush2.msra.mxu0 0.0
        %5703 = vmatprep.subr.mxu0 0.0
        %5704 = vmatpush2.msra.mxu0 0.0
        %5705 = vmatprep.subr.mxu0 0.0
        %5706 = vmatpush2.msra.mxu0 0.0
        %5707 = vmatprep.subr.mxu0 0.0
        %5708 = vmatpush2.msra.mxu0 0.0
        %5709 = vmatprep.subr.mxu0 0.0
        %5710 = vmatpush2.msra.mxu0 0.0
        %5711 = vmatprep.subr.mxu0 0.0
        %5712 = vmatpush2.msra.mxu0 0.0
        %5713 = vmatprep.subr.mxu0 0.0
        %5714 = vmatpush2.msra.mxu0 0.0
        %5715 = vmatprep.subr.mxu0 0.0
        %5716 = vmatpush2.msra.mxu0 0.0
        %5717 = vmatprep.subr.mxu0 0.0
        %5718 = vmatpush2.msra.mxu0 0.0
        %5719 = vmatprep.subr.mxu0 0.0
        %5720 = vmatpush2.msra.mxu0 0.0
        %5721 = vmatprep.subr.mxu0 0.0
        %5722 = vmatpush2.msra.mxu0 0.0
        %5723 = vmatprep.subr.mxu0 0.0
        %5724 = vmatpush2.msra.mxu0 0.0
        %5725 = vmatprep.subr.mxu0 0.0
        %5726 = vmatpush2.msra.mxu0 0.0
        %5727 = vmatprep.mubr.f32.mxu0 0.0
        %v5728 = vand.u32 %v5286, 4294901760
        %5729 = vmatmul.mubr.f32.gmra.mxu0 %v5728
        %v5730 = vpop.f32.mrf.mxu0
        %v5731 = vadd.f32 %v5659, %v5730
        %v5732 = vpop.f32.mrf.mxu0
        %5733 = vdwg.mxu0
        %5735 = vrot.lane.b32.xlu0 %v5731, 24
        %v5736 = vpop.permute.xlu0 %5735
        %vm5738 = vcmask 261312
        %5739 = vst.msk [vmem:[#allocation2] sm:$0xff] %vm5738, %v5736
        %v5740 = vld [vmem:[#allocation2] sm:$0xff]
        %v5741 = vld [vmem:[#allocation12] sm:$0xff]
        %v5742 = vld [vmem:[#allocation12 + $0x8] sm:$0xff]
        %v5743 = vld [vmem:[#allocation12 + $0x10] sm:$0xff]
        %v5744 = vld [vmem:[#allocation12 + $0x18] sm:$0xff]
        %v5745 = vld [vmem:[%s11] sm:$0x1]
        %v5747 = vlaneseq
        %v5748 = vshrl.u32 %v5747, 7
        %v5749 = vsub.s32 0, %v5748
        %v5750 = vrot.slane %v5745, %v5749
        %v5753 = vsel %vm527, %v5740, 0
        %5755 = vmatprep.subr.mxu0 0.0
        %5756 = vmatpush1.msra.mxu0 0.0
        %5757 = vmatprep.subr.mxu0 0.0
        %5758 = vmatpush1.msra.mxu0 0.0
        %5759 = vmatprep.subr.mxu0 0.0
        %5760 = vmatpush1.msra.mxu0 0.0
        %5761 = vmatprep.subr.mxu0 0.0
        %5762 = vmatpush1.msra.mxu0 0.0
        %5763 = vmatprep.subr.mxu0 0.0
        %5764 = vmatpush1.msra.mxu0 0.0
        %5765 = vmatprep.subr.mxu0 0.0
        %5766 = vmatpush1.msra.mxu0 0.0
        %5767 = vmatprep.subr.mxu0 0.0
        %5768 = vmatpush1.msra.mxu0 0.0
        %5769 = vmatprep.subr.mxu0 0.0
        %5770 = vmatpush1.msra.mxu0 0.0
        %5771 = vmatprep.subr.mxu0 0.0
        %5772 = vmatpush1.msra.mxu0 0.0
        %5773 = vmatprep.subr.mxu0 0.0
        %5774 = vmatpush1.msra.mxu0 0.0
        %5775 = vmatprep.subr.mxu0 0.0
        %5776 = vmatpush1.msra.mxu0 0.0
        %5777 = vmatprep.subr.mxu0 0.0
        %5778 = vmatpush1.msra.mxu0 0.0
        %5779 = vmatprep.subr.mxu0 0.0
        %v5780 = vand.u32 %v5744, 4294901760
        %5781 = vmatpush1.msra.mxu0 %v5780
        %5782 = vmatprep.subr.mxu0 0.0
        %v5783 = vand.u32 %v5743, 4294901760
        %5784 = vmatpush1.msra.mxu0 %v5783
        %5785 = vmatprep.subr.mxu0 0.0
        %v5786 = vand.u32 %v5742, 4294901760
        %5787 = vmatpush1.msra.mxu0 %v5786
        %5788 = vmatprep.subr.mxu0 0.0
        %v5789 = vand.u32 %v5741, 4294901760
        %5790 = vmatpush1.msra.mxu0 %v5789
        %5791 = vmatprep.subr.mxu0 0.0
        %5792 = vmatpush2.msra.mxu0 0.0
        %5793 = vmatprep.subr.mxu0 0.0
        %5794 = vmatpush2.msra.mxu0 0.0
        %5795 = vmatprep.subr.mxu0 0.0
        %5796 = vmatpush2.msra.mxu0 0.0
        %5797 = vmatprep.subr.mxu0 0.0
        %5798 = vmatpush2.msra.mxu0 0.0
        %5799 = vmatprep.subr.mxu0 0.0
        %5800 = vmatpush2.msra.mxu0 0.0
        %5801 = vmatprep.subr.mxu0 0.0
        %5802 = vmatpush2.msra.mxu0 0.0
        %5803 = vmatprep.subr.mxu0 0.0
        %5804 = vmatpush2.msra.mxu0 0.0
        %5805 = vmatprep.subr.mxu0 0.0
        %5806 = vmatpush2.msra.mxu0 0.0
        %5807 = vmatprep.subr.mxu0 0.0
        %5808 = vmatpush2.msra.mxu0 0.0
        %5809 = vmatprep.subr.mxu0 0.0
        %5810 = vmatpush2.msra.mxu0 0.0
        %5811 = vmatprep.subr.mxu0 0.0
        %5812 = vmatpush2.msra.mxu0 0.0
        %5813 = vmatprep.subr.mxu0 0.0
        %5814 = vmatpush2.msra.mxu0 0.0
        %5815 = vmatprep.subr.mxu0 0.0
        %5816 = vmatpush2.msra.mxu0 0.0
        %5817 = vmatprep.subr.mxu0 0.0
        %5818 = vmatpush2.msra.mxu0 0.0
        %5819 = vmatprep.subr.mxu0 0.0
        %5820 = vmatpush2.msra.mxu0 0.0
        %5821 = vmatprep.subr.mxu0 0.0
        %5822 = vmatpush2.msra.mxu0 0.0
        %5823 = vmatprep.mubr.f32.mxu0 0.0
        %v5824 = vand.u32 %v5753, 4294901760
        %v5825 = vsub.f32 %v5753, %v5824
        %v5826 = vand.u32 %v5825, 4294901760
        %v5827 = vsub.f32 %v5825, %v5826
        %v5828 = vand.u32 %v5827, 4294901760
        %5829 = vmatmul.mubr.f32.gmra.mxu0 %v5828
        %v5830 = vpop.f32.mrf.mxu0
        %v5831 = vadd.f32 %v5750, %v5830
        %v5832 = vpop.f32.mrf.mxu0
        %5833 = vdwg.mxu0
        %5834 = vmatprep.subr.mxu0 0.0
        %5835 = vmatpush1.msra.mxu0 0.0
        %5836 = vmatprep.subr.mxu0 0.0
        %5837 = vmatpush1.msra.mxu0 0.0
        %5838 = vmatprep.subr.mxu0 0.0
        %5839 = vmatpush1.msra.mxu0 0.0
        %5840 = vmatprep.subr.mxu0 0.0
        %5841 = vmatpush1.msra.mxu0 0.0
        %5842 = vmatprep.subr.mxu0 0.0
        %5843 = vmatpush1.msra.mxu0 0.0
        %5844 = vmatprep.subr.mxu0 0.0
        %5845 = vmatpush1.msra.mxu0 0.0
        %5846 = vmatprep.subr.mxu0 0.0
        %5847 = vmatpush1.msra.mxu0 0.0
        %5848 = vmatprep.subr.mxu0 0.0
        %5849 = vmatpush1.msra.mxu0 0.0
        %5850 = vmatprep.subr.mxu0 0.0
        %5851 = vmatpush1.msra.mxu0 0.0
        %5852 = vmatprep.subr.mxu0 0.0
        %5853 = vmatpush1.msra.mxu0 0.0
        %5854 = vmatprep.subr.mxu0 0.0
        %5855 = vmatpush1.msra.mxu0 0.0
        %5856 = vmatprep.subr.mxu0 0.0
        %5857 = vmatpush1.msra.mxu0 0.0
        %5858 = vmatprep.subr.mxu0 0.0
        %v5859 = vand.u32 %v5744, 4294901760
        %v5860 = vsub.f32 %v5744, %v5859
        %v5861 = vand.u32 %v5860, 4294901760
        %v5862 = vsub.f32 %v5860, %v5861
        %v5863 = vand.u32 %v5862, 4294901760
        %5864 = vmatpush1.msra.mxu0 %v5863
        %5865 = vmatprep.subr.mxu0 0.0
        %v5866 = vand.u32 %v5743, 4294901760
        %v5867 = vsub.f32 %v5743, %v5866
        %v5868 = vand.u32 %v5867, 4294901760
        %v5869 = vsub.f32 %v5867, %v5868
        %v5870 = vand.u32 %v5869, 4294901760
        %5871 = vmatpush1.msra.mxu0 %v5870
        %5872 = vmatprep.subr.mxu0 0.0
        %v5873 = vand.u32 %v5742, 4294901760
        %v5874 = vsub.f32 %v5742, %v5873
        %v5875 = vand.u32 %v5874, 4294901760
        %v5876 = vsub.f32 %v5874, %v5875
        %v5877 = vand.u32 %v5876, 4294901760
        %5878 = vmatpush1.msra.mxu0 %v5877
        %5879 = vmatprep.subr.mxu0 0.0
        %v5880 = vand.u32 %v5741, 4294901760
        %v5881 = vsub.f32 %v5741, %v5880
        %v5882 = vand.u32 %v5881, 4294901760
        %v5883 = vsub.f32 %v5881, %v5882
        %v5884 = vand.u32 %v5883, 4294901760
        %5885 = vmatpush1.msra.mxu0 %v5884
        %5886 = vmatprep.subr.mxu0 0.0
        %5887 = vmatpush2.msra.mxu0 0.0
        %5888 = vmatprep.subr.mxu0 0.0
        %5889 = vmatpush2.msra.mxu0 0.0
        %5890 = vmatprep.subr.mxu0 0.0
        %5891 = vmatpush2.msra.mxu0 0.0
        %5892 = vmatprep.subr.mxu0 0.0
        %5893 = vmatpush2.msra.mxu0 0.0
        %5894 = vmatprep.subr.mxu0 0.0
        %5895 = vmatpush2.msra.mxu0 0.0
        %5896 = vmatprep.subr.mxu0 0.0
        %5897 = vmatpush2.msra.mxu0 0.0
        %5898 = vmatprep.subr.mxu0 0.0
        %5899 = vmatpush2.msra.mxu0 0.0
        %5900 = vmatprep.subr.mxu0 0.0
        %5901 = vmatpush2.msra.mxu0 0.0
        %5902 = vmatprep.subr.mxu0 0.0
        %5903 = vmatpush2.msra.mxu0 0.0
        %5904 = vmatprep.subr.mxu0 0.0
        %5905 = vmatpush2.msra.mxu0 0.0
        %5906 = vmatprep.subr.mxu0 0.0
        %5907 = vmatpush2.msra.mxu0 0.0
        %5908 = vmatprep.subr.mxu0 0.0
        %5909 = vmatpush2.msra.mxu0 0.0
        %5910 = vmatprep.subr.mxu0 0.0
        %5911 = vmatpush2.msra.mxu0 0.0
        %5912 = vmatprep.subr.mxu0 0.0
        %5913 = vmatpush2.msra.mxu0 0.0
        %5914 = vmatprep.subr.mxu0 0.0
        %5915 = vmatpush2.msra.mxu0 0.0
        %5916 = vmatprep.subr.mxu0 0.0
        %5917 = vmatpush2.msra.mxu0 0.0
        %5918 = vmatprep.mubr.f32.mxu0 0.0
        %v5919 = vand.u32 %v5753, 4294901760
        %5920 = vmatmul.mubr.f32.gmra.mxu0 %v5919
        %v5921 = vpop.f32.mrf.mxu0
        %v5922 = vadd.f32 %v5831, %v5921
        %v5923 = vpop.f32.mrf.mxu0
        %5924 = vdwg.mxu0
        %5925 = vmatprep.subr.mxu0 0.0
        %5926 = vmatpush1.msra.mxu0 0.0
        %5927 = vmatprep.subr.mxu0 0.0
        %5928 = vmatpush1.msra.mxu0 0.0
        %5929 = vmatprep.subr.mxu0 0.0
        %5930 = vmatpush1.msra.mxu0 0.0
        %5931 = vmatprep.subr.mxu0 0.0
        %5932 = vmatpush1.msra.mxu0 0.0
        %5933 = vmatprep.subr.mxu0 0.0
        %5934 = vmatpush1.msra.mxu0 0.0
        %5935 = vmatprep.subr.mxu0 0.0
        %5936 = vmatpush1.msra.mxu0 0.0
        %5937 = vmatprep.subr.mxu0 0.0
        %5938 = vmatpush1.msra.mxu0 0.0
        %5939 = vmatprep.subr.mxu0 0.0
        %5940 = vmatpush1.msra.mxu0 0.0
        %5941 = vmatprep.subr.mxu0 0.0
        %5942 = vmatpush1.msra.mxu0 0.0
        %5943 = vmatprep.subr.mxu0 0.0
        %5944 = vmatpush1.msra.mxu0 0.0
        %5945 = vmatprep.subr.mxu0 0.0
        %5946 = vmatpush1.msra.mxu0 0.0
        %5947 = vmatprep.subr.mxu0 0.0
        %5948 = vmatpush1.msra.mxu0 0.0
        %5949 = vmatprep.subr.mxu0 0.0
        %v5950 = vand.u32 %v5744, 4294901760
        %v5951 = vsub.f32 %v5744, %v5950
        %5952 = vmatpush1.msra.mxu0 %v5951
        %5953 = vmatprep.subr.mxu0 0.0
        %v5954 = vand.u32 %v5743, 4294901760
        %v5955 = vsub.f32 %v5743, %v5954
        %5956 = vmatpush1.msra.mxu0 %v5955
        %5957 = vmatprep.subr.mxu0 0.0
        %v5958 = vand.u32 %v5742, 4294901760
        %v5959 = vsub.f32 %v5742, %v5958
        %5960 = vmatpush1.msra.mxu0 %v5959
        %5961 = vmatprep.subr.mxu0 0.0
        %v5962 = vand.u32 %v5741, 4294901760
        %v5963 = vsub.f32 %v5741, %v5962
        %5964 = vmatpush1.msra.mxu0 %v5963
        %5965 = vmatprep.subr.mxu0 0.0
        %5966 = vmatpush2.msra.mxu0 0.0
        %5967 = vmatprep.subr.mxu0 0.0
        %5968 = vmatpush2.msra.mxu0 0.0
        %5969 = vmatprep.subr.mxu0 0.0
        %5970 = vmatpush2.msra.mxu0 0.0
        %5971 = vmatprep.subr.mxu0 0.0
        %5972 = vmatpush2.msra.mxu0 0.0
        %5973 = vmatprep.subr.mxu0 0.0
        %5974 = vmatpush2.msra.mxu0 0.0
        %5975 = vmatprep.subr.mxu0 0.0
        %5976 = vmatpush2.msra.mxu0 0.0
        %5977 = vmatprep.subr.mxu0 0.0
        %5978 = vmatpush2.msra.mxu0 0.0
        %5979 = vmatprep.subr.mxu0 0.0
        %5980 = vmatpush2.msra.mxu0 0.0
        %5981 = vmatprep.subr.mxu0 0.0
        %5982 = vmatpush2.msra.mxu0 0.0
        %5983 = vmatprep.subr.mxu0 0.0
        %5984 = vmatpush2.msra.mxu0 0.0
        %5985 = vmatprep.subr.mxu0 0.0
        %5986 = vmatpush2.msra.mxu0 0.0
        %5987 = vmatprep.subr.mxu0 0.0
        %5988 = vmatpush2.msra.mxu0 0.0
        %5989 = vmatprep.subr.mxu0 0.0
        %5990 = vmatpush2.msra.mxu0 0.0
        %5991 = vmatprep.subr.mxu0 0.0
        %5992 = vmatpush2.msra.mxu0 0.0
        %5993 = vmatprep.subr.mxu0 0.0
        %5994 = vmatpush2.msra.mxu0 0.0
        %5995 = vmatprep.subr.mxu0 0.0
        %5996 = vmatpush2.msra.mxu0 0.0
        %5997 = vmatprep.mubr.f32.mxu0 0.0
        %v5998 = vand.u32 %v5753, 4294901760
        %v5999 = vsub.f32 %v5753, %v5998
        %6000 = vmatmul.mubr.f32.gmra.mxu0 %v5999
        %v6001 = vpop.f32.mrf.mxu0
        %v6002 = vadd.f32 %v5922, %v6001
        %v6003 = vpop.f32.mrf.mxu0
        %6004 = vdwg.mxu0
        %6005 = vmatprep.subr.mxu0 0.0
        %6006 = vmatpush1.msra.mxu0 0.0
        %6007 = vmatprep.subr.mxu0 0.0
        %6008 = vmatpush1.msra.mxu0 0.0
        %6009 = vmatprep.subr.mxu0 0.0
        %6010 = vmatpush1.msra.mxu0 0.0
        %6011 = vmatprep.subr.mxu0 0.0
        %6012 = vmatpush1.msra.mxu0 0.0
        %6013 = vmatprep.subr.mxu0 0.0
        %6014 = vmatpush1.msra.mxu0 0.0
        %6015 = vmatprep.subr.mxu0 0.0
        %6016 = vmatpush1.msra.mxu0 0.0
        %6017 = vmatprep.subr.mxu0 0.0
        %6018 = vmatpush1.msra.mxu0 0.0
        %6019 = vmatprep.subr.mxu0 0.0
        %6020 = vmatpush1.msra.mxu0 0.0
        %6021 = vmatprep.subr.mxu0 0.0
        %6022 = vmatpush1.msra.mxu0 0.0
        %6023 = vmatprep.subr.mxu0 0.0
        %6024 = vmatpush1.msra.mxu0 0.0
        %6025 = vmatprep.subr.mxu0 0.0
        %6026 = vmatpush1.msra.mxu0 0.0
        %6027 = vmatprep.subr.mxu0 0.0
        %6028 = vmatpush1.msra.mxu0 0.0
        %6029 = vmatprep.subr.mxu0 0.0
        %v6030 = vand.u32 %v5744, 4294901760
        %6031 = vmatpush1.msra.mxu0 %v6030
        %6032 = vmatprep.subr.mxu0 0.0
        %v6033 = vand.u32 %v5743, 4294901760
        %6034 = vmatpush1.msra.mxu0 %v6033
        %6035 = vmatprep.subr.mxu0 0.0
        %v6036 = vand.u32 %v5742, 4294901760
        %6037 = vmatpush1.msra.mxu0 %v6036
        %6038 = vmatprep.subr.mxu0 0.0
        %v6039 = vand.u32 %v5741, 4294901760
        %6040 = vmatpush1.msra.mxu0 %v6039
        %6041 = vmatprep.subr.mxu0 0.0
        %6042 = vmatpush2.msra.mxu0 0.0
        %6043 = vmatprep.subr.mxu0 0.0
        %6044 = vmatpush2.msra.mxu0 0.0
        %6045 = vmatprep.subr.mxu0 0.0
        %6046 = vmatpush2.msra.mxu0 0.0
        %6047 = vmatprep.subr.mxu0 0.0
        %6048 = vmatpush2.msra.mxu0 0.0
        %6049 = vmatprep.subr.mxu0 0.0
        %6050 = vmatpush2.msra.mxu0 0.0
        %6051 = vmatprep.subr.mxu0 0.0
        %6052 = vmatpush2.msra.mxu0 0.0
        %6053 = vmatprep.subr.mxu0 0.0
        %6054 = vmatpush2.msra.mxu0 0.0
        %6055 = vmatprep.subr.mxu0 0.0
        %6056 = vmatpush2.msra.mxu0 0.0
        %6057 = vmatprep.subr.mxu0 0.0
        %6058 = vmatpush2.msra.mxu0 0.0
        %6059 = vmatprep.subr.mxu0 0.0
        %6060 = vmatpush2.msra.mxu0 0.0
        %6061 = vmatprep.subr.mxu0 0.0
        %6062 = vmatpush2.msra.mxu0 0.0
        %6063 = vmatprep.subr.mxu0 0.0
        %6064 = vmatpush2.msra.mxu0 0.0
        %6065 = vmatprep.subr.mxu0 0.0
        %6066 = vmatpush2.msra.mxu0 0.0
        %6067 = vmatprep.subr.mxu0 0.0
        %6068 = vmatpush2.msra.mxu0 0.0
        %6069 = vmatprep.subr.mxu0 0.0
        %6070 = vmatpush2.msra.mxu0 0.0
        %6071 = vmatprep.subr.mxu0 0.0
        %6072 = vmatpush2.msra.mxu0 0.0
        %6073 = vmatprep.mubr.f32.mxu0 0.0
        %v6074 = vand.u32 %v5753, 4294901760
        %v6075 = vsub.f32 %v5753, %v6074
        %v6076 = vand.u32 %v6075, 4294901760
        %6077 = vmatmul.mubr.f32.gmra.mxu0 %v6076
        %v6078 = vpop.f32.mrf.mxu0
        %v6079 = vadd.f32 %v6002, %v6078
        %v6080 = vpop.f32.mrf.mxu0
        %6081 = vdwg.mxu0
        %6082 = vmatprep.subr.mxu0 0.0
        %6083 = vmatpush1.msra.mxu0 0.0
        %6084 = vmatprep.subr.mxu0 0.0
        %6085 = vmatpush1.msra.mxu0 0.0
        %6086 = vmatprep.subr.mxu0 0.0
        %6087 = vmatpush1.msra.mxu0 0.0
        %6088 = vmatprep.subr.mxu0 0.0
        %6089 = vmatpush1.msra.mxu0 0.0
        %6090 = vmatprep.subr.mxu0 0.0
        %6091 = vmatpush1.msra.mxu0 0.0
        %6092 = vmatprep.subr.mxu0 0.0
        %6093 = vmatpush1.msra.mxu0 0.0
        %6094 = vmatprep.subr.mxu0 0.0
        %6095 = vmatpush1.msra.mxu0 0.0
        %6096 = vmatprep.subr.mxu0 0.0
        %6097 = vmatpush1.msra.mxu0 0.0
        %6098 = vmatprep.subr.mxu0 0.0
        %6099 = vmatpush1.msra.mxu0 0.0
        %6100 = vmatprep.subr.mxu0 0.0
        %6101 = vmatpush1.msra.mxu0 0.0
        %6102 = vmatprep.subr.mxu0 0.0
        %6103 = vmatpush1.msra.mxu0 0.0
        %6104 = vmatprep.subr.mxu0 0.0
        %6105 = vmatpush1.msra.mxu0 0.0
        %6106 = vmatprep.subr.mxu0 0.0
        %v6107 = vand.u32 %v5744, 4294901760
        %v6108 = vsub.f32 %v5744, %v6107
        %v6109 = vand.u32 %v6108, 4294901760
        %6110 = vmatpush1.msra.mxu0 %v6109
        %6111 = vmatprep.subr.mxu0 0.0
        %v6112 = vand.u32 %v5743, 4294901760
        %v6113 = vsub.f32 %v5743, %v6112
        %v6114 = vand.u32 %v6113, 4294901760
        %6115 = vmatpush1.msra.mxu0 %v6114
        %6116 = vmatprep.subr.mxu0 0.0
        %v6117 = vand.u32 %v5742, 4294901760
        %v6118 = vsub.f32 %v5742, %v6117
        %v6119 = vand.u32 %v6118, 4294901760
        %6120 = vmatpush1.msra.mxu0 %v6119
        %6121 = vmatprep.subr.mxu0 0.0
        %v6122 = vand.u32 %v5741, 4294901760
        %v6123 = vsub.f32 %v5741, %v6122
        %v6124 = vand.u32 %v6123, 4294901760
        %6125 = vmatpush1.msra.mxu0 %v6124
        %6126 = vmatprep.subr.mxu0 0.0
        %6127 = vmatpush2.msra.mxu0 0.0
        %6128 = vmatprep.subr.mxu0 0.0
        %6129 = vmatpush2.msra.mxu0 0.0
        %6130 = vmatprep.subr.mxu0 0.0
        %6131 = vmatpush2.msra.mxu0 0.0
        %6132 = vmatprep.subr.mxu0 0.0
        %6133 = vmatpush2.msra.mxu0 0.0
        %6134 = vmatprep.subr.mxu0 0.0
        %6135 = vmatpush2.msra.mxu0 0.0
        %6136 = vmatprep.subr.mxu0 0.0
        %6137 = vmatpush2.msra.mxu0 0.0
        %6138 = vmatprep.subr.mxu0 0.0
        %6139 = vmatpush2.msra.mxu0 0.0
        %6140 = vmatprep.subr.mxu0 0.0
        %6141 = vmatpush2.msra.mxu0 0.0
        %6142 = vmatprep.subr.mxu0 0.0
        %6143 = vmatpush2.msra.mxu0 0.0
        %6144 = vmatprep.subr.mxu0 0.0
        %6145 = vmatpush2.msra.mxu0 0.0
        %6146 = vmatprep.subr.mxu0 0.0
        %6147 = vmatpush2.msra.mxu0 0.0
        %6148 = vmatprep.subr.mxu0 0.0
        %6149 = vmatpush2.msra.mxu0 0.0
        %6150 = vmatprep.subr.mxu0 0.0
        %6151 = vmatpush2.msra.mxu0 0.0
        %6152 = vmatprep.subr.mxu0 0.0
        %6153 = vmatpush2.msra.mxu0 0.0
        %6154 = vmatprep.subr.mxu0 0.0
        %6155 = vmatpush2.msra.mxu0 0.0
        %6156 = vmatprep.subr.mxu0 0.0
        %6157 = vmatpush2.msra.mxu0 0.0
        %6158 = vmatprep.mubr.f32.mxu0 0.0
        %v6159 = vand.u32 %v5753, 4294901760
        %6160 = vmatmul.mubr.f32.gmra.mxu0 %v6159
        %v6161 = vpop.f32.mrf.mxu0
        %v6162 = vadd.f32 %v6079, %v6161
        %v6163 = vpop.f32.mrf.mxu0
        %6164 = vdwg.mxu0
        %6165 = vmatprep.subr.mxu0 0.0
        %6166 = vmatpush1.msra.mxu0 0.0
        %6167 = vmatprep.subr.mxu0 0.0
        %6168 = vmatpush1.msra.mxu0 0.0
        %6169 = vmatprep.subr.mxu0 0.0
        %6170 = vmatpush1.msra.mxu0 0.0
        %6171 = vmatprep.subr.mxu0 0.0
        %6172 = vmatpush1.msra.mxu0 0.0
        %6173 = vmatprep.subr.mxu0 0.0
        %6174 = vmatpush1.msra.mxu0 0.0
        %6175 = vmatprep.subr.mxu0 0.0
        %6176 = vmatpush1.msra.mxu0 0.0
        %6177 = vmatprep.subr.mxu0 0.0
        %6178 = vmatpush1.msra.mxu0 0.0
        %6179 = vmatprep.subr.mxu0 0.0
        %6180 = vmatpush1.msra.mxu0 0.0
        %6181 = vmatprep.subr.mxu0 0.0
        %6182 = vmatpush1.msra.mxu0 0.0
        %6183 = vmatprep.subr.mxu0 0.0
        %6184 = vmatpush1.msra.mxu0 0.0
        %6185 = vmatprep.subr.mxu0 0.0
        %6186 = vmatpush1.msra.mxu0 0.0
        %6187 = vmatprep.subr.mxu0 0.0
        %6188 = vmatpush1.msra.mxu0 0.0
        %6189 = vmatprep.subr.mxu0 0.0
        %v6190 = vand.u32 %v5744, 4294901760
        %6191 = vmatpush1.msra.mxu0 %v6190
        %6192 = vmatprep.subr.mxu0 0.0
        %v6193 = vand.u32 %v5743, 4294901760
        %6194 = vmatpush1.msra.mxu0 %v6193
        %6195 = vmatprep.subr.mxu0 0.0
        %v6196 = vand.u32 %v5742, 4294901760
        %6197 = vmatpush1.msra.mxu0 %v6196
        %6198 = vmatprep.subr.mxu0 0.0
        %v6199 = vand.u32 %v5741, 4294901760
        %6200 = vmatpush1.msra.mxu0 %v6199
        %6201 = vmatprep.subr.mxu0 0.0
        %6202 = vmatpush2.msra.mxu0 0.0
        %6203 = vmatprep.subr.mxu0 0.0
        %6204 = vmatpush2.msra.mxu0 0.0
        %6205 = vmatprep.subr.mxu0 0.0
        %6206 = vmatpush2.msra.mxu0 0.0
        %6207 = vmatprep.subr.mxu0 0.0
        %6208 = vmatpush2.msra.mxu0 0.0
        %6209 = vmatprep.subr.mxu0 0.0
        %6210 = vmatpush2.msra.mxu0 0.0
        %6211 = vmatprep.subr.mxu0 0.0
        %6212 = vmatpush2.msra.mxu0 0.0
        %6213 = vmatprep.subr.mxu0 0.0
        %6214 = vmatpush2.msra.mxu0 0.0
        %6215 = vmatprep.subr.mxu0 0.0
        %6216 = vmatpush2.msra.mxu0 0.0
        %6217 = vmatprep.subr.mxu0 0.0
        %6218 = vmatpush2.msra.mxu0 0.0
        %6219 = vmatprep.subr.mxu0 0.0
        %6220 = vmatpush2.msra.mxu0 0.0
        %6221 = vmatprep.subr.mxu0 0.0
        %6222 = vmatpush2.msra.mxu0 0.0
        %6223 = vmatprep.subr.mxu0 0.0
        %6224 = vmatpush2.msra.mxu0 0.0
        %6225 = vmatprep.subr.mxu0 0.0
        %6226 = vmatpush2.msra.mxu0 0.0
        %6227 = vmatprep.subr.mxu0 0.0
        %6228 = vmatpush2.msra.mxu0 0.0
        %6229 = vmatprep.subr.mxu0 0.0
        %6230 = vmatpush2.msra.mxu0 0.0
        %6231 = vmatprep.subr.mxu0 0.0
        %6232 = vmatpush2.msra.mxu0 0.0
        %6233 = vmatprep.mubr.f32.mxu0 0.0
        %v6234 = vand.u32 %v5753, 4294901760
        %6235 = vmatmul.mubr.f32.gmra.mxu0 %v6234
        %v6236 = vpop.f32.mrf.mxu0
        %v6237 = vadd.f32 %v6162, %v6236
        %v6238 = vpop.f32.mrf.mxu0
        %6239 = vdwg.mxu0
        %v6240 = vadd.f32 %v524, %v6237
        %6241 = vst.msk [vmem:[%s523] sm:$0xff] %vm527, %v6240
        %s6242 = sand.u32 %s318, 1
        %s6243 = scalar_lea.sflag [#allocation5], %s6242
        %s6244 = sand.u32 %s318, 1
        %s6245 = smul.addr %s6244, 8
        %s6246 = scalar_lea.vmem [#allocation14], %s6245
        // Predicated region
        $region93: #{tpu_custom_call.1} parent=67 // pred_check
          %p6247 = pneg %p328
        $region94: #{tpu_custom_call.1} parent=67 // pred_check_branch
          %6249 = sbr.rel (%p6247) target = $region96
        $region95: #{tpu_custom_call.1} parent=67 // pred_region
          %s6251 = ssub.s32 128, 128
          %6252 = vsyncadd %s6243, %s6251
          %s6253 = sadd.s32 %s37, %s36
          %s6254 = smul.addr %s6253, 128
          %s6255 = scalar_lea.hbm %s12, %s6254
          %s6257 = sshll.u32 %s6246, 4
          %s6258 = int_to_ptr.vmem [resolvable:$true] %s6257
          %6260 = dma.vmem_to_hbm [thread:$0]  %s6258, 128, %s6255, %s6243
        $region96: #{tpu_custom_call.1} parent=67 // pred_fallthru
          _
      $region68: #{tpu_custom_call.1} parent=5 // pred_fallthru
        _
      %p6261 = scmp.le.s32.totalorder 2, %s27
      // Predicated region
      $region97: #{tpu_custom_call.1} parent=5 // pred_check
        %p6262 = pneg %p6261
      $region98: #{tpu_custom_call.1} parent=5 // pred_check_branch
        %6264 = sbr.rel (%p6262) target = $region100
      $region99: #{tpu_custom_call.1} parent=5 // pred_region
        %s6265 = ssub.s32 %s27, 2
        // Predicated region
        $region101: #{tpu_custom_call.1} parent=99 // pred_check
          %p6266 = pneg %p334
        $region102: #{tpu_custom_call.1} parent=99 // pred_check_branch
          %6268 = sbr.rel (%p6266) target = $region104
        $region103: #{tpu_custom_call.1} parent=99 // pred_region
          %s6269 = sand.u32 %s319, 1
          %s6270 = scalar_lea.sflag [#allocation5], %s6269
          %s6271 = sand.u32 %s319, 1
          %s6272 = smul.addr %s6271, 8
          %s6273 = scalar_lea.vmem [#allocation14], %s6272
          %6274 = dma.done %s6270, 128
        $region104: #{tpu_custom_call.1} parent=99 // pred_fallthru
          _
      $region100: #{tpu_custom_call.1} parent=5 // pred_fallthru
        _
    $region6: #{tpu_custom_call.1} parent=1 // loop_footer
      %s31 = sadd.s32 1, %s27
    $region7: #{tpu_custom_call.1} parent=1 // loop_footer_branch
      %26 = sbr.rel target = $region3
    $region8: #{tpu_custom_call.1} parent=1 // loop_exit
      _
    %6275 = vsyncpa [#allocation4], 1
    %s6276 = scalar_lea.sflag [#allocation4], 1
    %6277 = vsyncpa %s6276, 1
    %6278 = vsyncpa [#allocation7], 1
    %6279 = vsyncpa [#allocation10], 1
    %6280 = vsyncpa [#allocation13], 1
    %6281 = vsyncpa [#allocation5], 1
    %s6282 = scalar_lea.sflag [#allocation5], 1
    %6283 = vsyncpa %s6282, 1

</llo_original>
